<compile_context>
chip_gen: v5e
topology: v5e:2x2
jax: 0.10.0
libtpu: 0.0.40
codegen_flags: <defaults>
</compile_context>

<pallas_src>
import functools

import jax
import jax.numpy as jnp
from jax.experimental import pallas as pl
from jax.experimental.pallas import tpu as pltpu

_EPS = 1e-5
_LANE = 128
_VMEM = pl.BlockSpec(memory_space=pltpu.MemorySpace.VMEM)


def _round_up(x, m):
    return ((x + m - 1) // m) * m


# ----------------------------------------------------------------------------
# Fused BasicBlock kernel
# ----------------------------------------------------------------------------
def _basic_block_kernel(*refs, K, stride, has_shortcut, matmul_dtype):
    if has_shortcut:
        (x_ref, w1_ref, g1_ref, b1_ref, w2_ref, g2_ref, b2_ref,
         wsc_ref, gsc_ref, bsc_ref, o_ref, xp_s, yp_s) = refs
    else:
        (x_ref, w1_ref, g1_ref, b1_ref, w2_ref, g2_ref, b2_ref,
         wsc_ref, o_ref, xp_s, yp_s) = refs
        gsc_ref = bsc_ref = None

    p = K // 2
    N, H, W, Cin8 = x_ref.shape        # channels pre-padded to a multiple of 8
    _, Ho, Wo, Cpad = o_ref.shape      # output channels padded to 128 (lane-dense)
    Cout8 = w2_ref.shape[1]
    M = N * Ho * Wo

    def mm(a, w):
        # bf16 MXU matmul, f32 accumulation (native on v5e/v6e/v7x).
        return jnp.dot(a.astype(matmul_dtype), w,
                       preferred_element_type=jnp.float32)

    def bn(z, g, b):
        # Training-mode batch statistics, biased variance, single sweep
        # (var = E[z^2] - mean^2; clamp guards cancellation).  Padded output
        # channels are exactly zero -> normalized to beta (= 0 for pads).
        inv_n = 1.0 / float(z.shape[0])
        mean = jnp.sum(z, axis=0, keepdims=True) * inv_n
        mean_sq = jnp.sum(z * z, axis=0, keepdims=True) * inv_n
        var = jnp.maximum(mean_sq - mean * mean, 0.0)
        return (z - mean) * jax.lax.rsqrt(var + _EPS) * g + b

    def halo_pad(scr, val, h, w):
        # Zero only the K//2 halo strips; the interior is written directly
        # (no full zeros pass over the whole padded buffer).
        c = scr.shape[-1]
        if p > 0:
            zrow = jnp.zeros((N, p, w + 2 * p, c), scr.dtype)
            scr[:, 0:p, :, :] = zrow
            scr[:, p + h:p + h + p, :, :] = zrow
            zcol = jnp.zeros((N, h, p, c), scr.dtype)
            scr[:, p:p + h, 0:p, :] = zcol
            scr[:, p:p + h, p + w:p + w + p, :] = zcol
        scr[:, p:p + h, p:p + w, :] = val.astype(scr.dtype)

    def conv(xpad_ref, w_ref, s, ho, wo):
        # Direct convolution: per-tap (M, C) x (C, Cpad) MXU matmuls accumulated
        # in f32 -- no (M, K*K*Cpad) im2col temporary, no zero-padded reduction.
        xpad = xpad_ref[...]
        m = N * ho * wo
        acc = jnp.zeros((m, Cpad), jnp.float32)
        for kh in range(K):
            for kw in range(K):
                tap = xpad[:, kh:kh + (ho - 1) * s + 1:s,
                              kw:kw + (wo - 1) * s + 1:s, :]
                acc = acc + mm(tap.reshape(m, -1), w_ref[kh * K + kw])
        return acc

    # ---- stage 1: conv1 -> bn1 -> relu --------------------------------------
    halo_pad(xp_s, x_ref[...], H, W)
    h1 = conv(xp_s, w1_ref, stride, Ho, Wo)                       # (M, Cpad)
    y = jnp.maximum(bn(h1, g1_ref[...], b1_ref[...]), 0.0)

    # ---- stage 2: conv2 -> bn2 (y stays VMEM-resident, never hits HBM) ------
    halo_pad(yp_s, y.reshape(N, Ho, Wo, Cpad)[:, :, :, 0:Cout8], Ho, Wo)
    h2 = bn(conv(yp_s, w2_ref, 1, Ho, Wo), g2_ref[...], b2_ref[...])

    # ---- shortcut: the stride-s center tap of padded x IS the subsampled x --
    xs = xp_s[...][:, p:p + (Ho - 1) * stride + 1:stride,
                      p:p + (Wo - 1) * stride + 1:stride, :].reshape(M, Cin8)
    if has_shortcut:
        sc = bn(mm(xs, wsc_ref[...]), gsc_ref[...], bsc_ref[...])
    else:
        # wsc is a lane-placement identity (Cin == Cout); keeps the add lane-dense.
        sc = mm(xs, wsc_ref[...])

    out = jnp.maximum(h2 + sc, 0.0)
    o_ref[...] = out.reshape(N, Ho, Wo, Cpad).astype(o_ref.dtype)  # lane-dense store


# ----------------------------------------------------------------------------
# BasicBlock module (parameters initialized deterministically in-script)
# ----------------------------------------------------------------------------
class BasicBlockPallas:
    def __init__(self, in_channels, out_channels, kernel_size, stride=1, *,
                 key, matmul_dtype=jnp.bfloat16):
        k1, k2, k3 = jax.random.split(key, 3)
        K = kernel_size
        self.K = K
        self.cin = in_channels
        self.cout = out_channels
        self.stride = stride
        self.cin8 = _round_up(in_channels, 8)     # contraction dim (conv1 / shortcut)
        self.cout8 = _round_up(out_channels, 8)   # contraction dim (conv2)
        self.cpad = _round_up(out_channels, _LANE)  # lane-dense output channels
        self.matmul_dtype = matmul_dtype

        scale1 = (2.0 / (in_channels * K * K)) ** 0.5
        scale2 = (2.0 / (out_channels * K * K)) ** 0.5
        # torch-layout conv weights (Cout, Cin, Kh, Kw), no bias
        self.w1 = scale1 * jax.random.normal(k1, (out_channels, in_channels, K, K), jnp.float32)
        self.w2 = scale2 * jax.random.normal(k2, (out_channels, out_channels, K, K), jnp.float32)
        # BatchNorm affine params (PyTorch default init: weight=1, bias=0)
        self.g1 = jnp.ones((1, out_channels), jnp.float32)
        self.b1 = jnp.zeros((1, out_channels), jnp.float32)
        self.g2 = jnp.ones((1, out_channels), jnp.float32)
        self.b2 = jnp.zeros((1, out_channels), jnp.float32)
        self.has_shortcut = (stride != 1) or (in_channels != out_channels)
        if self.has_shortcut:
            scale_sc = (2.0 / in_channels) ** 0.5
            self.w_sc = scale_sc * jax.random.normal(
                k3, (out_channels, in_channels, 1, 1), jnp.float32)
            self.g_sc = jnp.ones((1, out_channels), jnp.float32)
            self.b_sc = jnp.zeros((1, out_channels), jnp.float32)

    # ---- padded parameter tensors (trace-time; tiny one-off prep) ------------
    def _conv_taps(self, w, cin_pad):
        # torch (Cout, Cin, K, K) -> (K*K, cin_pad, Cpad), tap-major to match the
        # kernel's per-tap accumulation order; cast once to the MXU dtype.
        Cout, Cin, K, _ = w.shape
        taps = jnp.transpose(w, (2, 3, 1, 0)).reshape(K * K, Cin, Cout)
        mat = jnp.zeros((K * K, cin_pad, self.cpad), jnp.float32)
        mat = mat.at[:, :Cin, :Cout].set(taps)
        return mat.astype(self.matmul_dtype)

    def _shortcut_matrix(self):
        if self.has_shortcut:
            mat = jnp.zeros((self.cin8, self.cpad), jnp.float32)
            mat = mat.at[:self.cin, :self.cout].set(self.w_sc[:, :, 0, 0].T)
        else:
            # identity shortcut (Cin == Cout): lane-placement selection matrix
            mat = jnp.eye(self.cin8, self.cpad, dtype=jnp.float32)
        return mat.astype(self.matmul_dtype)

    def _bn_pad(self, g, b):
        Cpad = self.cpad
        gp = jnp.ones((1, Cpad), jnp.float32).at[:, :g.shape[1]].set(g)
        bp = jnp.zeros((1, Cpad), jnp.float32).at[:, :b.shape[1]].set(b)
        return gp, bp

    def __call__(self, x_nhwc, *, return_padded=False):
        N, H, W, Cin = x_nhwc.shape
        K, s, p = self.K, self.stride, self.K // 2
        Ho = (H + 2 * p - K) // s + 1
        Wo = (W + 2 * p - K) // s + 1
        Cpad, Cin8, Cout8 = self.cpad, self.cin8, self.cout8
        M = N * Ho * Wo

        # Pad input channels to a sublane multiple once, wrapper-side (tiny).
        if Cin8 > Cin:
            x_nhwc = jnp.pad(x_nhwc, ((0, 0), (0, 0), (0, 0), (0, Cin8 - Cin)))
        x_nhwc = x_nhwc.astype(jnp.float32)

        g1p, b1p = self._bn_pad(self.g1, self.b1)
        g2p, b2p = self._bn_pad(self.g2, self.b2)
        params = [self._conv_taps(self.w1, Cin8), g1p, b1p,
                  self._conv_taps(self.w2, Cout8), g2p, b2p,
                  self._shortcut_matrix()]
        if self.has_shortcut:
            gscp, bscp = self._bn_pad(self.g_sc, self.b_sc)
            params += [gscp, bscp]
        in_arrays = [x_nhwc, *params]

        kernel = functools.partial(
            _basic_block_kernel, K=K, stride=s,
            has_shortcut=self.has_shortcut, matmul_dtype=self.matmul_dtype)

        # Cost / VMEM sizing derived from the actual buffers (not hard-coded).
        flops = 2 * M * K * K * (Cin8 + Cout8) * Cpad + 2 * M * Cin8 * Cpad
        io_bytes = sum(int(a.size) * a.dtype.itemsize for a in in_arrays) \
            + M * Cpad * 4
        scratch_bytes = 4 * (N * (H + 2 * p) * (W + 2 * p) * Cin8
                             + N * (Ho + 2 * p) * (Wo + 2 * p) * Cout8)
        live_bytes = 8 * M * Cpad * 4          # h1/y/h2/sc/out values + spill slack
        vmem_limit = int(min(56 * 1024 * 1024,
                             max(16 * 1024 * 1024,
                                 2 * (io_bytes + scratch_bytes + live_bytes)
                                 + (4 << 20))))

        out_pad = pl.pallas_call(
            kernel,
            out_shape=jax.ShapeDtypeStruct((N, Ho, Wo, Cpad), jnp.float32),
            in_specs=[_VMEM] * len(in_arrays),
            out_specs=_VMEM,
            scratch_shapes=[
                pltpu.VMEM((N, H + 2 * p, W + 2 * p, Cin8), jnp.float32),    # padded x
                pltpu.VMEM((N, Ho + 2 * p, Wo + 2 * p, Cout8), jnp.float32),  # padded y
            ],
            compiler_params=pltpu.CompilerParams(vmem_limit_bytes=vmem_limit),
            cost_estimate=pl.CostEstimate(
                flops=int(flops), transcendentals=int(3 * Cpad),
                bytes_accessed=int(io_bytes)),
        )(*in_arrays)

        if return_padded:
            # Keep the lane-padded layout flowing into a following block (avoids
            # the wrapper-side slice / extra HBM traffic when Cout << 128).
            return out_pad
        return out_pad[..., :self.cout]

    # Pure-JAX reference (same NHWC layout, full-f32 conv) for correctness check.
    def reference(self, x_nhwc):
        def conv_ref(x, w, stride):
            K = w.shape[2]
            p = K // 2
            return jax.lax.conv_general_dilated(
                x, jnp.transpose(w, (2, 3, 1, 0)),
                window_strides=(stride, stride),
                padding=[(p, p), (p, p)],
                dimension_numbers=("NHWC", "HWIO", "NHWC"),
                precision=jax.lax.Precision.HIGHEST)

        def bn_ref(x, g, b):
            mean = jnp.mean(x, axis=(0, 1, 2), keepdims=True)
            var = jnp.mean((x - mean) ** 2, axis=(0, 1, 2), keepdims=True)
            return ((x - mean) * jax.lax.rsqrt(var + _EPS)
                    * g.reshape(1, 1, 1, -1) + b.reshape(1, 1, 1, -1))

        y = jax.nn.relu(bn_ref(conv_ref(x_nhwc, self.w1, self.stride), self.g1, self.b1))
        y = bn_ref(conv_ref(y, self.w2, 1), self.g2, self.b2)
        if self.has_shortcut:
            sc = bn_ref(conv_ref(x_nhwc, self.w_sc, self.stride), self.g_sc, self.b_sc)
        else:
            sc = x_nhwc
        return jax.nn.relu(y + sc)


if __name__ == "__main__":
    key = jax.random.PRNGKey(0)
    k_x, k_p = jax.random.split(key)

    # Small shapes consistent with the module (PyTorch NCHW input).
    N, Cin, H, W = 2, 4, 16, 16
    Cout, K, stride = 8, 3, 1          # Cin != Cout -> 1x1-conv + BN shortcut path

    x_nchw = jax.random.normal(k_x, (N, Cin, H, W), jnp.float32)
    x_nhwc = jnp.transpose(x_nchw, (0, 2, 3, 1))   # NCHW -> NHWC

    block = BasicBlockPallas(Cin, Cout, K, stride, key=k_p)

    out = block(x_nhwc)
    out = jax.block_until_ready(out)

    ref = block.reference(x_nhwc)
    assert out.shape == (N, H, W, Cout), out.shape
    assert bool(jnp.all(jnp.isfinite(out)))
    # bf16 MXU matmuls vs a HIGHEST-precision f32 reference (BN-normalized data):
    # observed max abs error ~1e-2, so 2e-2 is a meaningful but safe tolerance.
    max_err = float(jnp.max(jnp.abs(out - ref)))
    assert bool(jnp.allclose(out, ref, atol=2e-2, rtol=2e-2)), max_err

    print("KERNEL_OK")
</pallas_src>

<mosaic_0001>
module attributes {stable_mosaic.version = 11 : i64} {
  func.func @_basic_block_kernel(%arg0: memref<2x16x16x8xf32, #tpu.memory_space<vmem>>, %arg1: memref<9x8x128xbf16, #tpu.memory_space<vmem>>, %arg2: memref<1x128xf32, #tpu.memory_space<vmem>>, %arg3: memref<1x128xf32, #tpu.memory_space<vmem>>, %arg4: memref<9x8x128xbf16, #tpu.memory_space<vmem>>, %arg5: memref<1x128xf32, #tpu.memory_space<vmem>>, %arg6: memref<1x128xf32, #tpu.memory_space<vmem>>, %arg7: memref<8x128xbf16, #tpu.memory_space<vmem>>, %arg8: memref<1x128xf32, #tpu.memory_space<vmem>>, %arg9: memref<1x128xf32, #tpu.memory_space<vmem>>, %arg10: memref<2x16x16x128xf32, #tpu.memory_space<vmem>>, %arg11: memref<2x18x18x8xf32, #tpu.memory_space<vmem>>, %arg12: memref<2x18x18x8xf32, #tpu.memory_space<vmem>>) attributes {dimension_semantics = [], scalar_prefetch = 0 : i64, scratch_operands = 2 : i64, tpu.core_type = #tpu.core_type<tc>} {
    %c0 = arith.constant 0 : index
    %c0_0 = arith.constant 0 : index
    %c0_1 = arith.constant 0 : index
    %c0_2 = arith.constant 0 : index
    %0 = vector.load %arg0[%c0, %c0_0, %c0_1, %c0_2] : memref<2x16x16x8xf32, #tpu.memory_space<vmem>>, vector<2x16x16x8xf32>
    %cst = arith.constant 0.000000e+00 : f32
    %1 = vector.broadcast %cst : f32 to vector<2x1x18x8xf32>
    %c0_3 = arith.constant 0 : index
    %c0_4 = arith.constant 0 : index
    %c0_5 = arith.constant 0 : index
    %c0_6 = arith.constant 0 : index
    %2 = vector.load %arg11[%c0_3, %c0_4, %c0_5, %c0_6] : memref<2x18x18x8xf32, #tpu.memory_space<vmem>>, vector<2x1x18x8xf32>
    tpu.vector_store %arg11[%c0_3, %c0_4, %c0_5, %c0_6], %1 {strides = array<i32>} : memref<2x18x18x8xf32, #tpu.memory_space<vmem>>, vector<2x1x18x8xf32>,
    %c0_7 = arith.constant 0 : index
    %c17 = arith.constant 17 : index
    %c0_8 = arith.constant 0 : index
    %c0_9 = arith.constant 0 : index
    %3 = vector.load %arg11[%c0_7, %c17, %c0_8, %c0_9] : memref<2x18x18x8xf32, #tpu.memory_space<vmem>>, vector<2x1x18x8xf32>
    tpu.vector_store %arg11[%c0_7, %c17, %c0_8, %c0_9], %1 {strides = array<i32>} : memref<2x18x18x8xf32, #tpu.memory_space<vmem>>, vector<2x1x18x8xf32>,
    %cst_10 = arith.constant 0.000000e+00 : f32
    %4 = vector.broadcast %cst_10 : f32 to vector<2x16x1x8xf32>
    %c0_11 = arith.constant 0 : index
    %c1 = arith.constant 1 : index
    %c0_12 = arith.constant 0 : index
    %c0_13 = arith.constant 0 : index
    %5 = vector.load %arg11[%c0_11, %c1, %c0_12, %c0_13] : memref<2x18x18x8xf32, #tpu.memory_space<vmem>>, vector<2x16x1x8xf32>
    tpu.vector_store %arg11[%c0_11, %c1, %c0_12, %c0_13], %4 {strides = array<i32>} : memref<2x18x18x8xf32, #tpu.memory_space<vmem>>, vector<2x16x1x8xf32>,
    %c0_14 = arith.constant 0 : index
    %c1_15 = arith.constant 1 : index
    %c17_16 = arith.constant 17 : index
    %c0_17 = arith.constant 0 : index
    %6 = vector.load %arg11[%c0_14, %c1_15, %c17_16, %c0_17] : memref<2x18x18x8xf32, #tpu.memory_space<vmem>>, vector<2x16x1x8xf32>
    tpu.vector_store %arg11[%c0_14, %c1_15, %c17_16, %c0_17], %4 {strides = array<i32>} : memref<2x18x18x8xf32, #tpu.memory_space<vmem>>, vector<2x16x1x8xf32>,
    %c0_18 = arith.constant 0 : index
    %c1_19 = arith.constant 1 : index
    %c1_20 = arith.constant 1 : index
    %c0_21 = arith.constant 0 : index
    %7 = vector.load %arg11[%c0_18, %c1_19, %c1_20, %c0_21] : memref<2x18x18x8xf32, #tpu.memory_space<vmem>>, vector<2x16x16x8xf32>
    tpu.vector_store %arg11[%c0_18, %c1_19, %c1_20, %c0_21], %0 {strides = array<i32>} : memref<2x18x18x8xf32, #tpu.memory_space<vmem>>, vector<2x16x16x8xf32>,
    %c0_22 = arith.constant 0 : index
    %c0_23 = arith.constant 0 : index
    %c0_24 = arith.constant 0 : index
    %c0_25 = arith.constant 0 : index
    %8 = vector.load %arg11[%c0_22, %c0_23, %c0_24, %c0_25] : memref<2x18x18x8xf32, #tpu.memory_space<vmem>>, vector<2x18x18x8xf32>
    %cst_26 = arith.constant 0.000000e+00 : f32
    %9 = vector.broadcast %cst_26 : f32 to vector<512x128xf32>
    %10 = vector.extract_strided_slice %8 {offsets = [0, 0, 0, 0], sizes = [2, 16, 16, 8], strides = [1, 1, 1, 1]} : vector<2x18x18x8xf32> to vector<2x16x16x8xf32>
    %11 = vector.shape_cast %10 : vector<2x16x16x8xf32> to vector<512x8xf32>
    %c0_27 = arith.constant 0 : index
    %c0_28 = arith.constant 0 : index
    %c0_29 = arith.constant 0 : index
    %12 = vector.load %arg1[%c0_27, %c0_28, %c0_29] : memref<9x8x128xbf16, #tpu.memory_space<vmem>>, vector<1x8x128xbf16>
    %13 = vector.shape_cast %12 : vector<1x8x128xbf16> to vector<8x128xbf16>
    %14 = arith.truncf %11 : vector<512x8xf32> to vector<512x8xbf16>
    %cst_30 = arith.constant dense<0.000000e+00> : vector<512x128xf32>
    %15 = tpu.matmul %14, %13, %cst_30 {dimension_numbers = #tpu.dot_dimension_numbers<[1], [0], [0], [1], [0, 0, 1, 1], [], []>} : vector<512x8xbf16>, vector<8x128xbf16>, vector<512x128xf32> -> vector<512x128xf32>
    %16 = arith.addf %9, %15 : vector<512x128xf32>
    %17 = vector.extract_strided_slice %8 {offsets = [0, 0, 1, 0], sizes = [2, 16, 16, 8], strides = [1, 1, 1, 1]} : vector<2x18x18x8xf32> to vector<2x16x16x8xf32>
    %18 = vector.shape_cast %17 : vector<2x16x16x8xf32> to vector<512x8xf32>
    %c1_31 = arith.constant 1 : index
    %c0_32 = arith.constant 0 : index
    %c0_33 = arith.constant 0 : index
    %19 = vector.load %arg1[%c1_31, %c0_32, %c0_33] : memref<9x8x128xbf16, #tpu.memory_space<vmem>>, vector<1x8x128xbf16>
    %20 = vector.shape_cast %19 : vector<1x8x128xbf16> to vector<8x128xbf16>
    %21 = arith.truncf %18 : vector<512x8xf32> to vector<512x8xbf16>
    %cst_34 = arith.constant dense<0.000000e+00> : vector<512x128xf32>
    %22 = tpu.matmul %21, %20, %cst_34 {dimension_numbers = #tpu.dot_dimension_numbers<[1], [0], [0], [1], [0, 0, 1, 1], [], []>} : vector<512x8xbf16>, vector<8x128xbf16>, vector<512x128xf32> -> vector<512x128xf32>
    %23 = arith.addf %16, %22 : vector<512x128xf32>
    %24 = vector.extract_strided_slice %8 {offsets = [0, 0, 2, 0], sizes = [2, 16, 16, 8], strides = [1, 1, 1, 1]} : vector<2x18x18x8xf32> to vector<2x16x16x8xf32>
    %25 = vector.shape_cast %24 : vector<2x16x16x8xf32> to vector<512x8xf32>
    %c2 = arith.constant 2 : index
    %c0_35 = arith.constant 0 : index
    %c0_36 = arith.constant 0 : index
    %26 = vector.load %arg1[%c2, %c0_35, %c0_36] : memref<9x8x128xbf16, #tpu.memory_space<vmem>>, vector<1x8x128xbf16>
    %27 = vector.shape_cast %26 : vector<1x8x128xbf16> to vector<8x128xbf16>
    %28 = arith.truncf %25 : vector<512x8xf32> to vector<512x8xbf16>
    %cst_37 = arith.constant dense<0.000000e+00> : vector<512x128xf32>
    %29 = tpu.matmul %28, %27, %cst_37 {dimension_numbers = #tpu.dot_dimension_numbers<[1], [0], [0], [1], [0, 0, 1, 1], [], []>} : vector<512x8xbf16>, vector<8x128xbf16>, vector<512x128xf32> -> vector<512x128xf32>
    %30 = arith.addf %23, %29 : vector<512x128xf32>
    %31 = vector.extract_strided_slice %8 {offsets = [0, 1, 0, 0], sizes = [2, 16, 16, 8], strides = [1, 1, 1, 1]} : vector<2x18x18x8xf32> to vector<2x16x16x8xf32>
    %32 = vector.shape_cast %31 : vector<2x16x16x8xf32> to vector<512x8xf32>
    %c3 = arith.constant 3 : index
    %c0_38 = arith.constant 0 : index
    %c0_39 = arith.constant 0 : index
    %33 = vector.load %arg1[%c3, %c0_38, %c0_39] : memref<9x8x128xbf16, #tpu.memory_space<vmem>>, vector<1x8x128xbf16>
    %34 = vector.shape_cast %33 : vector<1x8x128xbf16> to vector<8x128xbf16>
    %35 = arith.truncf %32 : vector<512x8xf32> to vector<512x8xbf16>
    %cst_40 = arith.constant dense<0.000000e+00> : vector<512x128xf32>
    %36 = tpu.matmul %35, %34, %cst_40 {dimension_numbers = #tpu.dot_dimension_numbers<[1], [0], [0], [1], [0, 0, 1, 1], [], []>} : vector<512x8xbf16>, vector<8x128xbf16>, vector<512x128xf32> -> vector<512x128xf32>
    %37 = arith.addf %30, %36 : vector<512x128xf32>
    %38 = vector.extract_strided_slice %8 {offsets = [0, 1, 1, 0], sizes = [2, 16, 16, 8], strides = [1, 1, 1, 1]} : vector<2x18x18x8xf32> to vector<2x16x16x8xf32>
    %39 = vector.shape_cast %38 : vector<2x16x16x8xf32> to vector<512x8xf32>
    %c4 = arith.constant 4 : index
    %c0_41 = arith.constant 0 : index
    %c0_42 = arith.constant 0 : index
    %40 = vector.load %arg1[%c4, %c0_41, %c0_42] : memref<9x8x128xbf16, #tpu.memory_space<vmem>>, vector<1x8x128xbf16>
    %41 = vector.shape_cast %40 : vector<1x8x128xbf16> to vector<8x128xbf16>
    %42 = arith.truncf %39 : vector<512x8xf32> to vector<512x8xbf16>
    %cst_43 = arith.constant dense<0.000000e+00> : vector<512x128xf32>
    %43 = tpu.matmul %42, %41, %cst_43 {dimension_numbers = #tpu.dot_dimension_numbers<[1], [0], [0], [1], [0, 0, 1, 1], [], []>} : vector<512x8xbf16>, vector<8x128xbf16>, vector<512x128xf32> -> vector<512x128xf32>
    %44 = arith.addf %37, %43 : vector<512x128xf32>
    %45 = vector.extract_strided_slice %8 {offsets = [0, 1, 2, 0], sizes = [2, 16, 16, 8], strides = [1, 1, 1, 1]} : vector<2x18x18x8xf32> to vector<2x16x16x8xf32>
    %46 = vector.shape_cast %45 : vector<2x16x16x8xf32> to vector<512x8xf32>
    %c5 = arith.constant 5 : index
    %c0_44 = arith.constant 0 : index
    %c0_45 = arith.constant 0 : index
    %47 = vector.load %arg1[%c5, %c0_44, %c0_45] : memref<9x8x128xbf16, #tpu.memory_space<vmem>>, vector<1x8x128xbf16>
    %48 = vector.shape_cast %47 : vector<1x8x128xbf16> to vector<8x128xbf16>
    %49 = arith.truncf %46 : vector<512x8xf32> to vector<512x8xbf16>
    %cst_46 = arith.constant dense<0.000000e+00> : vector<512x128xf32>
    %50 = tpu.matmul %49, %48, %cst_46 {dimension_numbers = #tpu.dot_dimension_numbers<[1], [0], [0], [1], [0, 0, 1, 1], [], []>} : vector<512x8xbf16>, vector<8x128xbf16>, vector<512x128xf32> -> vector<512x128xf32>
    %51 = arith.addf %44, %50 : vector<512x128xf32>
    %52 = vector.extract_strided_slice %8 {offsets = [0, 2, 0, 0], sizes = [2, 16, 16, 8], strides = [1, 1, 1, 1]} : vector<2x18x18x8xf32> to vector<2x16x16x8xf32>
    %53 = vector.shape_cast %52 : vector<2x16x16x8xf32> to vector<512x8xf32>
    %c6 = arith.constant 6 : index
    %c0_47 = arith.constant 0 : index
    %c0_48 = arith.constant 0 : index
    %54 = vector.load %arg1[%c6, %c0_47, %c0_48] : memref<9x8x128xbf16, #tpu.memory_space<vmem>>, vector<1x8x128xbf16>
    %55 = vector.shape_cast %54 : vector<1x8x128xbf16> to vector<8x128xbf16>
    %56 = arith.truncf %53 : vector<512x8xf32> to vector<512x8xbf16>
    %cst_49 = arith.constant dense<0.000000e+00> : vector<512x128xf32>
    %57 = tpu.matmul %56, %55, %cst_49 {dimension_numbers = #tpu.dot_dimension_numbers<[1], [0], [0], [1], [0, 0, 1, 1], [], []>} : vector<512x8xbf16>, vector<8x128xbf16>, vector<512x128xf32> -> vector<512x128xf32>
    %58 = arith.addf %51, %57 : vector<512x128xf32>
    %59 = vector.extract_strided_slice %8 {offsets = [0, 2, 1, 0], sizes = [2, 16, 16, 8], strides = [1, 1, 1, 1]} : vector<2x18x18x8xf32> to vector<2x16x16x8xf32>
    %60 = vector.shape_cast %59 : vector<2x16x16x8xf32> to vector<512x8xf32>
    %c7 = arith.constant 7 : index
    %c0_50 = arith.constant 0 : index
    %c0_51 = arith.constant 0 : index
    %61 = vector.load %arg1[%c7, %c0_50, %c0_51] : memref<9x8x128xbf16, #tpu.memory_space<vmem>>, vector<1x8x128xbf16>
    %62 = vector.shape_cast %61 : vector<1x8x128xbf16> to vector<8x128xbf16>
    %63 = arith.truncf %60 : vector<512x8xf32> to vector<512x8xbf16>
    %cst_52 = arith.constant dense<0.000000e+00> : vector<512x128xf32>
    %64 = tpu.matmul %63, %62, %cst_52 {dimension_numbers = #tpu.dot_dimension_numbers<[1], [0], [0], [1], [0, 0, 1, 1], [], []>} : vector<512x8xbf16>, vector<8x128xbf16>, vector<512x128xf32> -> vector<512x128xf32>
    %65 = arith.addf %58, %64 : vector<512x128xf32>
    %66 = vector.extract_strided_slice %8 {offsets = [0, 2, 2, 0], sizes = [2, 16, 16, 8], strides = [1, 1, 1, 1]} : vector<2x18x18x8xf32> to vector<2x16x16x8xf32>
    %67 = vector.shape_cast %66 : vector<2x16x16x8xf32> to vector<512x8xf32>
    %c8 = arith.constant 8 : index
    %c0_53 = arith.constant 0 : index
    %c0_54 = arith.constant 0 : index
    %68 = vector.load %arg1[%c8, %c0_53, %c0_54] : memref<9x8x128xbf16, #tpu.memory_space<vmem>>, vector<1x8x128xbf16>
    %69 = vector.shape_cast %68 : vector<1x8x128xbf16> to vector<8x128xbf16>
    %70 = arith.truncf %67 : vector<512x8xf32> to vector<512x8xbf16>
    %cst_55 = arith.constant dense<0.000000e+00> : vector<512x128xf32>
    %71 = tpu.matmul %70, %69, %cst_55 {dimension_numbers = #tpu.dot_dimension_numbers<[1], [0], [0], [1], [0, 0, 1, 1], [], []>} : vector<512x8xbf16>, vector<8x128xbf16>, vector<512x128xf32> -> vector<512x128xf32>
    %72 = arith.addf %65, %71 : vector<512x128xf32>
    %c0_56 = arith.constant 0 : index
    %c0_57 = arith.constant 0 : index
    %73 = vector.load %arg2[%c0_56, %c0_57] : memref<1x128xf32, #tpu.memory_space<vmem>>, vector<1x128xf32>
    %c0_58 = arith.constant 0 : index
    %c0_59 = arith.constant 0 : index
    %74 = vector.load %arg3[%c0_58, %c0_59] : memref<1x128xf32, #tpu.memory_space<vmem>>, vector<1x128xf32>
    %cst_60 = arith.constant dense<0.000000e+00> : vector<128xf32>
    %75 = vector.multi_reduction <add>, %72, %cst_60 [0] : vector<512x128xf32> to vector<128xf32>
    %76 = vector.shape_cast %75 : vector<128xf32> to vector<1x128xf32>
    %cst_61 = arith.constant 0.001953125 : f32
    %77 = vector.broadcast %cst_61 : f32 to vector<1x128xf32>
    %78 = arith.mulf %76, %77 : vector<1x128xf32>
    %79 = arith.mulf %72, %72 : vector<512x128xf32>
    %cst_62 = arith.constant dense<0.000000e+00> : vector<128xf32>
    %80 = vector.multi_reduction <add>, %79, %cst_62 [0] : vector<512x128xf32> to vector<128xf32>
    %81 = vector.shape_cast %80 : vector<128xf32> to vector<1x128xf32>
    %cst_63 = arith.constant 0.001953125 : f32
    %82 = vector.broadcast %cst_63 : f32 to vector<1x128xf32>
    %83 = arith.mulf %81, %82 : vector<1x128xf32>
    %84 = arith.mulf %78, %78 : vector<1x128xf32>
    %85 = arith.subf %83, %84 : vector<1x128xf32>
    %cst_64 = arith.constant 0.000000e+00 : f32
    %86 = vector.broadcast %cst_64 : f32 to vector<1x128xf32>
    %87 = arith.maximumf %85, %86 : vector<1x128xf32>
    %88 = vector.broadcast %78 : vector<1x128xf32> to vector<512x128xf32>
    %89 = arith.subf %72, %88 : vector<512x128xf32>
    %cst_65 = arith.constant 9.99999974E-6 : f32
    %90 = vector.broadcast %cst_65 : f32 to vector<1x128xf32>
    %91 = arith.addf %87, %90 : vector<1x128xf32>
    %92 = math.rsqrt %91 : vector<1x128xf32>
    %93 = vector.broadcast %92 : vector<1x128xf32> to vector<512x128xf32>
    %94 = arith.mulf %89, %93 : vector<512x128xf32>
    %95 = vector.broadcast %73 : vector<1x128xf32> to vector<512x128xf32>
    %96 = arith.mulf %94, %95 : vector<512x128xf32>
    %97 = vector.broadcast %74 : vector<1x128xf32> to vector<512x128xf32>
    %98 = arith.addf %96, %97 : vector<512x128xf32>
    %cst_66 = arith.constant 0.000000e+00 : f32
    %99 = vector.broadcast %cst_66 : f32 to vector<512x128xf32>
    %100 = arith.maximumf %98, %99 : vector<512x128xf32>
    %101 = vector.shape_cast %100 : vector<512x128xf32> to vector<2x16x16x128xf32>
    %102 = vector.extract_strided_slice %101 {offsets = [0, 0, 0, 0], sizes = [2, 16, 16, 8], strides = [1, 1, 1, 1]} : vector<2x16x16x128xf32> to vector<2x16x16x8xf32>
    %cst_67 = arith.constant 0.000000e+00 : f32
    %103 = vector.broadcast %cst_67 : f32 to vector<2x1x18x8xf32>
    %c0_68 = arith.constant 0 : index
    %c0_69 = arith.constant 0 : index
    %c0_70 = arith.constant 0 : index
    %c0_71 = arith.constant 0 : index
    %104 = vector.load %arg12[%c0_68, %c0_69, %c0_70, %c0_71] : memref<2x18x18x8xf32, #tpu.memory_space<vmem>>, vector<2x1x18x8xf32>
    tpu.vector_store %arg12[%c0_68, %c0_69, %c0_70, %c0_71], %103 {strides = array<i32>} : memref<2x18x18x8xf32, #tpu.memory_space<vmem>>, vector<2x1x18x8xf32>,
    %c0_72 = arith.constant 0 : index
    %c17_73 = arith.constant 17 : index
    %c0_74 = arith.constant 0 : index
    %c0_75 = arith.constant 0 : index
    %105 = vector.load %arg12[%c0_72, %c17_73, %c0_74, %c0_75] : memref<2x18x18x8xf32, #tpu.memory_space<vmem>>, vector<2x1x18x8xf32>
    tpu.vector_store %arg12[%c0_72, %c17_73, %c0_74, %c0_75], %103 {strides = array<i32>} : memref<2x18x18x8xf32, #tpu.memory_space<vmem>>, vector<2x1x18x8xf32>,
    %cst_76 = arith.constant 0.000000e+00 : f32
    %106 = vector.broadcast %cst_76 : f32 to vector<2x16x1x8xf32>
    %c0_77 = arith.constant 0 : index
    %c1_78 = arith.constant 1 : index
    %c0_79 = arith.constant 0 : index
    %c0_80 = arith.constant 0 : index
    %107 = vector.load %arg12[%c0_77, %c1_78, %c0_79, %c0_80] : memref<2x18x18x8xf32, #tpu.memory_space<vmem>>, vector<2x16x1x8xf32>
    tpu.vector_store %arg12[%c0_77, %c1_78, %c0_79, %c0_80], %106 {strides = array<i32>} : memref<2x18x18x8xf32, #tpu.memory_space<vmem>>, vector<2x16x1x8xf32>,
    %c0_81 = arith.constant 0 : index
    %c1_82 = arith.constant 1 : index
    %c17_83 = arith.constant 17 : index
    %c0_84 = arith.constant 0 : index
    %108 = vector.load %arg12[%c0_81, %c1_82, %c17_83, %c0_84] : memref<2x18x18x8xf32, #tpu.memory_space<vmem>>, vector<2x16x1x8xf32>
    tpu.vector_store %arg12[%c0_81, %c1_82, %c17_83, %c0_84], %106 {strides = array<i32>} : memref<2x18x18x8xf32, #tpu.memory_space<vmem>>, vector<2x16x1x8xf32>,
    %c0_85 = arith.constant 0 : index
    %c1_86 = arith.constant 1 : index
    %c1_87 = arith.constant 1 : index
    %c0_88 = arith.constant 0 : index
    %109 = vector.load %arg12[%c0_85, %c1_86, %c1_87, %c0_88] : memref<2x18x18x8xf32, #tpu.memory_space<vmem>>, vector<2x16x16x8xf32>
    tpu.vector_store %arg12[%c0_85, %c1_86, %c1_87, %c0_88], %102 {strides = array<i32>} : memref<2x18x18x8xf32, #tpu.memory_space<vmem>>, vector<2x16x16x8xf32>,
    %c0_89 = arith.constant 0 : index
    %c0_90 = arith.constant 0 : index
    %c0_91 = arith.constant 0 : index
    %c0_92 = arith.constant 0 : index
    %110 = vector.load %arg12[%c0_89, %c0_90, %c0_91, %c0_92] : memref<2x18x18x8xf32, #tpu.memory_space<vmem>>, vector<2x18x18x8xf32>
    %cst_93 = arith.constant 0.000000e+00 : f32
    %111 = vector.broadcast %cst_93 : f32 to vector<512x128xf32>
    %112 = vector.extract_strided_slice %110 {offsets = [0, 0, 0, 0], sizes = [2, 16, 16, 8], strides = [1, 1, 1, 1]} : vector<2x18x18x8xf32> to vector<2x16x16x8xf32>
    %113 = vector.shape_cast %112 : vector<2x16x16x8xf32> to vector<512x8xf32>
    %c0_94 = arith.constant 0 : index
    %c0_95 = arith.constant 0 : index
    %c0_96 = arith.constant 0 : index
    %114 = vector.load %arg4[%c0_94, %c0_95, %c0_96] : memref<9x8x128xbf16, #tpu.memory_space<vmem>>, vector<1x8x128xbf16>
    %115 = vector.shape_cast %114 : vector<1x8x128xbf16> to vector<8x128xbf16>
    %116 = arith.truncf %113 : vector<512x8xf32> to vector<512x8xbf16>
    %cst_97 = arith.constant dense<0.000000e+00> : vector<512x128xf32>
    %117 = tpu.matmul %116, %115, %cst_97 {dimension_numbers = #tpu.dot_dimension_numbers<[1], [0], [0], [1], [0, 0, 1, 1], [], []>} : vector<512x8xbf16>, vector<8x128xbf16>, vector<512x128xf32> -> vector<512x128xf32>
    %118 = arith.addf %111, %117 : vector<512x128xf32>
    %119 = vector.extract_strided_slice %110 {offsets = [0, 0, 1, 0], sizes = [2, 16, 16, 8], strides = [1, 1, 1, 1]} : vector<2x18x18x8xf32> to vector<2x16x16x8xf32>
    %120 = vector.shape_cast %119 : vector<2x16x16x8xf32> to vector<512x8xf32>
    %c1_98 = arith.constant 1 : index
    %c0_99 = arith.constant 0 : index
    %c0_100 = arith.constant 0 : index
    %121 = vector.load %arg4[%c1_98, %c0_99, %c0_100] : memref<9x8x128xbf16, #tpu.memory_space<vmem>>, vector<1x8x128xbf16>
    %122 = vector.shape_cast %121 : vector<1x8x128xbf16> to vector<8x128xbf16>
    %123 = arith.truncf %120 : vector<512x8xf32> to vector<512x8xbf16>
    %cst_101 = arith.constant dense<0.000000e+00> : vector<512x128xf32>
    %124 = tpu.matmul %123, %122, %cst_101 {dimension_numbers = #tpu.dot_dimension_numbers<[1], [0], [0], [1], [0, 0, 1, 1], [], []>} : vector<512x8xbf16>, vector<8x128xbf16>, vector<512x128xf32> -> vector<512x128xf32>
    %125 = arith.addf %118, %124 : vector<512x128xf32>
    %126 = vector.extract_strided_slice %110 {offsets = [0, 0, 2, 0], sizes = [2, 16, 16, 8], strides = [1, 1, 1, 1]} : vector<2x18x18x8xf32> to vector<2x16x16x8xf32>
    %127 = vector.shape_cast %126 : vector<2x16x16x8xf32> to vector<512x8xf32>
    %c2_102 = arith.constant 2 : index
    %c0_103 = arith.constant 0 : index
    %c0_104 = arith.constant 0 : index
    %128 = vector.load %arg4[%c2_102, %c0_103, %c0_104] : memref<9x8x128xbf16, #tpu.memory_space<vmem>>, vector<1x8x128xbf16>
    %129 = vector.shape_cast %128 : vector<1x8x128xbf16> to vector<8x128xbf16>
    %130 = arith.truncf %127 : vector<512x8xf32> to vector<512x8xbf16>
    %cst_105 = arith.constant dense<0.000000e+00> : vector<512x128xf32>
    %131 = tpu.matmul %130, %129, %cst_105 {dimension_numbers = #tpu.dot_dimension_numbers<[1], [0], [0], [1], [0, 0, 1, 1], [], []>} : vector<512x8xbf16>, vector<8x128xbf16>, vector<512x128xf32> -> vector<512x128xf32>
    %132 = arith.addf %125, %131 : vector<512x128xf32>
    %133 = vector.extract_strided_slice %110 {offsets = [0, 1, 0, 0], sizes = [2, 16, 16, 8], strides = [1, 1, 1, 1]} : vector<2x18x18x8xf32> to vector<2x16x16x8xf32>
    %134 = vector.shape_cast %133 : vector<2x16x16x8xf32> to vector<512x8xf32>
    %c3_106 = arith.constant 3 : index
    %c0_107 = arith.constant 0 : index
    %c0_108 = arith.constant 0 : index
    %135 = vector.load %arg4[%c3_106, %c0_107, %c0_108] : memref<9x8x128xbf16, #tpu.memory_space<vmem>>, vector<1x8x128xbf16>
    %136 = vector.shape_cast %135 : vector<1x8x128xbf16> to vector<8x128xbf16>
    %137 = arith.truncf %134 : vector<512x8xf32> to vector<512x8xbf16>
    %cst_109 = arith.constant dense<0.000000e+00> : vector<512x128xf32>
    %138 = tpu.matmul %137, %136, %cst_109 {dimension_numbers = #tpu.dot_dimension_numbers<[1], [0], [0], [1], [0, 0, 1, 1], [], []>} : vector<512x8xbf16>, vector<8x128xbf16>, vector<512x128xf32> -> vector<512x128xf32>
    %139 = arith.addf %132, %138 : vector<512x128xf32>
    %140 = vector.extract_strided_slice %110 {offsets = [0, 1, 1, 0], sizes = [2, 16, 16, 8], strides = [1, 1, 1, 1]} : vector<2x18x18x8xf32> to vector<2x16x16x8xf32>
    %141 = vector.shape_cast %140 : vector<2x16x16x8xf32> to vector<512x8xf32>
    %c4_110 = arith.constant 4 : index
    %c0_111 = arith.constant 0 : index
    %c0_112 = arith.constant 0 : index
    %142 = vector.load %arg4[%c4_110, %c0_111, %c0_112] : memref<9x8x128xbf16, #tpu.memory_space<vmem>>, vector<1x8x128xbf16>
    %143 = vector.shape_cast %142 : vector<1x8x128xbf16> to vector<8x128xbf16>
    %144 = arith.truncf %141 : vector<512x8xf32> to vector<512x8xbf16>
    %cst_113 = arith.constant dense<0.000000e+00> : vector<512x128xf32>
    %145 = tpu.matmul %144, %143, %cst_113 {dimension_numbers = #tpu.dot_dimension_numbers<[1], [0], [0], [1], [0, 0, 1, 1], [], []>} : vector<512x8xbf16>, vector<8x128xbf16>, vector<512x128xf32> -> vector<512x128xf32>
    %146 = arith.addf %139, %145 : vector<512x128xf32>
    %147 = vector.extract_strided_slice %110 {offsets = [0, 1, 2, 0], sizes = [2, 16, 16, 8], strides = [1, 1, 1, 1]} : vector<2x18x18x8xf32> to vector<2x16x16x8xf32>
    %148 = vector.shape_cast %147 : vector<2x16x16x8xf32> to vector<512x8xf32>
    %c5_114 = arith.constant 5 : index
    %c0_115 = arith.constant 0 : index
    %c0_116 = arith.constant 0 : index
    %149 = vector.load %arg4[%c5_114, %c0_115, %c0_116] : memref<9x8x128xbf16, #tpu.memory_space<vmem>>, vector<1x8x128xbf16>
    %150 = vector.shape_cast %149 : vector<1x8x128xbf16> to vector<8x128xbf16>
    %151 = arith.truncf %148 : vector<512x8xf32> to vector<512x8xbf16>
    %cst_117 = arith.constant dense<0.000000e+00> : vector<512x128xf32>
    %152 = tpu.matmul %151, %150, %cst_117 {dimension_numbers = #tpu.dot_dimension_numbers<[1], [0], [0], [1], [0, 0, 1, 1], [], []>} : vector<512x8xbf16>, vector<8x128xbf16>, vector<512x128xf32> -> vector<512x128xf32>
    %153 = arith.addf %146, %152 : vector<512x128xf32>
    %154 = vector.extract_strided_slice %110 {offsets = [0, 2, 0, 0], sizes = [2, 16, 16, 8], strides = [1, 1, 1, 1]} : vector<2x18x18x8xf32> to vector<2x16x16x8xf32>
    %155 = vector.shape_cast %154 : vector<2x16x16x8xf32> to vector<512x8xf32>
    %c6_118 = arith.constant 6 : index
    %c0_119 = arith.constant 0 : index
    %c0_120 = arith.constant 0 : index
    %156 = vector.load %arg4[%c6_118, %c0_119, %c0_120] : memref<9x8x128xbf16, #tpu.memory_space<vmem>>, vector<1x8x128xbf16>
    %157 = vector.shape_cast %156 : vector<1x8x128xbf16> to vector<8x128xbf16>
    %158 = arith.truncf %155 : vector<512x8xf32> to vector<512x8xbf16>
    %cst_121 = arith.constant dense<0.000000e+00> : vector<512x128xf32>
    %159 = tpu.matmul %158, %157, %cst_121 {dimension_numbers = #tpu.dot_dimension_numbers<[1], [0], [0], [1], [0, 0, 1, 1], [], []>} : vector<512x8xbf16>, vector<8x128xbf16>, vector<512x128xf32> -> vector<512x128xf32>
    %160 = arith.addf %153, %159 : vector<512x128xf32>
    %161 = vector.extract_strided_slice %110 {offsets = [0, 2, 1, 0], sizes = [2, 16, 16, 8], strides = [1, 1, 1, 1]} : vector<2x18x18x8xf32> to vector<2x16x16x8xf32>
    %162 = vector.shape_cast %161 : vector<2x16x16x8xf32> to vector<512x8xf32>
    %c7_122 = arith.constant 7 : index
    %c0_123 = arith.constant 0 : index
    %c0_124 = arith.constant 0 : index
    %163 = vector.load %arg4[%c7_122, %c0_123, %c0_124] : memref<9x8x128xbf16, #tpu.memory_space<vmem>>, vector<1x8x128xbf16>
    %164 = vector.shape_cast %163 : vector<1x8x128xbf16> to vector<8x128xbf16>
    %165 = arith.truncf %162 : vector<512x8xf32> to vector<512x8xbf16>
    %cst_125 = arith.constant dense<0.000000e+00> : vector<512x128xf32>
    %166 = tpu.matmul %165, %164, %cst_125 {dimension_numbers = #tpu.dot_dimension_numbers<[1], [0], [0], [1], [0, 0, 1, 1], [], []>} : vector<512x8xbf16>, vector<8x128xbf16>, vector<512x128xf32> -> vector<512x128xf32>
    %167 = arith.addf %160, %166 : vector<512x128xf32>
    %168 = vector.extract_strided_slice %110 {offsets = [0, 2, 2, 0], sizes = [2, 16, 16, 8], strides = [1, 1, 1, 1]} : vector<2x18x18x8xf32> to vector<2x16x16x8xf32>
    %169 = vector.shape_cast %168 : vector<2x16x16x8xf32> to vector<512x8xf32>
    %c8_126 = arith.constant 8 : index
    %c0_127 = arith.constant 0 : index
    %c0_128 = arith.constant 0 : index
    %170 = vector.load %arg4[%c8_126, %c0_127, %c0_128] : memref<9x8x128xbf16, #tpu.memory_space<vmem>>, vector<1x8x128xbf16>
    %171 = vector.shape_cast %170 : vector<1x8x128xbf16> to vector<8x128xbf16>
    %172 = arith.truncf %169 : vector<512x8xf32> to vector<512x8xbf16>
    %cst_129 = arith.constant dense<0.000000e+00> : vector<512x128xf32>
    %173 = tpu.matmul %172, %171, %cst_129 {dimension_numbers = #tpu.dot_dimension_numbers<[1], [0], [0], [1], [0, 0, 1, 1], [], []>} : vector<512x8xbf16>, vector<8x128xbf16>, vector<512x128xf32> -> vector<512x128xf32>
    %174 = arith.addf %167, %173 : vector<512x128xf32>
    %c0_130 = arith.constant 0 : index
    %c0_131 = arith.constant 0 : index
    %175 = vector.load %arg5[%c0_130, %c0_131] : memref<1x128xf32, #tpu.memory_space<vmem>>, vector<1x128xf32>
    %c0_132 = arith.constant 0 : index
    %c0_133 = arith.constant 0 : index
    %176 = vector.load %arg6[%c0_132, %c0_133] : memref<1x128xf32, #tpu.memory_space<vmem>>, vector<1x128xf32>
    %cst_134 = arith.constant dense<0.000000e+00> : vector<128xf32>
    %177 = vector.multi_reduction <add>, %174, %cst_134 [0] : vector<512x128xf32> to vector<128xf32>
    %178 = vector.shape_cast %177 : vector<128xf32> to vector<1x128xf32>
    %cst_135 = arith.constant 0.001953125 : f32
    %179 = vector.broadcast %cst_135 : f32 to vector<1x128xf32>
    %180 = arith.mulf %178, %179 : vector<1x128xf32>
    %181 = arith.mulf %174, %174 : vector<512x128xf32>
    %cst_136 = arith.constant dense<0.000000e+00> : vector<128xf32>
    %182 = vector.multi_reduction <add>, %181, %cst_136 [0] : vector<512x128xf32> to vector<128xf32>
    %183 = vector.shape_cast %182 : vector<128xf32> to vector<1x128xf32>
    %cst_137 = arith.constant 0.001953125 : f32
    %184 = vector.broadcast %cst_137 : f32 to vector<1x128xf32>
    %185 = arith.mulf %183, %184 : vector<1x128xf32>
    %186 = arith.mulf %180, %180 : vector<1x128xf32>
    %187 = arith.subf %185, %186 : vector<1x128xf32>
    %cst_138 = arith.constant 0.000000e+00 : f32
    %188 = vector.broadcast %cst_138 : f32 to vector<1x128xf32>
    %189 = arith.maximumf %187, %188 : vector<1x128xf32>
    %190 = vector.broadcast %180 : vector<1x128xf32> to vector<512x128xf32>
    %191 = arith.subf %174, %190 : vector<512x128xf32>
    %cst_139 = arith.constant 9.99999974E-6 : f32
    %192 = vector.broadcast %cst_139 : f32 to vector<1x128xf32>
    %193 = arith.addf %189, %192 : vector<1x128xf32>
    %194 = math.rsqrt %193 : vector<1x128xf32>
    %195 = vector.broadcast %194 : vector<1x128xf32> to vector<512x128xf32>
    %196 = arith.mulf %191, %195 : vector<512x128xf32>
    %197 = vector.broadcast %175 : vector<1x128xf32> to vector<512x128xf32>
    %198 = arith.mulf %196, %197 : vector<512x128xf32>
    %199 = vector.broadcast %176 : vector<1x128xf32> to vector<512x128xf32>
    %200 = arith.addf %198, %199 : vector<512x128xf32>
    %c0_140 = arith.constant 0 : index
    %c0_141 = arith.constant 0 : index
    %c0_142 = arith.constant 0 : index
    %c0_143 = arith.constant 0 : index
    %201 = vector.load %arg11[%c0_140, %c0_141, %c0_142, %c0_143] : memref<2x18x18x8xf32, #tpu.memory_space<vmem>>, vector<2x18x18x8xf32>
    %202 = vector.extract_strided_slice %201 {offsets = [0, 1, 1, 0], sizes = [2, 16, 16, 8], strides = [1, 1, 1, 1]} : vector<2x18x18x8xf32> to vector<2x16x16x8xf32>
    %203 = vector.shape_cast %202 : vector<2x16x16x8xf32> to vector<512x8xf32>
    %c0_144 = arith.constant 0 : index
    %c0_145 = arith.constant 0 : index
    %204 = vector.load %arg7[%c0_144, %c0_145] : memref<8x128xbf16, #tpu.memory_space<vmem>>, vector<8x128xbf16>
    %205 = arith.truncf %203 : vector<512x8xf32> to vector<512x8xbf16>
    %cst_146 = arith.constant dense<0.000000e+00> : vector<512x128xf32>
    %206 = tpu.matmul %205, %204, %cst_146 {dimension_numbers = #tpu.dot_dimension_numbers<[1], [0], [0], [1], [0, 0, 1, 1], [], []>} : vector<512x8xbf16>, vector<8x128xbf16>, vector<512x128xf32> -> vector<512x128xf32>
    %c0_147 = arith.constant 0 : index
    %c0_148 = arith.constant 0 : index
    %207 = vector.load %arg8[%c0_147, %c0_148] : memref<1x128xf32, #tpu.memory_space<vmem>>, vector<1x128xf32>
    %c0_149 = arith.constant 0 : index
    %c0_150 = arith.constant 0 : index
    %208 = vector.load %arg9[%c0_149, %c0_150] : memref<1x128xf32, #tpu.memory_space<vmem>>, vector<1x128xf32>
    %cst_151 = arith.constant dense<0.000000e+00> : vector<128xf32>
    %209 = vector.multi_reduction <add>, %206, %cst_151 [0] : vector<512x128xf32> to vector<128xf32>
    %210 = vector.shape_cast %209 : vector<128xf32> to vector<1x128xf32>
    %cst_152 = arith.constant 0.001953125 : f32
    %211 = vector.broadcast %cst_152 : f32 to vector<1x128xf32>
    %212 = arith.mulf %210, %211 : vector<1x128xf32>
    %213 = arith.mulf %206, %206 : vector<512x128xf32>
    %cst_153 = arith.constant dense<0.000000e+00> : vector<128xf32>
    %214 = vector.multi_reduction <add>, %213, %cst_153 [0] : vector<512x128xf32> to vector<128xf32>
    %215 = vector.shape_cast %214 : vector<128xf32> to vector<1x128xf32>
    %cst_154 = arith.constant 0.001953125 : f32
    %216 = vector.broadcast %cst_154 : f32 to vector<1x128xf32>
    %217 = arith.mulf %215, %216 : vector<1x128xf32>
    %218 = arith.mulf %212, %212 : vector<1x128xf32>
    %219 = arith.subf %217, %218 : vector<1x128xf32>
    %cst_155 = arith.constant 0.000000e+00 : f32
    %220 = vector.broadcast %cst_155 : f32 to vector<1x128xf32>
    %221 = arith.maximumf %219, %220 : vector<1x128xf32>
    %222 = vector.broadcast %212 : vector<1x128xf32> to vector<512x128xf32>
    %223 = arith.subf %206, %222 : vector<512x128xf32>
    %cst_156 = arith.constant 9.99999974E-6 : f32
    %224 = vector.broadcast %cst_156 : f32 to vector<1x128xf32>
    %225 = arith.addf %221, %224 : vector<1x128xf32>
    %226 = math.rsqrt %225 : vector<1x128xf32>
    %227 = vector.broadcast %226 : vector<1x128xf32> to vector<512x128xf32>
    %228 = arith.mulf %223, %227 : vector<512x128xf32>
    %229 = vector.broadcast %207 : vector<1x128xf32> to vector<512x128xf32>
    %230 = arith.mulf %228, %229 : vector<512x128xf32>
    %231 = vector.broadcast %208 : vector<1x128xf32> to vector<512x128xf32>
    %232 = arith.addf %230, %231 : vector<512x128xf32>
    %233 = arith.addf %200, %232 : vector<512x128xf32>
    %cst_157 = arith.constant 0.000000e+00 : f32
    %234 = vector.broadcast %cst_157 : f32 to vector<512x128xf32>
    %235 = arith.maximumf %233, %234 : vector<512x128xf32>
    %236 = vector.shape_cast %235 : vector<512x128xf32> to vector<2x16x16x128xf32>
    %c0_158 = arith.constant 0 : index
    %c0_159 = arith.constant 0 : index
    %c0_160 = arith.constant 0 : index
    %c0_161 = arith.constant 0 : index
    %237 = vector.load %arg10[%c0_158, %c0_159, %c0_160, %c0_161] : memref<2x16x16x128xf32, #tpu.memory_space<vmem>>, vector<2x16x16x128xf32>
    tpu.vector_store %arg10[%c0_158, %c0_159, %c0_160, %c0_161], %236 {strides = array<i32>} : memref<2x16x16x128xf32, #tpu.memory_space<vmem>>, vector<2x16x16x128xf32>,
    return
  }
}

</mosaic_0001>

<llo_original>
// kernel: tpu_custom_call.1
$region0: #{tpu_custom_call.1}
  #allocation0 [shape = 'u32[]', space=smem, size = 0x4, offset = 0x4, fixed_abs, tag = 'smem constant byte address 0x4 - core index']
  #allocation1 [shape = 'u32[72,128]{1,0:T(1,128)}', space=vmem, size = 0x9000, scoped, tag = 'internal scratch']
  #allocation2 [shape = 'f32[2,18,18,8]{3,2,1,0:T(8,128)}', space=vmem, size = 0x6c000, scoped, tag = 'scratch operand']
  #allocation3 [shape = 'f32[2,18,18,8]{3,2,1,0:T(8,128)}', space=vmem, size = 0x6c000, scoped, tag = 'scratch operand']
  %s0 = inlined_call_operand.vmem [shape: f32[2,16,16,8], index: 0, kind: input, shape index: {}]
  %s1 = inlined_call_operand.vmem [shape: bf16[9,8,128], index: 1, kind: input, shape index: {}]
  %s2 = inlined_call_operand.vmem [shape: f32[1,128], index: 2, kind: input, shape index: {}]
  %s3 = inlined_call_operand.vmem [shape: f32[1,128], index: 3, kind: input, shape index: {}]
  %s4 = inlined_call_operand.vmem [shape: bf16[9,8,128], index: 4, kind: input, shape index: {}]
  %s5 = inlined_call_operand.vmem [shape: f32[1,128], index: 5, kind: input, shape index: {}]
  %s6 = inlined_call_operand.vmem [shape: f32[1,128], index: 6, kind: input, shape index: {}]
  %s7 = inlined_call_operand.vmem [shape: bf16[8,128], index: 7, kind: input, shape index: {}]
  %s8 = inlined_call_operand.vmem [shape: f32[1,128], index: 8, kind: input, shape index: {}]
  %s9 = inlined_call_operand.vmem [shape: f32[1,128], index: 9, kind: input, shape index: {}]
  %s10 = inlined_call_operand.hbm [shape: f32[2,16,16,128], index: 10, kind: output, shape index: {}]
  %s11 = sld [smem:[#allocation0]]
  $region50: #{tpu_custom_call.1} parent=0
    _
  %s13 = ssub.s32 1, %s11
  %s14 = scalar_select 0, %s13, %s11
  $region1: #{tpu_custom_call.1} parent=0
    #allocation4 [shape = 'u8[262144]{0}', space=vmem, size = 0x40000, scoped, tag = 'output window, operand 0, single buffered']
    #allocation5 [shape = 's32[1]{0}', space=sflag, size = 0x4, scoped, tag = 'scoped memory for tpu_custom_call.1']
    %15 = vsyncpa [#allocation5], 0
    // Predicated region
    $region2: #{tpu_custom_call.1} parent=1 // pred_check
      _
    $region3: #{tpu_custom_call.1} parent=1 // pred_check_branch
      %17 = sbr.rel (0) target = $region5
    $region4: #{tpu_custom_call.1} parent=1 // pred_region
      _
    $region5: #{tpu_custom_call.1} parent=1 // pred_fallthru
      _
    // Predicated region
    $region6: #{tpu_custom_call.1} parent=1 // pred_check
      _
    $region7: #{tpu_custom_call.1} parent=1 // pred_check_branch
      %19 = sbr.rel (0) target = $region9
    $region8: #{tpu_custom_call.1} parent=1 // pred_region
      _
    $region9: #{tpu_custom_call.1} parent=1 // pred_fallthru
      _
    // Predicated region
    $region10: #{tpu_custom_call.1} parent=1 // pred_check
      _
    $region11: #{tpu_custom_call.1} parent=1 // pred_check_branch
      %21 = sbr.rel (0) target = $region13
    $region12: #{tpu_custom_call.1} parent=1 // pred_region
      _
    $region13: #{tpu_custom_call.1} parent=1 // pred_fallthru
      _
    // Predicated region
    $region14: #{tpu_custom_call.1} parent=1 // pred_check
      _
    $region15: #{tpu_custom_call.1} parent=1 // pred_check_branch
      %23 = sbr.rel (0) target = $region17
    $region16: #{tpu_custom_call.1} parent=1 // pred_region
      _
    $region17: #{tpu_custom_call.1} parent=1 // pred_fallthru
      _
    // Predicated region
    $region18: #{tpu_custom_call.1} parent=1 // pred_check
      _
    $region19: #{tpu_custom_call.1} parent=1 // pred_check_branch
      %25 = sbr.rel (0) target = $region21
    $region20: #{tpu_custom_call.1} parent=1 // pred_region
      _
    $region21: #{tpu_custom_call.1} parent=1 // pred_fallthru
      _
    // Predicated region
    $region22: #{tpu_custom_call.1} parent=1 // pred_check
      _
    $region23: #{tpu_custom_call.1} parent=1 // pred_check_branch
      %27 = sbr.rel (0) target = $region25
    $region24: #{tpu_custom_call.1} parent=1 // pred_region
      _
    $region25: #{tpu_custom_call.1} parent=1 // pred_fallthru
      _
    // Predicated region
    $region26: #{tpu_custom_call.1} parent=1 // pred_check
      _
    $region27: #{tpu_custom_call.1} parent=1 // pred_check_branch
      %29 = sbr.rel (0) target = $region29
    $region28: #{tpu_custom_call.1} parent=1 // pred_region
      _
    $region29: #{tpu_custom_call.1} parent=1 // pred_fallthru
      _
    // Predicated region
    $region30: #{tpu_custom_call.1} parent=1 // pred_check
      _
    $region31: #{tpu_custom_call.1} parent=1 // pred_check_branch
      %31 = sbr.rel (0) target = $region33
    $region32: #{tpu_custom_call.1} parent=1 // pred_region
      _
    $region33: #{tpu_custom_call.1} parent=1 // pred_fallthru
      _
    // Predicated region
    $region34: #{tpu_custom_call.1} parent=1 // pred_check
      _
    $region35: #{tpu_custom_call.1} parent=1 // pred_check_branch
      %33 = sbr.rel (0) target = $region37
    $region36: #{tpu_custom_call.1} parent=1 // pred_region
      _
    $region37: #{tpu_custom_call.1} parent=1 // pred_fallthru
      _
    // Predicated region
    $region38: #{tpu_custom_call.1} parent=1 // pred_check
      _
    $region39: #{tpu_custom_call.1} parent=1 // pred_check_branch
      %35 = sbr.rel (0) target = $region41
    $region40: #{tpu_custom_call.1} parent=1 // pred_region
      _
    $region41: #{tpu_custom_call.1} parent=1 // pred_fallthru
      _
    %v37 = vld [vmem:[%s0] sm:$0xff]
    %v38 = vld [vmem:[%s0 + $0x8] sm:$0xff]
    %v39 = vld [vmem:[%s0 + $0x10] sm:$0xff]
    %v40 = vld [vmem:[%s0 + $0x18] sm:$0xff]
    %v41 = vld [vmem:[%s0 + $0x20] sm:$0xff]
    %v42 = vld [vmem:[%s0 + $0x28] sm:$0xff]
    %v43 = vld [vmem:[%s0 + $0x30] sm:$0xff]
    %v44 = vld [vmem:[%s0 + $0x38] sm:$0xff]
    %v45 = vld [vmem:[%s0 + $0x40] sm:$0xff]
    %v46 = vld [vmem:[%s0 + $0x48] sm:$0xff]
    %v47 = vld [vmem:[%s0 + $0x50] sm:$0xff]
    %v48 = vld [vmem:[%s0 + $0x58] sm:$0xff]
    %v49 = vld [vmem:[%s0 + $0x60] sm:$0xff]
    %v50 = vld [vmem:[%s0 + $0x68] sm:$0xff]
    %v51 = vld [vmem:[%s0 + $0x70] sm:$0xff]
    %v52 = vld [vmem:[%s0 + $0x78] sm:$0xff]
    %v53 = vld [vmem:[%s0 + $0x80] sm:$0xff]
    %v54 = vld [vmem:[%s0 + $0x88] sm:$0xff]
    %v55 = vld [vmem:[%s0 + $0x90] sm:$0xff]
    %v56 = vld [vmem:[%s0 + $0x98] sm:$0xff]
    %v57 = vld [vmem:[%s0 + $0xa0] sm:$0xff]
    %v58 = vld [vmem:[%s0 + $0xa8] sm:$0xff]
    %v59 = vld [vmem:[%s0 + $0xb0] sm:$0xff]
    %v60 = vld [vmem:[%s0 + $0xb8] sm:$0xff]
    %v61 = vld [vmem:[%s0 + $0xc0] sm:$0xff]
    %v62 = vld [vmem:[%s0 + $0xc8] sm:$0xff]
    %v63 = vld [vmem:[%s0 + $0xd0] sm:$0xff]
    %v64 = vld [vmem:[%s0 + $0xd8] sm:$0xff]
    %v65 = vld [vmem:[%s0 + $0xe0] sm:$0xff]
    %v66 = vld [vmem:[%s0 + $0xe8] sm:$0xff]
    %v67 = vld [vmem:[%s0 + $0xf0] sm:$0xff]
    %v68 = vld [vmem:[%s0 + $0xf8] sm:$0xff]
    %v69 = vld [vmem:[%s0 + $0x100] sm:$0xff]
    %v70 = vld [vmem:[%s0 + $0x108] sm:$0xff]
    %v71 = vld [vmem:[%s0 + $0x110] sm:$0xff]
    %v72 = vld [vmem:[%s0 + $0x118] sm:$0xff]
    %v73 = vld [vmem:[%s0 + $0x120] sm:$0xff]
    %v74 = vld [vmem:[%s0 + $0x128] sm:$0xff]
    %v75 = vld [vmem:[%s0 + $0x130] sm:$0xff]
    %v76 = vld [vmem:[%s0 + $0x138] sm:$0xff]
    %v77 = vld [vmem:[%s0 + $0x140] sm:$0xff]
    %v78 = vld [vmem:[%s0 + $0x148] sm:$0xff]
    %v79 = vld [vmem:[%s0 + $0x150] sm:$0xff]
    %v80 = vld [vmem:[%s0 + $0x158] sm:$0xff]
    %v81 = vld [vmem:[%s0 + $0x160] sm:$0xff]
    %v82 = vld [vmem:[%s0 + $0x168] sm:$0xff]
    %v83 = vld [vmem:[%s0 + $0x170] sm:$0xff]
    %v84 = vld [vmem:[%s0 + $0x178] sm:$0xff]
    %v85 = vld [vmem:[%s0 + $0x180] sm:$0xff]
    %v86 = vld [vmem:[%s0 + $0x188] sm:$0xff]
    %v87 = vld [vmem:[%s0 + $0x190] sm:$0xff]
    %v88 = vld [vmem:[%s0 + $0x198] sm:$0xff]
    %v89 = vld [vmem:[%s0 + $0x1a0] sm:$0xff]
    %v90 = vld [vmem:[%s0 + $0x1a8] sm:$0xff]
    %v91 = vld [vmem:[%s0 + $0x1b0] sm:$0xff]
    %v92 = vld [vmem:[%s0 + $0x1b8] sm:$0xff]
    %v93 = vld [vmem:[%s0 + $0x1c0] sm:$0xff]
    %v94 = vld [vmem:[%s0 + $0x1c8] sm:$0xff]
    %v95 = vld [vmem:[%s0 + $0x1d0] sm:$0xff]
    %v96 = vld [vmem:[%s0 + $0x1d8] sm:$0xff]
    %v97 = vld [vmem:[%s0 + $0x1e0] sm:$0xff]
    %v98 = vld [vmem:[%s0 + $0x1e8] sm:$0xff]
    %v99 = vld [vmem:[%s0 + $0x1f0] sm:$0xff]
    %v100 = vld [vmem:[%s0 + $0x1f8] sm:$0xff]
    %vm101 = vcmask 64512
    %102 = vst.msk [vmem:[#allocation2] sm:$0xff] %vm101, 0.0
    %103 = vst.msk [vmem:[#allocation2 + $0x8] sm:$0xff] %vm101, 0.0
    %vm104 = vcmask 58368
    %105 = vst.msk [vmem:[#allocation2 + $0x10] sm:$0x3] %vm104, 0.0
    %106 = vst.msk [vmem:[#allocation2 + $0x1b0] sm:$0xff] %vm101, 0.0
    %107 = vst.msk [vmem:[#allocation2 + $0x1b8] sm:$0xff] %vm101, 0.0
    %108 = vst.msk [vmem:[#allocation2 + $0x1c0] sm:$0x3] %vm104, 0.0
    %s109 = scalar_lea.vmem [#allocation2], 408
    %110 = vst.msk [vmem:[%s109] sm:$0xff] %vm101, 0.0
    %111 = vst.msk [vmem:[%s109 + $0x8] sm:$0xff] %vm101, 0.0
    %112 = vst.msk [vmem:[%s109 + $0x10] sm:$0x3] %vm104, 0.0
    %113 = vst.msk [vmem:[%s109 + $0x1b0] sm:$0xff] %vm101, 0.0
    %114 = vst.msk [vmem:[%s109 + $0x1b8] sm:$0xff] %vm101, 0.0
    %115 = vst.msk [vmem:[%s109 + $0x1c0] sm:$0x3] %vm104, 0.0
    %s116 = scalar_lea.vmem [#allocation2], 24
    %vm117 = vcmask 57344
    %118 = vst.msk [vmem:[%s116] sm:$0x1] %vm117, 0.0
    %119 = vst.msk [vmem:[%s116 + $0x18] sm:$0x1] %vm117, 0.0
    %120 = vst.msk [vmem:[%s116 + $0x30] sm:$0x1] %vm117, 0.0
    %121 = vst.msk [vmem:[%s116 + $0x48] sm:$0x1] %vm117, 0.0
    %122 = vst.msk [vmem:[%s116 + $0x60] sm:$0x1] %vm117, 0.0
    %123 = vst.msk [vmem:[%s116 + $0x78] sm:$0x1] %vm117, 0.0
    %124 = vst.msk [vmem:[%s116 + $0x90] sm:$0x1] %vm117, 0.0
    %125 = vst.msk [vmem:[%s116 + $0xa8] sm:$0x1] %vm117, 0.0
    %126 = vst.msk [vmem:[%s116 + $0xc0] sm:$0x1] %vm117, 0.0
    %127 = vst.msk [vmem:[%s116 + $0xd8] sm:$0x1] %vm117, 0.0
    %128 = vst.msk [vmem:[%s116 + $0xf0] sm:$0x1] %vm117, 0.0
    %129 = vst.msk [vmem:[%s116 + $0x108] sm:$0x1] %vm117, 0.0
    %130 = vst.msk [vmem:[%s116 + $0x120] sm:$0x1] %vm117, 0.0
    %131 = vst.msk [vmem:[%s116 + $0x138] sm:$0x1] %vm117, 0.0
    %132 = vst.msk [vmem:[%s116 + $0x150] sm:$0x1] %vm117, 0.0
    %133 = vst.msk [vmem:[%s116 + $0x168] sm:$0x1] %vm117, 0.0
    %134 = vst.msk [vmem:[%s116 + $0x1b0] sm:$0x1] %vm117, 0.0
    %135 = vst.msk [vmem:[%s116 + $0x1c8] sm:$0x1] %vm117, 0.0
    %136 = vst.msk [vmem:[%s116 + $0x1e0] sm:$0x1] %vm117, 0.0
    %137 = vst.msk [vmem:[%s116 + $0x1f8] sm:$0x1] %vm117, 0.0
    %138 = vst.msk [vmem:[%s116 + $0x210] sm:$0x1] %vm117, 0.0
    %139 = vst.msk [vmem:[%s116 + $0x228] sm:$0x1] %vm117, 0.0
    %140 = vst.msk [vmem:[%s116 + $0x240] sm:$0x1] %vm117, 0.0
    %141 = vst.msk [vmem:[%s116 + $0x258] sm:$0x1] %vm117, 0.0
    %142 = vst.msk [vmem:[%s116 + $0x270] sm:$0x1] %vm117, 0.0
    %143 = vst.msk [vmem:[%s116 + $0x288] sm:$0x1] %vm117, 0.0
    %144 = vst.msk [vmem:[%s116 + $0x2a0] sm:$0x1] %vm117, 0.0
    %145 = vst.msk [vmem:[%s116 + $0x2b8] sm:$0x1] %vm117, 0.0
    %146 = vst.msk [vmem:[%s116 + $0x2d0] sm:$0x1] %vm117, 0.0
    %147 = vst.msk [vmem:[%s116 + $0x2e8] sm:$0x1] %vm117, 0.0
    %148 = vst.msk [vmem:[%s116 + $0x300] sm:$0x1] %vm117, 0.0
    %149 = vst.msk [vmem:[%s116 + $0x318] sm:$0x1] %vm117, 0.0
    %150 = vst.msk [vmem:[%s116 + $0x11] sm:$0x1] %vm117, 0.0
    %151 = vst.msk [vmem:[%s116 + $0x29] sm:$0x1] %vm117, 0.0
    %152 = vst.msk [vmem:[%s116 + $0x41] sm:$0x1] %vm117, 0.0
    %153 = vst.msk [vmem:[%s116 + $0x59] sm:$0x1] %vm117, 0.0
    %154 = vst.msk [vmem:[%s116 + $0x71] sm:$0x1] %vm117, 0.0
    %155 = vst.msk [vmem:[%s116 + $0x89] sm:$0x1] %vm117, 0.0
    %156 = vst.msk [vmem:[%s116 + $0xa1] sm:$0x1] %vm117, 0.0
    %157 = vst.msk [vmem:[%s116 + $0xb9] sm:$0x1] %vm117, 0.0
    %158 = vst.msk [vmem:[%s116 + $0xd1] sm:$0x1] %vm117, 0.0
    %159 = vst.msk [vmem:[%s116 + $0xe9] sm:$0x1] %vm117, 0.0
    %160 = vst.msk [vmem:[%s116 + $0x101] sm:$0x1] %vm117, 0.0
    %161 = vst.msk [vmem:[%s116 + $0x119] sm:$0x1] %vm117, 0.0
    %162 = vst.msk [vmem:[%s116 + $0x131] sm:$0x1] %vm117, 0.0
    %163 = vst.msk [vmem:[%s116 + $0x149] sm:$0x1] %vm117, 0.0
    %164 = vst.msk [vmem:[%s116 + $0x161] sm:$0x1] %vm117, 0.0
    %165 = vst.msk [vmem:[%s116 + $0x179] sm:$0x1] %vm117, 0.0
    %166 = vst.msk [vmem:[%s116 + $0x1c1] sm:$0x1] %vm117, 0.0
    %167 = vst.msk [vmem:[%s116 + $0x1d9] sm:$0x1] %vm117, 0.0
    %168 = vst.msk [vmem:[%s116 + $0x1f1] sm:$0x1] %vm117, 0.0
    %169 = vst.msk [vmem:[%s116 + $0x209] sm:$0x1] %vm117, 0.0
    %170 = vst.msk [vmem:[%s116 + $0x221] sm:$0x1] %vm117, 0.0
    %171 = vst.msk [vmem:[%s116 + $0x239] sm:$0x1] %vm117, 0.0
    %172 = vst.msk [vmem:[%s116 + $0x251] sm:$0x1] %vm117, 0.0
    %173 = vst.msk [vmem:[%s116 + $0x269] sm:$0x1] %vm117, 0.0
    %174 = vst.msk [vmem:[%s116 + $0x281] sm:$0x1] %vm117, 0.0
    %175 = vst.msk [vmem:[%s116 + $0x299] sm:$0x1] %vm117, 0.0
    %176 = vst.msk [vmem:[%s116 + $0x2b1] sm:$0x1] %vm117, 0.0
    %177 = vst.msk [vmem:[%s116 + $0x2c9] sm:$0x1] %vm117, 0.0
    %178 = vst.msk [vmem:[%s116 + $0x2e1] sm:$0x1] %vm117, 0.0
    %179 = vst.msk [vmem:[%s116 + $0x2f9] sm:$0x1] %vm117, 0.0
    %180 = vst.msk [vmem:[%s116 + $0x311] sm:$0x1] %vm117, 0.0
    %181 = vst.msk [vmem:[%s116 + $0x329] sm:$0x1] %vm117, 0.0
    %182 = vst.msk [vmem:[%s116 + $0x1] sm:$0xff] %vm101, %v37
    %183 = vst.msk [vmem:[%s116 + $0x9] sm:$0xff] %vm101, %v38
    %184 = vst.msk [vmem:[%s116 + $0x19] sm:$0xff] %vm101, %v39
    %185 = vst.msk [vmem:[%s116 + $0x21] sm:$0xff] %vm101, %v40
    %186 = vst.msk [vmem:[%s116 + $0x31] sm:$0xff] %vm101, %v41
    %187 = vst.msk [vmem:[%s116 + $0x39] sm:$0xff] %vm101, %v42
    %188 = vst.msk [vmem:[%s116 + $0x49] sm:$0xff] %vm101, %v43
    %189 = vst.msk [vmem:[%s116 + $0x51] sm:$0xff] %vm101, %v44
    %190 = vst.msk [vmem:[%s116 + $0x61] sm:$0xff] %vm101, %v45
    %191 = vst.msk [vmem:[%s116 + $0x69] sm:$0xff] %vm101, %v46
    %192 = vst.msk [vmem:[%s116 + $0x79] sm:$0xff] %vm101, %v47
    %193 = vst.msk [vmem:[%s116 + $0x81] sm:$0xff] %vm101, %v48
    %194 = vst.msk [vmem:[%s116 + $0x91] sm:$0xff] %vm101, %v49
    %195 = vst.msk [vmem:[%s116 + $0x99] sm:$0xff] %vm101, %v50
    %196 = vst.msk [vmem:[%s116 + $0xa9] sm:$0xff] %vm101, %v51
    %197 = vst.msk [vmem:[%s116 + $0xb1] sm:$0xff] %vm101, %v52
    %198 = vst.msk [vmem:[%s116 + $0xc1] sm:$0xff] %vm101, %v53
    %199 = vst.msk [vmem:[%s116 + $0xc9] sm:$0xff] %vm101, %v54
    %200 = vst.msk [vmem:[%s116 + $0xd9] sm:$0xff] %vm101, %v55
    %201 = vst.msk [vmem:[%s116 + $0xe1] sm:$0xff] %vm101, %v56
    %202 = vst.msk [vmem:[%s116 + $0xf1] sm:$0xff] %vm101, %v57
    %203 = vst.msk [vmem:[%s116 + $0xf9] sm:$0xff] %vm101, %v58
    %204 = vst.msk [vmem:[%s116 + $0x109] sm:$0xff] %vm101, %v59
    %205 = vst.msk [vmem:[%s116 + $0x111] sm:$0xff] %vm101, %v60
    %206 = vst.msk [vmem:[%s116 + $0x121] sm:$0xff] %vm101, %v61
    %207 = vst.msk [vmem:[%s116 + $0x129] sm:$0xff] %vm101, %v62
    %208 = vst.msk [vmem:[%s116 + $0x139] sm:$0xff] %vm101, %v63
    %209 = vst.msk [vmem:[%s116 + $0x141] sm:$0xff] %vm101, %v64
    %210 = vst.msk [vmem:[%s116 + $0x151] sm:$0xff] %vm101, %v65
    %211 = vst.msk [vmem:[%s116 + $0x159] sm:$0xff] %vm101, %v66
    %212 = vst.msk [vmem:[%s116 + $0x169] sm:$0xff] %vm101, %v67
    %213 = vst.msk [vmem:[%s116 + $0x171] sm:$0xff] %vm101, %v68
    %214 = vst.msk [vmem:[%s116 + $0x1b1] sm:$0xff] %vm101, %v69
    %215 = vst.msk [vmem:[%s116 + $0x1b9] sm:$0xff] %vm101, %v70
    %216 = vst.msk [vmem:[%s116 + $0x1c9] sm:$0xff] %vm101, %v71
    %217 = vst.msk [vmem:[%s116 + $0x1d1] sm:$0xff] %vm101, %v72
    %218 = vst.msk [vmem:[%s116 + $0x1e1] sm:$0xff] %vm101, %v73
    %219 = vst.msk [vmem:[%s116 + $0x1e9] sm:$0xff] %vm101, %v74
    %220 = vst.msk [vmem:[%s116 + $0x1f9] sm:$0xff] %vm101, %v75
    %221 = vst.msk [vmem:[%s116 + $0x201] sm:$0xff] %vm101, %v76
    %222 = vst.msk [vmem:[%s116 + $0x211] sm:$0xff] %vm101, %v77
    %223 = vst.msk [vmem:[%s116 + $0x219] sm:$0xff] %vm101, %v78
    %224 = vst.msk [vmem:[%s116 + $0x229] sm:$0xff] %vm101, %v79
    %225 = vst.msk [vmem:[%s116 + $0x231] sm:$0xff] %vm101, %v80
    %226 = vst.msk [vmem:[%s116 + $0x241] sm:$0xff] %vm101, %v81
    %227 = vst.msk [vmem:[%s116 + $0x249] sm:$0xff] %vm101, %v82
    %228 = vst.msk [vmem:[%s116 + $0x259] sm:$0xff] %vm101, %v83
    %229 = vst.msk [vmem:[%s116 + $0x261] sm:$0xff] %vm101, %v84
    %230 = vst.msk [vmem:[%s116 + $0x271] sm:$0xff] %vm101, %v85
    %231 = vst.msk [vmem:[%s116 + $0x279] sm:$0xff] %vm101, %v86
    %232 = vst.msk [vmem:[%s116 + $0x289] sm:$0xff] %vm101, %v87
    %233 = vst.msk [vmem:[%s116 + $0x291] sm:$0xff] %vm101, %v88
    %234 = vst.msk [vmem:[%s116 + $0x2a1] sm:$0xff] %vm101, %v89
    %235 = vst.msk [vmem:[%s116 + $0x2a9] sm:$0xff] %vm101, %v90
    %236 = vst.msk [vmem:[%s116 + $0x2b9] sm:$0xff] %vm101, %v91
    %237 = vst.msk [vmem:[%s116 + $0x2c1] sm:$0xff] %vm101, %v92
    %238 = vst.msk [vmem:[%s116 + $0x2d1] sm:$0xff] %vm101, %v93
    %239 = vst.msk [vmem:[%s116 + $0x2d9] sm:$0xff] %vm101, %v94
    %240 = vst.msk [vmem:[%s116 + $0x2e9] sm:$0xff] %vm101, %v95
    %241 = vst.msk [vmem:[%s116 + $0x2f1] sm:$0xff] %vm101, %v96
    %242 = vst.msk [vmem:[%s116 + $0x301] sm:$0xff] %vm101, %v97
    %243 = vst.msk [vmem:[%s116 + $0x309] sm:$0xff] %vm101, %v98
    %244 = vst.msk [vmem:[%s116 + $0x319] sm:$0xff] %vm101, %v99
    %245 = vst.msk [vmem:[%s116 + $0x321] sm:$0xff] %vm101, %v100
    %v246 = vld [vmem:[#allocation2] sm:$0xff]
    %v247 = vld [vmem:[#allocation2 + $0x8] sm:$0xff]
    %v248 = vld [vmem:[#allocation2 + $0x10] sm:$0x3]
    %v249 = vld [vmem:[#allocation2 + $0x18] sm:$0xff]
    %v250 = vld [vmem:[#allocation2 + $0x20] sm:$0xff]
    %v251 = vld [vmem:[#allocation2 + $0x28] sm:$0x3]
    %v252 = vld [vmem:[#allocation2 + $0x30] sm:$0xff]
    %v253 = vld [vmem:[#allocation2 + $0x38] sm:$0xff]
    %v254 = vld [vmem:[#allocation2 + $0x40] sm:$0x3]
    %v255 = vld [vmem:[#allocation2 + $0x48] sm:$0xff]
    %v256 = vld [vmem:[#allocation2 + $0x50] sm:$0xff]
    %v257 = vld [vmem:[#allocation2 + $0x58] sm:$0x3]
    %v258 = vld [vmem:[#allocation2 + $0x60] sm:$0xff]
    %v259 = vld [vmem:[#allocation2 + $0x68] sm:$0xff]
    %v260 = vld [vmem:[#allocation2 + $0x70] sm:$0x3]
    %v261 = vld [vmem:[#allocation2 + $0x78] sm:$0xff]
    %v262 = vld [vmem:[#allocation2 + $0x80] sm:$0xff]
    %v263 = vld [vmem:[#allocation2 + $0x88] sm:$0x3]
    %v264 = vld [vmem:[#allocation2 + $0x90] sm:$0xff]
    %v265 = vld [vmem:[#allocation2 + $0x98] sm:$0xff]
    %v266 = vld [vmem:[#allocation2 + $0xa0] sm:$0x3]
    %v267 = vld [vmem:[#allocation2 + $0xa8] sm:$0xff]
    %v268 = vld [vmem:[#allocation2 + $0xb0] sm:$0xff]
    %v269 = vld [vmem:[#allocation2 + $0xb8] sm:$0x3]
    %v270 = vld [vmem:[#allocation2 + $0xc0] sm:$0xff]
    %v271 = vld [vmem:[#allocation2 + $0xc8] sm:$0xff]
    %v272 = vld [vmem:[#allocation2 + $0xd0] sm:$0x3]
    %v273 = vld [vmem:[#allocation2 + $0xd8] sm:$0xff]
    %v274 = vld [vmem:[#allocation2 + $0xe0] sm:$0xff]
    %v275 = vld [vmem:[#allocation2 + $0xe8] sm:$0x3]
    %v276 = vld [vmem:[#allocation2 + $0xf0] sm:$0xff]
    %v277 = vld [vmem:[#allocation2 + $0xf8] sm:$0xff]
    %v278 = vld [vmem:[#allocation2 + $0x100] sm:$0x3]
    %v279 = vld [vmem:[#allocation2 + $0x108] sm:$0xff]
    %v280 = vld [vmem:[#allocation2 + $0x110] sm:$0xff]
    %v281 = vld [vmem:[#allocation2 + $0x118] sm:$0x3]
    %v282 = vld [vmem:[#allocation2 + $0x120] sm:$0xff]
    %v283 = vld [vmem:[#allocation2 + $0x128] sm:$0xff]
    %v284 = vld [vmem:[#allocation2 + $0x130] sm:$0x3]
    %v285 = vld [vmem:[#allocation2 + $0x138] sm:$0xff]
    %v286 = vld [vmem:[#allocation2 + $0x140] sm:$0xff]
    %v287 = vld [vmem:[#allocation2 + $0x148] sm:$0x3]
    %v288 = vld [vmem:[#allocation2 + $0x150] sm:$0xff]
    %v289 = vld [vmem:[#allocation2 + $0x158] sm:$0xff]
    %v290 = vld [vmem:[#allocation2 + $0x160] sm:$0x3]
    %v291 = vld [vmem:[#allocation2 + $0x168] sm:$0xff]
    %v292 = vld [vmem:[#allocation2 + $0x170] sm:$0xff]
    %v293 = vld [vmem:[#allocation2 + $0x178] sm:$0x3]
    %v294 = vld [vmem:[#allocation2 + $0x180] sm:$0xff]
    %v295 = vld [vmem:[#allocation2 + $0x188] sm:$0xff]
    %v296 = vld [vmem:[#allocation2 + $0x190] sm:$0x3]
    %v297 = vld [vmem:[#allocation2 + $0x198] sm:$0xff]
    %v298 = vld [vmem:[#allocation2 + $0x1a0] sm:$0xff]
    %v299 = vld [vmem:[#allocation2 + $0x1a8] sm:$0x3]
    %v300 = vld [vmem:[#allocation2 + $0x1b0] sm:$0xff]
    %v301 = vld [vmem:[#allocation2 + $0x1b8] sm:$0xff]
    %v302 = vld [vmem:[#allocation2 + $0x1c0] sm:$0x3]
    %v303 = vld [vmem:[#allocation2 + $0x1c8] sm:$0xff]
    %v304 = vld [vmem:[#allocation2 + $0x1d0] sm:$0xff]
    %v305 = vld [vmem:[#allocation2 + $0x1d8] sm:$0x3]
    %v306 = vld [vmem:[#allocation2 + $0x1e0] sm:$0xff]
    %v307 = vld [vmem:[#allocation2 + $0x1e8] sm:$0xff]
    %v308 = vld [vmem:[#allocation2 + $0x1f0] sm:$0x3]
    %v309 = vld [vmem:[#allocation2 + $0x1f8] sm:$0xff]
    %v310 = vld [vmem:[#allocation2 + $0x200] sm:$0xff]
    %v311 = vld [vmem:[#allocation2 + $0x208] sm:$0x3]
    %v312 = vld [vmem:[#allocation2 + $0x210] sm:$0xff]
    %v313 = vld [vmem:[#allocation2 + $0x218] sm:$0xff]
    %v314 = vld [vmem:[#allocation2 + $0x220] sm:$0x3]
    %v315 = vld [vmem:[#allocation2 + $0x228] sm:$0xff]
    %v316 = vld [vmem:[#allocation2 + $0x230] sm:$0xff]
    %v317 = vld [vmem:[#allocation2 + $0x238] sm:$0x3]
    %v318 = vld [vmem:[#allocation2 + $0x240] sm:$0xff]
    %v319 = vld [vmem:[#allocation2 + $0x248] sm:$0xff]
    %v320 = vld [vmem:[#allocation2 + $0x250] sm:$0x3]
    %v321 = vld [vmem:[#allocation2 + $0x258] sm:$0xff]
    %v322 = vld [vmem:[#allocation2 + $0x260] sm:$0xff]
    %v323 = vld [vmem:[#allocation2 + $0x268] sm:$0x3]
    %v324 = vld [vmem:[#allocation2 + $0x270] sm:$0xff]
    %v325 = vld [vmem:[#allocation2 + $0x278] sm:$0xff]
    %v326 = vld [vmem:[#allocation2 + $0x280] sm:$0x3]
    %v327 = vld [vmem:[#allocation2 + $0x288] sm:$0xff]
    %v328 = vld [vmem:[#allocation2 + $0x290] sm:$0xff]
    %v329 = vld [vmem:[#allocation2 + $0x298] sm:$0x3]
    %v330 = vld [vmem:[#allocation2 + $0x2a0] sm:$0xff]
    %v331 = vld [vmem:[#allocation2 + $0x2a8] sm:$0xff]
    %v332 = vld [vmem:[#allocation2 + $0x2b0] sm:$0x3]
    %v333 = vld [vmem:[#allocation2 + $0x2b8] sm:$0xff]
    %v334 = vld [vmem:[#allocation2 + $0x2c0] sm:$0xff]
    %v335 = vld [vmem:[#allocation2 + $0x2c8] sm:$0x3]
    %v336 = vld [vmem:[#allocation2 + $0x2d0] sm:$0xff]
    %v337 = vld [vmem:[#allocation2 + $0x2d8] sm:$0xff]
    %v338 = vld [vmem:[#allocation2 + $0x2e0] sm:$0x3]
    %v339 = vld [vmem:[#allocation2 + $0x2e8] sm:$0xff]
    %v340 = vld [vmem:[#allocation2 + $0x2f0] sm:$0xff]
    %v341 = vld [vmem:[#allocation2 + $0x2f8] sm:$0x3]
    %v342 = vld [vmem:[#allocation2 + $0x300] sm:$0xff]
    %v343 = vld [vmem:[#allocation2 + $0x308] sm:$0xff]
    %v344 = vld [vmem:[#allocation2 + $0x310] sm:$0x3]
    %v345 = vld [vmem:[#allocation2 + $0x318] sm:$0xff]
    %v346 = vld [vmem:[#allocation2 + $0x320] sm:$0xff]
    %v347 = vld [vmem:[#allocation2 + $0x328] sm:$0x3]
    %v348 = vld [vmem:[#allocation2 + $0x330] sm:$0xff]
    %v349 = vld [vmem:[#allocation2 + $0x338] sm:$0xff]
    %v350 = vld [vmem:[#allocation2 + $0x340] sm:$0x3]
    %v351 = vld [vmem:[#allocation2 + $0x348] sm:$0xff]
    %v352 = vld [vmem:[#allocation2 + $0x350] sm:$0xff]
    %v353 = vld [vmem:[#allocation2 + $0x358] sm:$0x3]
    %v354 = vld [vmem:[%s1] sm:$0xf]
    %v355 = vpack.c.bf16 %v247, %v246
    %v356 = vpack.c.bf16 %v250, %v249
    %v357 = vpack.c.bf16 %v253, %v252
    %v358 = vpack.c.bf16 %v256, %v255
    %v359 = vpack.c.bf16 %v259, %v258
    %v360 = vpack.c.bf16 %v262, %v261
    %v361 = vpack.c.bf16 %v265, %v264
    %v362 = vpack.c.bf16 %v268, %v267
    %v363 = vpack.c.bf16 %v271, %v270
    %v364 = vpack.c.bf16 %v274, %v273
    %v365 = vpack.c.bf16 %v277, %v276
    %v366 = vpack.c.bf16 %v280, %v279
    %v367 = vpack.c.bf16 %v283, %v282
    %v368 = vpack.c.bf16 %v286, %v285
    %v369 = vpack.c.bf16 %v289, %v288
    %v370 = vpack.c.bf16 %v292, %v291
    %v371 = vpack.c.bf16 %v301, %v300
    %v372 = vpack.c.bf16 %v304, %v303
    %v373 = vpack.c.bf16 %v307, %v306
    %v374 = vpack.c.bf16 %v310, %v309
    %v375 = vpack.c.bf16 %v313, %v312
    %v376 = vpack.c.bf16 %v316, %v315
    %v377 = vpack.c.bf16 %v319, %v318
    %v378 = vpack.c.bf16 %v322, %v321
    %v379 = vpack.c.bf16 %v325, %v324
    %v380 = vpack.c.bf16 %v328, %v327
    %v381 = vpack.c.bf16 %v331, %v330
    %v382 = vpack.c.bf16 %v334, %v333
    %v383 = vpack.c.bf16 %v337, %v336
    %v384 = vpack.c.bf16 %v340, %v339
    %v385 = vpack.c.bf16 %v343, %v342
    %v386 = vpack.c.bf16 %v346, %v345
    %vm483 = vcmask 1046528
    %v484 = vrot.slane %v246, 1
    %v485 = vrot.slane %v247, 1
    %v486 = vsel %vm483, %v484, %v485
    %v487 = vrot.slane %v248, 1
    %v488 = vsel %vm483, %v485, %v487
    %v489 = vrot.slane %v249, 1
    %v490 = vrot.slane %v250, 1
    %v491 = vsel %vm483, %v489, %v490
    %v492 = vrot.slane %v251, 1
    %v493 = vsel %vm483, %v490, %v492
    %v494 = vrot.slane %v252, 1
    %v495 = vrot.slane %v253, 1
    %v496 = vsel %vm483, %v494, %v495
    %v497 = vrot.slane %v254, 1
    %v498 = vsel %vm483, %v495, %v497
    %v499 = vrot.slane %v255, 1
    %v500 = vrot.slane %v256, 1
    %v501 = vsel %vm483, %v499, %v500
    %v502 = vrot.slane %v257, 1
    %v503 = vsel %vm483, %v500, %v502
    %v504 = vrot.slane %v258, 1
    %v505 = vrot.slane %v259, 1
    %v506 = vsel %vm483, %v504, %v505
    %v507 = vrot.slane %v260, 1
    %v508 = vsel %vm483, %v505, %v507
    %v509 = vrot.slane %v261, 1
    %v510 = vrot.slane %v262, 1
    %v511 = vsel %vm483, %v509, %v510
    %v512 = vrot.slane %v263, 1
    %v513 = vsel %vm483, %v510, %v512
    %v514 = vrot.slane %v264, 1
    %v515 = vrot.slane %v265, 1
    %v516 = vsel %vm483, %v514, %v515
    %v517 = vrot.slane %v266, 1
    %v518 = vsel %vm483, %v515, %v517
    %v519 = vrot.slane %v267, 1
    %v520 = vrot.slane %v268, 1
    %v521 = vsel %vm483, %v519, %v520
    %v522 = vrot.slane %v269, 1
    %v523 = vsel %vm483, %v520, %v522
    %v524 = vrot.slane %v270, 1
    %v525 = vrot.slane %v271, 1
    %v526 = vsel %vm483, %v524, %v525
    %v527 = vrot.slane %v272, 1
    %v528 = vsel %vm483, %v525, %v527
    %v529 = vrot.slane %v273, 1
    %v530 = vrot.slane %v274, 1
    %v531 = vsel %vm483, %v529, %v530
    %v532 = vrot.slane %v275, 1
    %v533 = vsel %vm483, %v530, %v532
    %v534 = vrot.slane %v276, 1
    %v535 = vrot.slane %v277, 1
    %v536 = vsel %vm483, %v534, %v535
    %v537 = vrot.slane %v278, 1
    %v538 = vsel %vm483, %v535, %v537
    %v539 = vrot.slane %v279, 1
    %v540 = vrot.slane %v280, 1
    %v541 = vsel %vm483, %v539, %v540
    %v542 = vrot.slane %v281, 1
    %v543 = vsel %vm483, %v540, %v542
    %v544 = vrot.slane %v282, 1
    %v545 = vrot.slane %v283, 1
    %v546 = vsel %vm483, %v544, %v545
    %v547 = vrot.slane %v284, 1
    %v548 = vsel %vm483, %v545, %v547
    %v549 = vrot.slane %v285, 1
    %v550 = vrot.slane %v286, 1
    %v551 = vsel %vm483, %v549, %v550
    %v552 = vrot.slane %v287, 1
    %v553 = vsel %vm483, %v550, %v552
    %v554 = vrot.slane %v288, 1
    %v555 = vrot.slane %v289, 1
    %v556 = vsel %vm483, %v554, %v555
    %v557 = vrot.slane %v290, 1
    %v558 = vsel %vm483, %v555, %v557
    %v559 = vrot.slane %v291, 1
    %v560 = vrot.slane %v292, 1
    %v561 = vsel %vm483, %v559, %v560
    %v562 = vrot.slane %v293, 1
    %v563 = vsel %vm483, %v560, %v562
    %v564 = vrot.slane %v300, 1
    %v565 = vrot.slane %v301, 1
    %v566 = vsel %vm483, %v564, %v565
    %v567 = vrot.slane %v302, 1
    %v568 = vsel %vm483, %v565, %v567
    %v569 = vrot.slane %v303, 1
    %v570 = vrot.slane %v304, 1
    %v571 = vsel %vm483, %v569, %v570
    %v572 = vrot.slane %v305, 1
    %v573 = vsel %vm483, %v570, %v572
    %v574 = vrot.slane %v306, 1
    %v575 = vrot.slane %v307, 1
    %v576 = vsel %vm483, %v574, %v575
    %v577 = vrot.slane %v308, 1
    %v578 = vsel %vm483, %v575, %v577
    %v579 = vrot.slane %v309, 1
    %v580 = vrot.slane %v310, 1
    %v581 = vsel %vm483, %v579, %v580
    %v582 = vrot.slane %v311, 1
    %v583 = vsel %vm483, %v580, %v582
    %v584 = vrot.slane %v312, 1
    %v585 = vrot.slane %v313, 1
    %v586 = vsel %vm483, %v584, %v585
    %v587 = vrot.slane %v314, 1
    %v588 = vsel %vm483, %v585, %v587
    %v589 = vrot.slane %v315, 1
    %v590 = vrot.slane %v316, 1
    %v591 = vsel %vm483, %v589, %v590
    %v592 = vrot.slane %v317, 1
    %v593 = vsel %vm483, %v590, %v592
    %v594 = vrot.slane %v318, 1
    %v595 = vrot.slane %v319, 1
    %v596 = vsel %vm483, %v594, %v595
    %v597 = vrot.slane %v320, 1
    %v598 = vsel %vm483, %v595, %v597
    %v599 = vrot.slane %v321, 1
    %v600 = vrot.slane %v322, 1
    %v601 = vsel %vm483, %v599, %v600
    %v602 = vrot.slane %v323, 1
    %v603 = vsel %vm483, %v600, %v602
    %v604 = vrot.slane %v324, 1
    %v605 = vrot.slane %v325, 1
    %v606 = vsel %vm483, %v604, %v605
    %v607 = vrot.slane %v326, 1
    %v608 = vsel %vm483, %v605, %v607
    %v609 = vrot.slane %v327, 1
    %v610 = vrot.slane %v328, 1
    %v611 = vsel %vm483, %v609, %v610
    %v612 = vrot.slane %v329, 1
    %v613 = vsel %vm483, %v610, %v612
    %v614 = vrot.slane %v330, 1
    %v615 = vrot.slane %v331, 1
    %v616 = vsel %vm483, %v614, %v615
    %v617 = vrot.slane %v332, 1
    %v618 = vsel %vm483, %v615, %v617
    %v619 = vrot.slane %v333, 1
    %v620 = vrot.slane %v334, 1
    %v621 = vsel %vm483, %v619, %v620
    %v622 = vrot.slane %v335, 1
    %v623 = vsel %vm483, %v620, %v622
    %v624 = vrot.slane %v336, 1
    %v625 = vrot.slane %v337, 1
    %v626 = vsel %vm483, %v624, %v625
    %v627 = vrot.slane %v338, 1
    %v628 = vsel %vm483, %v625, %v627
    %v629 = vrot.slane %v339, 1
    %v630 = vrot.slane %v340, 1
    %v631 = vsel %vm483, %v629, %v630
    %v632 = vrot.slane %v341, 1
    %v633 = vsel %vm483, %v630, %v632
    %v634 = vrot.slane %v342, 1
    %v635 = vrot.slane %v343, 1
    %v636 = vsel %vm483, %v634, %v635
    %v637 = vrot.slane %v344, 1
    %v638 = vsel %vm483, %v635, %v637
    %v639 = vrot.slane %v345, 1
    %v640 = vrot.slane %v346, 1
    %v641 = vsel %vm483, %v639, %v640
    %v642 = vrot.slane %v347, 1
    %v643 = vsel %vm483, %v640, %v642
    %s708 = scalar_lea.vmem %s1, 4
    %v709 = vld [vmem:[%s708] sm:$0xf]
    %v710 = vpack.c.bf16 %v488, %v486
    %v711 = vpack.c.bf16 %v493, %v491
    %v712 = vpack.c.bf16 %v498, %v496
    %v713 = vpack.c.bf16 %v503, %v501
    %v714 = vpack.c.bf16 %v508, %v506
    %v715 = vpack.c.bf16 %v513, %v511
    %v716 = vpack.c.bf16 %v518, %v516
    %v717 = vpack.c.bf16 %v523, %v521
    %v718 = vpack.c.bf16 %v528, %v526
    %v719 = vpack.c.bf16 %v533, %v531
    %v720 = vpack.c.bf16 %v538, %v536
    %v721 = vpack.c.bf16 %v543, %v541
    %v722 = vpack.c.bf16 %v548, %v546
    %v723 = vpack.c.bf16 %v553, %v551
    %v724 = vpack.c.bf16 %v558, %v556
    %v725 = vpack.c.bf16 %v563, %v561
    %v726 = vpack.c.bf16 %v568, %v566
    %v727 = vpack.c.bf16 %v573, %v571
    %v728 = vpack.c.bf16 %v578, %v576
    %v729 = vpack.c.bf16 %v583, %v581
    %v730 = vpack.c.bf16 %v588, %v586
    %v731 = vpack.c.bf16 %v593, %v591
    %v732 = vpack.c.bf16 %v598, %v596
    %v733 = vpack.c.bf16 %v603, %v601
    %v734 = vpack.c.bf16 %v608, %v606
    %v735 = vpack.c.bf16 %v613, %v611
    %v736 = vpack.c.bf16 %v618, %v616
    %v737 = vpack.c.bf16 %v623, %v621
    %v738 = vpack.c.bf16 %v628, %v626
    %v739 = vpack.c.bf16 %v633, %v631
    %v740 = vpack.c.bf16 %v638, %v636
    %v741 = vpack.c.bf16 %v643, %v641
    %v743 = vsel %vm101, %v710, 0
    %v746 = vsel %vm101, %v711, 0
    %v749 = vsel %vm101, %v712, 0
    %v752 = vsel %vm101, %v713, 0
    %v755 = vsel %vm101, %v714, 0
    %v758 = vsel %vm101, %v715, 0
    %v761 = vsel %vm101, %v716, 0
    %v764 = vsel %vm101, %v717, 0
    %v767 = vsel %vm101, %v718, 0
    %v770 = vsel %vm101, %v719, 0
    %v773 = vsel %vm101, %v720, 0
    %v776 = vsel %vm101, %v721, 0
    %v779 = vsel %vm101, %v722, 0
    %v782 = vsel %vm101, %v723, 0
    %v785 = vsel %vm101, %v724, 0
    %v788 = vsel %vm101, %v725, 0
    %v791 = vsel %vm101, %v726, 0
    %v794 = vsel %vm101, %v727, 0
    %v797 = vsel %vm101, %v728, 0
    %v800 = vsel %vm101, %v729, 0
    %v803 = vsel %vm101, %v730, 0
    %v806 = vsel %vm101, %v731, 0
    %v809 = vsel %vm101, %v732, 0
    %v812 = vsel %vm101, %v733, 0
    %v815 = vsel %vm101, %v734, 0
    %v818 = vsel %vm101, %v735, 0
    %v821 = vsel %vm101, %v736, 0
    %v824 = vsel %vm101, %v737, 0
    %v827 = vsel %vm101, %v738, 0
    %v830 = vsel %vm101, %v739, 0
    %v833 = vsel %vm101, %v740, 0
    %v836 = vsel %vm101, %v741, 0
    %vm838 = vcmask 1043456
    %v840 = vsel %vm838, %v709, 0
    %842 = vmatpush.bf16.msra.mxu0 0
    %843 = vmatpush.bf16.msra.mxu0 0
    %844 = vmatpush.bf16.msra.mxu0 0
    %845 = vmatpush.bf16.msra.mxu0 0
    %846 = vmatpush.bf16.msra.mxu0 0
    %847 = vmatpush.bf16.msra.mxu0 0
    %848 = vmatpush.bf16.msra.mxu0 0
    %849 = vmatpush.bf16.msra.mxu0 %v840
    %850 = vmatmul.bf16.gmra.mxu0 %v743
    %v851 = vpop.f32.mrf.mxu0
    %v852 = vadd.f32 0.0, %v851
    %v853 = vpop.f32.mrf.mxu0
    %v854 = vadd.f32 0.0, %v853
    %855 = vmatmul.bf16.gmra.mxu0 %v746
    %v856 = vpop.f32.mrf.mxu0
    %v857 = vadd.f32 0.0, %v856
    %v858 = vpop.f32.mrf.mxu0
    %v859 = vadd.f32 0.0, %v858
    %860 = vmatmul.bf16.gmra.mxu0 %v749
    %v861 = vpop.f32.mrf.mxu0
    %v862 = vadd.f32 0.0, %v861
    %v863 = vpop.f32.mrf.mxu0
    %v864 = vadd.f32 0.0, %v863
    %865 = vmatmul.bf16.gmra.mxu0 %v752
    %v866 = vpop.f32.mrf.mxu0
    %v867 = vadd.f32 0.0, %v866
    %v868 = vpop.f32.mrf.mxu0
    %v869 = vadd.f32 0.0, %v868
    %870 = vmatmul.bf16.gmra.mxu0 %v755
    %v871 = vpop.f32.mrf.mxu0
    %v872 = vadd.f32 0.0, %v871
    %v873 = vpop.f32.mrf.mxu0
    %v874 = vadd.f32 0.0, %v873
    %875 = vmatmul.bf16.gmra.mxu0 %v758
    %v876 = vpop.f32.mrf.mxu0
    %v877 = vadd.f32 0.0, %v876
    %v878 = vpop.f32.mrf.mxu0
    %v879 = vadd.f32 0.0, %v878
    %880 = vmatmul.bf16.gmra.mxu0 %v761
    %v881 = vpop.f32.mrf.mxu0
    %v882 = vadd.f32 0.0, %v881
    %v883 = vpop.f32.mrf.mxu0
    %v884 = vadd.f32 0.0, %v883
    %885 = vmatmul.bf16.gmra.mxu0 %v764
    %v886 = vpop.f32.mrf.mxu0
    %v887 = vadd.f32 0.0, %v886
    %v888 = vpop.f32.mrf.mxu0
    %v889 = vadd.f32 0.0, %v888
    %890 = vmatmul.bf16.gmra.mxu0 %v767
    %v891 = vpop.f32.mrf.mxu0
    %v892 = vadd.f32 0.0, %v891
    %v893 = vpop.f32.mrf.mxu0
    %v894 = vadd.f32 0.0, %v893
    %895 = vmatmul.bf16.gmra.mxu0 %v770
    %v896 = vpop.f32.mrf.mxu0
    %v897 = vadd.f32 0.0, %v896
    %v898 = vpop.f32.mrf.mxu0
    %v899 = vadd.f32 0.0, %v898
    %900 = vmatmul.bf16.gmra.mxu0 %v773
    %v901 = vpop.f32.mrf.mxu0
    %v902 = vadd.f32 0.0, %v901
    %v903 = vpop.f32.mrf.mxu0
    %v904 = vadd.f32 0.0, %v903
    %905 = vmatmul.bf16.gmra.mxu0 %v776
    %v906 = vpop.f32.mrf.mxu0
    %v907 = vadd.f32 0.0, %v906
    %v908 = vpop.f32.mrf.mxu0
    %v909 = vadd.f32 0.0, %v908
    %910 = vmatmul.bf16.gmra.mxu0 %v779
    %v911 = vpop.f32.mrf.mxu0
    %v912 = vadd.f32 0.0, %v911
    %v913 = vpop.f32.mrf.mxu0
    %v914 = vadd.f32 0.0, %v913
    %915 = vmatmul.bf16.gmra.mxu0 %v782
    %v916 = vpop.f32.mrf.mxu0
    %v917 = vadd.f32 0.0, %v916
    %v918 = vpop.f32.mrf.mxu0
    %v919 = vadd.f32 0.0, %v918
    %920 = vmatmul.bf16.gmra.mxu0 %v785
    %v921 = vpop.f32.mrf.mxu0
    %v922 = vadd.f32 0.0, %v921
    %v923 = vpop.f32.mrf.mxu0
    %v924 = vadd.f32 0.0, %v923
    %925 = vmatmul.bf16.gmra.mxu0 %v788
    %v926 = vpop.f32.mrf.mxu0
    %v927 = vadd.f32 0.0, %v926
    %v928 = vpop.f32.mrf.mxu0
    %v929 = vadd.f32 0.0, %v928
    %930 = vmatmul.bf16.gmra.mxu0 %v791
    %v931 = vpop.f32.mrf.mxu0
    %v932 = vadd.f32 0.0, %v931
    %v933 = vpop.f32.mrf.mxu0
    %v934 = vadd.f32 0.0, %v933
    %935 = vmatmul.bf16.gmra.mxu0 %v794
    %v936 = vpop.f32.mrf.mxu0
    %v937 = vadd.f32 0.0, %v936
    %v938 = vpop.f32.mrf.mxu0
    %v939 = vadd.f32 0.0, %v938
    %940 = vmatmul.bf16.gmra.mxu0 %v797
    %v941 = vpop.f32.mrf.mxu0
    %v942 = vadd.f32 0.0, %v941
    %v943 = vpop.f32.mrf.mxu0
    %v944 = vadd.f32 0.0, %v943
    %945 = vmatmul.bf16.gmra.mxu0 %v800
    %v946 = vpop.f32.mrf.mxu0
    %v947 = vadd.f32 0.0, %v946
    %v948 = vpop.f32.mrf.mxu0
    %v949 = vadd.f32 0.0, %v948
    %950 = vmatmul.bf16.gmra.mxu0 %v803
    %v951 = vpop.f32.mrf.mxu0
    %v952 = vadd.f32 0.0, %v951
    %v953 = vpop.f32.mrf.mxu0
    %v954 = vadd.f32 0.0, %v953
    %955 = vmatmul.bf16.gmra.mxu0 %v806
    %v956 = vpop.f32.mrf.mxu0
    %v957 = vadd.f32 0.0, %v956
    %v958 = vpop.f32.mrf.mxu0
    %v959 = vadd.f32 0.0, %v958
    %960 = vmatmul.bf16.gmra.mxu0 %v809
    %v961 = vpop.f32.mrf.mxu0
    %v962 = vadd.f32 0.0, %v961
    %v963 = vpop.f32.mrf.mxu0
    %v964 = vadd.f32 0.0, %v963
    %965 = vmatmul.bf16.gmra.mxu0 %v812
    %v966 = vpop.f32.mrf.mxu0
    %v967 = vadd.f32 0.0, %v966
    %v968 = vpop.f32.mrf.mxu0
    %v969 = vadd.f32 0.0, %v968
    %970 = vmatmul.bf16.gmra.mxu0 %v815
    %v971 = vpop.f32.mrf.mxu0
    %v972 = vadd.f32 0.0, %v971
    %v973 = vpop.f32.mrf.mxu0
    %v974 = vadd.f32 0.0, %v973
    %975 = vmatmul.bf16.gmra.mxu0 %v818
    %v976 = vpop.f32.mrf.mxu0
    %v977 = vadd.f32 0.0, %v976
    %v978 = vpop.f32.mrf.mxu0
    %v979 = vadd.f32 0.0, %v978
    %980 = vmatmul.bf16.gmra.mxu0 %v821
    %v981 = vpop.f32.mrf.mxu0
    %v982 = vadd.f32 0.0, %v981
    %v983 = vpop.f32.mrf.mxu0
    %v984 = vadd.f32 0.0, %v983
    %985 = vmatmul.bf16.gmra.mxu0 %v824
    %v986 = vpop.f32.mrf.mxu0
    %v987 = vadd.f32 0.0, %v986
    %v988 = vpop.f32.mrf.mxu0
    %v989 = vadd.f32 0.0, %v988
    %990 = vmatmul.bf16.gmra.mxu0 %v827
    %v991 = vpop.f32.mrf.mxu0
    %v992 = vadd.f32 0.0, %v991
    %v993 = vpop.f32.mrf.mxu0
    %v994 = vadd.f32 0.0, %v993
    %995 = vmatmul.bf16.gmra.mxu0 %v830
    %v996 = vpop.f32.mrf.mxu0
    %v997 = vadd.f32 0.0, %v996
    %v998 = vpop.f32.mrf.mxu0
    %v999 = vadd.f32 0.0, %v998
    %1000 = vmatmul.bf16.gmra.mxu0 %v833
    %v1001 = vpop.f32.mrf.mxu0
    %v1002 = vadd.f32 0.0, %v1001
    %v1003 = vpop.f32.mrf.mxu0
    %v1004 = vadd.f32 0.0, %v1003
    %1005 = vmatmul.bf16.gmra.mxu0 %v836
    %v1006 = vpop.f32.mrf.mxu0
    %v1007 = vadd.f32 0.0, %v1006
    %v1008 = vpop.f32.mrf.mxu0
    %v1009 = vadd.f32 0.0, %v1008
    %1010 = vdwg.mxu0
    %v1012 = vsel %vm101, %v355, 0
    %v1015 = vsel %vm101, %v356, 0
    %v1018 = vsel %vm101, %v357, 0
    %v1021 = vsel %vm101, %v358, 0
    %v1024 = vsel %vm101, %v359, 0
    %v1027 = vsel %vm101, %v360, 0
    %v1030 = vsel %vm101, %v361, 0
    %v1033 = vsel %vm101, %v362, 0
    %v1036 = vsel %vm101, %v363, 0
    %v1039 = vsel %vm101, %v364, 0
    %v1042 = vsel %vm101, %v365, 0
    %v1045 = vsel %vm101, %v366, 0
    %v1048 = vsel %vm101, %v367, 0
    %v1051 = vsel %vm101, %v368, 0
    %v1054 = vsel %vm101, %v369, 0
    %v1057 = vsel %vm101, %v370, 0
    %v1060 = vsel %vm101, %v371, 0
    %v1063 = vsel %vm101, %v372, 0
    %v1066 = vsel %vm101, %v373, 0
    %v1069 = vsel %vm101, %v374, 0
    %v1072 = vsel %vm101, %v375, 0
    %v1075 = vsel %vm101, %v376, 0
    %v1078 = vsel %vm101, %v377, 0
    %v1081 = vsel %vm101, %v378, 0
    %v1084 = vsel %vm101, %v379, 0
    %v1087 = vsel %vm101, %v380, 0
    %v1090 = vsel %vm101, %v381, 0
    %v1093 = vsel %vm101, %v382, 0
    %v1096 = vsel %vm101, %v383, 0
    %v1099 = vsel %vm101, %v384, 0
    %v1102 = vsel %vm101, %v385, 0
    %v1105 = vsel %vm101, %v386, 0
    %v1108 = vsel %vm838, %v354, 0
    %1110 = vmatpush.bf16.msra.mxu0 0
    %1111 = vmatpush.bf16.msra.mxu0 0
    %1112 = vmatpush.bf16.msra.mxu0 0
    %1113 = vmatpush.bf16.msra.mxu0 0
    %1114 = vmatpush.bf16.msra.mxu0 0
    %1115 = vmatpush.bf16.msra.mxu0 0
    %1116 = vmatpush.bf16.msra.mxu0 0
    %1117 = vmatpush.bf16.msra.mxu0 %v1108
    %1118 = vmatmul.bf16.gmra.mxu0 %v1012
    %v1119 = vpop.f32.mrf.mxu0
    %v1120 = vadd.f32 %v852, %v1119
    %v1121 = vpop.f32.mrf.mxu0
    %v1122 = vadd.f32 %v854, %v1121
    %1123 = vmatmul.bf16.gmra.mxu0 %v1015
    %v1124 = vpop.f32.mrf.mxu0
    %v1125 = vadd.f32 %v857, %v1124
    %v1126 = vpop.f32.mrf.mxu0
    %v1127 = vadd.f32 %v859, %v1126
    %1128 = vmatmul.bf16.gmra.mxu0 %v1018
    %v1129 = vpop.f32.mrf.mxu0
    %v1130 = vadd.f32 %v862, %v1129
    %v1131 = vpop.f32.mrf.mxu0
    %v1132 = vadd.f32 %v864, %v1131
    %1133 = vmatmul.bf16.gmra.mxu0 %v1021
    %v1134 = vpop.f32.mrf.mxu0
    %v1135 = vadd.f32 %v867, %v1134
    %v1136 = vpop.f32.mrf.mxu0
    %v1137 = vadd.f32 %v869, %v1136
    %1138 = vmatmul.bf16.gmra.mxu0 %v1024
    %v1139 = vpop.f32.mrf.mxu0
    %v1140 = vadd.f32 %v872, %v1139
    %v1141 = vpop.f32.mrf.mxu0
    %v1142 = vadd.f32 %v874, %v1141
    %1143 = vmatmul.bf16.gmra.mxu0 %v1027
    %v1144 = vpop.f32.mrf.mxu0
    %v1145 = vadd.f32 %v877, %v1144
    %v1146 = vpop.f32.mrf.mxu0
    %v1147 = vadd.f32 %v879, %v1146
    %1148 = vmatmul.bf16.gmra.mxu0 %v1030
    %v1149 = vpop.f32.mrf.mxu0
    %v1150 = vadd.f32 %v882, %v1149
    %v1151 = vpop.f32.mrf.mxu0
    %v1152 = vadd.f32 %v884, %v1151
    %1153 = vmatmul.bf16.gmra.mxu0 %v1033
    %v1154 = vpop.f32.mrf.mxu0
    %v1155 = vadd.f32 %v887, %v1154
    %v1156 = vpop.f32.mrf.mxu0
    %v1157 = vadd.f32 %v889, %v1156
    %1158 = vmatmul.bf16.gmra.mxu0 %v1036
    %v1159 = vpop.f32.mrf.mxu0
    %v1160 = vadd.f32 %v892, %v1159
    %v1161 = vpop.f32.mrf.mxu0
    %v1162 = vadd.f32 %v894, %v1161
    %1163 = vmatmul.bf16.gmra.mxu0 %v1039
    %v1164 = vpop.f32.mrf.mxu0
    %v1165 = vadd.f32 %v897, %v1164
    %v1166 = vpop.f32.mrf.mxu0
    %v1167 = vadd.f32 %v899, %v1166
    %1168 = vmatmul.bf16.gmra.mxu0 %v1042
    %v1169 = vpop.f32.mrf.mxu0
    %v1170 = vadd.f32 %v902, %v1169
    %v1171 = vpop.f32.mrf.mxu0
    %v1172 = vadd.f32 %v904, %v1171
    %1173 = vmatmul.bf16.gmra.mxu0 %v1045
    %v1174 = vpop.f32.mrf.mxu0
    %v1175 = vadd.f32 %v907, %v1174
    %v1176 = vpop.f32.mrf.mxu0
    %v1177 = vadd.f32 %v909, %v1176
    %1178 = vmatmul.bf16.gmra.mxu0 %v1048
    %v1179 = vpop.f32.mrf.mxu0
    %v1180 = vadd.f32 %v912, %v1179
    %v1181 = vpop.f32.mrf.mxu0
    %v1182 = vadd.f32 %v914, %v1181
    %1183 = vmatmul.bf16.gmra.mxu0 %v1051
    %v1184 = vpop.f32.mrf.mxu0
    %v1185 = vadd.f32 %v917, %v1184
    %v1186 = vpop.f32.mrf.mxu0
    %v1187 = vadd.f32 %v919, %v1186
    %1188 = vmatmul.bf16.gmra.mxu0 %v1054
    %v1189 = vpop.f32.mrf.mxu0
    %v1190 = vadd.f32 %v922, %v1189
    %v1191 = vpop.f32.mrf.mxu0
    %v1192 = vadd.f32 %v924, %v1191
    %1193 = vmatmul.bf16.gmra.mxu0 %v1057
    %v1194 = vpop.f32.mrf.mxu0
    %v1195 = vadd.f32 %v927, %v1194
    %v1196 = vpop.f32.mrf.mxu0
    %v1197 = vadd.f32 %v929, %v1196
    %1198 = vmatmul.bf16.gmra.mxu0 %v1060
    %v1199 = vpop.f32.mrf.mxu0
    %v1200 = vadd.f32 %v932, %v1199
    %v1201 = vpop.f32.mrf.mxu0
    %v1202 = vadd.f32 %v934, %v1201
    %1203 = vmatmul.bf16.gmra.mxu0 %v1063
    %v1204 = vpop.f32.mrf.mxu0
    %v1205 = vadd.f32 %v937, %v1204
    %v1206 = vpop.f32.mrf.mxu0
    %v1207 = vadd.f32 %v939, %v1206
    %1208 = vmatmul.bf16.gmra.mxu0 %v1066
    %v1209 = vpop.f32.mrf.mxu0
    %v1210 = vadd.f32 %v942, %v1209
    %v1211 = vpop.f32.mrf.mxu0
    %v1212 = vadd.f32 %v944, %v1211
    %1213 = vmatmul.bf16.gmra.mxu0 %v1069
    %v1214 = vpop.f32.mrf.mxu0
    %v1215 = vadd.f32 %v947, %v1214
    %v1216 = vpop.f32.mrf.mxu0
    %v1217 = vadd.f32 %v949, %v1216
    %1218 = vmatmul.bf16.gmra.mxu0 %v1072
    %v1219 = vpop.f32.mrf.mxu0
    %v1220 = vadd.f32 %v952, %v1219
    %v1221 = vpop.f32.mrf.mxu0
    %v1222 = vadd.f32 %v954, %v1221
    %1223 = vmatmul.bf16.gmra.mxu0 %v1075
    %v1224 = vpop.f32.mrf.mxu0
    %v1225 = vadd.f32 %v957, %v1224
    %v1226 = vpop.f32.mrf.mxu0
    %v1227 = vadd.f32 %v959, %v1226
    %1228 = vmatmul.bf16.gmra.mxu0 %v1078
    %v1229 = vpop.f32.mrf.mxu0
    %v1230 = vadd.f32 %v962, %v1229
    %v1231 = vpop.f32.mrf.mxu0
    %v1232 = vadd.f32 %v964, %v1231
    %1233 = vmatmul.bf16.gmra.mxu0 %v1081
    %v1234 = vpop.f32.mrf.mxu0
    %v1235 = vadd.f32 %v967, %v1234
    %v1236 = vpop.f32.mrf.mxu0
    %v1237 = vadd.f32 %v969, %v1236
    %1238 = vmatmul.bf16.gmra.mxu0 %v1084
    %v1239 = vpop.f32.mrf.mxu0
    %v1240 = vadd.f32 %v972, %v1239
    %v1241 = vpop.f32.mrf.mxu0
    %v1242 = vadd.f32 %v974, %v1241
    %1243 = vmatmul.bf16.gmra.mxu0 %v1087
    %v1244 = vpop.f32.mrf.mxu0
    %v1245 = vadd.f32 %v977, %v1244
    %v1246 = vpop.f32.mrf.mxu0
    %v1247 = vadd.f32 %v979, %v1246
    %1248 = vmatmul.bf16.gmra.mxu0 %v1090
    %v1249 = vpop.f32.mrf.mxu0
    %v1250 = vadd.f32 %v982, %v1249
    %v1251 = vpop.f32.mrf.mxu0
    %v1252 = vadd.f32 %v984, %v1251
    %1253 = vmatmul.bf16.gmra.mxu0 %v1093
    %v1254 = vpop.f32.mrf.mxu0
    %v1255 = vadd.f32 %v987, %v1254
    %v1256 = vpop.f32.mrf.mxu0
    %v1257 = vadd.f32 %v989, %v1256
    %1258 = vmatmul.bf16.gmra.mxu0 %v1096
    %v1259 = vpop.f32.mrf.mxu0
    %v1260 = vadd.f32 %v992, %v1259
    %v1261 = vpop.f32.mrf.mxu0
    %v1262 = vadd.f32 %v994, %v1261
    %1263 = vmatmul.bf16.gmra.mxu0 %v1099
    %v1264 = vpop.f32.mrf.mxu0
    %v1265 = vadd.f32 %v997, %v1264
    %v1266 = vpop.f32.mrf.mxu0
    %v1267 = vadd.f32 %v999, %v1266
    %1268 = vmatmul.bf16.gmra.mxu0 %v1102
    %v1269 = vpop.f32.mrf.mxu0
    %v1270 = vadd.f32 %v1002, %v1269
    %v1271 = vpop.f32.mrf.mxu0
    %v1272 = vadd.f32 %v1004, %v1271
    %1273 = vmatmul.bf16.gmra.mxu0 %v1105
    %v1274 = vpop.f32.mrf.mxu0
    %v1275 = vadd.f32 %v1007, %v1274
    %v1276 = vpop.f32.mrf.mxu0
    %v1277 = vadd.f32 %v1009, %v1276
    %1278 = vdwg.mxu0
    %vm1279 = vcmask 1045504
    %v1280 = vrot.slane %v246, 2
    %v1281 = vrot.slane %v247, 2
    %v1282 = vsel %vm1279, %v1280, %v1281
    %v1283 = vrot.slane %v248, 2
    %v1284 = vsel %vm1279, %v1281, %v1283
    %v1285 = vrot.slane %v249, 2
    %v1286 = vrot.slane %v250, 2
    %v1287 = vsel %vm1279, %v1285, %v1286
    %v1288 = vrot.slane %v251, 2
    %v1289 = vsel %vm1279, %v1286, %v1288
    %v1290 = vrot.slane %v252, 2
    %v1291 = vrot.slane %v253, 2
    %v1292 = vsel %vm1279, %v1290, %v1291
    %v1293 = vrot.slane %v254, 2
    %v1294 = vsel %vm1279, %v1291, %v1293
    %v1295 = vrot.slane %v255, 2
    %v1296 = vrot.slane %v256, 2
    %v1297 = vsel %vm1279, %v1295, %v1296
    %v1298 = vrot.slane %v257, 2
    %v1299 = vsel %vm1279, %v1296, %v1298
    %v1300 = vrot.slane %v258, 2
    %v1301 = vrot.slane %v259, 2
    %v1302 = vsel %vm1279, %v1300, %v1301
    %v1303 = vrot.slane %v260, 2
    %v1304 = vsel %vm1279, %v1301, %v1303
    %v1305 = vrot.slane %v261, 2
    %v1306 = vrot.slane %v262, 2
    %v1307 = vsel %vm1279, %v1305, %v1306
    %v1308 = vrot.slane %v263, 2
    %v1309 = vsel %vm1279, %v1306, %v1308
    %v1310 = vrot.slane %v264, 2
    %v1311 = vrot.slane %v265, 2
    %v1312 = vsel %vm1279, %v1310, %v1311
    %v1313 = vrot.slane %v266, 2
    %v1314 = vsel %vm1279, %v1311, %v1313
    %v1315 = vrot.slane %v267, 2
    %v1316 = vrot.slane %v268, 2
    %v1317 = vsel %vm1279, %v1315, %v1316
    %v1318 = vrot.slane %v269, 2
    %v1319 = vsel %vm1279, %v1316, %v1318
    %v1320 = vrot.slane %v270, 2
    %v1321 = vrot.slane %v271, 2
    %v1322 = vsel %vm1279, %v1320, %v1321
    %v1323 = vrot.slane %v272, 2
    %v1324 = vsel %vm1279, %v1321, %v1323
    %v1325 = vrot.slane %v273, 2
    %v1326 = vrot.slane %v274, 2
    %v1327 = vsel %vm1279, %v1325, %v1326
    %v1328 = vrot.slane %v275, 2
    %v1329 = vsel %vm1279, %v1326, %v1328
    %v1330 = vrot.slane %v276, 2
    %v1331 = vrot.slane %v277, 2
    %v1332 = vsel %vm1279, %v1330, %v1331
    %v1333 = vrot.slane %v278, 2
    %v1334 = vsel %vm1279, %v1331, %v1333
    %v1335 = vrot.slane %v279, 2
    %v1336 = vrot.slane %v280, 2
    %v1337 = vsel %vm1279, %v1335, %v1336
    %v1338 = vrot.slane %v281, 2
    %v1339 = vsel %vm1279, %v1336, %v1338
    %v1340 = vrot.slane %v282, 2
    %v1341 = vrot.slane %v283, 2
    %v1342 = vsel %vm1279, %v1340, %v1341
    %v1343 = vrot.slane %v284, 2
    %v1344 = vsel %vm1279, %v1341, %v1343
    %v1345 = vrot.slane %v285, 2
    %v1346 = vrot.slane %v286, 2
    %v1347 = vsel %vm1279, %v1345, %v1346
    %v1348 = vrot.slane %v287, 2
    %v1349 = vsel %vm1279, %v1346, %v1348
    %v1350 = vrot.slane %v288, 2
    %v1351 = vrot.slane %v289, 2
    %v1352 = vsel %vm1279, %v1350, %v1351
    %v1353 = vrot.slane %v290, 2
    %v1354 = vsel %vm1279, %v1351, %v1353
    %v1355 = vrot.slane %v291, 2
    %v1356 = vrot.slane %v292, 2
    %v1357 = vsel %vm1279, %v1355, %v1356
    %v1358 = vrot.slane %v293, 2
    %v1359 = vsel %vm1279, %v1356, %v1358
    %v1360 = vrot.slane %v300, 2
    %v1361 = vrot.slane %v301, 2
    %v1362 = vsel %vm1279, %v1360, %v1361
    %v1363 = vrot.slane %v302, 2
    %v1364 = vsel %vm1279, %v1361, %v1363
    %v1365 = vrot.slane %v303, 2
    %v1366 = vrot.slane %v304, 2
    %v1367 = vsel %vm1279, %v1365, %v1366
    %v1368 = vrot.slane %v305, 2
    %v1369 = vsel %vm1279, %v1366, %v1368
    %v1370 = vrot.slane %v306, 2
    %v1371 = vrot.slane %v307, 2
    %v1372 = vsel %vm1279, %v1370, %v1371
    %v1373 = vrot.slane %v308, 2
    %v1374 = vsel %vm1279, %v1371, %v1373
    %v1375 = vrot.slane %v309, 2
    %v1376 = vrot.slane %v310, 2
    %v1377 = vsel %vm1279, %v1375, %v1376
    %v1378 = vrot.slane %v311, 2
    %v1379 = vsel %vm1279, %v1376, %v1378
    %v1380 = vrot.slane %v312, 2
    %v1381 = vrot.slane %v313, 2
    %v1382 = vsel %vm1279, %v1380, %v1381
    %v1383 = vrot.slane %v314, 2
    %v1384 = vsel %vm1279, %v1381, %v1383
    %v1385 = vrot.slane %v315, 2
    %v1386 = vrot.slane %v316, 2
    %v1387 = vsel %vm1279, %v1385, %v1386
    %v1388 = vrot.slane %v317, 2
    %v1389 = vsel %vm1279, %v1386, %v1388
    %v1390 = vrot.slane %v318, 2
    %v1391 = vrot.slane %v319, 2
    %v1392 = vsel %vm1279, %v1390, %v1391
    %v1393 = vrot.slane %v320, 2
    %v1394 = vsel %vm1279, %v1391, %v1393
    %v1395 = vrot.slane %v321, 2
    %v1396 = vrot.slane %v322, 2
    %v1397 = vsel %vm1279, %v1395, %v1396
    %v1398 = vrot.slane %v323, 2
    %v1399 = vsel %vm1279, %v1396, %v1398
    %v1400 = vrot.slane %v324, 2
    %v1401 = vrot.slane %v325, 2
    %v1402 = vsel %vm1279, %v1400, %v1401
    %v1403 = vrot.slane %v326, 2
    %v1404 = vsel %vm1279, %v1401, %v1403
    %v1405 = vrot.slane %v327, 2
    %v1406 = vrot.slane %v328, 2
    %v1407 = vsel %vm1279, %v1405, %v1406
    %v1408 = vrot.slane %v329, 2
    %v1409 = vsel %vm1279, %v1406, %v1408
    %v1410 = vrot.slane %v330, 2
    %v1411 = vrot.slane %v331, 2
    %v1412 = vsel %vm1279, %v1410, %v1411
    %v1413 = vrot.slane %v332, 2
    %v1414 = vsel %vm1279, %v1411, %v1413
    %v1415 = vrot.slane %v333, 2
    %v1416 = vrot.slane %v334, 2
    %v1417 = vsel %vm1279, %v1415, %v1416
    %v1418 = vrot.slane %v335, 2
    %v1419 = vsel %vm1279, %v1416, %v1418
    %v1420 = vrot.slane %v336, 2
    %v1421 = vrot.slane %v337, 2
    %v1422 = vsel %vm1279, %v1420, %v1421
    %v1423 = vrot.slane %v338, 2
    %v1424 = vsel %vm1279, %v1421, %v1423
    %v1425 = vrot.slane %v339, 2
    %v1426 = vrot.slane %v340, 2
    %v1427 = vsel %vm1279, %v1425, %v1426
    %v1428 = vrot.slane %v341, 2
    %v1429 = vsel %vm1279, %v1426, %v1428
    %v1430 = vrot.slane %v342, 2
    %v1431 = vrot.slane %v343, 2
    %v1432 = vsel %vm1279, %v1430, %v1431
    %v1433 = vrot.slane %v344, 2
    %v1434 = vsel %vm1279, %v1431, %v1433
    %v1435 = vrot.slane %v345, 2
    %v1436 = vrot.slane %v346, 2
    %v1437 = vsel %vm1279, %v1435, %v1436
    %v1438 = vrot.slane %v347, 2
    %v1439 = vsel %vm1279, %v1436, %v1438
    %s1504 = scalar_lea.vmem %s1, 8
    %v1505 = vld [vmem:[%s1504] sm:$0xf]
    %v1506 = vpack.c.bf16 %v1284, %v1282
    %v1507 = vpack.c.bf16 %v1289, %v1287
    %v1508 = vpack.c.bf16 %v1294, %v1292
    %v1509 = vpack.c.bf16 %v1299, %v1297
    %v1510 = vpack.c.bf16 %v1304, %v1302
    %v1511 = vpack.c.bf16 %v1309, %v1307
    %v1512 = vpack.c.bf16 %v1314, %v1312
    %v1513 = vpack.c.bf16 %v1319, %v1317
    %v1514 = vpack.c.bf16 %v1324, %v1322
    %v1515 = vpack.c.bf16 %v1329, %v1327
    %v1516 = vpack.c.bf16 %v1334, %v1332
    %v1517 = vpack.c.bf16 %v1339, %v1337
    %v1518 = vpack.c.bf16 %v1344, %v1342
    %v1519 = vpack.c.bf16 %v1349, %v1347
    %v1520 = vpack.c.bf16 %v1354, %v1352
    %v1521 = vpack.c.bf16 %v1359, %v1357
    %v1522 = vpack.c.bf16 %v1364, %v1362
    %v1523 = vpack.c.bf16 %v1369, %v1367
    %v1524 = vpack.c.bf16 %v1374, %v1372
    %v1525 = vpack.c.bf16 %v1379, %v1377
    %v1526 = vpack.c.bf16 %v1384, %v1382
    %v1527 = vpack.c.bf16 %v1389, %v1387
    %v1528 = vpack.c.bf16 %v1394, %v1392
    %v1529 = vpack.c.bf16 %v1399, %v1397
    %v1530 = vpack.c.bf16 %v1404, %v1402
    %v1531 = vpack.c.bf16 %v1409, %v1407
    %v1532 = vpack.c.bf16 %v1414, %v1412
    %v1533 = vpack.c.bf16 %v1419, %v1417
    %v1534 = vpack.c.bf16 %v1424, %v1422
    %v1535 = vpack.c.bf16 %v1429, %v1427
    %v1536 = vpack.c.bf16 %v1434, %v1432
    %v1537 = vpack.c.bf16 %v1439, %v1437
    %v1539 = vsel %vm101, %v1506, 0
    %v1542 = vsel %vm101, %v1507, 0
    %v1545 = vsel %vm101, %v1508, 0
    %v1548 = vsel %vm101, %v1509, 0
    %v1551 = vsel %vm101, %v1510, 0
    %v1554 = vsel %vm101, %v1511, 0
    %v1557 = vsel %vm101, %v1512, 0
    %v1560 = vsel %vm101, %v1513, 0
    %v1563 = vsel %vm101, %v1514, 0
    %v1566 = vsel %vm101, %v1515, 0
    %v1569 = vsel %vm101, %v1516, 0
    %v1572 = vsel %vm101, %v1517, 0
    %v1575 = vsel %vm101, %v1518, 0
    %v1578 = vsel %vm101, %v1519, 0
    %v1581 = vsel %vm101, %v1520, 0
    %v1584 = vsel %vm101, %v1521, 0
    %v1587 = vsel %vm101, %v1522, 0
    %v1590 = vsel %vm101, %v1523, 0
    %v1593 = vsel %vm101, %v1524, 0
    %v1596 = vsel %vm101, %v1525, 0
    %v1599 = vsel %vm101, %v1526, 0
    %v1602 = vsel %vm101, %v1527, 0
    %v1605 = vsel %vm101, %v1528, 0
    %v1608 = vsel %vm101, %v1529, 0
    %v1611 = vsel %vm101, %v1530, 0
    %v1614 = vsel %vm101, %v1531, 0
    %v1617 = vsel %vm101, %v1532, 0
    %v1620 = vsel %vm101, %v1533, 0
    %v1623 = vsel %vm101, %v1534, 0
    %v1626 = vsel %vm101, %v1535, 0
    %v1629 = vsel %vm101, %v1536, 0
    %v1632 = vsel %vm101, %v1537, 0
    %v1635 = vsel %vm838, %v1505, 0
    %1637 = vmatpush.bf16.msra.mxu0 0
    %1638 = vmatpush.bf16.msra.mxu0 0
    %1639 = vmatpush.bf16.msra.mxu0 0
    %1640 = vmatpush.bf16.msra.mxu0 0
    %1641 = vmatpush.bf16.msra.mxu0 0
    %1642 = vmatpush.bf16.msra.mxu0 0
    %1643 = vmatpush.bf16.msra.mxu0 0
    %1644 = vmatpush.bf16.msra.mxu0 %v1635
    %1645 = vmatmul.bf16.gmra.mxu0 %v1539
    %v1646 = vpop.f32.mrf.mxu0
    %v1647 = vadd.f32 0.0, %v1646
    %v1648 = vpop.f32.mrf.mxu0
    %v1649 = vadd.f32 0.0, %v1648
    %1650 = vmatmul.bf16.gmra.mxu0 %v1542
    %v1651 = vpop.f32.mrf.mxu0
    %v1652 = vadd.f32 0.0, %v1651
    %v1653 = vpop.f32.mrf.mxu0
    %v1654 = vadd.f32 0.0, %v1653
    %1655 = vmatmul.bf16.gmra.mxu0 %v1545
    %v1656 = vpop.f32.mrf.mxu0
    %v1657 = vadd.f32 0.0, %v1656
    %v1658 = vpop.f32.mrf.mxu0
    %v1659 = vadd.f32 0.0, %v1658
    %1660 = vmatmul.bf16.gmra.mxu0 %v1548
    %v1661 = vpop.f32.mrf.mxu0
    %v1662 = vadd.f32 0.0, %v1661
    %v1663 = vpop.f32.mrf.mxu0
    %v1664 = vadd.f32 0.0, %v1663
    %1665 = vmatmul.bf16.gmra.mxu0 %v1551
    %v1666 = vpop.f32.mrf.mxu0
    %v1667 = vadd.f32 0.0, %v1666
    %v1668 = vpop.f32.mrf.mxu0
    %v1669 = vadd.f32 0.0, %v1668
    %1670 = vmatmul.bf16.gmra.mxu0 %v1554
    %v1671 = vpop.f32.mrf.mxu0
    %v1672 = vadd.f32 0.0, %v1671
    %v1673 = vpop.f32.mrf.mxu0
    %v1674 = vadd.f32 0.0, %v1673
    %1675 = vmatmul.bf16.gmra.mxu0 %v1557
    %v1676 = vpop.f32.mrf.mxu0
    %v1677 = vadd.f32 0.0, %v1676
    %v1678 = vpop.f32.mrf.mxu0
    %v1679 = vadd.f32 0.0, %v1678
    %1680 = vmatmul.bf16.gmra.mxu0 %v1560
    %v1681 = vpop.f32.mrf.mxu0
    %v1682 = vadd.f32 0.0, %v1681
    %v1683 = vpop.f32.mrf.mxu0
    %v1684 = vadd.f32 0.0, %v1683
    %1685 = vmatmul.bf16.gmra.mxu0 %v1563
    %v1686 = vpop.f32.mrf.mxu0
    %v1687 = vadd.f32 0.0, %v1686
    %v1688 = vpop.f32.mrf.mxu0
    %v1689 = vadd.f32 0.0, %v1688
    %1690 = vmatmul.bf16.gmra.mxu0 %v1566
    %v1691 = vpop.f32.mrf.mxu0
    %v1692 = vadd.f32 0.0, %v1691
    %v1693 = vpop.f32.mrf.mxu0
    %v1694 = vadd.f32 0.0, %v1693
    %1695 = vmatmul.bf16.gmra.mxu0 %v1569
    %v1696 = vpop.f32.mrf.mxu0
    %v1697 = vadd.f32 0.0, %v1696
    %v1698 = vpop.f32.mrf.mxu0
    %v1699 = vadd.f32 0.0, %v1698
    %1700 = vmatmul.bf16.gmra.mxu0 %v1572
    %v1701 = vpop.f32.mrf.mxu0
    %v1702 = vadd.f32 0.0, %v1701
    %v1703 = vpop.f32.mrf.mxu0
    %v1704 = vadd.f32 0.0, %v1703
    %1705 = vmatmul.bf16.gmra.mxu0 %v1575
    %v1706 = vpop.f32.mrf.mxu0
    %v1707 = vadd.f32 0.0, %v1706
    %v1708 = vpop.f32.mrf.mxu0
    %v1709 = vadd.f32 0.0, %v1708
    %1710 = vmatmul.bf16.gmra.mxu0 %v1578
    %v1711 = vpop.f32.mrf.mxu0
    %v1712 = vadd.f32 0.0, %v1711
    %v1713 = vpop.f32.mrf.mxu0
    %v1714 = vadd.f32 0.0, %v1713
    %1715 = vmatmul.bf16.gmra.mxu0 %v1581
    %v1716 = vpop.f32.mrf.mxu0
    %v1717 = vadd.f32 0.0, %v1716
    %v1718 = vpop.f32.mrf.mxu0
    %v1719 = vadd.f32 0.0, %v1718
    %1720 = vmatmul.bf16.gmra.mxu0 %v1584
    %v1721 = vpop.f32.mrf.mxu0
    %v1722 = vadd.f32 0.0, %v1721
    %v1723 = vpop.f32.mrf.mxu0
    %v1724 = vadd.f32 0.0, %v1723
    %1725 = vmatmul.bf16.gmra.mxu0 %v1587
    %v1726 = vpop.f32.mrf.mxu0
    %v1727 = vadd.f32 0.0, %v1726
    %v1728 = vpop.f32.mrf.mxu0
    %v1729 = vadd.f32 0.0, %v1728
    %1730 = vmatmul.bf16.gmra.mxu0 %v1590
    %v1731 = vpop.f32.mrf.mxu0
    %v1732 = vadd.f32 0.0, %v1731
    %v1733 = vpop.f32.mrf.mxu0
    %v1734 = vadd.f32 0.0, %v1733
    %1735 = vmatmul.bf16.gmra.mxu0 %v1593
    %v1736 = vpop.f32.mrf.mxu0
    %v1737 = vadd.f32 0.0, %v1736
    %v1738 = vpop.f32.mrf.mxu0
    %v1739 = vadd.f32 0.0, %v1738
    %1740 = vmatmul.bf16.gmra.mxu0 %v1596
    %v1741 = vpop.f32.mrf.mxu0
    %v1742 = vadd.f32 0.0, %v1741
    %v1743 = vpop.f32.mrf.mxu0
    %v1744 = vadd.f32 0.0, %v1743
    %1745 = vmatmul.bf16.gmra.mxu0 %v1599
    %v1746 = vpop.f32.mrf.mxu0
    %v1747 = vadd.f32 0.0, %v1746
    %v1748 = vpop.f32.mrf.mxu0
    %v1749 = vadd.f32 0.0, %v1748
    %1750 = vmatmul.bf16.gmra.mxu0 %v1602
    %v1751 = vpop.f32.mrf.mxu0
    %v1752 = vadd.f32 0.0, %v1751
    %v1753 = vpop.f32.mrf.mxu0
    %v1754 = vadd.f32 0.0, %v1753
    %1755 = vmatmul.bf16.gmra.mxu0 %v1605
    %v1756 = vpop.f32.mrf.mxu0
    %v1757 = vadd.f32 0.0, %v1756
    %v1758 = vpop.f32.mrf.mxu0
    %v1759 = vadd.f32 0.0, %v1758
    %1760 = vmatmul.bf16.gmra.mxu0 %v1608
    %v1761 = vpop.f32.mrf.mxu0
    %v1762 = vadd.f32 0.0, %v1761
    %v1763 = vpop.f32.mrf.mxu0
    %v1764 = vadd.f32 0.0, %v1763
    %1765 = vmatmul.bf16.gmra.mxu0 %v1611
    %v1766 = vpop.f32.mrf.mxu0
    %v1767 = vadd.f32 0.0, %v1766
    %v1768 = vpop.f32.mrf.mxu0
    %v1769 = vadd.f32 0.0, %v1768
    %1770 = vmatmul.bf16.gmra.mxu0 %v1614
    %v1771 = vpop.f32.mrf.mxu0
    %v1772 = vadd.f32 0.0, %v1771
    %v1773 = vpop.f32.mrf.mxu0
    %v1774 = vadd.f32 0.0, %v1773
    %1775 = vmatmul.bf16.gmra.mxu0 %v1617
    %v1776 = vpop.f32.mrf.mxu0
    %v1777 = vadd.f32 0.0, %v1776
    %v1778 = vpop.f32.mrf.mxu0
    %v1779 = vadd.f32 0.0, %v1778
    %1780 = vmatmul.bf16.gmra.mxu0 %v1620
    %v1781 = vpop.f32.mrf.mxu0
    %v1782 = vadd.f32 0.0, %v1781
    %v1783 = vpop.f32.mrf.mxu0
    %v1784 = vadd.f32 0.0, %v1783
    %1785 = vmatmul.bf16.gmra.mxu0 %v1623
    %v1786 = vpop.f32.mrf.mxu0
    %v1787 = vadd.f32 0.0, %v1786
    %v1788 = vpop.f32.mrf.mxu0
    %v1789 = vadd.f32 0.0, %v1788
    %1790 = vmatmul.bf16.gmra.mxu0 %v1626
    %v1791 = vpop.f32.mrf.mxu0
    %v1792 = vadd.f32 0.0, %v1791
    %v1793 = vpop.f32.mrf.mxu0
    %v1794 = vadd.f32 0.0, %v1793
    %1795 = vmatmul.bf16.gmra.mxu0 %v1629
    %v1796 = vpop.f32.mrf.mxu0
    %v1797 = vadd.f32 0.0, %v1796
    %v1798 = vpop.f32.mrf.mxu0
    %v1799 = vadd.f32 0.0, %v1798
    %1800 = vmatmul.bf16.gmra.mxu0 %v1632
    %v1801 = vpop.f32.mrf.mxu0
    %v1802 = vadd.f32 0.0, %v1801
    %v1803 = vpop.f32.mrf.mxu0
    %v1804 = vadd.f32 0.0, %v1803
    %1805 = vdwg.mxu0
    %v1806 = vadd.f32 %v1120, %v1647
    %v1807 = vadd.f32 %v1122, %v1649
    %v1808 = vadd.f32 %v1125, %v1652
    %v1809 = vadd.f32 %v1127, %v1654
    %v1810 = vadd.f32 %v1130, %v1657
    %v1811 = vadd.f32 %v1132, %v1659
    %v1812 = vadd.f32 %v1135, %v1662
    %v1813 = vadd.f32 %v1137, %v1664
    %v1814 = vadd.f32 %v1140, %v1667
    %v1815 = vadd.f32 %v1142, %v1669
    %v1816 = vadd.f32 %v1145, %v1672
    %v1817 = vadd.f32 %v1147, %v1674
    %v1818 = vadd.f32 %v1150, %v1677
    %v1819 = vadd.f32 %v1152, %v1679
    %v1820 = vadd.f32 %v1155, %v1682
    %v1821 = vadd.f32 %v1157, %v1684
    %v1822 = vadd.f32 %v1160, %v1687
    %v1823 = vadd.f32 %v1162, %v1689
    %v1824 = vadd.f32 %v1165, %v1692
    %v1825 = vadd.f32 %v1167, %v1694
    %v1826 = vadd.f32 %v1170, %v1697
    %v1827 = vadd.f32 %v1172, %v1699
    %v1828 = vadd.f32 %v1175, %v1702
    %v1829 = vadd.f32 %v1177, %v1704
    %v1830 = vadd.f32 %v1180, %v1707
    %v1831 = vadd.f32 %v1182, %v1709
    %v1832 = vadd.f32 %v1185, %v1712
    %v1833 = vadd.f32 %v1187, %v1714
    %v1834 = vadd.f32 %v1190, %v1717
    %v1835 = vadd.f32 %v1192, %v1719
    %v1836 = vadd.f32 %v1195, %v1722
    %v1837 = vadd.f32 %v1197, %v1724
    %v1838 = vadd.f32 %v1200, %v1727
    %v1839 = vadd.f32 %v1202, %v1729
    %v1840 = vadd.f32 %v1205, %v1732
    %v1841 = vadd.f32 %v1207, %v1734
    %v1842 = vadd.f32 %v1210, %v1737
    %v1843 = vadd.f32 %v1212, %v1739
    %v1844 = vadd.f32 %v1215, %v1742
    %v1845 = vadd.f32 %v1217, %v1744
    %v1846 = vadd.f32 %v1220, %v1747
    %v1847 = vadd.f32 %v1222, %v1749
    %v1848 = vadd.f32 %v1225, %v1752
    %v1849 = vadd.f32 %v1227, %v1754
    %v1850 = vadd.f32 %v1230, %v1757
    %v1851 = vadd.f32 %v1232, %v1759
    %v1852 = vadd.f32 %v1235, %v1762
    %v1853 = vadd.f32 %v1237, %v1764
    %v1854 = vadd.f32 %v1240, %v1767
    %v1855 = vadd.f32 %v1242, %v1769
    %v1856 = vadd.f32 %v1245, %v1772
    %v1857 = vadd.f32 %v1247, %v1774
    %v1858 = vadd.f32 %v1250, %v1777
    %v1859 = vadd.f32 %v1252, %v1779
    %v1860 = vadd.f32 %v1255, %v1782
    %v1861 = vadd.f32 %v1257, %v1784
    %v1862 = vadd.f32 %v1260, %v1787
    %v1863 = vadd.f32 %v1262, %v1789
    %v1864 = vadd.f32 %v1265, %v1792
    %v1865 = vadd.f32 %v1267, %v1794
    %v1866 = vadd.f32 %v1270, %v1797
    %v1867 = vadd.f32 %v1272, %v1799
    %v1868 = vadd.f32 %v1275, %v1802
    %v1869 = vadd.f32 %v1277, %v1804
    %s1870 = scalar_lea.vmem %s1, 12
    %v1871 = vld [vmem:[%s1870] sm:$0xf]
    %v1872 = vpack.c.bf16 %v295, %v294
    %v1873 = vpack.c.bf16 %v349, %v348
    %v1875 = vsel %vm101, %v1872, 0
    %v1878 = vsel %vm101, %v1873, 0
    %v1881 = vsel %vm838, %v1871, 0
    %1883 = vmatpush.bf16.msra.mxu0 0
    %1884 = vmatpush.bf16.msra.mxu0 0
    %1885 = vmatpush.bf16.msra.mxu0 0
    %1886 = vmatpush.bf16.msra.mxu0 0
    %1887 = vmatpush.bf16.msra.mxu0 0
    %1888 = vmatpush.bf16.msra.mxu0 0
    %1889 = vmatpush.bf16.msra.mxu0 0
    %1890 = vmatpush.bf16.msra.mxu0 %v1881
    %1891 = vmatmul.bf16.gmra.mxu0 %v1015
    %v1892 = vpop.f32.mrf.mxu0
    %v1893 = vadd.f32 0.0, %v1892
    %v1894 = vpop.f32.mrf.mxu0
    %v1895 = vadd.f32 0.0, %v1894
    %1896 = vmatmul.bf16.gmra.mxu0 %v1018
    %v1897 = vpop.f32.mrf.mxu0
    %v1898 = vadd.f32 0.0, %v1897
    %v1899 = vpop.f32.mrf.mxu0
    %v1900 = vadd.f32 0.0, %v1899
    %1901 = vmatmul.bf16.gmra.mxu0 %v1021
    %v1902 = vpop.f32.mrf.mxu0
    %v1903 = vadd.f32 0.0, %v1902
    %v1904 = vpop.f32.mrf.mxu0
    %v1905 = vadd.f32 0.0, %v1904
    %1906 = vmatmul.bf16.gmra.mxu0 %v1024
    %v1907 = vpop.f32.mrf.mxu0
    %v1908 = vadd.f32 0.0, %v1907
    %v1909 = vpop.f32.mrf.mxu0
    %v1910 = vadd.f32 0.0, %v1909
    %1911 = vmatmul.bf16.gmra.mxu0 %v1027
    %v1912 = vpop.f32.mrf.mxu0
    %v1913 = vadd.f32 0.0, %v1912
    %v1914 = vpop.f32.mrf.mxu0
    %v1915 = vadd.f32 0.0, %v1914
    %1916 = vmatmul.bf16.gmra.mxu0 %v1030
    %v1917 = vpop.f32.mrf.mxu0
    %v1918 = vadd.f32 0.0, %v1917
    %v1919 = vpop.f32.mrf.mxu0
    %v1920 = vadd.f32 0.0, %v1919
    %1921 = vmatmul.bf16.gmra.mxu0 %v1033
    %v1922 = vpop.f32.mrf.mxu0
    %v1923 = vadd.f32 0.0, %v1922
    %v1924 = vpop.f32.mrf.mxu0
    %v1925 = vadd.f32 0.0, %v1924
    %1926 = vmatmul.bf16.gmra.mxu0 %v1036
    %v1927 = vpop.f32.mrf.mxu0
    %v1928 = vadd.f32 0.0, %v1927
    %v1929 = vpop.f32.mrf.mxu0
    %v1930 = vadd.f32 0.0, %v1929
    %1931 = vmatmul.bf16.gmra.mxu0 %v1039
    %v1932 = vpop.f32.mrf.mxu0
    %v1933 = vadd.f32 0.0, %v1932
    %v1934 = vpop.f32.mrf.mxu0
    %v1935 = vadd.f32 0.0, %v1934
    %1936 = vmatmul.bf16.gmra.mxu0 %v1042
    %v1937 = vpop.f32.mrf.mxu0
    %v1938 = vadd.f32 0.0, %v1937
    %v1939 = vpop.f32.mrf.mxu0
    %v1940 = vadd.f32 0.0, %v1939
    %1941 = vmatmul.bf16.gmra.mxu0 %v1045
    %v1942 = vpop.f32.mrf.mxu0
    %v1943 = vadd.f32 0.0, %v1942
    %v1944 = vpop.f32.mrf.mxu0
    %v1945 = vadd.f32 0.0, %v1944
    %1946 = vmatmul.bf16.gmra.mxu0 %v1048
    %v1947 = vpop.f32.mrf.mxu0
    %v1948 = vadd.f32 0.0, %v1947
    %v1949 = vpop.f32.mrf.mxu0
    %v1950 = vadd.f32 0.0, %v1949
    %1951 = vmatmul.bf16.gmra.mxu0 %v1051
    %v1952 = vpop.f32.mrf.mxu0
    %v1953 = vadd.f32 0.0, %v1952
    %v1954 = vpop.f32.mrf.mxu0
    %v1955 = vadd.f32 0.0, %v1954
    %1956 = vmatmul.bf16.gmra.mxu0 %v1054
    %v1957 = vpop.f32.mrf.mxu0
    %v1958 = vadd.f32 0.0, %v1957
    %v1959 = vpop.f32.mrf.mxu0
    %v1960 = vadd.f32 0.0, %v1959
    %1961 = vmatmul.bf16.gmra.mxu0 %v1057
    %v1962 = vpop.f32.mrf.mxu0
    %v1963 = vadd.f32 0.0, %v1962
    %v1964 = vpop.f32.mrf.mxu0
    %v1965 = vadd.f32 0.0, %v1964
    %1966 = vmatmul.bf16.gmra.mxu0 %v1875
    %v1967 = vpop.f32.mrf.mxu0
    %v1968 = vadd.f32 0.0, %v1967
    %v1969 = vpop.f32.mrf.mxu0
    %v1970 = vadd.f32 0.0, %v1969
    %1971 = vmatmul.bf16.gmra.mxu0 %v1063
    %v1972 = vpop.f32.mrf.mxu0
    %v1973 = vadd.f32 0.0, %v1972
    %v1974 = vpop.f32.mrf.mxu0
    %v1975 = vadd.f32 0.0, %v1974
    %1976 = vmatmul.bf16.gmra.mxu0 %v1066
    %v1977 = vpop.f32.mrf.mxu0
    %v1978 = vadd.f32 0.0, %v1977
    %v1979 = vpop.f32.mrf.mxu0
    %v1980 = vadd.f32 0.0, %v1979
    %1981 = vmatmul.bf16.gmra.mxu0 %v1069
    %v1982 = vpop.f32.mrf.mxu0
    %v1983 = vadd.f32 0.0, %v1982
    %v1984 = vpop.f32.mrf.mxu0
    %v1985 = vadd.f32 0.0, %v1984
    %1986 = vmatmul.bf16.gmra.mxu0 %v1072
    %v1987 = vpop.f32.mrf.mxu0
    %v1988 = vadd.f32 0.0, %v1987
    %v1989 = vpop.f32.mrf.mxu0
    %v1990 = vadd.f32 0.0, %v1989
    %1991 = vmatmul.bf16.gmra.mxu0 %v1075
    %v1992 = vpop.f32.mrf.mxu0
    %v1993 = vadd.f32 0.0, %v1992
    %v1994 = vpop.f32.mrf.mxu0
    %v1995 = vadd.f32 0.0, %v1994
    %1996 = vmatmul.bf16.gmra.mxu0 %v1078
    %v1997 = vpop.f32.mrf.mxu0
    %v1998 = vadd.f32 0.0, %v1997
    %v1999 = vpop.f32.mrf.mxu0
    %v2000 = vadd.f32 0.0, %v1999
    %2001 = vmatmul.bf16.gmra.mxu0 %v1081
    %v2002 = vpop.f32.mrf.mxu0
    %v2003 = vadd.f32 0.0, %v2002
    %v2004 = vpop.f32.mrf.mxu0
    %v2005 = vadd.f32 0.0, %v2004
    %2006 = vmatmul.bf16.gmra.mxu0 %v1084
    %v2007 = vpop.f32.mrf.mxu0
    %v2008 = vadd.f32 0.0, %v2007
    %v2009 = vpop.f32.mrf.mxu0
    %v2010 = vadd.f32 0.0, %v2009
    %2011 = vmatmul.bf16.gmra.mxu0 %v1087
    %v2012 = vpop.f32.mrf.mxu0
    %v2013 = vadd.f32 0.0, %v2012
    %v2014 = vpop.f32.mrf.mxu0
    %v2015 = vadd.f32 0.0, %v2014
    %2016 = vmatmul.bf16.gmra.mxu0 %v1090
    %v2017 = vpop.f32.mrf.mxu0
    %v2018 = vadd.f32 0.0, %v2017
    %v2019 = vpop.f32.mrf.mxu0
    %v2020 = vadd.f32 0.0, %v2019
    %2021 = vmatmul.bf16.gmra.mxu0 %v1093
    %v2022 = vpop.f32.mrf.mxu0
    %v2023 = vadd.f32 0.0, %v2022
    %v2024 = vpop.f32.mrf.mxu0
    %v2025 = vadd.f32 0.0, %v2024
    %2026 = vmatmul.bf16.gmra.mxu0 %v1096
    %v2027 = vpop.f32.mrf.mxu0
    %v2028 = vadd.f32 0.0, %v2027
    %v2029 = vpop.f32.mrf.mxu0
    %v2030 = vadd.f32 0.0, %v2029
    %2031 = vmatmul.bf16.gmra.mxu0 %v1099
    %v2032 = vpop.f32.mrf.mxu0
    %v2033 = vadd.f32 0.0, %v2032
    %v2034 = vpop.f32.mrf.mxu0
    %v2035 = vadd.f32 0.0, %v2034
    %2036 = vmatmul.bf16.gmra.mxu0 %v1102
    %v2037 = vpop.f32.mrf.mxu0
    %v2038 = vadd.f32 0.0, %v2037
    %v2039 = vpop.f32.mrf.mxu0
    %v2040 = vadd.f32 0.0, %v2039
    %2041 = vmatmul.bf16.gmra.mxu0 %v1105
    %v2042 = vpop.f32.mrf.mxu0
    %v2043 = vadd.f32 0.0, %v2042
    %v2044 = vpop.f32.mrf.mxu0
    %v2045 = vadd.f32 0.0, %v2044
    %2046 = vmatmul.bf16.gmra.mxu0 %v1878
    %v2047 = vpop.f32.mrf.mxu0
    %v2048 = vadd.f32 0.0, %v2047
    %v2049 = vpop.f32.mrf.mxu0
    %v2050 = vadd.f32 0.0, %v2049
    %2051 = vdwg.mxu0
    %v2052 = vadd.f32 %v1806, %v1893
    %v2053 = vadd.f32 %v1807, %v1895
    %v2054 = vadd.f32 %v1808, %v1898
    %v2055 = vadd.f32 %v1809, %v1900
    %v2056 = vadd.f32 %v1810, %v1903
    %v2057 = vadd.f32 %v1811, %v1905
    %v2058 = vadd.f32 %v1812, %v1908
    %v2059 = vadd.f32 %v1813, %v1910
    %v2060 = vadd.f32 %v1814, %v1913
    %v2061 = vadd.f32 %v1815, %v1915
    %v2062 = vadd.f32 %v1816, %v1918
    %v2063 = vadd.f32 %v1817, %v1920
    %v2064 = vadd.f32 %v1818, %v1923
    %v2065 = vadd.f32 %v1819, %v1925
    %v2066 = vadd.f32 %v1820, %v1928
    %v2067 = vadd.f32 %v1821, %v1930
    %v2068 = vadd.f32 %v1822, %v1933
    %v2069 = vadd.f32 %v1823, %v1935
    %v2070 = vadd.f32 %v1824, %v1938
    %v2071 = vadd.f32 %v1825, %v1940
    %v2072 = vadd.f32 %v1826, %v1943
    %v2073 = vadd.f32 %v1827, %v1945
    %v2074 = vadd.f32 %v1828, %v1948
    %v2075 = vadd.f32 %v1829, %v1950
    %v2076 = vadd.f32 %v1830, %v1953
    %v2077 = vadd.f32 %v1831, %v1955
    %v2078 = vadd.f32 %v1832, %v1958
    %v2079 = vadd.f32 %v1833, %v1960
    %v2080 = vadd.f32 %v1834, %v1963
    %v2081 = vadd.f32 %v1835, %v1965
    %v2082 = vadd.f32 %v1836, %v1968
    %v2083 = vadd.f32 %v1837, %v1970
    %v2084 = vadd.f32 %v1838, %v1973
    %v2085 = vadd.f32 %v1839, %v1975
    %v2086 = vadd.f32 %v1840, %v1978
    %v2087 = vadd.f32 %v1841, %v1980
    %v2088 = vadd.f32 %v1842, %v1983
    %v2089 = vadd.f32 %v1843, %v1985
    %v2090 = vadd.f32 %v1844, %v1988
    %v2091 = vadd.f32 %v1845, %v1990
    %v2092 = vadd.f32 %v1846, %v1993
    %v2093 = vadd.f32 %v1847, %v1995
    %v2094 = vadd.f32 %v1848, %v1998
    %v2095 = vadd.f32 %v1849, %v2000
    %v2096 = vadd.f32 %v1850, %v2003
    %v2097 = vadd.f32 %v1851, %v2005
    %v2098 = vadd.f32 %v1852, %v2008
    %v2099 = vadd.f32 %v1853, %v2010
    %v2100 = vadd.f32 %v1854, %v2013
    %v2101 = vadd.f32 %v1855, %v2015
    %v2102 = vadd.f32 %v1856, %v2018
    %v2103 = vadd.f32 %v1857, %v2020
    %v2104 = vadd.f32 %v1858, %v2023
    %v2105 = vadd.f32 %v1859, %v2025
    %v2106 = vadd.f32 %v1860, %v2028
    %v2107 = vadd.f32 %v1861, %v2030
    %v2108 = vadd.f32 %v1862, %v2033
    %v2109 = vadd.f32 %v1863, %v2035
    %v2110 = vadd.f32 %v1864, %v2038
    %v2111 = vadd.f32 %v1865, %v2040
    %v2112 = vadd.f32 %v1866, %v2043
    %v2113 = vadd.f32 %v1867, %v2045
    %v2114 = vadd.f32 %v1868, %v2048
    %v2115 = vadd.f32 %v1869, %v2050
    %v2122 = vrot.slane %v294, 1
    %v2123 = vrot.slane %v295, 1
    %v2124 = vsel %vm483, %v2122, %v2123
    %v2125 = vrot.slane %v296, 1
    %v2126 = vsel %vm483, %v2123, %v2125
    %v2127 = vrot.slane %v348, 1
    %v2128 = vrot.slane %v349, 1
    %v2129 = vsel %vm483, %v2127, %v2128
    %v2130 = vrot.slane %v350, 1
    %v2131 = vsel %vm483, %v2128, %v2130
    %s2136 = scalar_lea.vmem %s1, 16
    %v2137 = vld [vmem:[%s2136] sm:$0xf]
    %v2138 = vpack.c.bf16 %v2126, %v2124
    %v2139 = vpack.c.bf16 %v2131, %v2129
    %v2141 = vsel %vm101, %v2138, 0
    %v2144 = vsel %vm101, %v2139, 0
    %v2147 = vsel %vm838, %v2137, 0
    %2149 = vmatpush.bf16.msra.mxu0 0
    %2150 = vmatpush.bf16.msra.mxu0 0
    %2151 = vmatpush.bf16.msra.mxu0 0
    %2152 = vmatpush.bf16.msra.mxu0 0
    %2153 = vmatpush.bf16.msra.mxu0 0
    %2154 = vmatpush.bf16.msra.mxu0 0
    %2155 = vmatpush.bf16.msra.mxu0 0
    %2156 = vmatpush.bf16.msra.mxu0 %v2147
    %2157 = vmatmul.bf16.gmra.mxu0 %v746
    %v2158 = vpop.f32.mrf.mxu0
    %v2159 = vadd.f32 0.0, %v2158
    %v2160 = vpop.f32.mrf.mxu0
    %v2161 = vadd.f32 0.0, %v2160
    %2162 = vmatmul.bf16.gmra.mxu0 %v749
    %v2163 = vpop.f32.mrf.mxu0
    %v2164 = vadd.f32 0.0, %v2163
    %v2165 = vpop.f32.mrf.mxu0
    %v2166 = vadd.f32 0.0, %v2165
    %2167 = vmatmul.bf16.gmra.mxu0 %v752
    %v2168 = vpop.f32.mrf.mxu0
    %v2169 = vadd.f32 0.0, %v2168
    %v2170 = vpop.f32.mrf.mxu0
    %v2171 = vadd.f32 0.0, %v2170
    %2172 = vmatmul.bf16.gmra.mxu0 %v755
    %v2173 = vpop.f32.mrf.mxu0
    %v2174 = vadd.f32 0.0, %v2173
    %v2175 = vpop.f32.mrf.mxu0
    %v2176 = vadd.f32 0.0, %v2175
    %2177 = vmatmul.bf16.gmra.mxu0 %v758
    %v2178 = vpop.f32.mrf.mxu0
    %v2179 = vadd.f32 0.0, %v2178
    %v2180 = vpop.f32.mrf.mxu0
    %v2181 = vadd.f32 0.0, %v2180
    %2182 = vmatmul.bf16.gmra.mxu0 %v761
    %v2183 = vpop.f32.mrf.mxu0
    %v2184 = vadd.f32 0.0, %v2183
    %v2185 = vpop.f32.mrf.mxu0
    %v2186 = vadd.f32 0.0, %v2185
    %2187 = vmatmul.bf16.gmra.mxu0 %v764
    %v2188 = vpop.f32.mrf.mxu0
    %v2189 = vadd.f32 0.0, %v2188
    %v2190 = vpop.f32.mrf.mxu0
    %v2191 = vadd.f32 0.0, %v2190
    %2192 = vmatmul.bf16.gmra.mxu0 %v767
    %v2193 = vpop.f32.mrf.mxu0
    %v2194 = vadd.f32 0.0, %v2193
    %v2195 = vpop.f32.mrf.mxu0
    %v2196 = vadd.f32 0.0, %v2195
    %2197 = vmatmul.bf16.gmra.mxu0 %v770
    %v2198 = vpop.f32.mrf.mxu0
    %v2199 = vadd.f32 0.0, %v2198
    %v2200 = vpop.f32.mrf.mxu0
    %v2201 = vadd.f32 0.0, %v2200
    %2202 = vmatmul.bf16.gmra.mxu0 %v773
    %v2203 = vpop.f32.mrf.mxu0
    %v2204 = vadd.f32 0.0, %v2203
    %v2205 = vpop.f32.mrf.mxu0
    %v2206 = vadd.f32 0.0, %v2205
    %2207 = vmatmul.bf16.gmra.mxu0 %v776
    %v2208 = vpop.f32.mrf.mxu0
    %v2209 = vadd.f32 0.0, %v2208
    %v2210 = vpop.f32.mrf.mxu0
    %v2211 = vadd.f32 0.0, %v2210
    %2212 = vmatmul.bf16.gmra.mxu0 %v779
    %v2213 = vpop.f32.mrf.mxu0
    %v2214 = vadd.f32 0.0, %v2213
    %v2215 = vpop.f32.mrf.mxu0
    %v2216 = vadd.f32 0.0, %v2215
    %2217 = vmatmul.bf16.gmra.mxu0 %v782
    %v2218 = vpop.f32.mrf.mxu0
    %v2219 = vadd.f32 0.0, %v2218
    %v2220 = vpop.f32.mrf.mxu0
    %v2221 = vadd.f32 0.0, %v2220
    %2222 = vmatmul.bf16.gmra.mxu0 %v785
    %v2223 = vpop.f32.mrf.mxu0
    %v2224 = vadd.f32 0.0, %v2223
    %v2225 = vpop.f32.mrf.mxu0
    %v2226 = vadd.f32 0.0, %v2225
    %2227 = vmatmul.bf16.gmra.mxu0 %v788
    %v2228 = vpop.f32.mrf.mxu0
    %v2229 = vadd.f32 0.0, %v2228
    %v2230 = vpop.f32.mrf.mxu0
    %v2231 = vadd.f32 0.0, %v2230
    %2232 = vmatmul.bf16.gmra.mxu0 %v2141
    %v2233 = vpop.f32.mrf.mxu0
    %v2234 = vadd.f32 0.0, %v2233
    %v2235 = vpop.f32.mrf.mxu0
    %v2236 = vadd.f32 0.0, %v2235
    %2237 = vmatmul.bf16.gmra.mxu0 %v794
    %v2238 = vpop.f32.mrf.mxu0
    %v2239 = vadd.f32 0.0, %v2238
    %v2240 = vpop.f32.mrf.mxu0
    %v2241 = vadd.f32 0.0, %v2240
    %2242 = vmatmul.bf16.gmra.mxu0 %v797
    %v2243 = vpop.f32.mrf.mxu0
    %v2244 = vadd.f32 0.0, %v2243
    %v2245 = vpop.f32.mrf.mxu0
    %v2246 = vadd.f32 0.0, %v2245
    %2247 = vmatmul.bf16.gmra.mxu0 %v800
    %v2248 = vpop.f32.mrf.mxu0
    %v2249 = vadd.f32 0.0, %v2248
    %v2250 = vpop.f32.mrf.mxu0
    %v2251 = vadd.f32 0.0, %v2250
    %2252 = vmatmul.bf16.gmra.mxu0 %v803
    %v2253 = vpop.f32.mrf.mxu0
    %v2254 = vadd.f32 0.0, %v2253
    %v2255 = vpop.f32.mrf.mxu0
    %v2256 = vadd.f32 0.0, %v2255
    %2257 = vmatmul.bf16.gmra.mxu0 %v806
    %v2258 = vpop.f32.mrf.mxu0
    %v2259 = vadd.f32 0.0, %v2258
    %v2260 = vpop.f32.mrf.mxu0
    %v2261 = vadd.f32 0.0, %v2260
    %2262 = vmatmul.bf16.gmra.mxu0 %v809
    %v2263 = vpop.f32.mrf.mxu0
    %v2264 = vadd.f32 0.0, %v2263
    %v2265 = vpop.f32.mrf.mxu0
    %v2266 = vadd.f32 0.0, %v2265
    %2267 = vmatmul.bf16.gmra.mxu0 %v812
    %v2268 = vpop.f32.mrf.mxu0
    %v2269 = vadd.f32 0.0, %v2268
    %v2270 = vpop.f32.mrf.mxu0
    %v2271 = vadd.f32 0.0, %v2270
    %2272 = vmatmul.bf16.gmra.mxu0 %v815
    %v2273 = vpop.f32.mrf.mxu0
    %v2274 = vadd.f32 0.0, %v2273
    %v2275 = vpop.f32.mrf.mxu0
    %v2276 = vadd.f32 0.0, %v2275
    %2277 = vmatmul.bf16.gmra.mxu0 %v818
    %v2278 = vpop.f32.mrf.mxu0
    %v2279 = vadd.f32 0.0, %v2278
    %v2280 = vpop.f32.mrf.mxu0
    %v2281 = vadd.f32 0.0, %v2280
    %2282 = vmatmul.bf16.gmra.mxu0 %v821
    %v2283 = vpop.f32.mrf.mxu0
    %v2284 = vadd.f32 0.0, %v2283
    %v2285 = vpop.f32.mrf.mxu0
    %v2286 = vadd.f32 0.0, %v2285
    %2287 = vmatmul.bf16.gmra.mxu0 %v824
    %v2288 = vpop.f32.mrf.mxu0
    %v2289 = vadd.f32 0.0, %v2288
    %v2290 = vpop.f32.mrf.mxu0
    %v2291 = vadd.f32 0.0, %v2290
    %2292 = vmatmul.bf16.gmra.mxu0 %v827
    %v2293 = vpop.f32.mrf.mxu0
    %v2294 = vadd.f32 0.0, %v2293
    %v2295 = vpop.f32.mrf.mxu0
    %v2296 = vadd.f32 0.0, %v2295
    %2297 = vmatmul.bf16.gmra.mxu0 %v830
    %v2298 = vpop.f32.mrf.mxu0
    %v2299 = vadd.f32 0.0, %v2298
    %v2300 = vpop.f32.mrf.mxu0
    %v2301 = vadd.f32 0.0, %v2300
    %2302 = vmatmul.bf16.gmra.mxu0 %v833
    %v2303 = vpop.f32.mrf.mxu0
    %v2304 = vadd.f32 0.0, %v2303
    %v2305 = vpop.f32.mrf.mxu0
    %v2306 = vadd.f32 0.0, %v2305
    %2307 = vmatmul.bf16.gmra.mxu0 %v836
    %v2308 = vpop.f32.mrf.mxu0
    %v2309 = vadd.f32 0.0, %v2308
    %v2310 = vpop.f32.mrf.mxu0
    %v2311 = vadd.f32 0.0, %v2310
    %2312 = vmatmul.bf16.gmra.mxu0 %v2144
    %v2313 = vpop.f32.mrf.mxu0
    %v2314 = vadd.f32 0.0, %v2313
    %v2315 = vpop.f32.mrf.mxu0
    %v2316 = vadd.f32 0.0, %v2315
    %2317 = vdwg.mxu0
    %v2318 = vadd.f32 %v2052, %v2159
    %v2319 = vadd.f32 %v2053, %v2161
    %v2320 = vadd.f32 %v2054, %v2164
    %v2321 = vadd.f32 %v2055, %v2166
    %v2322 = vadd.f32 %v2056, %v2169
    %v2323 = vadd.f32 %v2057, %v2171
    %v2324 = vadd.f32 %v2058, %v2174
    %v2325 = vadd.f32 %v2059, %v2176
    %v2326 = vadd.f32 %v2060, %v2179
    %v2327 = vadd.f32 %v2061, %v2181
    %v2328 = vadd.f32 %v2062, %v2184
    %v2329 = vadd.f32 %v2063, %v2186
    %v2330 = vadd.f32 %v2064, %v2189
    %v2331 = vadd.f32 %v2065, %v2191
    %v2332 = vadd.f32 %v2066, %v2194
    %v2333 = vadd.f32 %v2067, %v2196
    %v2334 = vadd.f32 %v2068, %v2199
    %v2335 = vadd.f32 %v2069, %v2201
    %v2336 = vadd.f32 %v2070, %v2204
    %v2337 = vadd.f32 %v2071, %v2206
    %v2338 = vadd.f32 %v2072, %v2209
    %v2339 = vadd.f32 %v2073, %v2211
    %v2340 = vadd.f32 %v2074, %v2214
    %v2341 = vadd.f32 %v2075, %v2216
    %v2342 = vadd.f32 %v2076, %v2219
    %v2343 = vadd.f32 %v2077, %v2221
    %v2344 = vadd.f32 %v2078, %v2224
    %v2345 = vadd.f32 %v2079, %v2226
    %v2346 = vadd.f32 %v2080, %v2229
    %v2347 = vadd.f32 %v2081, %v2231
    %v2348 = vadd.f32 %v2082, %v2234
    %v2349 = vadd.f32 %v2083, %v2236
    %v2350 = vadd.f32 %v2084, %v2239
    %v2351 = vadd.f32 %v2085, %v2241
    %v2352 = vadd.f32 %v2086, %v2244
    %v2353 = vadd.f32 %v2087, %v2246
    %v2354 = vadd.f32 %v2088, %v2249
    %v2355 = vadd.f32 %v2089, %v2251
    %v2356 = vadd.f32 %v2090, %v2254
    %v2357 = vadd.f32 %v2091, %v2256
    %v2358 = vadd.f32 %v2092, %v2259
    %v2359 = vadd.f32 %v2093, %v2261
    %v2360 = vadd.f32 %v2094, %v2264
    %v2361 = vadd.f32 %v2095, %v2266
    %v2362 = vadd.f32 %v2096, %v2269
    %v2363 = vadd.f32 %v2097, %v2271
    %v2364 = vadd.f32 %v2098, %v2274
    %v2365 = vadd.f32 %v2099, %v2276
    %v2366 = vadd.f32 %v2100, %v2279
    %v2367 = vadd.f32 %v2101, %v2281
    %v2368 = vadd.f32 %v2102, %v2284
    %v2369 = vadd.f32 %v2103, %v2286
    %v2370 = vadd.f32 %v2104, %v2289
    %v2371 = vadd.f32 %v2105, %v2291
    %v2372 = vadd.f32 %v2106, %v2294
    %v2373 = vadd.f32 %v2107, %v2296
    %v2374 = vadd.f32 %v2108, %v2299
    %v2375 = vadd.f32 %v2109, %v2301
    %v2376 = vadd.f32 %v2110, %v2304
    %v2377 = vadd.f32 %v2111, %v2306
    %v2378 = vadd.f32 %v2112, %v2309
    %v2379 = vadd.f32 %v2113, %v2311
    %v2380 = vadd.f32 %v2114, %v2314
    %v2381 = vadd.f32 %v2115, %v2316
    %v2382 = vrot.slane %v294, 2
    %v2383 = vrot.slane %v295, 2
    %v2384 = vsel %vm1279, %v2382, %v2383
    %v2385 = vrot.slane %v296, 2
    %v2386 = vsel %vm1279, %v2383, %v2385
    %v2387 = vrot.slane %v348, 2
    %v2388 = vrot.slane %v349, 2
    %v2389 = vsel %vm1279, %v2387, %v2388
    %v2390 = vrot.slane %v350, 2
    %v2391 = vsel %vm1279, %v2388, %v2390
    %s2396 = scalar_lea.vmem %s1, 20
    %v2397 = vld [vmem:[%s2396] sm:$0xf]
    %v2398 = vpack.c.bf16 %v2386, %v2384
    %v2399 = vpack.c.bf16 %v2391, %v2389
    %v2401 = vsel %vm101, %v2398, 0
    %v2404 = vsel %vm101, %v2399, 0
    %v2407 = vsel %vm838, %v2397, 0
    %2409 = vmatpush.bf16.msra.mxu0 0
    %2410 = vmatpush.bf16.msra.mxu0 0
    %2411 = vmatpush.bf16.msra.mxu0 0
    %2412 = vmatpush.bf16.msra.mxu0 0
    %2413 = vmatpush.bf16.msra.mxu0 0
    %2414 = vmatpush.bf16.msra.mxu0 0
    %2415 = vmatpush.bf16.msra.mxu0 0
    %2416 = vmatpush.bf16.msra.mxu0 %v2407
    %2417 = vmatmul.bf16.gmra.mxu0 %v1542
    %v2418 = vpop.f32.mrf.mxu0
    %v2419 = vadd.f32 0.0, %v2418
    %v2420 = vpop.f32.mrf.mxu0
    %v2421 = vadd.f32 0.0, %v2420
    %2422 = vmatmul.bf16.gmra.mxu0 %v1545
    %v2423 = vpop.f32.mrf.mxu0
    %v2424 = vadd.f32 0.0, %v2423
    %v2425 = vpop.f32.mrf.mxu0
    %v2426 = vadd.f32 0.0, %v2425
    %2427 = vmatmul.bf16.gmra.mxu0 %v1548
    %v2428 = vpop.f32.mrf.mxu0
    %v2429 = vadd.f32 0.0, %v2428
    %v2430 = vpop.f32.mrf.mxu0
    %v2431 = vadd.f32 0.0, %v2430
    %2432 = vmatmul.bf16.gmra.mxu0 %v1551
    %v2433 = vpop.f32.mrf.mxu0
    %v2434 = vadd.f32 0.0, %v2433
    %v2435 = vpop.f32.mrf.mxu0
    %v2436 = vadd.f32 0.0, %v2435
    %2437 = vmatmul.bf16.gmra.mxu0 %v1554
    %v2438 = vpop.f32.mrf.mxu0
    %v2439 = vadd.f32 0.0, %v2438
    %v2440 = vpop.f32.mrf.mxu0
    %v2441 = vadd.f32 0.0, %v2440
    %2442 = vmatmul.bf16.gmra.mxu0 %v1557
    %v2443 = vpop.f32.mrf.mxu0
    %v2444 = vadd.f32 0.0, %v2443
    %v2445 = vpop.f32.mrf.mxu0
    %v2446 = vadd.f32 0.0, %v2445
    %2447 = vmatmul.bf16.gmra.mxu0 %v1560
    %v2448 = vpop.f32.mrf.mxu0
    %v2449 = vadd.f32 0.0, %v2448
    %v2450 = vpop.f32.mrf.mxu0
    %v2451 = vadd.f32 0.0, %v2450
    %2452 = vmatmul.bf16.gmra.mxu0 %v1563
    %v2453 = vpop.f32.mrf.mxu0
    %v2454 = vadd.f32 0.0, %v2453
    %v2455 = vpop.f32.mrf.mxu0
    %v2456 = vadd.f32 0.0, %v2455
    %2457 = vmatmul.bf16.gmra.mxu0 %v1566
    %v2458 = vpop.f32.mrf.mxu0
    %v2459 = vadd.f32 0.0, %v2458
    %v2460 = vpop.f32.mrf.mxu0
    %v2461 = vadd.f32 0.0, %v2460
    %2462 = vmatmul.bf16.gmra.mxu0 %v1569
    %v2463 = vpop.f32.mrf.mxu0
    %v2464 = vadd.f32 0.0, %v2463
    %v2465 = vpop.f32.mrf.mxu0
    %v2466 = vadd.f32 0.0, %v2465
    %2467 = vmatmul.bf16.gmra.mxu0 %v1572
    %v2468 = vpop.f32.mrf.mxu0
    %v2469 = vadd.f32 0.0, %v2468
    %v2470 = vpop.f32.mrf.mxu0
    %v2471 = vadd.f32 0.0, %v2470
    %2472 = vmatmul.bf16.gmra.mxu0 %v1575
    %v2473 = vpop.f32.mrf.mxu0
    %v2474 = vadd.f32 0.0, %v2473
    %v2475 = vpop.f32.mrf.mxu0
    %v2476 = vadd.f32 0.0, %v2475
    %2477 = vmatmul.bf16.gmra.mxu0 %v1578
    %v2478 = vpop.f32.mrf.mxu0
    %v2479 = vadd.f32 0.0, %v2478
    %v2480 = vpop.f32.mrf.mxu0
    %v2481 = vadd.f32 0.0, %v2480
    %2482 = vmatmul.bf16.gmra.mxu0 %v1581
    %v2483 = vpop.f32.mrf.mxu0
    %v2484 = vadd.f32 0.0, %v2483
    %v2485 = vpop.f32.mrf.mxu0
    %v2486 = vadd.f32 0.0, %v2485
    %2487 = vmatmul.bf16.gmra.mxu0 %v1584
    %v2488 = vpop.f32.mrf.mxu0
    %v2489 = vadd.f32 0.0, %v2488
    %v2490 = vpop.f32.mrf.mxu0
    %v2491 = vadd.f32 0.0, %v2490
    %2492 = vmatmul.bf16.gmra.mxu0 %v2401
    %v2493 = vpop.f32.mrf.mxu0
    %v2494 = vadd.f32 0.0, %v2493
    %v2495 = vpop.f32.mrf.mxu0
    %v2496 = vadd.f32 0.0, %v2495
    %2497 = vmatmul.bf16.gmra.mxu0 %v1590
    %v2498 = vpop.f32.mrf.mxu0
    %v2499 = vadd.f32 0.0, %v2498
    %v2500 = vpop.f32.mrf.mxu0
    %v2501 = vadd.f32 0.0, %v2500
    %2502 = vmatmul.bf16.gmra.mxu0 %v1593
    %v2503 = vpop.f32.mrf.mxu0
    %v2504 = vadd.f32 0.0, %v2503
    %v2505 = vpop.f32.mrf.mxu0
    %v2506 = vadd.f32 0.0, %v2505
    %2507 = vmatmul.bf16.gmra.mxu0 %v1596
    %v2508 = vpop.f32.mrf.mxu0
    %v2509 = vadd.f32 0.0, %v2508
    %v2510 = vpop.f32.mrf.mxu0
    %v2511 = vadd.f32 0.0, %v2510
    %2512 = vmatmul.bf16.gmra.mxu0 %v1599
    %v2513 = vpop.f32.mrf.mxu0
    %v2514 = vadd.f32 0.0, %v2513
    %v2515 = vpop.f32.mrf.mxu0
    %v2516 = vadd.f32 0.0, %v2515
    %2517 = vmatmul.bf16.gmra.mxu0 %v1602
    %v2518 = vpop.f32.mrf.mxu0
    %v2519 = vadd.f32 0.0, %v2518
    %v2520 = vpop.f32.mrf.mxu0
    %v2521 = vadd.f32 0.0, %v2520
    %2522 = vmatmul.bf16.gmra.mxu0 %v1605
    %v2523 = vpop.f32.mrf.mxu0
    %v2524 = vadd.f32 0.0, %v2523
    %v2525 = vpop.f32.mrf.mxu0
    %v2526 = vadd.f32 0.0, %v2525
    %2527 = vmatmul.bf16.gmra.mxu0 %v1608
    %v2528 = vpop.f32.mrf.mxu0
    %v2529 = vadd.f32 0.0, %v2528
    %v2530 = vpop.f32.mrf.mxu0
    %v2531 = vadd.f32 0.0, %v2530
    %2532 = vmatmul.bf16.gmra.mxu0 %v1611
    %v2533 = vpop.f32.mrf.mxu0
    %v2534 = vadd.f32 0.0, %v2533
    %v2535 = vpop.f32.mrf.mxu0
    %v2536 = vadd.f32 0.0, %v2535
    %2537 = vmatmul.bf16.gmra.mxu0 %v1614
    %v2538 = vpop.f32.mrf.mxu0
    %v2539 = vadd.f32 0.0, %v2538
    %v2540 = vpop.f32.mrf.mxu0
    %v2541 = vadd.f32 0.0, %v2540
    %2542 = vmatmul.bf16.gmra.mxu0 %v1617
    %v2543 = vpop.f32.mrf.mxu0
    %v2544 = vadd.f32 0.0, %v2543
    %v2545 = vpop.f32.mrf.mxu0
    %v2546 = vadd.f32 0.0, %v2545
    %2547 = vmatmul.bf16.gmra.mxu0 %v1620
    %v2548 = vpop.f32.mrf.mxu0
    %v2549 = vadd.f32 0.0, %v2548
    %v2550 = vpop.f32.mrf.mxu0
    %v2551 = vadd.f32 0.0, %v2550
    %2552 = vmatmul.bf16.gmra.mxu0 %v1623
    %v2553 = vpop.f32.mrf.mxu0
    %v2554 = vadd.f32 0.0, %v2553
    %v2555 = vpop.f32.mrf.mxu0
    %v2556 = vadd.f32 0.0, %v2555
    %2557 = vmatmul.bf16.gmra.mxu0 %v1626
    %v2558 = vpop.f32.mrf.mxu0
    %v2559 = vadd.f32 0.0, %v2558
    %v2560 = vpop.f32.mrf.mxu0
    %v2561 = vadd.f32 0.0, %v2560
    %2562 = vmatmul.bf16.gmra.mxu0 %v1629
    %v2563 = vpop.f32.mrf.mxu0
    %v2564 = vadd.f32 0.0, %v2563
    %v2565 = vpop.f32.mrf.mxu0
    %v2566 = vadd.f32 0.0, %v2565
    %2567 = vmatmul.bf16.gmra.mxu0 %v1632
    %v2568 = vpop.f32.mrf.mxu0
    %v2569 = vadd.f32 0.0, %v2568
    %v2570 = vpop.f32.mrf.mxu0
    %v2571 = vadd.f32 0.0, %v2570
    %2572 = vmatmul.bf16.gmra.mxu0 %v2404
    %v2573 = vpop.f32.mrf.mxu0
    %v2574 = vadd.f32 0.0, %v2573
    %v2575 = vpop.f32.mrf.mxu0
    %v2576 = vadd.f32 0.0, %v2575
    %2577 = vdwg.mxu0
    %v2578 = vadd.f32 %v2318, %v2419
    %v2579 = vadd.f32 %v2319, %v2421
    %v2580 = vadd.f32 %v2320, %v2424
    %v2581 = vadd.f32 %v2321, %v2426
    %v2582 = vadd.f32 %v2322, %v2429
    %v2583 = vadd.f32 %v2323, %v2431
    %v2584 = vadd.f32 %v2324, %v2434
    %v2585 = vadd.f32 %v2325, %v2436
    %v2586 = vadd.f32 %v2326, %v2439
    %v2587 = vadd.f32 %v2327, %v2441
    %v2588 = vadd.f32 %v2328, %v2444
    %v2589 = vadd.f32 %v2329, %v2446
    %v2590 = vadd.f32 %v2330, %v2449
    %v2591 = vadd.f32 %v2331, %v2451
    %v2592 = vadd.f32 %v2332, %v2454
    %v2593 = vadd.f32 %v2333, %v2456
    %v2594 = vadd.f32 %v2334, %v2459
    %v2595 = vadd.f32 %v2335, %v2461
    %v2596 = vadd.f32 %v2336, %v2464
    %v2597 = vadd.f32 %v2337, %v2466
    %v2598 = vadd.f32 %v2338, %v2469
    %v2599 = vadd.f32 %v2339, %v2471
    %v2600 = vadd.f32 %v2340, %v2474
    %v2601 = vadd.f32 %v2341, %v2476
    %v2602 = vadd.f32 %v2342, %v2479
    %v2603 = vadd.f32 %v2343, %v2481
    %v2604 = vadd.f32 %v2344, %v2484
    %v2605 = vadd.f32 %v2345, %v2486
    %v2606 = vadd.f32 %v2346, %v2489
    %v2607 = vadd.f32 %v2347, %v2491
    %v2608 = vadd.f32 %v2348, %v2494
    %v2609 = vadd.f32 %v2349, %v2496
    %v2610 = vadd.f32 %v2350, %v2499
    %v2611 = vadd.f32 %v2351, %v2501
    %v2612 = vadd.f32 %v2352, %v2504
    %v2613 = vadd.f32 %v2353, %v2506
    %v2614 = vadd.f32 %v2354, %v2509
    %v2615 = vadd.f32 %v2355, %v2511
    %v2616 = vadd.f32 %v2356, %v2514
    %v2617 = vadd.f32 %v2357, %v2516
    %v2618 = vadd.f32 %v2358, %v2519
    %v2619 = vadd.f32 %v2359, %v2521
    %v2620 = vadd.f32 %v2360, %v2524
    %v2621 = vadd.f32 %v2361, %v2526
    %v2622 = vadd.f32 %v2362, %v2529
    %v2623 = vadd.f32 %v2363, %v2531
    %v2624 = vadd.f32 %v2364, %v2534
    %v2625 = vadd.f32 %v2365, %v2536
    %v2626 = vadd.f32 %v2366, %v2539
    %v2627 = vadd.f32 %v2367, %v2541
    %v2628 = vadd.f32 %v2368, %v2544
    %v2629 = vadd.f32 %v2369, %v2546
    %v2630 = vadd.f32 %v2370, %v2549
    %v2631 = vadd.f32 %v2371, %v2551
    %v2632 = vadd.f32 %v2372, %v2554
    %v2633 = vadd.f32 %v2373, %v2556
    %v2634 = vadd.f32 %v2374, %v2559
    %v2635 = vadd.f32 %v2375, %v2561
    %v2636 = vadd.f32 %v2376, %v2564
    %v2637 = vadd.f32 %v2377, %v2566
    %v2638 = vadd.f32 %v2378, %v2569
    %v2639 = vadd.f32 %v2379, %v2571
    %v2640 = vadd.f32 %v2380, %v2574
    %v2641 = vadd.f32 %v2381, %v2576
    %s2642 = scalar_lea.vmem %s1, 24
    %v2643 = vld [vmem:[%s2642] sm:$0xf]
    %v2644 = vpack.c.bf16 %v298, %v297
    %v2645 = vpack.c.bf16 %v352, %v351
    %v2647 = vsel %vm101, %v2644, 0
    %v2650 = vsel %vm101, %v2645, 0
    %v2653 = vsel %vm838, %v2643, 0
    %2655 = vmatpush.bf16.msra.mxu0 0
    %2656 = vmatpush.bf16.msra.mxu0 0
    %2657 = vmatpush.bf16.msra.mxu0 0
    %2658 = vmatpush.bf16.msra.mxu0 0
    %2659 = vmatpush.bf16.msra.mxu0 0
    %2660 = vmatpush.bf16.msra.mxu0 0
    %2661 = vmatpush.bf16.msra.mxu0 0
    %2662 = vmatpush.bf16.msra.mxu0 %v2653
    %2663 = vmatmul.bf16.gmra.mxu0 %v1018
    %v2664 = vpop.f32.mrf.mxu0
    %v2665 = vadd.f32 0.0, %v2664
    %v2666 = vpop.f32.mrf.mxu0
    %v2667 = vadd.f32 0.0, %v2666
    %2668 = vmatmul.bf16.gmra.mxu0 %v1021
    %v2669 = vpop.f32.mrf.mxu0
    %v2670 = vadd.f32 0.0, %v2669
    %v2671 = vpop.f32.mrf.mxu0
    %v2672 = vadd.f32 0.0, %v2671
    %2673 = vmatmul.bf16.gmra.mxu0 %v1024
    %v2674 = vpop.f32.mrf.mxu0
    %v2675 = vadd.f32 0.0, %v2674
    %v2676 = vpop.f32.mrf.mxu0
    %v2677 = vadd.f32 0.0, %v2676
    %2678 = vmatmul.bf16.gmra.mxu0 %v1027
    %v2679 = vpop.f32.mrf.mxu0
    %v2680 = vadd.f32 0.0, %v2679
    %v2681 = vpop.f32.mrf.mxu0
    %v2682 = vadd.f32 0.0, %v2681
    %2683 = vmatmul.bf16.gmra.mxu0 %v1030
    %v2684 = vpop.f32.mrf.mxu0
    %v2685 = vadd.f32 0.0, %v2684
    %v2686 = vpop.f32.mrf.mxu0
    %v2687 = vadd.f32 0.0, %v2686
    %2688 = vmatmul.bf16.gmra.mxu0 %v1033
    %v2689 = vpop.f32.mrf.mxu0
    %v2690 = vadd.f32 0.0, %v2689
    %v2691 = vpop.f32.mrf.mxu0
    %v2692 = vadd.f32 0.0, %v2691
    %2693 = vmatmul.bf16.gmra.mxu0 %v1036
    %v2694 = vpop.f32.mrf.mxu0
    %v2695 = vadd.f32 0.0, %v2694
    %v2696 = vpop.f32.mrf.mxu0
    %v2697 = vadd.f32 0.0, %v2696
    %2698 = vmatmul.bf16.gmra.mxu0 %v1039
    %v2699 = vpop.f32.mrf.mxu0
    %v2700 = vadd.f32 0.0, %v2699
    %v2701 = vpop.f32.mrf.mxu0
    %v2702 = vadd.f32 0.0, %v2701
    %2703 = vmatmul.bf16.gmra.mxu0 %v1042
    %v2704 = vpop.f32.mrf.mxu0
    %v2705 = vadd.f32 0.0, %v2704
    %v2706 = vpop.f32.mrf.mxu0
    %v2707 = vadd.f32 0.0, %v2706
    %2708 = vmatmul.bf16.gmra.mxu0 %v1045
    %v2709 = vpop.f32.mrf.mxu0
    %v2710 = vadd.f32 0.0, %v2709
    %v2711 = vpop.f32.mrf.mxu0
    %v2712 = vadd.f32 0.0, %v2711
    %2713 = vmatmul.bf16.gmra.mxu0 %v1048
    %v2714 = vpop.f32.mrf.mxu0
    %v2715 = vadd.f32 0.0, %v2714
    %v2716 = vpop.f32.mrf.mxu0
    %v2717 = vadd.f32 0.0, %v2716
    %2718 = vmatmul.bf16.gmra.mxu0 %v1051
    %v2719 = vpop.f32.mrf.mxu0
    %v2720 = vadd.f32 0.0, %v2719
    %v2721 = vpop.f32.mrf.mxu0
    %v2722 = vadd.f32 0.0, %v2721
    %2723 = vmatmul.bf16.gmra.mxu0 %v1054
    %v2724 = vpop.f32.mrf.mxu0
    %v2725 = vadd.f32 0.0, %v2724
    %v2726 = vpop.f32.mrf.mxu0
    %v2727 = vadd.f32 0.0, %v2726
    %2728 = vmatmul.bf16.gmra.mxu0 %v1057
    %v2729 = vpop.f32.mrf.mxu0
    %v2730 = vadd.f32 0.0, %v2729
    %v2731 = vpop.f32.mrf.mxu0
    %v2732 = vadd.f32 0.0, %v2731
    %2733 = vmatmul.bf16.gmra.mxu0 %v1875
    %v2734 = vpop.f32.mrf.mxu0
    %v2735 = vadd.f32 0.0, %v2734
    %v2736 = vpop.f32.mrf.mxu0
    %v2737 = vadd.f32 0.0, %v2736
    %2738 = vmatmul.bf16.gmra.mxu0 %v2647
    %v2739 = vpop.f32.mrf.mxu0
    %v2740 = vadd.f32 0.0, %v2739
    %v2741 = vpop.f32.mrf.mxu0
    %v2742 = vadd.f32 0.0, %v2741
    %2743 = vmatmul.bf16.gmra.mxu0 %v1066
    %v2744 = vpop.f32.mrf.mxu0
    %v2745 = vadd.f32 0.0, %v2744
    %v2746 = vpop.f32.mrf.mxu0
    %v2747 = vadd.f32 0.0, %v2746
    %2748 = vmatmul.bf16.gmra.mxu0 %v1069
    %v2749 = vpop.f32.mrf.mxu0
    %v2750 = vadd.f32 0.0, %v2749
    %v2751 = vpop.f32.mrf.mxu0
    %v2752 = vadd.f32 0.0, %v2751
    %2753 = vmatmul.bf16.gmra.mxu0 %v1072
    %v2754 = vpop.f32.mrf.mxu0
    %v2755 = vadd.f32 0.0, %v2754
    %v2756 = vpop.f32.mrf.mxu0
    %v2757 = vadd.f32 0.0, %v2756
    %2758 = vmatmul.bf16.gmra.mxu0 %v1075
    %v2759 = vpop.f32.mrf.mxu0
    %v2760 = vadd.f32 0.0, %v2759
    %v2761 = vpop.f32.mrf.mxu0
    %v2762 = vadd.f32 0.0, %v2761
    %2763 = vmatmul.bf16.gmra.mxu0 %v1078
    %v2764 = vpop.f32.mrf.mxu0
    %v2765 = vadd.f32 0.0, %v2764
    %v2766 = vpop.f32.mrf.mxu0
    %v2767 = vadd.f32 0.0, %v2766
    %2768 = vmatmul.bf16.gmra.mxu0 %v1081
    %v2769 = vpop.f32.mrf.mxu0
    %v2770 = vadd.f32 0.0, %v2769
    %v2771 = vpop.f32.mrf.mxu0
    %v2772 = vadd.f32 0.0, %v2771
    %2773 = vmatmul.bf16.gmra.mxu0 %v1084
    %v2774 = vpop.f32.mrf.mxu0
    %v2775 = vadd.f32 0.0, %v2774
    %v2776 = vpop.f32.mrf.mxu0
    %v2777 = vadd.f32 0.0, %v2776
    %2778 = vmatmul.bf16.gmra.mxu0 %v1087
    %v2779 = vpop.f32.mrf.mxu0
    %v2780 = vadd.f32 0.0, %v2779
    %v2781 = vpop.f32.mrf.mxu0
    %v2782 = vadd.f32 0.0, %v2781
    %2783 = vmatmul.bf16.gmra.mxu0 %v1090
    %v2784 = vpop.f32.mrf.mxu0
    %v2785 = vadd.f32 0.0, %v2784
    %v2786 = vpop.f32.mrf.mxu0
    %v2787 = vadd.f32 0.0, %v2786
    %2788 = vmatmul.bf16.gmra.mxu0 %v1093
    %v2789 = vpop.f32.mrf.mxu0
    %v2790 = vadd.f32 0.0, %v2789
    %v2791 = vpop.f32.mrf.mxu0
    %v2792 = vadd.f32 0.0, %v2791
    %2793 = vmatmul.bf16.gmra.mxu0 %v1096
    %v2794 = vpop.f32.mrf.mxu0
    %v2795 = vadd.f32 0.0, %v2794
    %v2796 = vpop.f32.mrf.mxu0
    %v2797 = vadd.f32 0.0, %v2796
    %2798 = vmatmul.bf16.gmra.mxu0 %v1099
    %v2799 = vpop.f32.mrf.mxu0
    %v2800 = vadd.f32 0.0, %v2799
    %v2801 = vpop.f32.mrf.mxu0
    %v2802 = vadd.f32 0.0, %v2801
    %2803 = vmatmul.bf16.gmra.mxu0 %v1102
    %v2804 = vpop.f32.mrf.mxu0
    %v2805 = vadd.f32 0.0, %v2804
    %v2806 = vpop.f32.mrf.mxu0
    %v2807 = vadd.f32 0.0, %v2806
    %2808 = vmatmul.bf16.gmra.mxu0 %v1105
    %v2809 = vpop.f32.mrf.mxu0
    %v2810 = vadd.f32 0.0, %v2809
    %v2811 = vpop.f32.mrf.mxu0
    %v2812 = vadd.f32 0.0, %v2811
    %2813 = vmatmul.bf16.gmra.mxu0 %v1878
    %v2814 = vpop.f32.mrf.mxu0
    %v2815 = vadd.f32 0.0, %v2814
    %v2816 = vpop.f32.mrf.mxu0
    %v2817 = vadd.f32 0.0, %v2816
    %2818 = vmatmul.bf16.gmra.mxu0 %v2650
    %v2819 = vpop.f32.mrf.mxu0
    %v2820 = vadd.f32 0.0, %v2819
    %v2821 = vpop.f32.mrf.mxu0
    %v2822 = vadd.f32 0.0, %v2821
    %2823 = vdwg.mxu0
    %v2824 = vadd.f32 %v2578, %v2665
    %v2825 = vadd.f32 %v2579, %v2667
    %v2826 = vadd.f32 %v2580, %v2670
    %v2827 = vadd.f32 %v2581, %v2672
    %v2828 = vadd.f32 %v2582, %v2675
    %v2829 = vadd.f32 %v2583, %v2677
    %v2830 = vadd.f32 %v2584, %v2680
    %v2831 = vadd.f32 %v2585, %v2682
    %v2832 = vadd.f32 %v2586, %v2685
    %v2833 = vadd.f32 %v2587, %v2687
    %v2834 = vadd.f32 %v2588, %v2690
    %v2835 = vadd.f32 %v2589, %v2692
    %v2836 = vadd.f32 %v2590, %v2695
    %v2837 = vadd.f32 %v2591, %v2697
    %v2838 = vadd.f32 %v2592, %v2700
    %v2839 = vadd.f32 %v2593, %v2702
    %v2840 = vadd.f32 %v2594, %v2705
    %v2841 = vadd.f32 %v2595, %v2707
    %v2842 = vadd.f32 %v2596, %v2710
    %v2843 = vadd.f32 %v2597, %v2712
    %v2844 = vadd.f32 %v2598, %v2715
    %v2845 = vadd.f32 %v2599, %v2717
    %v2846 = vadd.f32 %v2600, %v2720
    %v2847 = vadd.f32 %v2601, %v2722
    %v2848 = vadd.f32 %v2602, %v2725
    %v2849 = vadd.f32 %v2603, %v2727
    %v2850 = vadd.f32 %v2604, %v2730
    %v2851 = vadd.f32 %v2605, %v2732
    %v2852 = vadd.f32 %v2606, %v2735
    %v2853 = vadd.f32 %v2607, %v2737
    %v2854 = vadd.f32 %v2608, %v2740
    %v2855 = vadd.f32 %v2609, %v2742
    %v2856 = vadd.f32 %v2610, %v2745
    %v2857 = vadd.f32 %v2611, %v2747
    %v2858 = vadd.f32 %v2612, %v2750
    %v2859 = vadd.f32 %v2613, %v2752
    %v2860 = vadd.f32 %v2614, %v2755
    %v2861 = vadd.f32 %v2615, %v2757
    %v2862 = vadd.f32 %v2616, %v2760
    %v2863 = vadd.f32 %v2617, %v2762
    %v2864 = vadd.f32 %v2618, %v2765
    %v2865 = vadd.f32 %v2619, %v2767
    %v2866 = vadd.f32 %v2620, %v2770
    %v2867 = vadd.f32 %v2621, %v2772
    %v2868 = vadd.f32 %v2622, %v2775
    %v2869 = vadd.f32 %v2623, %v2777
    %v2870 = vadd.f32 %v2624, %v2780
    %v2871 = vadd.f32 %v2625, %v2782
    %v2872 = vadd.f32 %v2626, %v2785
    %v2873 = vadd.f32 %v2627, %v2787
    %v2874 = vadd.f32 %v2628, %v2790
    %v2875 = vadd.f32 %v2629, %v2792
    %v2876 = vadd.f32 %v2630, %v2795
    %v2877 = vadd.f32 %v2631, %v2797
    %v2878 = vadd.f32 %v2632, %v2800
    %v2879 = vadd.f32 %v2633, %v2802
    %v2880 = vadd.f32 %v2634, %v2805
    %v2881 = vadd.f32 %v2635, %v2807
    %v2882 = vadd.f32 %v2636, %v2810
    %v2883 = vadd.f32 %v2637, %v2812
    %v2884 = vadd.f32 %v2638, %v2815
    %v2885 = vadd.f32 %v2639, %v2817
    %v2886 = vadd.f32 %v2640, %v2820
    %v2887 = vadd.f32 %v2641, %v2822
    %v2894 = vrot.slane %v297, 1
    %v2895 = vrot.slane %v298, 1
    %v2896 = vsel %vm483, %v2894, %v2895
    %v2897 = vrot.slane %v299, 1
    %v2898 = vsel %vm483, %v2895, %v2897
    %v2899 = vrot.slane %v351, 1
    %v2900 = vrot.slane %v352, 1
    %v2901 = vsel %vm483, %v2899, %v2900
    %v2902 = vrot.slane %v353, 1
    %v2903 = vsel %vm483, %v2900, %v2902
    %s2908 = scalar_lea.vmem %s1, 28
    %v2909 = vld [vmem:[%s2908] sm:$0xf]
    %v2910 = vpack.c.bf16 %v2898, %v2896
    %v2911 = vpack.c.bf16 %v2903, %v2901
    %v2913 = vsel %vm101, %v2910, 0
    %v2916 = vsel %vm101, %v2911, 0
    %v2919 = vsel %vm838, %v2909, 0
    %2921 = vmatpush.bf16.msra.mxu0 0
    %2922 = vmatpush.bf16.msra.mxu0 0
    %2923 = vmatpush.bf16.msra.mxu0 0
    %2924 = vmatpush.bf16.msra.mxu0 0
    %2925 = vmatpush.bf16.msra.mxu0 0
    %2926 = vmatpush.bf16.msra.mxu0 0
    %2927 = vmatpush.bf16.msra.mxu0 0
    %2928 = vmatpush.bf16.msra.mxu0 %v2919
    %2929 = vmatmul.bf16.gmra.mxu0 %v749
    %v2930 = vpop.f32.mrf.mxu0
    %v2931 = vadd.f32 0.0, %v2930
    %v2932 = vpop.f32.mrf.mxu0
    %v2933 = vadd.f32 0.0, %v2932
    %2934 = vmatmul.bf16.gmra.mxu0 %v752
    %v2935 = vpop.f32.mrf.mxu0
    %v2936 = vadd.f32 0.0, %v2935
    %v2937 = vpop.f32.mrf.mxu0
    %v2938 = vadd.f32 0.0, %v2937
    %2939 = vmatmul.bf16.gmra.mxu0 %v755
    %v2940 = vpop.f32.mrf.mxu0
    %v2941 = vadd.f32 0.0, %v2940
    %v2942 = vpop.f32.mrf.mxu0
    %v2943 = vadd.f32 0.0, %v2942
    %2944 = vmatmul.bf16.gmra.mxu0 %v758
    %v2945 = vpop.f32.mrf.mxu0
    %v2946 = vadd.f32 0.0, %v2945
    %v2947 = vpop.f32.mrf.mxu0
    %v2948 = vadd.f32 0.0, %v2947
    %2949 = vmatmul.bf16.gmra.mxu0 %v761
    %v2950 = vpop.f32.mrf.mxu0
    %v2951 = vadd.f32 0.0, %v2950
    %v2952 = vpop.f32.mrf.mxu0
    %v2953 = vadd.f32 0.0, %v2952
    %2954 = vmatmul.bf16.gmra.mxu0 %v764
    %v2955 = vpop.f32.mrf.mxu0
    %v2956 = vadd.f32 0.0, %v2955
    %v2957 = vpop.f32.mrf.mxu0
    %v2958 = vadd.f32 0.0, %v2957
    %2959 = vmatmul.bf16.gmra.mxu0 %v767
    %v2960 = vpop.f32.mrf.mxu0
    %v2961 = vadd.f32 0.0, %v2960
    %v2962 = vpop.f32.mrf.mxu0
    %v2963 = vadd.f32 0.0, %v2962
    %2964 = vmatmul.bf16.gmra.mxu0 %v770
    %v2965 = vpop.f32.mrf.mxu0
    %v2966 = vadd.f32 0.0, %v2965
    %v2967 = vpop.f32.mrf.mxu0
    %v2968 = vadd.f32 0.0, %v2967
    %2969 = vmatmul.bf16.gmra.mxu0 %v773
    %v2970 = vpop.f32.mrf.mxu0
    %v2971 = vadd.f32 0.0, %v2970
    %v2972 = vpop.f32.mrf.mxu0
    %v2973 = vadd.f32 0.0, %v2972
    %2974 = vmatmul.bf16.gmra.mxu0 %v776
    %v2975 = vpop.f32.mrf.mxu0
    %v2976 = vadd.f32 0.0, %v2975
    %v2977 = vpop.f32.mrf.mxu0
    %v2978 = vadd.f32 0.0, %v2977
    %2979 = vmatmul.bf16.gmra.mxu0 %v779
    %v2980 = vpop.f32.mrf.mxu0
    %v2981 = vadd.f32 0.0, %v2980
    %v2982 = vpop.f32.mrf.mxu0
    %v2983 = vadd.f32 0.0, %v2982
    %2984 = vmatmul.bf16.gmra.mxu0 %v782
    %v2985 = vpop.f32.mrf.mxu0
    %v2986 = vadd.f32 0.0, %v2985
    %v2987 = vpop.f32.mrf.mxu0
    %v2988 = vadd.f32 0.0, %v2987
    %2989 = vmatmul.bf16.gmra.mxu0 %v785
    %v2990 = vpop.f32.mrf.mxu0
    %v2991 = vadd.f32 0.0, %v2990
    %v2992 = vpop.f32.mrf.mxu0
    %v2993 = vadd.f32 0.0, %v2992
    %2994 = vmatmul.bf16.gmra.mxu0 %v788
    %v2995 = vpop.f32.mrf.mxu0
    %v2996 = vadd.f32 0.0, %v2995
    %v2997 = vpop.f32.mrf.mxu0
    %v2998 = vadd.f32 0.0, %v2997
    %2999 = vmatmul.bf16.gmra.mxu0 %v2141
    %v3000 = vpop.f32.mrf.mxu0
    %v3001 = vadd.f32 0.0, %v3000
    %v3002 = vpop.f32.mrf.mxu0
    %v3003 = vadd.f32 0.0, %v3002
    %3004 = vmatmul.bf16.gmra.mxu0 %v2913
    %v3005 = vpop.f32.mrf.mxu0
    %v3006 = vadd.f32 0.0, %v3005
    %v3007 = vpop.f32.mrf.mxu0
    %v3008 = vadd.f32 0.0, %v3007
    %3009 = vmatmul.bf16.gmra.mxu0 %v797
    %v3010 = vpop.f32.mrf.mxu0
    %v3011 = vadd.f32 0.0, %v3010
    %v3012 = vpop.f32.mrf.mxu0
    %v3013 = vadd.f32 0.0, %v3012
    %3014 = vmatmul.bf16.gmra.mxu0 %v800
    %v3015 = vpop.f32.mrf.mxu0
    %v3016 = vadd.f32 0.0, %v3015
    %v3017 = vpop.f32.mrf.mxu0
    %v3018 = vadd.f32 0.0, %v3017
    %3019 = vmatmul.bf16.gmra.mxu0 %v803
    %v3020 = vpop.f32.mrf.mxu0
    %v3021 = vadd.f32 0.0, %v3020
    %v3022 = vpop.f32.mrf.mxu0
    %v3023 = vadd.f32 0.0, %v3022
    %3024 = vmatmul.bf16.gmra.mxu0 %v806
    %v3025 = vpop.f32.mrf.mxu0
    %v3026 = vadd.f32 0.0, %v3025
    %v3027 = vpop.f32.mrf.mxu0
    %v3028 = vadd.f32 0.0, %v3027
    %3029 = vmatmul.bf16.gmra.mxu0 %v809
    %v3030 = vpop.f32.mrf.mxu0
    %v3031 = vadd.f32 0.0, %v3030
    %v3032 = vpop.f32.mrf.mxu0
    %v3033 = vadd.f32 0.0, %v3032
    %3034 = vmatmul.bf16.gmra.mxu0 %v812
    %v3035 = vpop.f32.mrf.mxu0
    %v3036 = vadd.f32 0.0, %v3035
    %v3037 = vpop.f32.mrf.mxu0
    %v3038 = vadd.f32 0.0, %v3037
    %3039 = vmatmul.bf16.gmra.mxu0 %v815
    %v3040 = vpop.f32.mrf.mxu0
    %v3041 = vadd.f32 0.0, %v3040
    %v3042 = vpop.f32.mrf.mxu0
    %v3043 = vadd.f32 0.0, %v3042
    %3044 = vmatmul.bf16.gmra.mxu0 %v818
    %v3045 = vpop.f32.mrf.mxu0
    %v3046 = vadd.f32 0.0, %v3045
    %v3047 = vpop.f32.mrf.mxu0
    %v3048 = vadd.f32 0.0, %v3047
    %3049 = vmatmul.bf16.gmra.mxu0 %v821
    %v3050 = vpop.f32.mrf.mxu0
    %v3051 = vadd.f32 0.0, %v3050
    %v3052 = vpop.f32.mrf.mxu0
    %v3053 = vadd.f32 0.0, %v3052
    %3054 = vmatmul.bf16.gmra.mxu0 %v824
    %v3055 = vpop.f32.mrf.mxu0
    %v3056 = vadd.f32 0.0, %v3055
    %v3057 = vpop.f32.mrf.mxu0
    %v3058 = vadd.f32 0.0, %v3057
    %3059 = vmatmul.bf16.gmra.mxu0 %v827
    %v3060 = vpop.f32.mrf.mxu0
    %v3061 = vadd.f32 0.0, %v3060
    %v3062 = vpop.f32.mrf.mxu0
    %v3063 = vadd.f32 0.0, %v3062
    %3064 = vmatmul.bf16.gmra.mxu0 %v830
    %v3065 = vpop.f32.mrf.mxu0
    %v3066 = vadd.f32 0.0, %v3065
    %v3067 = vpop.f32.mrf.mxu0
    %v3068 = vadd.f32 0.0, %v3067
    %3069 = vmatmul.bf16.gmra.mxu0 %v833
    %v3070 = vpop.f32.mrf.mxu0
    %v3071 = vadd.f32 0.0, %v3070
    %v3072 = vpop.f32.mrf.mxu0
    %v3073 = vadd.f32 0.0, %v3072
    %3074 = vmatmul.bf16.gmra.mxu0 %v836
    %v3075 = vpop.f32.mrf.mxu0
    %v3076 = vadd.f32 0.0, %v3075
    %v3077 = vpop.f32.mrf.mxu0
    %v3078 = vadd.f32 0.0, %v3077
    %3079 = vmatmul.bf16.gmra.mxu0 %v2144
    %v3080 = vpop.f32.mrf.mxu0
    %v3081 = vadd.f32 0.0, %v3080
    %v3082 = vpop.f32.mrf.mxu0
    %v3083 = vadd.f32 0.0, %v3082
    %3084 = vmatmul.bf16.gmra.mxu0 %v2916
    %v3085 = vpop.f32.mrf.mxu0
    %v3086 = vadd.f32 0.0, %v3085
    %v3087 = vpop.f32.mrf.mxu0
    %v3088 = vadd.f32 0.0, %v3087
    %3089 = vdwg.mxu0
    %v3090 = vadd.f32 %v2824, %v2931
    %v3091 = vadd.f32 %v2825, %v2933
    %v3092 = vadd.f32 %v2826, %v2936
    %v3093 = vadd.f32 %v2827, %v2938
    %v3094 = vadd.f32 %v2828, %v2941
    %v3095 = vadd.f32 %v2829, %v2943
    %v3096 = vadd.f32 %v2830, %v2946
    %v3097 = vadd.f32 %v2831, %v2948
    %v3098 = vadd.f32 %v2832, %v2951
    %v3099 = vadd.f32 %v2833, %v2953
    %v3100 = vadd.f32 %v2834, %v2956
    %v3101 = vadd.f32 %v2835, %v2958
    %v3102 = vadd.f32 %v2836, %v2961
    %v3103 = vadd.f32 %v2837, %v2963
    %v3104 = vadd.f32 %v2838, %v2966
    %v3105 = vadd.f32 %v2839, %v2968
    %v3106 = vadd.f32 %v2840, %v2971
    %v3107 = vadd.f32 %v2841, %v2973
    %v3108 = vadd.f32 %v2842, %v2976
    %v3109 = vadd.f32 %v2843, %v2978
    %v3110 = vadd.f32 %v2844, %v2981
    %v3111 = vadd.f32 %v2845, %v2983
    %v3112 = vadd.f32 %v2846, %v2986
    %v3113 = vadd.f32 %v2847, %v2988
    %v3114 = vadd.f32 %v2848, %v2991
    %v3115 = vadd.f32 %v2849, %v2993
    %v3116 = vadd.f32 %v2850, %v2996
    %v3117 = vadd.f32 %v2851, %v2998
    %v3118 = vadd.f32 %v2852, %v3001
    %v3119 = vadd.f32 %v2853, %v3003
    %v3120 = vadd.f32 %v2854, %v3006
    %v3121 = vadd.f32 %v2855, %v3008
    %v3122 = vadd.f32 %v2856, %v3011
    %v3123 = vadd.f32 %v2857, %v3013
    %v3124 = vadd.f32 %v2858, %v3016
    %v3125 = vadd.f32 %v2859, %v3018
    %v3126 = vadd.f32 %v2860, %v3021
    %v3127 = vadd.f32 %v2861, %v3023
    %v3128 = vadd.f32 %v2862, %v3026
    %v3129 = vadd.f32 %v2863, %v3028
    %v3130 = vadd.f32 %v2864, %v3031
    %v3131 = vadd.f32 %v2865, %v3033
    %v3132 = vadd.f32 %v2866, %v3036
    %v3133 = vadd.f32 %v2867, %v3038
    %v3134 = vadd.f32 %v2868, %v3041
    %v3135 = vadd.f32 %v2869, %v3043
    %v3136 = vadd.f32 %v2870, %v3046
    %v3137 = vadd.f32 %v2871, %v3048
    %v3138 = vadd.f32 %v2872, %v3051
    %v3139 = vadd.f32 %v2873, %v3053
    %v3140 = vadd.f32 %v2874, %v3056
    %v3141 = vadd.f32 %v2875, %v3058
    %v3142 = vadd.f32 %v2876, %v3061
    %v3143 = vadd.f32 %v2877, %v3063
    %v3144 = vadd.f32 %v2878, %v3066
    %v3145 = vadd.f32 %v2879, %v3068
    %v3146 = vadd.f32 %v2880, %v3071
    %v3147 = vadd.f32 %v2881, %v3073
    %v3148 = vadd.f32 %v2882, %v3076
    %v3149 = vadd.f32 %v2883, %v3078
    %v3150 = vadd.f32 %v2884, %v3081
    %v3151 = vadd.f32 %v2885, %v3083
    %v3152 = vadd.f32 %v2886, %v3086
    %v3153 = vadd.f32 %v2887, %v3088
    %v3154 = vrot.slane %v297, 2
    %v3155 = vrot.slane %v298, 2
    %v3156 = vsel %vm1279, %v3154, %v3155
    %v3157 = vrot.slane %v299, 2
    %v3158 = vsel %vm1279, %v3155, %v3157
    %v3159 = vrot.slane %v351, 2
    %v3160 = vrot.slane %v352, 2
    %v3161 = vsel %vm1279, %v3159, %v3160
    %v3162 = vrot.slane %v353, 2
    %v3163 = vsel %vm1279, %v3160, %v3162
    %s3168 = scalar_lea.vmem %s1, 32
    %v3169 = vld [vmem:[%s3168] sm:$0xf]
    %v3170 = vpack.c.bf16 %v3158, %v3156
    %v3171 = vpack.c.bf16 %v3163, %v3161
    %v3173 = vsel %vm101, %v3170, 0
    %v3176 = vsel %vm101, %v3171, 0
    %v3179 = vsel %vm838, %v3169, 0
    %3181 = vmatpush.bf16.msra.mxu0 0
    %3182 = vmatpush.bf16.msra.mxu0 0
    %3183 = vmatpush.bf16.msra.mxu0 0
    %3184 = vmatpush.bf16.msra.mxu0 0
    %3185 = vmatpush.bf16.msra.mxu0 0
    %3186 = vmatpush.bf16.msra.mxu0 0
    %3187 = vmatpush.bf16.msra.mxu0 0
    %3188 = vmatpush.bf16.msra.mxu0 %v3179
    %3189 = vmatmul.bf16.gmra.mxu0 %v1545
    %v3190 = vpop.f32.mrf.mxu0
    %v3191 = vadd.f32 0.0, %v3190
    %v3192 = vpop.f32.mrf.mxu0
    %v3193 = vadd.f32 0.0, %v3192
    %3194 = vmatmul.bf16.gmra.mxu0 %v1548
    %v3195 = vpop.f32.mrf.mxu0
    %v3196 = vadd.f32 0.0, %v3195
    %v3197 = vpop.f32.mrf.mxu0
    %v3198 = vadd.f32 0.0, %v3197
    %3199 = vmatmul.bf16.gmra.mxu0 %v1551
    %v3200 = vpop.f32.mrf.mxu0
    %v3201 = vadd.f32 0.0, %v3200
    %v3202 = vpop.f32.mrf.mxu0
    %v3203 = vadd.f32 0.0, %v3202
    %3204 = vmatmul.bf16.gmra.mxu0 %v1554
    %v3205 = vpop.f32.mrf.mxu0
    %v3206 = vadd.f32 0.0, %v3205
    %v3207 = vpop.f32.mrf.mxu0
    %v3208 = vadd.f32 0.0, %v3207
    %3209 = vmatmul.bf16.gmra.mxu0 %v1557
    %v3210 = vpop.f32.mrf.mxu0
    %v3211 = vadd.f32 0.0, %v3210
    %v3212 = vpop.f32.mrf.mxu0
    %v3213 = vadd.f32 0.0, %v3212
    %3214 = vmatmul.bf16.gmra.mxu0 %v1560
    %v3215 = vpop.f32.mrf.mxu0
    %v3216 = vadd.f32 0.0, %v3215
    %v3217 = vpop.f32.mrf.mxu0
    %v3218 = vadd.f32 0.0, %v3217
    %3219 = vmatmul.bf16.gmra.mxu0 %v1563
    %v3220 = vpop.f32.mrf.mxu0
    %v3221 = vadd.f32 0.0, %v3220
    %v3222 = vpop.f32.mrf.mxu0
    %v3223 = vadd.f32 0.0, %v3222
    %3224 = vmatmul.bf16.gmra.mxu0 %v1566
    %v3225 = vpop.f32.mrf.mxu0
    %v3226 = vadd.f32 0.0, %v3225
    %v3227 = vpop.f32.mrf.mxu0
    %v3228 = vadd.f32 0.0, %v3227
    %3229 = vmatmul.bf16.gmra.mxu0 %v1569
    %v3230 = vpop.f32.mrf.mxu0
    %v3231 = vadd.f32 0.0, %v3230
    %v3232 = vpop.f32.mrf.mxu0
    %v3233 = vadd.f32 0.0, %v3232
    %3234 = vmatmul.bf16.gmra.mxu0 %v1572
    %v3235 = vpop.f32.mrf.mxu0
    %v3236 = vadd.f32 0.0, %v3235
    %v3237 = vpop.f32.mrf.mxu0
    %v3238 = vadd.f32 0.0, %v3237
    %3239 = vmatmul.bf16.gmra.mxu0 %v1575
    %v3240 = vpop.f32.mrf.mxu0
    %v3241 = vadd.f32 0.0, %v3240
    %v3242 = vpop.f32.mrf.mxu0
    %v3243 = vadd.f32 0.0, %v3242
    %3244 = vmatmul.bf16.gmra.mxu0 %v1578
    %v3245 = vpop.f32.mrf.mxu0
    %v3246 = vadd.f32 0.0, %v3245
    %v3247 = vpop.f32.mrf.mxu0
    %v3248 = vadd.f32 0.0, %v3247
    %3249 = vmatmul.bf16.gmra.mxu0 %v1581
    %v3250 = vpop.f32.mrf.mxu0
    %v3251 = vadd.f32 0.0, %v3250
    %v3252 = vpop.f32.mrf.mxu0
    %v3253 = vadd.f32 0.0, %v3252
    %3254 = vmatmul.bf16.gmra.mxu0 %v1584
    %v3255 = vpop.f32.mrf.mxu0
    %v3256 = vadd.f32 0.0, %v3255
    %v3257 = vpop.f32.mrf.mxu0
    %v3258 = vadd.f32 0.0, %v3257
    %3259 = vmatmul.bf16.gmra.mxu0 %v2401
    %v3260 = vpop.f32.mrf.mxu0
    %v3261 = vadd.f32 0.0, %v3260
    %v3262 = vpop.f32.mrf.mxu0
    %v3263 = vadd.f32 0.0, %v3262
    %3264 = vmatmul.bf16.gmra.mxu0 %v3173
    %v3265 = vpop.f32.mrf.mxu0
    %v3266 = vadd.f32 0.0, %v3265
    %v3267 = vpop.f32.mrf.mxu0
    %v3268 = vadd.f32 0.0, %v3267
    %3269 = vmatmul.bf16.gmra.mxu0 %v1593
    %v3270 = vpop.f32.mrf.mxu0
    %v3271 = vadd.f32 0.0, %v3270
    %v3272 = vpop.f32.mrf.mxu0
    %v3273 = vadd.f32 0.0, %v3272
    %3274 = vmatmul.bf16.gmra.mxu0 %v1596
    %v3275 = vpop.f32.mrf.mxu0
    %v3276 = vadd.f32 0.0, %v3275
    %v3277 = vpop.f32.mrf.mxu0
    %v3278 = vadd.f32 0.0, %v3277
    %3279 = vmatmul.bf16.gmra.mxu0 %v1599
    %v3280 = vpop.f32.mrf.mxu0
    %v3281 = vadd.f32 0.0, %v3280
    %v3282 = vpop.f32.mrf.mxu0
    %v3283 = vadd.f32 0.0, %v3282
    %3284 = vmatmul.bf16.gmra.mxu0 %v1602
    %v3285 = vpop.f32.mrf.mxu0
    %v3286 = vadd.f32 0.0, %v3285
    %v3287 = vpop.f32.mrf.mxu0
    %v3288 = vadd.f32 0.0, %v3287
    %3289 = vmatmul.bf16.gmra.mxu0 %v1605
    %v3290 = vpop.f32.mrf.mxu0
    %v3291 = vadd.f32 0.0, %v3290
    %v3292 = vpop.f32.mrf.mxu0
    %v3293 = vadd.f32 0.0, %v3292
    %3294 = vmatmul.bf16.gmra.mxu0 %v1608
    %v3295 = vpop.f32.mrf.mxu0
    %v3296 = vadd.f32 0.0, %v3295
    %v3297 = vpop.f32.mrf.mxu0
    %v3298 = vadd.f32 0.0, %v3297
    %3299 = vmatmul.bf16.gmra.mxu0 %v1611
    %v3300 = vpop.f32.mrf.mxu0
    %v3301 = vadd.f32 0.0, %v3300
    %v3302 = vpop.f32.mrf.mxu0
    %v3303 = vadd.f32 0.0, %v3302
    %3304 = vmatmul.bf16.gmra.mxu0 %v1614
    %v3305 = vpop.f32.mrf.mxu0
    %v3306 = vadd.f32 0.0, %v3305
    %v3307 = vpop.f32.mrf.mxu0
    %v3308 = vadd.f32 0.0, %v3307
    %3309 = vmatmul.bf16.gmra.mxu0 %v1617
    %v3310 = vpop.f32.mrf.mxu0
    %v3311 = vadd.f32 0.0, %v3310
    %v3312 = vpop.f32.mrf.mxu0
    %v3313 = vadd.f32 0.0, %v3312
    %3314 = vmatmul.bf16.gmra.mxu0 %v1620
    %v3315 = vpop.f32.mrf.mxu0
    %v3316 = vadd.f32 0.0, %v3315
    %v3317 = vpop.f32.mrf.mxu0
    %v3318 = vadd.f32 0.0, %v3317
    %3319 = vmatmul.bf16.gmra.mxu0 %v1623
    %v3320 = vpop.f32.mrf.mxu0
    %v3321 = vadd.f32 0.0, %v3320
    %v3322 = vpop.f32.mrf.mxu0
    %v3323 = vadd.f32 0.0, %v3322
    %3324 = vmatmul.bf16.gmra.mxu0 %v1626
    %v3325 = vpop.f32.mrf.mxu0
    %v3326 = vadd.f32 0.0, %v3325
    %v3327 = vpop.f32.mrf.mxu0
    %v3328 = vadd.f32 0.0, %v3327
    %3329 = vmatmul.bf16.gmra.mxu0 %v1629
    %v3330 = vpop.f32.mrf.mxu0
    %v3331 = vadd.f32 0.0, %v3330
    %v3332 = vpop.f32.mrf.mxu0
    %v3333 = vadd.f32 0.0, %v3332
    %3334 = vmatmul.bf16.gmra.mxu0 %v1632
    %v3335 = vpop.f32.mrf.mxu0
    %v3336 = vadd.f32 0.0, %v3335
    %v3337 = vpop.f32.mrf.mxu0
    %v3338 = vadd.f32 0.0, %v3337
    %3339 = vmatmul.bf16.gmra.mxu0 %v2404
    %v3340 = vpop.f32.mrf.mxu0
    %v3341 = vadd.f32 0.0, %v3340
    %v3342 = vpop.f32.mrf.mxu0
    %v3343 = vadd.f32 0.0, %v3342
    %3344 = vmatmul.bf16.gmra.mxu0 %v3176
    %v3345 = vpop.f32.mrf.mxu0
    %v3346 = vadd.f32 0.0, %v3345
    %v3347 = vpop.f32.mrf.mxu0
    %v3348 = vadd.f32 0.0, %v3347
    %3349 = vdwg.mxu0
    %v3350 = vadd.f32 %v3090, %v3191
    %v3351 = vadd.f32 %v3091, %v3193
    %v3352 = vadd.f32 %v3092, %v3196
    %v3353 = vadd.f32 %v3093, %v3198
    %v3354 = vadd.f32 %v3094, %v3201
    %v3355 = vadd.f32 %v3095, %v3203
    %v3356 = vadd.f32 %v3096, %v3206
    %v3357 = vadd.f32 %v3097, %v3208
    %v3358 = vadd.f32 %v3098, %v3211
    %v3359 = vadd.f32 %v3099, %v3213
    %v3360 = vadd.f32 %v3100, %v3216
    %v3361 = vadd.f32 %v3101, %v3218
    %v3362 = vadd.f32 %v3102, %v3221
    %v3363 = vadd.f32 %v3103, %v3223
    %v3364 = vadd.f32 %v3104, %v3226
    %v3365 = vadd.f32 %v3105, %v3228
    %v3366 = vadd.f32 %v3106, %v3231
    %v3367 = vadd.f32 %v3107, %v3233
    %v3368 = vadd.f32 %v3108, %v3236
    %v3369 = vadd.f32 %v3109, %v3238
    %v3370 = vadd.f32 %v3110, %v3241
    %v3371 = vadd.f32 %v3111, %v3243
    %v3372 = vadd.f32 %v3112, %v3246
    %v3373 = vadd.f32 %v3113, %v3248
    %v3374 = vadd.f32 %v3114, %v3251
    %v3375 = vadd.f32 %v3115, %v3253
    %v3376 = vadd.f32 %v3116, %v3256
    %v3377 = vadd.f32 %v3117, %v3258
    %v3378 = vadd.f32 %v3118, %v3261
    %v3379 = vadd.f32 %v3119, %v3263
    %v3380 = vadd.f32 %v3120, %v3266
    %v3381 = vadd.f32 %v3121, %v3268
    %v3382 = vadd.f32 %v3122, %v3271
    %v3383 = vadd.f32 %v3123, %v3273
    %v3384 = vadd.f32 %v3124, %v3276
    %v3385 = vadd.f32 %v3125, %v3278
    %v3386 = vadd.f32 %v3126, %v3281
    %v3387 = vadd.f32 %v3127, %v3283
    %v3388 = vadd.f32 %v3128, %v3286
    %v3389 = vadd.f32 %v3129, %v3288
    %v3390 = vadd.f32 %v3130, %v3291
    %v3391 = vadd.f32 %v3131, %v3293
    %v3392 = vadd.f32 %v3132, %v3296
    %v3393 = vadd.f32 %v3133, %v3298
    %v3394 = vadd.f32 %v3134, %v3301
    %v3395 = vadd.f32 %v3135, %v3303
    %v3396 = vadd.f32 %v3136, %v3306
    %v3397 = vadd.f32 %v3137, %v3308
    %v3398 = vadd.f32 %v3138, %v3311
    %v3399 = vadd.f32 %v3139, %v3313
    %v3400 = vadd.f32 %v3140, %v3316
    %v3401 = vadd.f32 %v3141, %v3318
    %v3402 = vadd.f32 %v3142, %v3321
    %v3403 = vadd.f32 %v3143, %v3323
    %v3404 = vadd.f32 %v3144, %v3326
    %v3405 = vadd.f32 %v3145, %v3328
    %v3406 = vadd.f32 %v3146, %v3331
    %v3407 = vadd.f32 %v3147, %v3333
    %v3408 = vadd.f32 %v3148, %v3336
    %v3409 = vadd.f32 %v3149, %v3338
    %v3410 = vadd.f32 %v3150, %v3341
    %v3411 = vadd.f32 %v3151, %v3343
    %v3412 = vadd.f32 %v3152, %v3346
    %v3413 = vadd.f32 %v3153, %v3348
    %v3414 = vld [vmem:[%s2] sm:$0x1]
    %v3415 = vld [vmem:[%s3] sm:$0x1]
    %v3416 = vadd.f32 %v3350, %v3351
    %v3417 = vadd.f32 %v3416, %v3352
    %v3418 = vadd.f32 %v3417, %v3353
    %v3419 = vadd.f32 %v3418, %v3354
    %v3420 = vadd.f32 %v3419, %v3355
    %v3421 = vadd.f32 %v3420, %v3356
    %v3422 = vadd.f32 %v3421, %v3357
    %v3423 = vadd.f32 %v3422, %v3358
    %v3424 = vadd.f32 %v3423, %v3359
    %v3425 = vadd.f32 %v3424, %v3360
    %v3426 = vadd.f32 %v3425, %v3361
    %v3427 = vadd.f32 %v3426, %v3362
    %v3428 = vadd.f32 %v3427, %v3363
    %v3429 = vadd.f32 %v3428, %v3364
    %v3430 = vadd.f32 %v3429, %v3365
    %v3431 = vadd.f32 %v3430, %v3366
    %v3432 = vadd.f32 %v3431, %v3367
    %v3433 = vadd.f32 %v3432, %v3368
    %v3434 = vadd.f32 %v3433, %v3369
    %v3435 = vadd.f32 %v3434, %v3370
    %v3436 = vadd.f32 %v3435, %v3371
    %v3437 = vadd.f32 %v3436, %v3372
    %v3438 = vadd.f32 %v3437, %v3373
    %v3439 = vadd.f32 %v3438, %v3374
    %v3440 = vadd.f32 %v3439, %v3375
    %v3441 = vadd.f32 %v3440, %v3376
    %v3442 = vadd.f32 %v3441, %v3377
    %v3443 = vadd.f32 %v3442, %v3378
    %v3444 = vadd.f32 %v3443, %v3379
    %v3445 = vadd.f32 %v3444, %v3380
    %v3446 = vadd.f32 %v3445, %v3381
    %v3447 = vadd.f32 %v3446, %v3382
    %v3448 = vadd.f32 %v3447, %v3383
    %v3449 = vadd.f32 %v3448, %v3384
    %v3450 = vadd.f32 %v3449, %v3385
    %v3451 = vadd.f32 %v3450, %v3386
    %v3452 = vadd.f32 %v3451, %v3387
    %v3453 = vadd.f32 %v3452, %v3388
    %v3454 = vadd.f32 %v3453, %v3389
    %v3455 = vadd.f32 %v3454, %v3390
    %v3456 = vadd.f32 %v3455, %v3391
    %v3457 = vadd.f32 %v3456, %v3392
    %v3458 = vadd.f32 %v3457, %v3393
    %v3459 = vadd.f32 %v3458, %v3394
    %v3460 = vadd.f32 %v3459, %v3395
    %v3461 = vadd.f32 %v3460, %v3396
    %v3462 = vadd.f32 %v3461, %v3397
    %v3463 = vadd.f32 %v3462, %v3398
    %v3464 = vadd.f32 %v3463, %v3399
    %v3465 = vadd.f32 %v3464, %v3400
    %v3466 = vadd.f32 %v3465, %v3401
    %v3467 = vadd.f32 %v3466, %v3402
    %v3468 = vadd.f32 %v3467, %v3403
    %v3469 = vadd.f32 %v3468, %v3404
    %v3470 = vadd.f32 %v3469, %v3405
    %v3471 = vadd.f32 %v3470, %v3406
    %v3472 = vadd.f32 %v3471, %v3407
    %v3473 = vadd.f32 %v3472, %v3408
    %v3474 = vadd.f32 %v3473, %v3409
    %v3475 = vadd.f32 %v3474, %v3410
    %v3476 = vadd.f32 %v3475, %v3411
    %v3477 = vadd.f32 %v3476, %v3412
    %v3478 = vadd.f32 %v3477, %v3413
    %v3479 = vrot.slane %v3478, 4
    %v3480 = vadd.f32 %v3478, %v3479
    %v3481 = vrot.slane %v3480, 2
    %v3482 = vadd.f32 %v3480, %v3481
    %v3483 = vrot.slane %v3482, 1
    %v3484 = vadd.f32 %v3482, %v3483
    %v3485 = vmul.f32 %v3484, 0.001953125
    %v3486 = vmul.f32 %v3350, %v3350
    %v3487 = vmul.f32 %v3351, %v3351
    %v3488 = vmul.f32 %v3352, %v3352
    %v3489 = vmul.f32 %v3353, %v3353
    %v3490 = vmul.f32 %v3354, %v3354
    %v3491 = vmul.f32 %v3355, %v3355
    %v3492 = vmul.f32 %v3356, %v3356
    %v3493 = vmul.f32 %v3357, %v3357
    %v3494 = vmul.f32 %v3358, %v3358
    %v3495 = vmul.f32 %v3359, %v3359
    %v3496 = vmul.f32 %v3360, %v3360
    %v3497 = vmul.f32 %v3361, %v3361
    %v3498 = vmul.f32 %v3362, %v3362
    %v3499 = vmul.f32 %v3363, %v3363
    %v3500 = vmul.f32 %v3364, %v3364
    %v3501 = vmul.f32 %v3365, %v3365
    %v3502 = vmul.f32 %v3366, %v3366
    %v3503 = vmul.f32 %v3367, %v3367
    %v3504 = vmul.f32 %v3368, %v3368
    %v3505 = vmul.f32 %v3369, %v3369
    %v3506 = vmul.f32 %v3370, %v3370
    %v3507 = vmul.f32 %v3371, %v3371
    %v3508 = vmul.f32 %v3372, %v3372
    %v3509 = vmul.f32 %v3373, %v3373
    %v3510 = vmul.f32 %v3374, %v3374
    %v3511 = vmul.f32 %v3375, %v3375
    %v3512 = vmul.f32 %v3376, %v3376
    %v3513 = vmul.f32 %v3377, %v3377
    %v3514 = vmul.f32 %v3378, %v3378
    %v3515 = vmul.f32 %v3379, %v3379
    %v3516 = vmul.f32 %v3380, %v3380
    %v3517 = vmul.f32 %v3381, %v3381
    %v3518 = vmul.f32 %v3382, %v3382
    %v3519 = vmul.f32 %v3383, %v3383
    %v3520 = vmul.f32 %v3384, %v3384
    %v3521 = vmul.f32 %v3385, %v3385
    %v3522 = vmul.f32 %v3386, %v3386
    %v3523 = vmul.f32 %v3387, %v3387
    %v3524 = vmul.f32 %v3388, %v3388
    %v3525 = vmul.f32 %v3389, %v3389
    %v3526 = vmul.f32 %v3390, %v3390
    %v3527 = vmul.f32 %v3391, %v3391
    %v3528 = vmul.f32 %v3392, %v3392
    %v3529 = vmul.f32 %v3393, %v3393
    %v3530 = vmul.f32 %v3394, %v3394
    %v3531 = vmul.f32 %v3395, %v3395
    %v3532 = vmul.f32 %v3396, %v3396
    %v3533 = vmul.f32 %v3397, %v3397
    %v3534 = vmul.f32 %v3398, %v3398
    %v3535 = vmul.f32 %v3399, %v3399
    %v3536 = vmul.f32 %v3400, %v3400
    %v3537 = vmul.f32 %v3401, %v3401
    %v3538 = vmul.f32 %v3402, %v3402
    %v3539 = vmul.f32 %v3403, %v3403
    %v3540 = vmul.f32 %v3404, %v3404
    %v3541 = vmul.f32 %v3405, %v3405
    %v3542 = vmul.f32 %v3406, %v3406
    %v3543 = vmul.f32 %v3407, %v3407
    %v3544 = vmul.f32 %v3408, %v3408
    %v3545 = vmul.f32 %v3409, %v3409
    %v3546 = vmul.f32 %v3410, %v3410
    %v3547 = vmul.f32 %v3411, %v3411
    %v3548 = vmul.f32 %v3412, %v3412
    %v3549 = vmul.f32 %v3413, %v3413
    %v3550 = vadd.f32 %v3486, %v3487
    %v3551 = vadd.f32 %v3550, %v3488
    %v3552 = vadd.f32 %v3551, %v3489
    %v3553 = vadd.f32 %v3552, %v3490
    %v3554 = vadd.f32 %v3553, %v3491
    %v3555 = vadd.f32 %v3554, %v3492
    %v3556 = vadd.f32 %v3555, %v3493
    %v3557 = vadd.f32 %v3556, %v3494
    %v3558 = vadd.f32 %v3557, %v3495
    %v3559 = vadd.f32 %v3558, %v3496
    %v3560 = vadd.f32 %v3559, %v3497
    %v3561 = vadd.f32 %v3560, %v3498
    %v3562 = vadd.f32 %v3561, %v3499
    %v3563 = vadd.f32 %v3562, %v3500
    %v3564 = vadd.f32 %v3563, %v3501
    %v3565 = vadd.f32 %v3564, %v3502
    %v3566 = vadd.f32 %v3565, %v3503
    %v3567 = vadd.f32 %v3566, %v3504
    %v3568 = vadd.f32 %v3567, %v3505
    %v3569 = vadd.f32 %v3568, %v3506
    %v3570 = vadd.f32 %v3569, %v3507
    %v3571 = vadd.f32 %v3570, %v3508
    %v3572 = vadd.f32 %v3571, %v3509
    %v3573 = vadd.f32 %v3572, %v3510
    %v3574 = vadd.f32 %v3573, %v3511
    %v3575 = vadd.f32 %v3574, %v3512
    %v3576 = vadd.f32 %v3575, %v3513
    %v3577 = vadd.f32 %v3576, %v3514
    %v3578 = vadd.f32 %v3577, %v3515
    %v3579 = vadd.f32 %v3578, %v3516
    %v3580 = vadd.f32 %v3579, %v3517
    %v3581 = vadd.f32 %v3580, %v3518
    %v3582 = vadd.f32 %v3581, %v3519
    %v3583 = vadd.f32 %v3582, %v3520
    %v3584 = vadd.f32 %v3583, %v3521
    %v3585 = vadd.f32 %v3584, %v3522
    %v3586 = vadd.f32 %v3585, %v3523
    %v3587 = vadd.f32 %v3586, %v3524
    %v3588 = vadd.f32 %v3587, %v3525
    %v3589 = vadd.f32 %v3588, %v3526
    %v3590 = vadd.f32 %v3589, %v3527
    %v3591 = vadd.f32 %v3590, %v3528
    %v3592 = vadd.f32 %v3591, %v3529
    %v3593 = vadd.f32 %v3592, %v3530
    %v3594 = vadd.f32 %v3593, %v3531
    %v3595 = vadd.f32 %v3594, %v3532
    %v3596 = vadd.f32 %v3595, %v3533
    %v3597 = vadd.f32 %v3596, %v3534
    %v3598 = vadd.f32 %v3597, %v3535
    %v3599 = vadd.f32 %v3598, %v3536
    %v3600 = vadd.f32 %v3599, %v3537
    %v3601 = vadd.f32 %v3600, %v3538
    %v3602 = vadd.f32 %v3601, %v3539
    %v3603 = vadd.f32 %v3602, %v3540
    %v3604 = vadd.f32 %v3603, %v3541
    %v3605 = vadd.f32 %v3604, %v3542
    %v3606 = vadd.f32 %v3605, %v3543
    %v3607 = vadd.f32 %v3606, %v3544
    %v3608 = vadd.f32 %v3607, %v3545
    %v3609 = vadd.f32 %v3608, %v3546
    %v3610 = vadd.f32 %v3609, %v3547
    %v3611 = vadd.f32 %v3610, %v3548
    %v3612 = vadd.f32 %v3611, %v3549
    %v3613 = vrot.slane %v3612, 4
    %v3614 = vadd.f32 %v3612, %v3613
    %v3615 = vrot.slane %v3614, 2
    %v3616 = vadd.f32 %v3614, %v3615
    %v3617 = vrot.slane %v3616, 1
    %v3618 = vadd.f32 %v3616, %v3617
    %v3619 = vmul.f32 %v3618, 0.001953125
    %v3620 = vmul.f32 %v3485, %v3485
    %v3621 = vsub.f32 %v3619, %v3620
    %v3622 = vmax.f32 %v3621, 0.0
    %v3623 = vsub.f32 %v3350, %v3485
    %v3624 = vsub.f32 %v3351, %v3485
    %v3625 = vsub.f32 %v3352, %v3485
    %v3626 = vsub.f32 %v3353, %v3485
    %v3627 = vsub.f32 %v3354, %v3485
    %v3628 = vsub.f32 %v3355, %v3485
    %v3629 = vsub.f32 %v3356, %v3485
    %v3630 = vsub.f32 %v3357, %v3485
    %v3631 = vsub.f32 %v3358, %v3485
    %v3632 = vsub.f32 %v3359, %v3485
    %v3633 = vsub.f32 %v3360, %v3485
    %v3634 = vsub.f32 %v3361, %v3485
    %v3635 = vsub.f32 %v3362, %v3485
    %v3636 = vsub.f32 %v3363, %v3485
    %v3637 = vsub.f32 %v3364, %v3485
    %v3638 = vsub.f32 %v3365, %v3485
    %v3639 = vsub.f32 %v3366, %v3485
    %v3640 = vsub.f32 %v3367, %v3485
    %v3641 = vsub.f32 %v3368, %v3485
    %v3642 = vsub.f32 %v3369, %v3485
    %v3643 = vsub.f32 %v3370, %v3485
    %v3644 = vsub.f32 %v3371, %v3485
    %v3645 = vsub.f32 %v3372, %v3485
    %v3646 = vsub.f32 %v3373, %v3485
    %v3647 = vsub.f32 %v3374, %v3485
    %v3648 = vsub.f32 %v3375, %v3485
    %v3649 = vsub.f32 %v3376, %v3485
    %v3650 = vsub.f32 %v3377, %v3485
    %v3651 = vsub.f32 %v3378, %v3485
    %v3652 = vsub.f32 %v3379, %v3485
    %v3653 = vsub.f32 %v3380, %v3485
    %v3654 = vsub.f32 %v3381, %v3485
    %v3655 = vsub.f32 %v3382, %v3485
    %v3656 = vsub.f32 %v3383, %v3485
    %v3657 = vsub.f32 %v3384, %v3485
    %v3658 = vsub.f32 %v3385, %v3485
    %v3659 = vsub.f32 %v3386, %v3485
    %v3660 = vsub.f32 %v3387, %v3485
    %v3661 = vsub.f32 %v3388, %v3485
    %v3662 = vsub.f32 %v3389, %v3485
    %v3663 = vsub.f32 %v3390, %v3485
    %v3664 = vsub.f32 %v3391, %v3485
    %v3665 = vsub.f32 %v3392, %v3485
    %v3666 = vsub.f32 %v3393, %v3485
    %v3667 = vsub.f32 %v3394, %v3485
    %v3668 = vsub.f32 %v3395, %v3485
    %v3669 = vsub.f32 %v3396, %v3485
    %v3670 = vsub.f32 %v3397, %v3485
    %v3671 = vsub.f32 %v3398, %v3485
    %v3672 = vsub.f32 %v3399, %v3485
    %v3673 = vsub.f32 %v3400, %v3485
    %v3674 = vsub.f32 %v3401, %v3485
    %v3675 = vsub.f32 %v3402, %v3485
    %v3676 = vsub.f32 %v3403, %v3485
    %v3677 = vsub.f32 %v3404, %v3485
    %v3678 = vsub.f32 %v3405, %v3485
    %v3679 = vsub.f32 %v3406, %v3485
    %v3680 = vsub.f32 %v3407, %v3485
    %v3681 = vsub.f32 %v3408, %v3485
    %v3682 = vsub.f32 %v3409, %v3485
    %v3683 = vsub.f32 %v3410, %v3485
    %v3684 = vsub.f32 %v3411, %v3485
    %v3685 = vsub.f32 %v3412, %v3485
    %v3686 = vsub.f32 %v3413, %v3485
    %v3687 = vadd.f32 %v3622, 1e-05
    %v3688 = vrsqrt.pop %v3687
    %v3689 = vmul.f32 %v3688, %v3687
    %v3690 = vmul.f32 %v3689, %v3688
    %v3691 = vmul.f32 0.5, %v3690
    %v3692 = vsub.f32 1.5, %v3691
    %v3693 = vmul.f32 %v3688, %v3692
    %vm3694 = vweird.f32 %v3687
    %vm3695 = vweird.f32 %v3688
    %vm3696 = vmor %vm3694, %vm3695
    %v3697 = vsel %vm3696, %v3688, %v3693
    %v3698 = vmul.f32 %v3623, %v3697
    %v3699 = vmul.f32 %v3624, %v3697
    %v3700 = vmul.f32 %v3625, %v3697
    %v3701 = vmul.f32 %v3626, %v3697
    %v3702 = vmul.f32 %v3627, %v3697
    %v3703 = vmul.f32 %v3628, %v3697
    %v3704 = vmul.f32 %v3629, %v3697
    %v3705 = vmul.f32 %v3630, %v3697
    %v3706 = vmul.f32 %v3631, %v3697
    %v3707 = vmul.f32 %v3632, %v3697
    %v3708 = vmul.f32 %v3633, %v3697
    %v3709 = vmul.f32 %v3634, %v3697
    %v3710 = vmul.f32 %v3635, %v3697
    %v3711 = vmul.f32 %v3636, %v3697
    %v3712 = vmul.f32 %v3637, %v3697
    %v3713 = vmul.f32 %v3638, %v3697
    %v3714 = vmul.f32 %v3639, %v3697
    %v3715 = vmul.f32 %v3640, %v3697
    %v3716 = vmul.f32 %v3641, %v3697
    %v3717 = vmul.f32 %v3642, %v3697
    %v3718 = vmul.f32 %v3643, %v3697
    %v3719 = vmul.f32 %v3644, %v3697
    %v3720 = vmul.f32 %v3645, %v3697
    %v3721 = vmul.f32 %v3646, %v3697
    %v3722 = vmul.f32 %v3647, %v3697
    %v3723 = vmul.f32 %v3648, %v3697
    %v3724 = vmul.f32 %v3649, %v3697
    %v3725 = vmul.f32 %v3650, %v3697
    %v3726 = vmul.f32 %v3651, %v3697
    %v3727 = vmul.f32 %v3652, %v3697
    %v3728 = vmul.f32 %v3653, %v3697
    %v3729 = vmul.f32 %v3654, %v3697
    %v3730 = vmul.f32 %v3655, %v3697
    %v3731 = vmul.f32 %v3656, %v3697
    %v3732 = vmul.f32 %v3657, %v3697
    %v3733 = vmul.f32 %v3658, %v3697
    %v3734 = vmul.f32 %v3659, %v3697
    %v3735 = vmul.f32 %v3660, %v3697
    %v3736 = vmul.f32 %v3661, %v3697
    %v3737 = vmul.f32 %v3662, %v3697
    %v3738 = vmul.f32 %v3663, %v3697
    %v3739 = vmul.f32 %v3664, %v3697
    %v3740 = vmul.f32 %v3665, %v3697
    %v3741 = vmul.f32 %v3666, %v3697
    %v3742 = vmul.f32 %v3667, %v3697
    %v3743 = vmul.f32 %v3668, %v3697
    %v3744 = vmul.f32 %v3669, %v3697
    %v3745 = vmul.f32 %v3670, %v3697
    %v3746 = vmul.f32 %v3671, %v3697
    %v3747 = vmul.f32 %v3672, %v3697
    %v3748 = vmul.f32 %v3673, %v3697
    %v3749 = vmul.f32 %v3674, %v3697
    %v3750 = vmul.f32 %v3675, %v3697
    %v3751 = vmul.f32 %v3676, %v3697
    %v3752 = vmul.f32 %v3677, %v3697
    %v3753 = vmul.f32 %v3678, %v3697
    %v3754 = vmul.f32 %v3679, %v3697
    %v3755 = vmul.f32 %v3680, %v3697
    %v3756 = vmul.f32 %v3681, %v3697
    %v3757 = vmul.f32 %v3682, %v3697
    %v3758 = vmul.f32 %v3683, %v3697
    %v3759 = vmul.f32 %v3684, %v3697
    %v3760 = vmul.f32 %v3685, %v3697
    %v3761 = vmul.f32 %v3686, %v3697
    %v3763 = vperm.slane %v3414, 0
    %v3765 = vmul.f32 %v3698, %v3763
    %v3766 = vmul.f32 %v3699, %v3763
    %v3767 = vmul.f32 %v3700, %v3763
    %v3768 = vmul.f32 %v3701, %v3763
    %v3769 = vmul.f32 %v3702, %v3763
    %v3770 = vmul.f32 %v3703, %v3763
    %v3771 = vmul.f32 %v3704, %v3763
    %v3772 = vmul.f32 %v3705, %v3763
    %v3773 = vmul.f32 %v3706, %v3763
    %v3774 = vmul.f32 %v3707, %v3763
    %v3775 = vmul.f32 %v3708, %v3763
    %v3776 = vmul.f32 %v3709, %v3763
    %v3777 = vmul.f32 %v3710, %v3763
    %v3778 = vmul.f32 %v3711, %v3763
    %v3779 = vmul.f32 %v3712, %v3763
    %v3780 = vmul.f32 %v3713, %v3763
    %v3781 = vmul.f32 %v3714, %v3763
    %v3782 = vmul.f32 %v3715, %v3763
    %v3783 = vmul.f32 %v3716, %v3763
    %v3784 = vmul.f32 %v3717, %v3763
    %v3785 = vmul.f32 %v3718, %v3763
    %v3786 = vmul.f32 %v3719, %v3763
    %v3787 = vmul.f32 %v3720, %v3763
    %v3788 = vmul.f32 %v3721, %v3763
    %v3789 = vmul.f32 %v3722, %v3763
    %v3790 = vmul.f32 %v3723, %v3763
    %v3791 = vmul.f32 %v3724, %v3763
    %v3792 = vmul.f32 %v3725, %v3763
    %v3793 = vmul.f32 %v3726, %v3763
    %v3794 = vmul.f32 %v3727, %v3763
    %v3795 = vmul.f32 %v3728, %v3763
    %v3796 = vmul.f32 %v3729, %v3763
    %v3797 = vmul.f32 %v3730, %v3763
    %v3798 = vmul.f32 %v3731, %v3763
    %v3799 = vmul.f32 %v3732, %v3763
    %v3800 = vmul.f32 %v3733, %v3763
    %v3801 = vmul.f32 %v3734, %v3763
    %v3802 = vmul.f32 %v3735, %v3763
    %v3803 = vmul.f32 %v3736, %v3763
    %v3804 = vmul.f32 %v3737, %v3763
    %v3805 = vmul.f32 %v3738, %v3763
    %v3806 = vmul.f32 %v3739, %v3763
    %v3807 = vmul.f32 %v3740, %v3763
    %v3808 = vmul.f32 %v3741, %v3763
    %v3809 = vmul.f32 %v3742, %v3763
    %v3810 = vmul.f32 %v3743, %v3763
    %v3811 = vmul.f32 %v3744, %v3763
    %v3812 = vmul.f32 %v3745, %v3763
    %v3813 = vmul.f32 %v3746, %v3763
    %v3814 = vmul.f32 %v3747, %v3763
    %v3815 = vmul.f32 %v3748, %v3763
    %v3816 = vmul.f32 %v3749, %v3763
    %v3817 = vmul.f32 %v3750, %v3763
    %v3818 = vmul.f32 %v3751, %v3763
    %v3819 = vmul.f32 %v3752, %v3763
    %v3820 = vmul.f32 %v3753, %v3763
    %v3821 = vmul.f32 %v3754, %v3763
    %v3822 = vmul.f32 %v3755, %v3763
    %v3823 = vmul.f32 %v3756, %v3763
    %v3824 = vmul.f32 %v3757, %v3763
    %v3825 = vmul.f32 %v3758, %v3763
    %v3826 = vmul.f32 %v3759, %v3763
    %v3827 = vmul.f32 %v3760, %v3763
    %v3828 = vmul.f32 %v3761, %v3763
    %v3830 = vperm.slane %v3415, 0
    %v3832 = vadd.f32 %v3765, %v3830
    %v3833 = vadd.f32 %v3766, %v3830
    %v3834 = vadd.f32 %v3767, %v3830
    %v3835 = vadd.f32 %v3768, %v3830
    %v3836 = vadd.f32 %v3769, %v3830
    %v3837 = vadd.f32 %v3770, %v3830
    %v3838 = vadd.f32 %v3771, %v3830
    %v3839 = vadd.f32 %v3772, %v3830
    %v3840 = vadd.f32 %v3773, %v3830
    %v3841 = vadd.f32 %v3774, %v3830
    %v3842 = vadd.f32 %v3775, %v3830
    %v3843 = vadd.f32 %v3776, %v3830
    %v3844 = vadd.f32 %v3777, %v3830
    %v3845 = vadd.f32 %v3778, %v3830
    %v3846 = vadd.f32 %v3779, %v3830
    %v3847 = vadd.f32 %v3780, %v3830
    %v3848 = vadd.f32 %v3781, %v3830
    %v3849 = vadd.f32 %v3782, %v3830
    %v3850 = vadd.f32 %v3783, %v3830
    %v3851 = vadd.f32 %v3784, %v3830
    %v3852 = vadd.f32 %v3785, %v3830
    %v3853 = vadd.f32 %v3786, %v3830
    %v3854 = vadd.f32 %v3787, %v3830
    %v3855 = vadd.f32 %v3788, %v3830
    %v3856 = vadd.f32 %v3789, %v3830
    %v3857 = vadd.f32 %v3790, %v3830
    %v3858 = vadd.f32 %v3791, %v3830
    %v3859 = vadd.f32 %v3792, %v3830
    %v3860 = vadd.f32 %v3793, %v3830
    %v3861 = vadd.f32 %v3794, %v3830
    %v3862 = vadd.f32 %v3795, %v3830
    %v3863 = vadd.f32 %v3796, %v3830
    %v3864 = vadd.f32 %v3797, %v3830
    %v3865 = vadd.f32 %v3798, %v3830
    %v3866 = vadd.f32 %v3799, %v3830
    %v3867 = vadd.f32 %v3800, %v3830
    %v3868 = vadd.f32 %v3801, %v3830
    %v3869 = vadd.f32 %v3802, %v3830
    %v3870 = vadd.f32 %v3803, %v3830
    %v3871 = vadd.f32 %v3804, %v3830
    %v3872 = vadd.f32 %v3805, %v3830
    %v3873 = vadd.f32 %v3806, %v3830
    %v3874 = vadd.f32 %v3807, %v3830
    %v3875 = vadd.f32 %v3808, %v3830
    %v3876 = vadd.f32 %v3809, %v3830
    %v3877 = vadd.f32 %v3810, %v3830
    %v3878 = vadd.f32 %v3811, %v3830
    %v3879 = vadd.f32 %v3812, %v3830
    %v3880 = vadd.f32 %v3813, %v3830
    %v3881 = vadd.f32 %v3814, %v3830
    %v3882 = vadd.f32 %v3815, %v3830
    %v3883 = vadd.f32 %v3816, %v3830
    %v3884 = vadd.f32 %v3817, %v3830
    %v3885 = vadd.f32 %v3818, %v3830
    %v3886 = vadd.f32 %v3819, %v3830
    %v3887 = vadd.f32 %v3820, %v3830
    %v3888 = vadd.f32 %v3821, %v3830
    %v3889 = vadd.f32 %v3822, %v3830
    %v3890 = vadd.f32 %v3823, %v3830
    %v3891 = vadd.f32 %v3824, %v3830
    %v3892 = vadd.f32 %v3825, %v3830
    %v3893 = vadd.f32 %v3826, %v3830
    %v3894 = vadd.f32 %v3827, %v3830
    %v3895 = vadd.f32 %v3828, %v3830
    %v3896 = vmax.f32 %v3832, 0.0
    %v3897 = vmax.f32 %v3833, 0.0
    %v3898 = vmax.f32 %v3834, 0.0
    %v3899 = vmax.f32 %v3835, 0.0
    %v3900 = vmax.f32 %v3836, 0.0
    %v3901 = vmax.f32 %v3837, 0.0
    %v3902 = vmax.f32 %v3838, 0.0
    %v3903 = vmax.f32 %v3839, 0.0
    %v3904 = vmax.f32 %v3840, 0.0
    %v3905 = vmax.f32 %v3841, 0.0
    %v3906 = vmax.f32 %v3842, 0.0
    %v3907 = vmax.f32 %v3843, 0.0
    %v3908 = vmax.f32 %v3844, 0.0
    %v3909 = vmax.f32 %v3845, 0.0
    %v3910 = vmax.f32 %v3846, 0.0
    %v3911 = vmax.f32 %v3847, 0.0
    %v3912 = vmax.f32 %v3848, 0.0
    %v3913 = vmax.f32 %v3849, 0.0
    %v3914 = vmax.f32 %v3850, 0.0
    %v3915 = vmax.f32 %v3851, 0.0
    %v3916 = vmax.f32 %v3852, 0.0
    %v3917 = vmax.f32 %v3853, 0.0
    %v3918 = vmax.f32 %v3854, 0.0
    %v3919 = vmax.f32 %v3855, 0.0
    %v3920 = vmax.f32 %v3856, 0.0
    %v3921 = vmax.f32 %v3857, 0.0
    %v3922 = vmax.f32 %v3858, 0.0
    %v3923 = vmax.f32 %v3859, 0.0
    %v3924 = vmax.f32 %v3860, 0.0
    %v3925 = vmax.f32 %v3861, 0.0
    %v3926 = vmax.f32 %v3862, 0.0
    %v3927 = vmax.f32 %v3863, 0.0
    %v3928 = vmax.f32 %v3864, 0.0
    %v3929 = vmax.f32 %v3865, 0.0
    %v3930 = vmax.f32 %v3866, 0.0
    %v3931 = vmax.f32 %v3867, 0.0
    %v3932 = vmax.f32 %v3868, 0.0
    %v3933 = vmax.f32 %v3869, 0.0
    %v3934 = vmax.f32 %v3870, 0.0
    %v3935 = vmax.f32 %v3871, 0.0
    %v3936 = vmax.f32 %v3872, 0.0
    %v3937 = vmax.f32 %v3873, 0.0
    %v3938 = vmax.f32 %v3874, 0.0
    %v3939 = vmax.f32 %v3875, 0.0
    %v3940 = vmax.f32 %v3876, 0.0
    %v3941 = vmax.f32 %v3877, 0.0
    %v3942 = vmax.f32 %v3878, 0.0
    %v3943 = vmax.f32 %v3879, 0.0
    %v3944 = vmax.f32 %v3880, 0.0
    %v3945 = vmax.f32 %v3881, 0.0
    %v3946 = vmax.f32 %v3882, 0.0
    %v3947 = vmax.f32 %v3883, 0.0
    %v3948 = vmax.f32 %v3884, 0.0
    %v3949 = vmax.f32 %v3885, 0.0
    %v3950 = vmax.f32 %v3886, 0.0
    %v3951 = vmax.f32 %v3887, 0.0
    %v3952 = vmax.f32 %v3888, 0.0
    %v3953 = vmax.f32 %v3889, 0.0
    %v3954 = vmax.f32 %v3890, 0.0
    %v3955 = vmax.f32 %v3891, 0.0
    %v3956 = vmax.f32 %v3892, 0.0
    %v3957 = vmax.f32 %v3893, 0.0
    %v3958 = vmax.f32 %v3894, 0.0
    %v3959 = vmax.f32 %v3895, 0.0
    %3960 = vst.msk [vmem:[#allocation3] sm:$0xff] %vm101, 0.0
    %3961 = vst.msk [vmem:[#allocation3 + $0x8] sm:$0xff] %vm101, 0.0
    %3962 = vst.msk [vmem:[#allocation3 + $0x10] sm:$0x3] %vm104, 0.0
    %3963 = vst.msk [vmem:[#allocation3 + $0x1b0] sm:$0xff] %vm101, 0.0
    %3964 = vst.msk [vmem:[#allocation3 + $0x1b8] sm:$0xff] %vm101, 0.0
    %3965 = vst.msk [vmem:[#allocation3 + $0x1c0] sm:$0x3] %vm104, 0.0
    %s3966 = scalar_lea.vmem [#allocation3], 408
    %3967 = vst.msk [vmem:[%s3966] sm:$0xff] %vm101, 0.0
    %3968 = vst.msk [vmem:[%s3966 + $0x8] sm:$0xff] %vm101, 0.0
    %3969 = vst.msk [vmem:[%s3966 + $0x10] sm:$0x3] %vm104, 0.0
    %3970 = vst.msk [vmem:[%s3966 + $0x1b0] sm:$0xff] %vm101, 0.0
    %3971 = vst.msk [vmem:[%s3966 + $0x1b8] sm:$0xff] %vm101, 0.0
    %3972 = vst.msk [vmem:[%s3966 + $0x1c0] sm:$0x3] %vm104, 0.0
    %s3973 = scalar_lea.vmem [#allocation3], 24
    %3974 = vst.msk [vmem:[%s3973] sm:$0x1] %vm117, 0.0
    %3975 = vst.msk [vmem:[%s3973 + $0x18] sm:$0x1] %vm117, 0.0
    %3976 = vst.msk [vmem:[%s3973 + $0x30] sm:$0x1] %vm117, 0.0
    %3977 = vst.msk [vmem:[%s3973 + $0x48] sm:$0x1] %vm117, 0.0
    %3978 = vst.msk [vmem:[%s3973 + $0x60] sm:$0x1] %vm117, 0.0
    %3979 = vst.msk [vmem:[%s3973 + $0x78] sm:$0x1] %vm117, 0.0
    %3980 = vst.msk [vmem:[%s3973 + $0x90] sm:$0x1] %vm117, 0.0
    %3981 = vst.msk [vmem:[%s3973 + $0xa8] sm:$0x1] %vm117, 0.0
    %3982 = vst.msk [vmem:[%s3973 + $0xc0] sm:$0x1] %vm117, 0.0
    %3983 = vst.msk [vmem:[%s3973 + $0xd8] sm:$0x1] %vm117, 0.0
    %3984 = vst.msk [vmem:[%s3973 + $0xf0] sm:$0x1] %vm117, 0.0
    %3985 = vst.msk [vmem:[%s3973 + $0x108] sm:$0x1] %vm117, 0.0
    %3986 = vst.msk [vmem:[%s3973 + $0x120] sm:$0x1] %vm117, 0.0
    %3987 = vst.msk [vmem:[%s3973 + $0x138] sm:$0x1] %vm117, 0.0
    %3988 = vst.msk [vmem:[%s3973 + $0x150] sm:$0x1] %vm117, 0.0
    %3989 = vst.msk [vmem:[%s3973 + $0x168] sm:$0x1] %vm117, 0.0
    %3990 = vst.msk [vmem:[%s3973 + $0x1b0] sm:$0x1] %vm117, 0.0
    %3991 = vst.msk [vmem:[%s3973 + $0x1c8] sm:$0x1] %vm117, 0.0
    %3992 = vst.msk [vmem:[%s3973 + $0x1e0] sm:$0x1] %vm117, 0.0
    %3993 = vst.msk [vmem:[%s3973 + $0x1f8] sm:$0x1] %vm117, 0.0
    %3994 = vst.msk [vmem:[%s3973 + $0x210] sm:$0x1] %vm117, 0.0
    %3995 = vst.msk [vmem:[%s3973 + $0x228] sm:$0x1] %vm117, 0.0
    %3996 = vst.msk [vmem:[%s3973 + $0x240] sm:$0x1] %vm117, 0.0
    %3997 = vst.msk [vmem:[%s3973 + $0x258] sm:$0x1] %vm117, 0.0
    %3998 = vst.msk [vmem:[%s3973 + $0x270] sm:$0x1] %vm117, 0.0
    %3999 = vst.msk [vmem:[%s3973 + $0x288] sm:$0x1] %vm117, 0.0
    %4000 = vst.msk [vmem:[%s3973 + $0x2a0] sm:$0x1] %vm117, 0.0
    %4001 = vst.msk [vmem:[%s3973 + $0x2b8] sm:$0x1] %vm117, 0.0
    %4002 = vst.msk [vmem:[%s3973 + $0x2d0] sm:$0x1] %vm117, 0.0
    %4003 = vst.msk [vmem:[%s3973 + $0x2e8] sm:$0x1] %vm117, 0.0
    %4004 = vst.msk [vmem:[%s3973 + $0x300] sm:$0x1] %vm117, 0.0
    %4005 = vst.msk [vmem:[%s3973 + $0x318] sm:$0x1] %vm117, 0.0
    %4006 = vst.msk [vmem:[%s3973 + $0x11] sm:$0x1] %vm117, 0.0
    %4007 = vst.msk [vmem:[%s3973 + $0x29] sm:$0x1] %vm117, 0.0
    %4008 = vst.msk [vmem:[%s3973 + $0x41] sm:$0x1] %vm117, 0.0
    %4009 = vst.msk [vmem:[%s3973 + $0x59] sm:$0x1] %vm117, 0.0
    %4010 = vst.msk [vmem:[%s3973 + $0x71] sm:$0x1] %vm117, 0.0
    %4011 = vst.msk [vmem:[%s3973 + $0x89] sm:$0x1] %vm117, 0.0
    %4012 = vst.msk [vmem:[%s3973 + $0xa1] sm:$0x1] %vm117, 0.0
    %4013 = vst.msk [vmem:[%s3973 + $0xb9] sm:$0x1] %vm117, 0.0
    %4014 = vst.msk [vmem:[%s3973 + $0xd1] sm:$0x1] %vm117, 0.0
    %4015 = vst.msk [vmem:[%s3973 + $0xe9] sm:$0x1] %vm117, 0.0
    %4016 = vst.msk [vmem:[%s3973 + $0x101] sm:$0x1] %vm117, 0.0
    %4017 = vst.msk [vmem:[%s3973 + $0x119] sm:$0x1] %vm117, 0.0
    %4018 = vst.msk [vmem:[%s3973 + $0x131] sm:$0x1] %vm117, 0.0
    %4019 = vst.msk [vmem:[%s3973 + $0x149] sm:$0x1] %vm117, 0.0
    %4020 = vst.msk [vmem:[%s3973 + $0x161] sm:$0x1] %vm117, 0.0
    %4021 = vst.msk [vmem:[%s3973 + $0x179] sm:$0x1] %vm117, 0.0
    %4022 = vst.msk [vmem:[%s3973 + $0x1c1] sm:$0x1] %vm117, 0.0
    %4023 = vst.msk [vmem:[%s3973 + $0x1d9] sm:$0x1] %vm117, 0.0
    %4024 = vst.msk [vmem:[%s3973 + $0x1f1] sm:$0x1] %vm117, 0.0
    %4025 = vst.msk [vmem:[%s3973 + $0x209] sm:$0x1] %vm117, 0.0
    %4026 = vst.msk [vmem:[%s3973 + $0x221] sm:$0x1] %vm117, 0.0
    %4027 = vst.msk [vmem:[%s3973 + $0x239] sm:$0x1] %vm117, 0.0
    %4028 = vst.msk [vmem:[%s3973 + $0x251] sm:$0x1] %vm117, 0.0
    %4029 = vst.msk [vmem:[%s3973 + $0x269] sm:$0x1] %vm117, 0.0
    %4030 = vst.msk [vmem:[%s3973 + $0x281] sm:$0x1] %vm117, 0.0
    %4031 = vst.msk [vmem:[%s3973 + $0x299] sm:$0x1] %vm117, 0.0
    %4032 = vst.msk [vmem:[%s3973 + $0x2b1] sm:$0x1] %vm117, 0.0
    %4033 = vst.msk [vmem:[%s3973 + $0x2c9] sm:$0x1] %vm117, 0.0
    %4034 = vst.msk [vmem:[%s3973 + $0x2e1] sm:$0x1] %vm117, 0.0
    %4035 = vst.msk [vmem:[%s3973 + $0x2f9] sm:$0x1] %vm117, 0.0
    %4036 = vst.msk [vmem:[%s3973 + $0x311] sm:$0x1] %vm117, 0.0
    %4037 = vst.msk [vmem:[%s3973 + $0x329] sm:$0x1] %vm117, 0.0
    %4038 = vst.msk [vmem:[%s3973 + $0x1] sm:$0xff] %vm101, %v3896
    %4039 = vst.msk [vmem:[%s3973 + $0x9] sm:$0xff] %vm101, %v3897
    %4040 = vst.msk [vmem:[%s3973 + $0x19] sm:$0xff] %vm101, %v3898
    %4041 = vst.msk [vmem:[%s3973 + $0x21] sm:$0xff] %vm101, %v3899
    %4042 = vst.msk [vmem:[%s3973 + $0x31] sm:$0xff] %vm101, %v3900
    %4043 = vst.msk [vmem:[%s3973 + $0x39] sm:$0xff] %vm101, %v3901
    %4044 = vst.msk [vmem:[%s3973 + $0x49] sm:$0xff] %vm101, %v3902
    %4045 = vst.msk [vmem:[%s3973 + $0x51] sm:$0xff] %vm101, %v3903
    %4046 = vst.msk [vmem:[%s3973 + $0x61] sm:$0xff] %vm101, %v3904
    %4047 = vst.msk [vmem:[%s3973 + $0x69] sm:$0xff] %vm101, %v3905
    %4048 = vst.msk [vmem:[%s3973 + $0x79] sm:$0xff] %vm101, %v3906
    %4049 = vst.msk [vmem:[%s3973 + $0x81] sm:$0xff] %vm101, %v3907
    %4050 = vst.msk [vmem:[%s3973 + $0x91] sm:$0xff] %vm101, %v3908
    %4051 = vst.msk [vmem:[%s3973 + $0x99] sm:$0xff] %vm101, %v3909
    %4052 = vst.msk [vmem:[%s3973 + $0xa9] sm:$0xff] %vm101, %v3910
    %4053 = vst.msk [vmem:[%s3973 + $0xb1] sm:$0xff] %vm101, %v3911
    %4054 = vst.msk [vmem:[%s3973 + $0xc1] sm:$0xff] %vm101, %v3912
    %4055 = vst.msk [vmem:[%s3973 + $0xc9] sm:$0xff] %vm101, %v3913
    %4056 = vst.msk [vmem:[%s3973 + $0xd9] sm:$0xff] %vm101, %v3914
    %4057 = vst.msk [vmem:[%s3973 + $0xe1] sm:$0xff] %vm101, %v3915
    %4058 = vst.msk [vmem:[%s3973 + $0xf1] sm:$0xff] %vm101, %v3916
    %4059 = vst.msk [vmem:[%s3973 + $0xf9] sm:$0xff] %vm101, %v3917
    %4060 = vst.msk [vmem:[%s3973 + $0x109] sm:$0xff] %vm101, %v3918
    %4061 = vst.msk [vmem:[%s3973 + $0x111] sm:$0xff] %vm101, %v3919
    %4062 = vst.msk [vmem:[%s3973 + $0x121] sm:$0xff] %vm101, %v3920
    %4063 = vst.msk [vmem:[%s3973 + $0x129] sm:$0xff] %vm101, %v3921
    %4064 = vst.msk [vmem:[%s3973 + $0x139] sm:$0xff] %vm101, %v3922
    %4065 = vst.msk [vmem:[%s3973 + $0x141] sm:$0xff] %vm101, %v3923
    %4066 = vst.msk [vmem:[%s3973 + $0x151] sm:$0xff] %vm101, %v3924
    %4067 = vst.msk [vmem:[%s3973 + $0x159] sm:$0xff] %vm101, %v3925
    %4068 = vst.msk [vmem:[%s3973 + $0x169] sm:$0xff] %vm101, %v3926
    %4069 = vst.msk [vmem:[%s3973 + $0x171] sm:$0xff] %vm101, %v3927
    %4070 = vst.msk [vmem:[%s3973 + $0x1b1] sm:$0xff] %vm101, %v3928
    %4071 = vst.msk [vmem:[%s3973 + $0x1b9] sm:$0xff] %vm101, %v3929
    %4072 = vst.msk [vmem:[%s3973 + $0x1c9] sm:$0xff] %vm101, %v3930
    %4073 = vst.msk [vmem:[%s3973 + $0x1d1] sm:$0xff] %vm101, %v3931
    %4074 = vst.msk [vmem:[%s3973 + $0x1e1] sm:$0xff] %vm101, %v3932
    %4075 = vst.msk [vmem:[%s3973 + $0x1e9] sm:$0xff] %vm101, %v3933
    %4076 = vst.msk [vmem:[%s3973 + $0x1f9] sm:$0xff] %vm101, %v3934
    %4077 = vst.msk [vmem:[%s3973 + $0x201] sm:$0xff] %vm101, %v3935
    %4078 = vst.msk [vmem:[%s3973 + $0x211] sm:$0xff] %vm101, %v3936
    %4079 = vst.msk [vmem:[%s3973 + $0x219] sm:$0xff] %vm101, %v3937
    %4080 = vst.msk [vmem:[%s3973 + $0x229] sm:$0xff] %vm101, %v3938
    %4081 = vst.msk [vmem:[%s3973 + $0x231] sm:$0xff] %vm101, %v3939
    %4082 = vst.msk [vmem:[%s3973 + $0x241] sm:$0xff] %vm101, %v3940
    %4083 = vst.msk [vmem:[%s3973 + $0x249] sm:$0xff] %vm101, %v3941
    %4084 = vst.msk [vmem:[%s3973 + $0x259] sm:$0xff] %vm101, %v3942
    %4085 = vst.msk [vmem:[%s3973 + $0x261] sm:$0xff] %vm101, %v3943
    %4086 = vst.msk [vmem:[%s3973 + $0x271] sm:$0xff] %vm101, %v3944
    %4087 = vst.msk [vmem:[%s3973 + $0x279] sm:$0xff] %vm101, %v3945
    %4088 = vst.msk [vmem:[%s3973 + $0x289] sm:$0xff] %vm101, %v3946
    %4089 = vst.msk [vmem:[%s3973 + $0x291] sm:$0xff] %vm101, %v3947
    %4090 = vst.msk [vmem:[%s3973 + $0x2a1] sm:$0xff] %vm101, %v3948
    %4091 = vst.msk [vmem:[%s3973 + $0x2a9] sm:$0xff] %vm101, %v3949
    %4092 = vst.msk [vmem:[%s3973 + $0x2b9] sm:$0xff] %vm101, %v3950
    %4093 = vst.msk [vmem:[%s3973 + $0x2c1] sm:$0xff] %vm101, %v3951
    %4094 = vst.msk [vmem:[%s3973 + $0x2d1] sm:$0xff] %vm101, %v3952
    %4095 = vst.msk [vmem:[%s3973 + $0x2d9] sm:$0xff] %vm101, %v3953
    %4096 = vst.msk [vmem:[%s3973 + $0x2e9] sm:$0xff] %vm101, %v3954
    %4097 = vst.msk [vmem:[%s3973 + $0x2f1] sm:$0xff] %vm101, %v3955
    %4098 = vst.msk [vmem:[%s3973 + $0x301] sm:$0xff] %vm101, %v3956
    %4099 = vst.msk [vmem:[%s3973 + $0x309] sm:$0xff] %vm101, %v3957
    %4100 = vst.msk [vmem:[%s3973 + $0x319] sm:$0xff] %vm101, %v3958
    %4101 = vst.msk [vmem:[%s3973 + $0x321] sm:$0xff] %vm101, %v3959
    %v4102 = vld [vmem:[#allocation3] sm:$0xff]
    %v4103 = vld [vmem:[#allocation3 + $0x8] sm:$0xff]
    %v4104 = vld [vmem:[#allocation3 + $0x10] sm:$0x3]
    %v4105 = vld [vmem:[#allocation3 + $0x18] sm:$0xff]
    %v4106 = vld [vmem:[#allocation3 + $0x20] sm:$0xff]
    %v4107 = vld [vmem:[#allocation3 + $0x28] sm:$0x3]
    %v4108 = vld [vmem:[#allocation3 + $0x30] sm:$0xff]
    %v4109 = vld [vmem:[#allocation3 + $0x38] sm:$0xff]
    %v4110 = vld [vmem:[#allocation3 + $0x40] sm:$0x3]
    %v4111 = vld [vmem:[#allocation3 + $0x48] sm:$0xff]
    %v4112 = vld [vmem:[#allocation3 + $0x50] sm:$0xff]
    %v4113 = vld [vmem:[#allocation3 + $0x58] sm:$0x3]
    %v4114 = vld [vmem:[#allocation3 + $0x60] sm:$0xff]
    %v4115 = vld [vmem:[#allocation3 + $0x68] sm:$0xff]
    %v4116 = vld [vmem:[#allocation3 + $0x70] sm:$0x3]
    %v4117 = vld [vmem:[#allocation3 + $0x78] sm:$0xff]
    %v4118 = vld [vmem:[#allocation3 + $0x80] sm:$0xff]
    %v4119 = vld [vmem:[#allocation3 + $0x88] sm:$0x3]
    %v4120 = vld [vmem:[#allocation3 + $0x90] sm:$0xff]
    %v4121 = vld [vmem:[#allocation3 + $0x98] sm:$0xff]
    %v4122 = vld [vmem:[#allocation3 + $0xa0] sm:$0x3]
    %v4123 = vld [vmem:[#allocation3 + $0xa8] sm:$0xff]
    %v4124 = vld [vmem:[#allocation3 + $0xb0] sm:$0xff]
    %v4125 = vld [vmem:[#allocation3 + $0xb8] sm:$0x3]
    %v4126 = vld [vmem:[#allocation3 + $0xc0] sm:$0xff]
    %v4127 = vld [vmem:[#allocation3 + $0xc8] sm:$0xff]
    %v4128 = vld [vmem:[#allocation3 + $0xd0] sm:$0x3]
    %v4129 = vld [vmem:[#allocation3 + $0xd8] sm:$0xff]
    %v4130 = vld [vmem:[#allocation3 + $0xe0] sm:$0xff]
    %v4131 = vld [vmem:[#allocation3 + $0xe8] sm:$0x3]
    %v4132 = vld [vmem:[#allocation3 + $0xf0] sm:$0xff]
    %v4133 = vld [vmem:[#allocation3 + $0xf8] sm:$0xff]
    %v4134 = vld [vmem:[#allocation3 + $0x100] sm:$0x3]
    %v4135 = vld [vmem:[#allocation3 + $0x108] sm:$0xff]
    %v4136 = vld [vmem:[#allocation3 + $0x110] sm:$0xff]
    %v4137 = vld [vmem:[#allocation3 + $0x118] sm:$0x3]
    %v4138 = vld [vmem:[#allocation3 + $0x120] sm:$0xff]
    %v4139 = vld [vmem:[#allocation3 + $0x128] sm:$0xff]
    %v4140 = vld [vmem:[#allocation3 + $0x130] sm:$0x3]
    %v4141 = vld [vmem:[#allocation3 + $0x138] sm:$0xff]
    %v4142 = vld [vmem:[#allocation3 + $0x140] sm:$0xff]
    %v4143 = vld [vmem:[#allocation3 + $0x148] sm:$0x3]
    %v4144 = vld [vmem:[#allocation3 + $0x150] sm:$0xff]
    %v4145 = vld [vmem:[#allocation3 + $0x158] sm:$0xff]
    %v4146 = vld [vmem:[#allocation3 + $0x160] sm:$0x3]
    %v4147 = vld [vmem:[#allocation3 + $0x168] sm:$0xff]
    %v4148 = vld [vmem:[#allocation3 + $0x170] sm:$0xff]
    %v4149 = vld [vmem:[#allocation3 + $0x178] sm:$0x3]
    %v4150 = vld [vmem:[#allocation3 + $0x180] sm:$0xff]
    %v4151 = vld [vmem:[#allocation3 + $0x188] sm:$0xff]
    %v4152 = vld [vmem:[#allocation3 + $0x190] sm:$0x3]
    %v4153 = vld [vmem:[#allocation3 + $0x198] sm:$0xff]
    %v4154 = vld [vmem:[#allocation3 + $0x1a0] sm:$0xff]
    %v4155 = vld [vmem:[#allocation3 + $0x1a8] sm:$0x3]
    %v4156 = vld [vmem:[#allocation3 + $0x1b0] sm:$0xff]
    %v4157 = vld [vmem:[#allocation3 + $0x1b8] sm:$0xff]
    %v4158 = vld [vmem:[#allocation3 + $0x1c0] sm:$0x3]
    %v4159 = vld [vmem:[#allocation3 + $0x1c8] sm:$0xff]
    %v4160 = vld [vmem:[#allocation3 + $0x1d0] sm:$0xff]
    %v4161 = vld [vmem:[#allocation3 + $0x1d8] sm:$0x3]
    %v4162 = vld [vmem:[#allocation3 + $0x1e0] sm:$0xff]
    %v4163 = vld [vmem:[#allocation3 + $0x1e8] sm:$0xff]
    %v4164 = vld [vmem:[#allocation3 + $0x1f0] sm:$0x3]
    %v4165 = vld [vmem:[#allocation3 + $0x1f8] sm:$0xff]
    %v4166 = vld [vmem:[#allocation3 + $0x200] sm:$0xff]
    %v4167 = vld [vmem:[#allocation3 + $0x208] sm:$0x3]
    %v4168 = vld [vmem:[#allocation3 + $0x210] sm:$0xff]
    %v4169 = vld [vmem:[#allocation3 + $0x218] sm:$0xff]
    %v4170 = vld [vmem:[#allocation3 + $0x220] sm:$0x3]
    %v4171 = vld [vmem:[#allocation3 + $0x228] sm:$0xff]
    %v4172 = vld [vmem:[#allocation3 + $0x230] sm:$0xff]
    %v4173 = vld [vmem:[#allocation3 + $0x238] sm:$0x3]
    %v4174 = vld [vmem:[#allocation3 + $0x240] sm:$0xff]
    %v4175 = vld [vmem:[#allocation3 + $0x248] sm:$0xff]
    %v4176 = vld [vmem:[#allocation3 + $0x250] sm:$0x3]
    %v4177 = vld [vmem:[#allocation3 + $0x258] sm:$0xff]
    %v4178 = vld [vmem:[#allocation3 + $0x260] sm:$0xff]
    %v4179 = vld [vmem:[#allocation3 + $0x268] sm:$0x3]
    %v4180 = vld [vmem:[#allocation3 + $0x270] sm:$0xff]
    %v4181 = vld [vmem:[#allocation3 + $0x278] sm:$0xff]
    %v4182 = vld [vmem:[#allocation3 + $0x280] sm:$0x3]
    %v4183 = vld [vmem:[#allocation3 + $0x288] sm:$0xff]
    %v4184 = vld [vmem:[#allocation3 + $0x290] sm:$0xff]
    %v4185 = vld [vmem:[#allocation3 + $0x298] sm:$0x3]
    %v4186 = vld [vmem:[#allocation3 + $0x2a0] sm:$0xff]
    %v4187 = vld [vmem:[#allocation3 + $0x2a8] sm:$0xff]
    %v4188 = vld [vmem:[#allocation3 + $0x2b0] sm:$0x3]
    %v4189 = vld [vmem:[#allocation3 + $0x2b8] sm:$0xff]
    %v4190 = vld [vmem:[#allocation3 + $0x2c0] sm:$0xff]
    %v4191 = vld [vmem:[#allocation3 + $0x2c8] sm:$0x3]
    %v4192 = vld [vmem:[#allocation3 + $0x2d0] sm:$0xff]
    %v4193 = vld [vmem:[#allocation3 + $0x2d8] sm:$0xff]
    %v4194 = vld [vmem:[#allocation3 + $0x2e0] sm:$0x3]
    %v4195 = vld [vmem:[#allocation3 + $0x2e8] sm:$0xff]
    %v4196 = vld [vmem:[#allocation3 + $0x2f0] sm:$0xff]
    %v4197 = vld [vmem:[#allocation3 + $0x2f8] sm:$0x3]
    %v4198 = vld [vmem:[#allocation3 + $0x300] sm:$0xff]
    %v4199 = vld [vmem:[#allocation3 + $0x308] sm:$0xff]
    %v4200 = vld [vmem:[#allocation3 + $0x310] sm:$0x3]
    %v4201 = vld [vmem:[#allocation3 + $0x318] sm:$0xff]
    %v4202 = vld [vmem:[#allocation3 + $0x320] sm:$0xff]
    %v4203 = vld [vmem:[#allocation3 + $0x328] sm:$0x3]
    %v4204 = vld [vmem:[#allocation3 + $0x330] sm:$0xff]
    %v4205 = vld [vmem:[#allocation3 + $0x338] sm:$0xff]
    %v4206 = vld [vmem:[#allocation3 + $0x340] sm:$0x3]
    %v4207 = vld [vmem:[#allocation3 + $0x348] sm:$0xff]
    %v4208 = vld [vmem:[#allocation3 + $0x350] sm:$0xff]
    %v4209 = vld [vmem:[#allocation3 + $0x358] sm:$0x3]
    %v4210 = vld [vmem:[%s4] sm:$0xf]
    %v4211 = vpack.c.bf16 %v4103, %v4102
    %v4212 = vpack.c.bf16 %v4106, %v4105
    %v4213 = vpack.c.bf16 %v4109, %v4108
    %v4214 = vpack.c.bf16 %v4112, %v4111
    %v4215 = vpack.c.bf16 %v4115, %v4114
    %v4216 = vpack.c.bf16 %v4118, %v4117
    %v4217 = vpack.c.bf16 %v4121, %v4120
    %v4218 = vpack.c.bf16 %v4124, %v4123
    %v4219 = vpack.c.bf16 %v4127, %v4126
    %v4220 = vpack.c.bf16 %v4130, %v4129
    %v4221 = vpack.c.bf16 %v4133, %v4132
    %v4222 = vpack.c.bf16 %v4136, %v4135
    %v4223 = vpack.c.bf16 %v4139, %v4138
    %v4224 = vpack.c.bf16 %v4142, %v4141
    %v4225 = vpack.c.bf16 %v4145, %v4144
    %v4226 = vpack.c.bf16 %v4148, %v4147
    %v4227 = vpack.c.bf16 %v4157, %v4156
    %v4228 = vpack.c.bf16 %v4160, %v4159
    %v4229 = vpack.c.bf16 %v4163, %v4162
    %v4230 = vpack.c.bf16 %v4166, %v4165
    %v4231 = vpack.c.bf16 %v4169, %v4168
    %v4232 = vpack.c.bf16 %v4172, %v4171
    %v4233 = vpack.c.bf16 %v4175, %v4174
    %v4234 = vpack.c.bf16 %v4178, %v4177
    %v4235 = vpack.c.bf16 %v4181, %v4180
    %v4236 = vpack.c.bf16 %v4184, %v4183
    %v4237 = vpack.c.bf16 %v4187, %v4186
    %v4238 = vpack.c.bf16 %v4190, %v4189
    %v4239 = vpack.c.bf16 %v4193, %v4192
    %v4240 = vpack.c.bf16 %v4196, %v4195
    %v4241 = vpack.c.bf16 %v4199, %v4198
    %v4242 = vpack.c.bf16 %v4202, %v4201
    %v4339 = vrot.slane %v4102, 1
    %v4340 = vrot.slane %v4103, 1
    %v4341 = vsel %vm483, %v4339, %v4340
    %v4342 = vrot.slane %v4104, 1
    %v4343 = vsel %vm483, %v4340, %v4342
    %v4344 = vrot.slane %v4105, 1
    %v4345 = vrot.slane %v4106, 1
    %v4346 = vsel %vm483, %v4344, %v4345
    %v4347 = vrot.slane %v4107, 1
    %v4348 = vsel %vm483, %v4345, %v4347
    %v4349 = vrot.slane %v4108, 1
    %v4350 = vrot.slane %v4109, 1
    %v4351 = vsel %vm483, %v4349, %v4350
    %v4352 = vrot.slane %v4110, 1
    %v4353 = vsel %vm483, %v4350, %v4352
    %v4354 = vrot.slane %v4111, 1
    %v4355 = vrot.slane %v4112, 1
    %v4356 = vsel %vm483, %v4354, %v4355
    %v4357 = vrot.slane %v4113, 1
    %v4358 = vsel %vm483, %v4355, %v4357
    %v4359 = vrot.slane %v4114, 1
    %v4360 = vrot.slane %v4115, 1
    %v4361 = vsel %vm483, %v4359, %v4360
    %v4362 = vrot.slane %v4116, 1
    %v4363 = vsel %vm483, %v4360, %v4362
    %v4364 = vrot.slane %v4117, 1
    %v4365 = vrot.slane %v4118, 1
    %v4366 = vsel %vm483, %v4364, %v4365
    %v4367 = vrot.slane %v4119, 1
    %v4368 = vsel %vm483, %v4365, %v4367
    %v4369 = vrot.slane %v4120, 1
    %v4370 = vrot.slane %v4121, 1
    %v4371 = vsel %vm483, %v4369, %v4370
    %v4372 = vrot.slane %v4122, 1
    %v4373 = vsel %vm483, %v4370, %v4372
    %v4374 = vrot.slane %v4123, 1
    %v4375 = vrot.slane %v4124, 1
    %v4376 = vsel %vm483, %v4374, %v4375
    %v4377 = vrot.slane %v4125, 1
    %v4378 = vsel %vm483, %v4375, %v4377
    %v4379 = vrot.slane %v4126, 1
    %v4380 = vrot.slane %v4127, 1
    %v4381 = vsel %vm483, %v4379, %v4380
    %v4382 = vrot.slane %v4128, 1
    %v4383 = vsel %vm483, %v4380, %v4382
    %v4384 = vrot.slane %v4129, 1
    %v4385 = vrot.slane %v4130, 1
    %v4386 = vsel %vm483, %v4384, %v4385
    %v4387 = vrot.slane %v4131, 1
    %v4388 = vsel %vm483, %v4385, %v4387
    %v4389 = vrot.slane %v4132, 1
    %v4390 = vrot.slane %v4133, 1
    %v4391 = vsel %vm483, %v4389, %v4390
    %v4392 = vrot.slane %v4134, 1
    %v4393 = vsel %vm483, %v4390, %v4392
    %v4394 = vrot.slane %v4135, 1
    %v4395 = vrot.slane %v4136, 1
    %v4396 = vsel %vm483, %v4394, %v4395
    %v4397 = vrot.slane %v4137, 1
    %v4398 = vsel %vm483, %v4395, %v4397
    %v4399 = vrot.slane %v4138, 1
    %v4400 = vrot.slane %v4139, 1
    %v4401 = vsel %vm483, %v4399, %v4400
    %v4402 = vrot.slane %v4140, 1
    %v4403 = vsel %vm483, %v4400, %v4402
    %v4404 = vrot.slane %v4141, 1
    %v4405 = vrot.slane %v4142, 1
    %v4406 = vsel %vm483, %v4404, %v4405
    %v4407 = vrot.slane %v4143, 1
    %v4408 = vsel %vm483, %v4405, %v4407
    %v4409 = vrot.slane %v4144, 1
    %v4410 = vrot.slane %v4145, 1
    %v4411 = vsel %vm483, %v4409, %v4410
    %v4412 = vrot.slane %v4146, 1
    %v4413 = vsel %vm483, %v4410, %v4412
    %v4414 = vrot.slane %v4147, 1
    %v4415 = vrot.slane %v4148, 1
    %v4416 = vsel %vm483, %v4414, %v4415
    %v4417 = vrot.slane %v4149, 1
    %v4418 = vsel %vm483, %v4415, %v4417
    %v4419 = vrot.slane %v4156, 1
    %v4420 = vrot.slane %v4157, 1
    %v4421 = vsel %vm483, %v4419, %v4420
    %v4422 = vrot.slane %v4158, 1
    %v4423 = vsel %vm483, %v4420, %v4422
    %v4424 = vrot.slane %v4159, 1
    %v4425 = vrot.slane %v4160, 1
    %v4426 = vsel %vm483, %v4424, %v4425
    %v4427 = vrot.slane %v4161, 1
    %v4428 = vsel %vm483, %v4425, %v4427
    %v4429 = vrot.slane %v4162, 1
    %v4430 = vrot.slane %v4163, 1
    %v4431 = vsel %vm483, %v4429, %v4430
    %v4432 = vrot.slane %v4164, 1
    %v4433 = vsel %vm483, %v4430, %v4432
    %v4434 = vrot.slane %v4165, 1
    %v4435 = vrot.slane %v4166, 1
    %v4436 = vsel %vm483, %v4434, %v4435
    %v4437 = vrot.slane %v4167, 1
    %v4438 = vsel %vm483, %v4435, %v4437
    %v4439 = vrot.slane %v4168, 1
    %v4440 = vrot.slane %v4169, 1
    %v4441 = vsel %vm483, %v4439, %v4440
    %v4442 = vrot.slane %v4170, 1
    %v4443 = vsel %vm483, %v4440, %v4442
    %v4444 = vrot.slane %v4171, 1
    %v4445 = vrot.slane %v4172, 1
    %v4446 = vsel %vm483, %v4444, %v4445
    %v4447 = vrot.slane %v4173, 1
    %v4448 = vsel %vm483, %v4445, %v4447
    %v4449 = vrot.slane %v4174, 1
    %v4450 = vrot.slane %v4175, 1
    %v4451 = vsel %vm483, %v4449, %v4450
    %v4452 = vrot.slane %v4176, 1
    %v4453 = vsel %vm483, %v4450, %v4452
    %v4454 = vrot.slane %v4177, 1
    %v4455 = vrot.slane %v4178, 1
    %v4456 = vsel %vm483, %v4454, %v4455
    %v4457 = vrot.slane %v4179, 1
    %v4458 = vsel %vm483, %v4455, %v4457
    %v4459 = vrot.slane %v4180, 1
    %v4460 = vrot.slane %v4181, 1
    %v4461 = vsel %vm483, %v4459, %v4460
    %v4462 = vrot.slane %v4182, 1
    %v4463 = vsel %vm483, %v4460, %v4462
    %v4464 = vrot.slane %v4183, 1
    %v4465 = vrot.slane %v4184, 1
    %v4466 = vsel %vm483, %v4464, %v4465
    %v4467 = vrot.slane %v4185, 1
    %v4468 = vsel %vm483, %v4465, %v4467
    %v4469 = vrot.slane %v4186, 1
    %v4470 = vrot.slane %v4187, 1
    %v4471 = vsel %vm483, %v4469, %v4470
    %v4472 = vrot.slane %v4188, 1
    %v4473 = vsel %vm483, %v4470, %v4472
    %v4474 = vrot.slane %v4189, 1
    %v4475 = vrot.slane %v4190, 1
    %v4476 = vsel %vm483, %v4474, %v4475
    %v4477 = vrot.slane %v4191, 1
    %v4478 = vsel %vm483, %v4475, %v4477
    %v4479 = vrot.slane %v4192, 1
    %v4480 = vrot.slane %v4193, 1
    %v4481 = vsel %vm483, %v4479, %v4480
    %v4482 = vrot.slane %v4194, 1
    %v4483 = vsel %vm483, %v4480, %v4482
    %v4484 = vrot.slane %v4195, 1
    %v4485 = vrot.slane %v4196, 1
    %v4486 = vsel %vm483, %v4484, %v4485
    %v4487 = vrot.slane %v4197, 1
    %v4488 = vsel %vm483, %v4485, %v4487
    %v4489 = vrot.slane %v4198, 1
    %v4490 = vrot.slane %v4199, 1
    %v4491 = vsel %vm483, %v4489, %v4490
    %v4492 = vrot.slane %v4200, 1
    %v4493 = vsel %vm483, %v4490, %v4492
    %v4494 = vrot.slane %v4201, 1
    %v4495 = vrot.slane %v4202, 1
    %v4496 = vsel %vm483, %v4494, %v4495
    %v4497 = vrot.slane %v4203, 1
    %v4498 = vsel %vm483, %v4495, %v4497
    %s4563 = scalar_lea.vmem %s4, 4
    %v4564 = vld [vmem:[%s4563] sm:$0xf]
    %v4565 = vpack.c.bf16 %v4343, %v4341
    %v4566 = vpack.c.bf16 %v4348, %v4346
    %v4567 = vpack.c.bf16 %v4353, %v4351
    %v4568 = vpack.c.bf16 %v4358, %v4356
    %v4569 = vpack.c.bf16 %v4363, %v4361
    %v4570 = vpack.c.bf16 %v4368, %v4366
    %v4571 = vpack.c.bf16 %v4373, %v4371
    %v4572 = vpack.c.bf16 %v4378, %v4376
    %v4573 = vpack.c.bf16 %v4383, %v4381
    %v4574 = vpack.c.bf16 %v4388, %v4386
    %v4575 = vpack.c.bf16 %v4393, %v4391
    %v4576 = vpack.c.bf16 %v4398, %v4396
    %v4577 = vpack.c.bf16 %v4403, %v4401
    %v4578 = vpack.c.bf16 %v4408, %v4406
    %v4579 = vpack.c.bf16 %v4413, %v4411
    %v4580 = vpack.c.bf16 %v4418, %v4416
    %v4581 = vpack.c.bf16 %v4423, %v4421
    %v4582 = vpack.c.bf16 %v4428, %v4426
    %v4583 = vpack.c.bf16 %v4433, %v4431
    %v4584 = vpack.c.bf16 %v4438, %v4436
    %v4585 = vpack.c.bf16 %v4443, %v4441
    %v4586 = vpack.c.bf16 %v4448, %v4446
    %v4587 = vpack.c.bf16 %v4453, %v4451
    %v4588 = vpack.c.bf16 %v4458, %v4456
    %v4589 = vpack.c.bf16 %v4463, %v4461
    %v4590 = vpack.c.bf16 %v4468, %v4466
    %v4591 = vpack.c.bf16 %v4473, %v4471
    %v4592 = vpack.c.bf16 %v4478, %v4476
    %v4593 = vpack.c.bf16 %v4483, %v4481
    %v4594 = vpack.c.bf16 %v4488, %v4486
    %v4595 = vpack.c.bf16 %v4493, %v4491
    %v4596 = vpack.c.bf16 %v4498, %v4496
    %v4598 = vsel %vm101, %v4565, 0
    %v4601 = vsel %vm101, %v4566, 0
    %v4604 = vsel %vm101, %v4567, 0
    %v4607 = vsel %vm101, %v4568, 0
    %v4610 = vsel %vm101, %v4569, 0
    %v4613 = vsel %vm101, %v4570, 0
    %v4616 = vsel %vm101, %v4571, 0
    %v4619 = vsel %vm101, %v4572, 0
    %v4622 = vsel %vm101, %v4573, 0
    %v4625 = vsel %vm101, %v4574, 0
    %v4628 = vsel %vm101, %v4575, 0
    %v4631 = vsel %vm101, %v4576, 0
    %v4634 = vsel %vm101, %v4577, 0
    %v4637 = vsel %vm101, %v4578, 0
    %v4640 = vsel %vm101, %v4579, 0
    %v4643 = vsel %vm101, %v4580, 0
    %v4646 = vsel %vm101, %v4581, 0
    %v4649 = vsel %vm101, %v4582, 0
    %v4652 = vsel %vm101, %v4583, 0
    %v4655 = vsel %vm101, %v4584, 0
    %v4658 = vsel %vm101, %v4585, 0
    %v4661 = vsel %vm101, %v4586, 0
    %v4664 = vsel %vm101, %v4587, 0
    %v4667 = vsel %vm101, %v4588, 0
    %v4670 = vsel %vm101, %v4589, 0
    %v4673 = vsel %vm101, %v4590, 0
    %v4676 = vsel %vm101, %v4591, 0
    %v4679 = vsel %vm101, %v4592, 0
    %v4682 = vsel %vm101, %v4593, 0
    %v4685 = vsel %vm101, %v4594, 0
    %v4688 = vsel %vm101, %v4595, 0
    %v4691 = vsel %vm101, %v4596, 0
    %v4694 = vsel %vm838, %v4564, 0
    %4696 = vmatpush.bf16.msra.mxu0 0
    %4697 = vmatpush.bf16.msra.mxu0 0
    %4698 = vmatpush.bf16.msra.mxu0 0
    %4699 = vmatpush.bf16.msra.mxu0 0
    %4700 = vmatpush.bf16.msra.mxu0 0
    %4701 = vmatpush.bf16.msra.mxu0 0
    %4702 = vmatpush.bf16.msra.mxu0 0
    %4703 = vmatpush.bf16.msra.mxu0 %v4694
    %4704 = vmatmul.bf16.gmra.mxu0 %v4598
    %v4705 = vpop.f32.mrf.mxu0
    %v4706 = vadd.f32 0.0, %v4705
    %v4707 = vpop.f32.mrf.mxu0
    %v4708 = vadd.f32 0.0, %v4707
    %4709 = vmatmul.bf16.gmra.mxu0 %v4601
    %v4710 = vpop.f32.mrf.mxu0
    %v4711 = vadd.f32 0.0, %v4710
    %v4712 = vpop.f32.mrf.mxu0
    %v4713 = vadd.f32 0.0, %v4712
    %4714 = vmatmul.bf16.gmra.mxu0 %v4604
    %v4715 = vpop.f32.mrf.mxu0
    %v4716 = vadd.f32 0.0, %v4715
    %v4717 = vpop.f32.mrf.mxu0
    %v4718 = vadd.f32 0.0, %v4717
    %4719 = vmatmul.bf16.gmra.mxu0 %v4607
    %v4720 = vpop.f32.mrf.mxu0
    %v4721 = vadd.f32 0.0, %v4720
    %v4722 = vpop.f32.mrf.mxu0
    %v4723 = vadd.f32 0.0, %v4722
    %4724 = vmatmul.bf16.gmra.mxu0 %v4610
    %v4725 = vpop.f32.mrf.mxu0
    %v4726 = vadd.f32 0.0, %v4725
    %v4727 = vpop.f32.mrf.mxu0
    %v4728 = vadd.f32 0.0, %v4727
    %4729 = vmatmul.bf16.gmra.mxu0 %v4613
    %v4730 = vpop.f32.mrf.mxu0
    %v4731 = vadd.f32 0.0, %v4730
    %v4732 = vpop.f32.mrf.mxu0
    %v4733 = vadd.f32 0.0, %v4732
    %4734 = vmatmul.bf16.gmra.mxu0 %v4616
    %v4735 = vpop.f32.mrf.mxu0
    %v4736 = vadd.f32 0.0, %v4735
    %v4737 = vpop.f32.mrf.mxu0
    %v4738 = vadd.f32 0.0, %v4737
    %4739 = vmatmul.bf16.gmra.mxu0 %v4619
    %v4740 = vpop.f32.mrf.mxu0
    %v4741 = vadd.f32 0.0, %v4740
    %v4742 = vpop.f32.mrf.mxu0
    %v4743 = vadd.f32 0.0, %v4742
    %4744 = vmatmul.bf16.gmra.mxu0 %v4622
    %v4745 = vpop.f32.mrf.mxu0
    %v4746 = vadd.f32 0.0, %v4745
    %v4747 = vpop.f32.mrf.mxu0
    %v4748 = vadd.f32 0.0, %v4747
    %4749 = vmatmul.bf16.gmra.mxu0 %v4625
    %v4750 = vpop.f32.mrf.mxu0
    %v4751 = vadd.f32 0.0, %v4750
    %v4752 = vpop.f32.mrf.mxu0
    %v4753 = vadd.f32 0.0, %v4752
    %4754 = vmatmul.bf16.gmra.mxu0 %v4628
    %v4755 = vpop.f32.mrf.mxu0
    %v4756 = vadd.f32 0.0, %v4755
    %v4757 = vpop.f32.mrf.mxu0
    %v4758 = vadd.f32 0.0, %v4757
    %4759 = vmatmul.bf16.gmra.mxu0 %v4631
    %v4760 = vpop.f32.mrf.mxu0
    %v4761 = vadd.f32 0.0, %v4760
    %v4762 = vpop.f32.mrf.mxu0
    %v4763 = vadd.f32 0.0, %v4762
    %4764 = vmatmul.bf16.gmra.mxu0 %v4634
    %v4765 = vpop.f32.mrf.mxu0
    %v4766 = vadd.f32 0.0, %v4765
    %v4767 = vpop.f32.mrf.mxu0
    %v4768 = vadd.f32 0.0, %v4767
    %4769 = vmatmul.bf16.gmra.mxu0 %v4637
    %v4770 = vpop.f32.mrf.mxu0
    %v4771 = vadd.f32 0.0, %v4770
    %v4772 = vpop.f32.mrf.mxu0
    %v4773 = vadd.f32 0.0, %v4772
    %4774 = vmatmul.bf16.gmra.mxu0 %v4640
    %v4775 = vpop.f32.mrf.mxu0
    %v4776 = vadd.f32 0.0, %v4775
    %v4777 = vpop.f32.mrf.mxu0
    %v4778 = vadd.f32 0.0, %v4777
    %4779 = vmatmul.bf16.gmra.mxu0 %v4643
    %v4780 = vpop.f32.mrf.mxu0
    %v4781 = vadd.f32 0.0, %v4780
    %v4782 = vpop.f32.mrf.mxu0
    %v4783 = vadd.f32 0.0, %v4782
    %4784 = vmatmul.bf16.gmra.mxu0 %v4646
    %v4785 = vpop.f32.mrf.mxu0
    %v4786 = vadd.f32 0.0, %v4785
    %v4787 = vpop.f32.mrf.mxu0
    %v4788 = vadd.f32 0.0, %v4787
    %4789 = vmatmul.bf16.gmra.mxu0 %v4649
    %v4790 = vpop.f32.mrf.mxu0
    %v4791 = vadd.f32 0.0, %v4790
    %v4792 = vpop.f32.mrf.mxu0
    %v4793 = vadd.f32 0.0, %v4792
    %4794 = vmatmul.bf16.gmra.mxu0 %v4652
    %v4795 = vpop.f32.mrf.mxu0
    %v4796 = vadd.f32 0.0, %v4795
    %v4797 = vpop.f32.mrf.mxu0
    %v4798 = vadd.f32 0.0, %v4797
    %4799 = vmatmul.bf16.gmra.mxu0 %v4655
    %v4800 = vpop.f32.mrf.mxu0
    %v4801 = vadd.f32 0.0, %v4800
    %v4802 = vpop.f32.mrf.mxu0
    %v4803 = vadd.f32 0.0, %v4802
    %4804 = vmatmul.bf16.gmra.mxu0 %v4658
    %v4805 = vpop.f32.mrf.mxu0
    %v4806 = vadd.f32 0.0, %v4805
    %v4807 = vpop.f32.mrf.mxu0
    %v4808 = vadd.f32 0.0, %v4807
    %4809 = vmatmul.bf16.gmra.mxu0 %v4661
    %v4810 = vpop.f32.mrf.mxu0
    %v4811 = vadd.f32 0.0, %v4810
    %v4812 = vpop.f32.mrf.mxu0
    %v4813 = vadd.f32 0.0, %v4812
    %4814 = vmatmul.bf16.gmra.mxu0 %v4664
    %v4815 = vpop.f32.mrf.mxu0
    %v4816 = vadd.f32 0.0, %v4815
    %v4817 = vpop.f32.mrf.mxu0
    %v4818 = vadd.f32 0.0, %v4817
    %4819 = vmatmul.bf16.gmra.mxu0 %v4667
    %v4820 = vpop.f32.mrf.mxu0
    %v4821 = vadd.f32 0.0, %v4820
    %v4822 = vpop.f32.mrf.mxu0
    %v4823 = vadd.f32 0.0, %v4822
    %4824 = vmatmul.bf16.gmra.mxu0 %v4670
    %v4825 = vpop.f32.mrf.mxu0
    %v4826 = vadd.f32 0.0, %v4825
    %v4827 = vpop.f32.mrf.mxu0
    %v4828 = vadd.f32 0.0, %v4827
    %4829 = vmatmul.bf16.gmra.mxu0 %v4673
    %v4830 = vpop.f32.mrf.mxu0
    %v4831 = vadd.f32 0.0, %v4830
    %v4832 = vpop.f32.mrf.mxu0
    %v4833 = vadd.f32 0.0, %v4832
    %4834 = vmatmul.bf16.gmra.mxu0 %v4676
    %v4835 = vpop.f32.mrf.mxu0
    %v4836 = vadd.f32 0.0, %v4835
    %v4837 = vpop.f32.mrf.mxu0
    %v4838 = vadd.f32 0.0, %v4837
    %4839 = vmatmul.bf16.gmra.mxu0 %v4679
    %v4840 = vpop.f32.mrf.mxu0
    %v4841 = vadd.f32 0.0, %v4840
    %v4842 = vpop.f32.mrf.mxu0
    %v4843 = vadd.f32 0.0, %v4842
    %4844 = vmatmul.bf16.gmra.mxu0 %v4682
    %v4845 = vpop.f32.mrf.mxu0
    %v4846 = vadd.f32 0.0, %v4845
    %v4847 = vpop.f32.mrf.mxu0
    %v4848 = vadd.f32 0.0, %v4847
    %4849 = vmatmul.bf16.gmra.mxu0 %v4685
    %v4850 = vpop.f32.mrf.mxu0
    %v4851 = vadd.f32 0.0, %v4850
    %v4852 = vpop.f32.mrf.mxu0
    %v4853 = vadd.f32 0.0, %v4852
    %4854 = vmatmul.bf16.gmra.mxu0 %v4688
    %v4855 = vpop.f32.mrf.mxu0
    %v4856 = vadd.f32 0.0, %v4855
    %v4857 = vpop.f32.mrf.mxu0
    %v4858 = vadd.f32 0.0, %v4857
    %4859 = vmatmul.bf16.gmra.mxu0 %v4691
    %v4860 = vpop.f32.mrf.mxu0
    %v4861 = vadd.f32 0.0, %v4860
    %v4862 = vpop.f32.mrf.mxu0
    %v4863 = vadd.f32 0.0, %v4862
    %4864 = vdwg.mxu0
    %v4866 = vsel %vm101, %v4211, 0
    %v4869 = vsel %vm101, %v4212, 0
    %v4872 = vsel %vm101, %v4213, 0
    %v4875 = vsel %vm101, %v4214, 0
    %v4878 = vsel %vm101, %v4215, 0
    %v4881 = vsel %vm101, %v4216, 0
    %v4884 = vsel %vm101, %v4217, 0
    %v4887 = vsel %vm101, %v4218, 0
    %v4890 = vsel %vm101, %v4219, 0
    %v4893 = vsel %vm101, %v4220, 0
    %v4896 = vsel %vm101, %v4221, 0
    %v4899 = vsel %vm101, %v4222, 0
    %v4902 = vsel %vm101, %v4223, 0
    %v4905 = vsel %vm101, %v4224, 0
    %v4908 = vsel %vm101, %v4225, 0
    %v4911 = vsel %vm101, %v4226, 0
    %v4914 = vsel %vm101, %v4227, 0
    %v4917 = vsel %vm101, %v4228, 0
    %v4920 = vsel %vm101, %v4229, 0
    %v4923 = vsel %vm101, %v4230, 0
    %v4926 = vsel %vm101, %v4231, 0
    %v4929 = vsel %vm101, %v4232, 0
    %v4932 = vsel %vm101, %v4233, 0
    %v4935 = vsel %vm101, %v4234, 0
    %v4938 = vsel %vm101, %v4235, 0
    %v4941 = vsel %vm101, %v4236, 0
    %v4944 = vsel %vm101, %v4237, 0
    %v4947 = vsel %vm101, %v4238, 0
    %v4950 = vsel %vm101, %v4239, 0
    %v4953 = vsel %vm101, %v4240, 0
    %v4956 = vsel %vm101, %v4241, 0
    %v4959 = vsel %vm101, %v4242, 0
    %v4962 = vsel %vm838, %v4210, 0
    %4964 = vmatpush.bf16.msra.mxu0 0
    %4965 = vmatpush.bf16.msra.mxu0 0
    %4966 = vmatpush.bf16.msra.mxu0 0
    %4967 = vmatpush.bf16.msra.mxu0 0
    %4968 = vmatpush.bf16.msra.mxu0 0
    %4969 = vmatpush.bf16.msra.mxu0 0
    %4970 = vmatpush.bf16.msra.mxu0 0
    %4971 = vmatpush.bf16.msra.mxu0 %v4962
    %4972 = vmatmul.bf16.gmra.mxu0 %v4866
    %v4973 = vpop.f32.mrf.mxu0
    %v4974 = vadd.f32 %v4706, %v4973
    %v4975 = vpop.f32.mrf.mxu0
    %v4976 = vadd.f32 %v4708, %v4975
    %4977 = vmatmul.bf16.gmra.mxu0 %v4869
    %v4978 = vpop.f32.mrf.mxu0
    %v4979 = vadd.f32 %v4711, %v4978
    %v4980 = vpop.f32.mrf.mxu0
    %v4981 = vadd.f32 %v4713, %v4980
    %4982 = vmatmul.bf16.gmra.mxu0 %v4872
    %v4983 = vpop.f32.mrf.mxu0
    %v4984 = vadd.f32 %v4716, %v4983
    %v4985 = vpop.f32.mrf.mxu0
    %v4986 = vadd.f32 %v4718, %v4985
    %4987 = vmatmul.bf16.gmra.mxu0 %v4875
    %v4988 = vpop.f32.mrf.mxu0
    %v4989 = vadd.f32 %v4721, %v4988
    %v4990 = vpop.f32.mrf.mxu0
    %v4991 = vadd.f32 %v4723, %v4990
    %4992 = vmatmul.bf16.gmra.mxu0 %v4878
    %v4993 = vpop.f32.mrf.mxu0
    %v4994 = vadd.f32 %v4726, %v4993
    %v4995 = vpop.f32.mrf.mxu0
    %v4996 = vadd.f32 %v4728, %v4995
    %4997 = vmatmul.bf16.gmra.mxu0 %v4881
    %v4998 = vpop.f32.mrf.mxu0
    %v4999 = vadd.f32 %v4731, %v4998
    %v5000 = vpop.f32.mrf.mxu0
    %v5001 = vadd.f32 %v4733, %v5000
    %5002 = vmatmul.bf16.gmra.mxu0 %v4884
    %v5003 = vpop.f32.mrf.mxu0
    %v5004 = vadd.f32 %v4736, %v5003
    %v5005 = vpop.f32.mrf.mxu0
    %v5006 = vadd.f32 %v4738, %v5005
    %5007 = vmatmul.bf16.gmra.mxu0 %v4887
    %v5008 = vpop.f32.mrf.mxu0
    %v5009 = vadd.f32 %v4741, %v5008
    %v5010 = vpop.f32.mrf.mxu0
    %v5011 = vadd.f32 %v4743, %v5010
    %5012 = vmatmul.bf16.gmra.mxu0 %v4890
    %v5013 = vpop.f32.mrf.mxu0
    %v5014 = vadd.f32 %v4746, %v5013
    %v5015 = vpop.f32.mrf.mxu0
    %v5016 = vadd.f32 %v4748, %v5015
    %5017 = vmatmul.bf16.gmra.mxu0 %v4893
    %v5018 = vpop.f32.mrf.mxu0
    %v5019 = vadd.f32 %v4751, %v5018
    %v5020 = vpop.f32.mrf.mxu0
    %v5021 = vadd.f32 %v4753, %v5020
    %5022 = vmatmul.bf16.gmra.mxu0 %v4896
    %v5023 = vpop.f32.mrf.mxu0
    %v5024 = vadd.f32 %v4756, %v5023
    %v5025 = vpop.f32.mrf.mxu0
    %v5026 = vadd.f32 %v4758, %v5025
    %5027 = vmatmul.bf16.gmra.mxu0 %v4899
    %v5028 = vpop.f32.mrf.mxu0
    %v5029 = vadd.f32 %v4761, %v5028
    %v5030 = vpop.f32.mrf.mxu0
    %v5031 = vadd.f32 %v4763, %v5030
    %5032 = vmatmul.bf16.gmra.mxu0 %v4902
    %v5033 = vpop.f32.mrf.mxu0
    %v5034 = vadd.f32 %v4766, %v5033
    %v5035 = vpop.f32.mrf.mxu0
    %v5036 = vadd.f32 %v4768, %v5035
    %5037 = vmatmul.bf16.gmra.mxu0 %v4905
    %v5038 = vpop.f32.mrf.mxu0
    %v5039 = vadd.f32 %v4771, %v5038
    %v5040 = vpop.f32.mrf.mxu0
    %v5041 = vadd.f32 %v4773, %v5040
    %5042 = vmatmul.bf16.gmra.mxu0 %v4908
    %v5043 = vpop.f32.mrf.mxu0
    %v5044 = vadd.f32 %v4776, %v5043
    %v5045 = vpop.f32.mrf.mxu0
    %v5046 = vadd.f32 %v4778, %v5045
    %5047 = vmatmul.bf16.gmra.mxu0 %v4911
    %v5048 = vpop.f32.mrf.mxu0
    %v5049 = vadd.f32 %v4781, %v5048
    %v5050 = vpop.f32.mrf.mxu0
    %v5051 = vadd.f32 %v4783, %v5050
    %5052 = vmatmul.bf16.gmra.mxu0 %v4914
    %v5053 = vpop.f32.mrf.mxu0
    %v5054 = vadd.f32 %v4786, %v5053
    %v5055 = vpop.f32.mrf.mxu0
    %v5056 = vadd.f32 %v4788, %v5055
    %5057 = vmatmul.bf16.gmra.mxu0 %v4917
    %v5058 = vpop.f32.mrf.mxu0
    %v5059 = vadd.f32 %v4791, %v5058
    %v5060 = vpop.f32.mrf.mxu0
    %v5061 = vadd.f32 %v4793, %v5060
    %5062 = vmatmul.bf16.gmra.mxu0 %v4920
    %v5063 = vpop.f32.mrf.mxu0
    %v5064 = vadd.f32 %v4796, %v5063
    %v5065 = vpop.f32.mrf.mxu0
    %v5066 = vadd.f32 %v4798, %v5065
    %5067 = vmatmul.bf16.gmra.mxu0 %v4923
    %v5068 = vpop.f32.mrf.mxu0
    %v5069 = vadd.f32 %v4801, %v5068
    %v5070 = vpop.f32.mrf.mxu0
    %v5071 = vadd.f32 %v4803, %v5070
    %5072 = vmatmul.bf16.gmra.mxu0 %v4926
    %v5073 = vpop.f32.mrf.mxu0
    %v5074 = vadd.f32 %v4806, %v5073
    %v5075 = vpop.f32.mrf.mxu0
    %v5076 = vadd.f32 %v4808, %v5075
    %5077 = vmatmul.bf16.gmra.mxu0 %v4929
    %v5078 = vpop.f32.mrf.mxu0
    %v5079 = vadd.f32 %v4811, %v5078
    %v5080 = vpop.f32.mrf.mxu0
    %v5081 = vadd.f32 %v4813, %v5080
    %5082 = vmatmul.bf16.gmra.mxu0 %v4932
    %v5083 = vpop.f32.mrf.mxu0
    %v5084 = vadd.f32 %v4816, %v5083
    %v5085 = vpop.f32.mrf.mxu0
    %v5086 = vadd.f32 %v4818, %v5085
    %5087 = vmatmul.bf16.gmra.mxu0 %v4935
    %v5088 = vpop.f32.mrf.mxu0
    %v5089 = vadd.f32 %v4821, %v5088
    %v5090 = vpop.f32.mrf.mxu0
    %v5091 = vadd.f32 %v4823, %v5090
    %5092 = vmatmul.bf16.gmra.mxu0 %v4938
    %v5093 = vpop.f32.mrf.mxu0
    %v5094 = vadd.f32 %v4826, %v5093
    %v5095 = vpop.f32.mrf.mxu0
    %v5096 = vadd.f32 %v4828, %v5095
    %5097 = vmatmul.bf16.gmra.mxu0 %v4941
    %v5098 = vpop.f32.mrf.mxu0
    %v5099 = vadd.f32 %v4831, %v5098
    %v5100 = vpop.f32.mrf.mxu0
    %v5101 = vadd.f32 %v4833, %v5100
    %5102 = vmatmul.bf16.gmra.mxu0 %v4944
    %v5103 = vpop.f32.mrf.mxu0
    %v5104 = vadd.f32 %v4836, %v5103
    %v5105 = vpop.f32.mrf.mxu0
    %v5106 = vadd.f32 %v4838, %v5105
    %5107 = vmatmul.bf16.gmra.mxu0 %v4947
    %v5108 = vpop.f32.mrf.mxu0
    %v5109 = vadd.f32 %v4841, %v5108
    %v5110 = vpop.f32.mrf.mxu0
    %v5111 = vadd.f32 %v4843, %v5110
    %5112 = vmatmul.bf16.gmra.mxu0 %v4950
    %v5113 = vpop.f32.mrf.mxu0
    %v5114 = vadd.f32 %v4846, %v5113
    %v5115 = vpop.f32.mrf.mxu0
    %v5116 = vadd.f32 %v4848, %v5115
    %5117 = vmatmul.bf16.gmra.mxu0 %v4953
    %v5118 = vpop.f32.mrf.mxu0
    %v5119 = vadd.f32 %v4851, %v5118
    %v5120 = vpop.f32.mrf.mxu0
    %v5121 = vadd.f32 %v4853, %v5120
    %5122 = vmatmul.bf16.gmra.mxu0 %v4956
    %v5123 = vpop.f32.mrf.mxu0
    %v5124 = vadd.f32 %v4856, %v5123
    %v5125 = vpop.f32.mrf.mxu0
    %v5126 = vadd.f32 %v4858, %v5125
    %5127 = vmatmul.bf16.gmra.mxu0 %v4959
    %v5128 = vpop.f32.mrf.mxu0
    %v5129 = vadd.f32 %v4861, %v5128
    %v5130 = vpop.f32.mrf.mxu0
    %v5131 = vadd.f32 %v4863, %v5130
    %5132 = vdwg.mxu0
    %v5133 = vrot.slane %v4102, 2
    %v5134 = vrot.slane %v4103, 2
    %v5135 = vsel %vm1279, %v5133, %v5134
    %v5136 = vrot.slane %v4104, 2
    %v5137 = vsel %vm1279, %v5134, %v5136
    %v5138 = vrot.slane %v4105, 2
    %v5139 = vrot.slane %v4106, 2
    %v5140 = vsel %vm1279, %v5138, %v5139
    %v5141 = vrot.slane %v4107, 2
    %v5142 = vsel %vm1279, %v5139, %v5141
    %v5143 = vrot.slane %v4108, 2
    %v5144 = vrot.slane %v4109, 2
    %v5145 = vsel %vm1279, %v5143, %v5144
    %v5146 = vrot.slane %v4110, 2
    %v5147 = vsel %vm1279, %v5144, %v5146
    %v5148 = vrot.slane %v4111, 2
    %v5149 = vrot.slane %v4112, 2
    %v5150 = vsel %vm1279, %v5148, %v5149
    %v5151 = vrot.slane %v4113, 2
    %v5152 = vsel %vm1279, %v5149, %v5151
    %v5153 = vrot.slane %v4114, 2
    %v5154 = vrot.slane %v4115, 2
    %v5155 = vsel %vm1279, %v5153, %v5154
    %v5156 = vrot.slane %v4116, 2
    %v5157 = vsel %vm1279, %v5154, %v5156
    %v5158 = vrot.slane %v4117, 2
    %v5159 = vrot.slane %v4118, 2
    %v5160 = vsel %vm1279, %v5158, %v5159
    %v5161 = vrot.slane %v4119, 2
    %v5162 = vsel %vm1279, %v5159, %v5161
    %v5163 = vrot.slane %v4120, 2
    %v5164 = vrot.slane %v4121, 2
    %v5165 = vsel %vm1279, %v5163, %v5164
    %v5166 = vrot.slane %v4122, 2
    %v5167 = vsel %vm1279, %v5164, %v5166
    %v5168 = vrot.slane %v4123, 2
    %v5169 = vrot.slane %v4124, 2
    %v5170 = vsel %vm1279, %v5168, %v5169
    %v5171 = vrot.slane %v4125, 2
    %v5172 = vsel %vm1279, %v5169, %v5171
    %v5173 = vrot.slane %v4126, 2
    %v5174 = vrot.slane %v4127, 2
    %v5175 = vsel %vm1279, %v5173, %v5174
    %v5176 = vrot.slane %v4128, 2
    %v5177 = vsel %vm1279, %v5174, %v5176
    %v5178 = vrot.slane %v4129, 2
    %v5179 = vrot.slane %v4130, 2
    %v5180 = vsel %vm1279, %v5178, %v5179
    %v5181 = vrot.slane %v4131, 2
    %v5182 = vsel %vm1279, %v5179, %v5181
    %v5183 = vrot.slane %v4132, 2
    %v5184 = vrot.slane %v4133, 2
    %v5185 = vsel %vm1279, %v5183, %v5184
    %v5186 = vrot.slane %v4134, 2
    %v5187 = vsel %vm1279, %v5184, %v5186
    %v5188 = vrot.slane %v4135, 2
    %v5189 = vrot.slane %v4136, 2
    %v5190 = vsel %vm1279, %v5188, %v5189
    %v5191 = vrot.slane %v4137, 2
    %v5192 = vsel %vm1279, %v5189, %v5191
    %v5193 = vrot.slane %v4138, 2
    %v5194 = vrot.slane %v4139, 2
    %v5195 = vsel %vm1279, %v5193, %v5194
    %v5196 = vrot.slane %v4140, 2
    %v5197 = vsel %vm1279, %v5194, %v5196
    %v5198 = vrot.slane %v4141, 2
    %v5199 = vrot.slane %v4142, 2
    %v5200 = vsel %vm1279, %v5198, %v5199
    %v5201 = vrot.slane %v4143, 2
    %v5202 = vsel %vm1279, %v5199, %v5201
    %v5203 = vrot.slane %v4144, 2
    %v5204 = vrot.slane %v4145, 2
    %v5205 = vsel %vm1279, %v5203, %v5204
    %v5206 = vrot.slane %v4146, 2
    %v5207 = vsel %vm1279, %v5204, %v5206
    %v5208 = vrot.slane %v4147, 2
    %v5209 = vrot.slane %v4148, 2
    %v5210 = vsel %vm1279, %v5208, %v5209
    %v5211 = vrot.slane %v4149, 2
    %v5212 = vsel %vm1279, %v5209, %v5211
    %v5213 = vrot.slane %v4156, 2
    %v5214 = vrot.slane %v4157, 2
    %v5215 = vsel %vm1279, %v5213, %v5214
    %v5216 = vrot.slane %v4158, 2
    %v5217 = vsel %vm1279, %v5214, %v5216
    %v5218 = vrot.slane %v4159, 2
    %v5219 = vrot.slane %v4160, 2
    %v5220 = vsel %vm1279, %v5218, %v5219
    %v5221 = vrot.slane %v4161, 2
    %v5222 = vsel %vm1279, %v5219, %v5221
    %v5223 = vrot.slane %v4162, 2
    %v5224 = vrot.slane %v4163, 2
    %v5225 = vsel %vm1279, %v5223, %v5224
    %v5226 = vrot.slane %v4164, 2
    %v5227 = vsel %vm1279, %v5224, %v5226
    %v5228 = vrot.slane %v4165, 2
    %v5229 = vrot.slane %v4166, 2
    %v5230 = vsel %vm1279, %v5228, %v5229
    %v5231 = vrot.slane %v4167, 2
    %v5232 = vsel %vm1279, %v5229, %v5231
    %v5233 = vrot.slane %v4168, 2
    %v5234 = vrot.slane %v4169, 2
    %v5235 = vsel %vm1279, %v5233, %v5234
    %v5236 = vrot.slane %v4170, 2
    %v5237 = vsel %vm1279, %v5234, %v5236
    %v5238 = vrot.slane %v4171, 2
    %v5239 = vrot.slane %v4172, 2
    %v5240 = vsel %vm1279, %v5238, %v5239
    %v5241 = vrot.slane %v4173, 2
    %v5242 = vsel %vm1279, %v5239, %v5241
    %v5243 = vrot.slane %v4174, 2
    %v5244 = vrot.slane %v4175, 2
    %v5245 = vsel %vm1279, %v5243, %v5244
    %v5246 = vrot.slane %v4176, 2
    %v5247 = vsel %vm1279, %v5244, %v5246
    %v5248 = vrot.slane %v4177, 2
    %v5249 = vrot.slane %v4178, 2
    %v5250 = vsel %vm1279, %v5248, %v5249
    %v5251 = vrot.slane %v4179, 2
    %v5252 = vsel %vm1279, %v5249, %v5251
    %v5253 = vrot.slane %v4180, 2
    %v5254 = vrot.slane %v4181, 2
    %v5255 = vsel %vm1279, %v5253, %v5254
    %v5256 = vrot.slane %v4182, 2
    %v5257 = vsel %vm1279, %v5254, %v5256
    %v5258 = vrot.slane %v4183, 2
    %v5259 = vrot.slane %v4184, 2
    %v5260 = vsel %vm1279, %v5258, %v5259
    %v5261 = vrot.slane %v4185, 2
    %v5262 = vsel %vm1279, %v5259, %v5261
    %v5263 = vrot.slane %v4186, 2
    %v5264 = vrot.slane %v4187, 2
    %v5265 = vsel %vm1279, %v5263, %v5264
    %v5266 = vrot.slane %v4188, 2
    %v5267 = vsel %vm1279, %v5264, %v5266
    %v5268 = vrot.slane %v4189, 2
    %v5269 = vrot.slane %v4190, 2
    %v5270 = vsel %vm1279, %v5268, %v5269
    %v5271 = vrot.slane %v4191, 2
    %v5272 = vsel %vm1279, %v5269, %v5271
    %v5273 = vrot.slane %v4192, 2
    %v5274 = vrot.slane %v4193, 2
    %v5275 = vsel %vm1279, %v5273, %v5274
    %v5276 = vrot.slane %v4194, 2
    %v5277 = vsel %vm1279, %v5274, %v5276
    %v5278 = vrot.slane %v4195, 2
    %v5279 = vrot.slane %v4196, 2
    %v5280 = vsel %vm1279, %v5278, %v5279
    %v5281 = vrot.slane %v4197, 2
    %v5282 = vsel %vm1279, %v5279, %v5281
    %v5283 = vrot.slane %v4198, 2
    %v5284 = vrot.slane %v4199, 2
    %v5285 = vsel %vm1279, %v5283, %v5284
    %v5286 = vrot.slane %v4200, 2
    %v5287 = vsel %vm1279, %v5284, %v5286
    %v5288 = vrot.slane %v4201, 2
    %v5289 = vrot.slane %v4202, 2
    %v5290 = vsel %vm1279, %v5288, %v5289
    %v5291 = vrot.slane %v4203, 2
    %v5292 = vsel %vm1279, %v5289, %v5291
    %s5357 = scalar_lea.vmem %s4, 8
    %v5358 = vld [vmem:[%s5357] sm:$0xf]
    %v5359 = vpack.c.bf16 %v5137, %v5135
    %v5360 = vpack.c.bf16 %v5142, %v5140
    %v5361 = vpack.c.bf16 %v5147, %v5145
    %v5362 = vpack.c.bf16 %v5152, %v5150
    %v5363 = vpack.c.bf16 %v5157, %v5155
    %v5364 = vpack.c.bf16 %v5162, %v5160
    %v5365 = vpack.c.bf16 %v5167, %v5165
    %v5366 = vpack.c.bf16 %v5172, %v5170
    %v5367 = vpack.c.bf16 %v5177, %v5175
    %v5368 = vpack.c.bf16 %v5182, %v5180
    %v5369 = vpack.c.bf16 %v5187, %v5185
    %v5370 = vpack.c.bf16 %v5192, %v5190
    %v5371 = vpack.c.bf16 %v5197, %v5195
    %v5372 = vpack.c.bf16 %v5202, %v5200
    %v5373 = vpack.c.bf16 %v5207, %v5205
    %v5374 = vpack.c.bf16 %v5212, %v5210
    %v5375 = vpack.c.bf16 %v5217, %v5215
    %v5376 = vpack.c.bf16 %v5222, %v5220
    %v5377 = vpack.c.bf16 %v5227, %v5225
    %v5378 = vpack.c.bf16 %v5232, %v5230
    %v5379 = vpack.c.bf16 %v5237, %v5235
    %v5380 = vpack.c.bf16 %v5242, %v5240
    %v5381 = vpack.c.bf16 %v5247, %v5245
    %v5382 = vpack.c.bf16 %v5252, %v5250
    %v5383 = vpack.c.bf16 %v5257, %v5255
    %v5384 = vpack.c.bf16 %v5262, %v5260
    %v5385 = vpack.c.bf16 %v5267, %v5265
    %v5386 = vpack.c.bf16 %v5272, %v5270
    %v5387 = vpack.c.bf16 %v5277, %v5275
    %v5388 = vpack.c.bf16 %v5282, %v5280
    %v5389 = vpack.c.bf16 %v5287, %v5285
    %v5390 = vpack.c.bf16 %v5292, %v5290
    %v5392 = vsel %vm101, %v5359, 0
    %v5395 = vsel %vm101, %v5360, 0
    %v5398 = vsel %vm101, %v5361, 0
    %v5401 = vsel %vm101, %v5362, 0
    %v5404 = vsel %vm101, %v5363, 0
    %v5407 = vsel %vm101, %v5364, 0
    %v5410 = vsel %vm101, %v5365, 0
    %v5413 = vsel %vm101, %v5366, 0
    %v5416 = vsel %vm101, %v5367, 0
    %v5419 = vsel %vm101, %v5368, 0
    %v5422 = vsel %vm101, %v5369, 0
    %v5425 = vsel %vm101, %v5370, 0
    %v5428 = vsel %vm101, %v5371, 0
    %v5431 = vsel %vm101, %v5372, 0
    %v5434 = vsel %vm101, %v5373, 0
    %v5437 = vsel %vm101, %v5374, 0
    %v5440 = vsel %vm101, %v5375, 0
    %v5443 = vsel %vm101, %v5376, 0
    %v5446 = vsel %vm101, %v5377, 0
    %v5449 = vsel %vm101, %v5378, 0
    %v5452 = vsel %vm101, %v5379, 0
    %v5455 = vsel %vm101, %v5380, 0
    %v5458 = vsel %vm101, %v5381, 0
    %v5461 = vsel %vm101, %v5382, 0
    %v5464 = vsel %vm101, %v5383, 0
    %v5467 = vsel %vm101, %v5384, 0
    %v5470 = vsel %vm101, %v5385, 0
    %v5473 = vsel %vm101, %v5386, 0
    %v5476 = vsel %vm101, %v5387, 0
    %v5479 = vsel %vm101, %v5388, 0
    %v5482 = vsel %vm101, %v5389, 0
    %v5485 = vsel %vm101, %v5390, 0
    %v5488 = vsel %vm838, %v5358, 0
    %5490 = vmatpush.bf16.msra.mxu0 0
    %5491 = vmatpush.bf16.msra.mxu0 0
    %5492 = vmatpush.bf16.msra.mxu0 0
    %5493 = vmatpush.bf16.msra.mxu0 0
    %5494 = vmatpush.bf16.msra.mxu0 0
    %5495 = vmatpush.bf16.msra.mxu0 0
    %5496 = vmatpush.bf16.msra.mxu0 0
    %5497 = vmatpush.bf16.msra.mxu0 %v5488
    %5498 = vmatmul.bf16.gmra.mxu0 %v5392
    %v5499 = vpop.f32.mrf.mxu0
    %v5500 = vadd.f32 0.0, %v5499
    %v5501 = vpop.f32.mrf.mxu0
    %v5502 = vadd.f32 0.0, %v5501
    %5503 = vmatmul.bf16.gmra.mxu0 %v5395
    %v5504 = vpop.f32.mrf.mxu0
    %v5505 = vadd.f32 0.0, %v5504
    %v5506 = vpop.f32.mrf.mxu0
    %v5507 = vadd.f32 0.0, %v5506
    %5508 = vmatmul.bf16.gmra.mxu0 %v5398
    %v5509 = vpop.f32.mrf.mxu0
    %v5510 = vadd.f32 0.0, %v5509
    %v5511 = vpop.f32.mrf.mxu0
    %v5512 = vadd.f32 0.0, %v5511
    %5513 = vmatmul.bf16.gmra.mxu0 %v5401
    %v5514 = vpop.f32.mrf.mxu0
    %v5515 = vadd.f32 0.0, %v5514
    %v5516 = vpop.f32.mrf.mxu0
    %v5517 = vadd.f32 0.0, %v5516
    %5518 = vmatmul.bf16.gmra.mxu0 %v5404
    %v5519 = vpop.f32.mrf.mxu0
    %v5520 = vadd.f32 0.0, %v5519
    %v5521 = vpop.f32.mrf.mxu0
    %v5522 = vadd.f32 0.0, %v5521
    %5523 = vmatmul.bf16.gmra.mxu0 %v5407
    %v5524 = vpop.f32.mrf.mxu0
    %v5525 = vadd.f32 0.0, %v5524
    %v5526 = vpop.f32.mrf.mxu0
    %v5527 = vadd.f32 0.0, %v5526
    %5528 = vmatmul.bf16.gmra.mxu0 %v5410
    %v5529 = vpop.f32.mrf.mxu0
    %v5530 = vadd.f32 0.0, %v5529
    %v5531 = vpop.f32.mrf.mxu0
    %v5532 = vadd.f32 0.0, %v5531
    %5533 = vmatmul.bf16.gmra.mxu0 %v5413
    %v5534 = vpop.f32.mrf.mxu0
    %v5535 = vadd.f32 0.0, %v5534
    %v5536 = vpop.f32.mrf.mxu0
    %v5537 = vadd.f32 0.0, %v5536
    %5538 = vmatmul.bf16.gmra.mxu0 %v5416
    %v5539 = vpop.f32.mrf.mxu0
    %v5540 = vadd.f32 0.0, %v5539
    %v5541 = vpop.f32.mrf.mxu0
    %v5542 = vadd.f32 0.0, %v5541
    %5543 = vmatmul.bf16.gmra.mxu0 %v5419
    %v5544 = vpop.f32.mrf.mxu0
    %v5545 = vadd.f32 0.0, %v5544
    %v5546 = vpop.f32.mrf.mxu0
    %v5547 = vadd.f32 0.0, %v5546
    %5548 = vmatmul.bf16.gmra.mxu0 %v5422
    %v5549 = vpop.f32.mrf.mxu0
    %v5550 = vadd.f32 0.0, %v5549
    %v5551 = vpop.f32.mrf.mxu0
    %v5552 = vadd.f32 0.0, %v5551
    %5553 = vmatmul.bf16.gmra.mxu0 %v5425
    %v5554 = vpop.f32.mrf.mxu0
    %v5555 = vadd.f32 0.0, %v5554
    %v5556 = vpop.f32.mrf.mxu0
    %v5557 = vadd.f32 0.0, %v5556
    %5558 = vmatmul.bf16.gmra.mxu0 %v5428
    %v5559 = vpop.f32.mrf.mxu0
    %v5560 = vadd.f32 0.0, %v5559
    %v5561 = vpop.f32.mrf.mxu0
    %v5562 = vadd.f32 0.0, %v5561
    %5563 = vmatmul.bf16.gmra.mxu0 %v5431
    %v5564 = vpop.f32.mrf.mxu0
    %v5565 = vadd.f32 0.0, %v5564
    %v5566 = vpop.f32.mrf.mxu0
    %v5567 = vadd.f32 0.0, %v5566
    %5568 = vmatmul.bf16.gmra.mxu0 %v5434
    %v5569 = vpop.f32.mrf.mxu0
    %v5570 = vadd.f32 0.0, %v5569
    %v5571 = vpop.f32.mrf.mxu0
    %v5572 = vadd.f32 0.0, %v5571
    %5573 = vmatmul.bf16.gmra.mxu0 %v5437
    %v5574 = vpop.f32.mrf.mxu0
    %v5575 = vadd.f32 0.0, %v5574
    %v5576 = vpop.f32.mrf.mxu0
    %v5577 = vadd.f32 0.0, %v5576
    %5578 = vmatmul.bf16.gmra.mxu0 %v5440
    %v5579 = vpop.f32.mrf.mxu0
    %v5580 = vadd.f32 0.0, %v5579
    %v5581 = vpop.f32.mrf.mxu0
    %v5582 = vadd.f32 0.0, %v5581
    %5583 = vmatmul.bf16.gmra.mxu0 %v5443
    %v5584 = vpop.f32.mrf.mxu0
    %v5585 = vadd.f32 0.0, %v5584
    %v5586 = vpop.f32.mrf.mxu0
    %v5587 = vadd.f32 0.0, %v5586
    %5588 = vmatmul.bf16.gmra.mxu0 %v5446
    %v5589 = vpop.f32.mrf.mxu0
    %v5590 = vadd.f32 0.0, %v5589
    %v5591 = vpop.f32.mrf.mxu0
    %v5592 = vadd.f32 0.0, %v5591
    %5593 = vmatmul.bf16.gmra.mxu0 %v5449
    %v5594 = vpop.f32.mrf.mxu0
    %v5595 = vadd.f32 0.0, %v5594
    %v5596 = vpop.f32.mrf.mxu0
    %v5597 = vadd.f32 0.0, %v5596
    %5598 = vmatmul.bf16.gmra.mxu0 %v5452
    %v5599 = vpop.f32.mrf.mxu0
    %v5600 = vadd.f32 0.0, %v5599
    %v5601 = vpop.f32.mrf.mxu0
    %v5602 = vadd.f32 0.0, %v5601
    %5603 = vmatmul.bf16.gmra.mxu0 %v5455
    %v5604 = vpop.f32.mrf.mxu0
    %v5605 = vadd.f32 0.0, %v5604
    %v5606 = vpop.f32.mrf.mxu0
    %v5607 = vadd.f32 0.0, %v5606
    %5608 = vmatmul.bf16.gmra.mxu0 %v5458
    %v5609 = vpop.f32.mrf.mxu0
    %v5610 = vadd.f32 0.0, %v5609
    %v5611 = vpop.f32.mrf.mxu0
    %v5612 = vadd.f32 0.0, %v5611
    %5613 = vmatmul.bf16.gmra.mxu0 %v5461
    %v5614 = vpop.f32.mrf.mxu0
    %v5615 = vadd.f32 0.0, %v5614
    %v5616 = vpop.f32.mrf.mxu0
    %v5617 = vadd.f32 0.0, %v5616
    %5618 = vmatmul.bf16.gmra.mxu0 %v5464
    %v5619 = vpop.f32.mrf.mxu0
    %v5620 = vadd.f32 0.0, %v5619
    %v5621 = vpop.f32.mrf.mxu0
    %v5622 = vadd.f32 0.0, %v5621
    %5623 = vmatmul.bf16.gmra.mxu0 %v5467
    %v5624 = vpop.f32.mrf.mxu0
    %v5625 = vadd.f32 0.0, %v5624
    %v5626 = vpop.f32.mrf.mxu0
    %v5627 = vadd.f32 0.0, %v5626
    %5628 = vmatmul.bf16.gmra.mxu0 %v5470
    %v5629 = vpop.f32.mrf.mxu0
    %v5630 = vadd.f32 0.0, %v5629
    %v5631 = vpop.f32.mrf.mxu0
    %v5632 = vadd.f32 0.0, %v5631
    %5633 = vmatmul.bf16.gmra.mxu0 %v5473
    %v5634 = vpop.f32.mrf.mxu0
    %v5635 = vadd.f32 0.0, %v5634
    %v5636 = vpop.f32.mrf.mxu0
    %v5637 = vadd.f32 0.0, %v5636
    %5638 = vmatmul.bf16.gmra.mxu0 %v5476
    %v5639 = vpop.f32.mrf.mxu0
    %v5640 = vadd.f32 0.0, %v5639
    %v5641 = vpop.f32.mrf.mxu0
    %v5642 = vadd.f32 0.0, %v5641
    %5643 = vmatmul.bf16.gmra.mxu0 %v5479
    %v5644 = vpop.f32.mrf.mxu0
    %v5645 = vadd.f32 0.0, %v5644
    %v5646 = vpop.f32.mrf.mxu0
    %v5647 = vadd.f32 0.0, %v5646
    %5648 = vmatmul.bf16.gmra.mxu0 %v5482
    %v5649 = vpop.f32.mrf.mxu0
    %v5650 = vadd.f32 0.0, %v5649
    %v5651 = vpop.f32.mrf.mxu0
    %v5652 = vadd.f32 0.0, %v5651
    %5653 = vmatmul.bf16.gmra.mxu0 %v5485
    %v5654 = vpop.f32.mrf.mxu0
    %v5655 = vadd.f32 0.0, %v5654
    %v5656 = vpop.f32.mrf.mxu0
    %v5657 = vadd.f32 0.0, %v5656
    %5658 = vdwg.mxu0
    %v5659 = vadd.f32 %v4974, %v5500
    %v5660 = vadd.f32 %v4976, %v5502
    %v5661 = vadd.f32 %v4979, %v5505
    %v5662 = vadd.f32 %v4981, %v5507
    %v5663 = vadd.f32 %v4984, %v5510
    %v5664 = vadd.f32 %v4986, %v5512
    %v5665 = vadd.f32 %v4989, %v5515
    %v5666 = vadd.f32 %v4991, %v5517
    %v5667 = vadd.f32 %v4994, %v5520
    %v5668 = vadd.f32 %v4996, %v5522
    %v5669 = vadd.f32 %v4999, %v5525
    %v5670 = vadd.f32 %v5001, %v5527
    %v5671 = vadd.f32 %v5004, %v5530
    %v5672 = vadd.f32 %v5006, %v5532
    %v5673 = vadd.f32 %v5009, %v5535
    %v5674 = vadd.f32 %v5011, %v5537
    %v5675 = vadd.f32 %v5014, %v5540
    %v5676 = vadd.f32 %v5016, %v5542
    %v5677 = vadd.f32 %v5019, %v5545
    %v5678 = vadd.f32 %v5021, %v5547
    %v5679 = vadd.f32 %v5024, %v5550
    %v5680 = vadd.f32 %v5026, %v5552
    %v5681 = vadd.f32 %v5029, %v5555
    %v5682 = vadd.f32 %v5031, %v5557
    %v5683 = vadd.f32 %v5034, %v5560
    %v5684 = vadd.f32 %v5036, %v5562
    %v5685 = vadd.f32 %v5039, %v5565
    %v5686 = vadd.f32 %v5041, %v5567
    %v5687 = vadd.f32 %v5044, %v5570
    %v5688 = vadd.f32 %v5046, %v5572
    %v5689 = vadd.f32 %v5049, %v5575
    %v5690 = vadd.f32 %v5051, %v5577
    %v5691 = vadd.f32 %v5054, %v5580
    %v5692 = vadd.f32 %v5056, %v5582
    %v5693 = vadd.f32 %v5059, %v5585
    %v5694 = vadd.f32 %v5061, %v5587
    %v5695 = vadd.f32 %v5064, %v5590
    %v5696 = vadd.f32 %v5066, %v5592
    %v5697 = vadd.f32 %v5069, %v5595
    %v5698 = vadd.f32 %v5071, %v5597
    %v5699 = vadd.f32 %v5074, %v5600
    %v5700 = vadd.f32 %v5076, %v5602
    %v5701 = vadd.f32 %v5079, %v5605
    %v5702 = vadd.f32 %v5081, %v5607
    %v5703 = vadd.f32 %v5084, %v5610
    %v5704 = vadd.f32 %v5086, %v5612
    %v5705 = vadd.f32 %v5089, %v5615
    %v5706 = vadd.f32 %v5091, %v5617
    %v5707 = vadd.f32 %v5094, %v5620
    %v5708 = vadd.f32 %v5096, %v5622
    %v5709 = vadd.f32 %v5099, %v5625
    %v5710 = vadd.f32 %v5101, %v5627
    %v5711 = vadd.f32 %v5104, %v5630
    %v5712 = vadd.f32 %v5106, %v5632
    %v5713 = vadd.f32 %v5109, %v5635
    %v5714 = vadd.f32 %v5111, %v5637
    %v5715 = vadd.f32 %v5114, %v5640
    %v5716 = vadd.f32 %v5116, %v5642
    %v5717 = vadd.f32 %v5119, %v5645
    %v5718 = vadd.f32 %v5121, %v5647
    %v5719 = vadd.f32 %v5124, %v5650
    %v5720 = vadd.f32 %v5126, %v5652
    %v5721 = vadd.f32 %v5129, %v5655
    %v5722 = vadd.f32 %v5131, %v5657
    %s5723 = scalar_lea.vmem %s4, 12
    %v5724 = vld [vmem:[%s5723] sm:$0xf]
    %v5725 = vpack.c.bf16 %v4151, %v4150
    %v5726 = vpack.c.bf16 %v4205, %v4204
    %v5728 = vsel %vm101, %v5725, 0
    %v5731 = vsel %vm101, %v5726, 0
    %v5734 = vsel %vm838, %v5724, 0
    %5736 = vmatpush.bf16.msra.mxu0 0
    %5737 = vmatpush.bf16.msra.mxu0 0
    %5738 = vmatpush.bf16.msra.mxu0 0
    %5739 = vmatpush.bf16.msra.mxu0 0
    %5740 = vmatpush.bf16.msra.mxu0 0
    %5741 = vmatpush.bf16.msra.mxu0 0
    %5742 = vmatpush.bf16.msra.mxu0 0
    %5743 = vmatpush.bf16.msra.mxu0 %v5734
    %5744 = vmatmul.bf16.gmra.mxu0 %v4869
    %v5745 = vpop.f32.mrf.mxu0
    %v5746 = vadd.f32 0.0, %v5745
    %v5747 = vpop.f32.mrf.mxu0
    %v5748 = vadd.f32 0.0, %v5747
    %5749 = vmatmul.bf16.gmra.mxu0 %v4872
    %v5750 = vpop.f32.mrf.mxu0
    %v5751 = vadd.f32 0.0, %v5750
    %v5752 = vpop.f32.mrf.mxu0
    %v5753 = vadd.f32 0.0, %v5752
    %5754 = vmatmul.bf16.gmra.mxu0 %v4875
    %v5755 = vpop.f32.mrf.mxu0
    %v5756 = vadd.f32 0.0, %v5755
    %v5757 = vpop.f32.mrf.mxu0
    %v5758 = vadd.f32 0.0, %v5757
    %5759 = vmatmul.bf16.gmra.mxu0 %v4878
    %v5760 = vpop.f32.mrf.mxu0
    %v5761 = vadd.f32 0.0, %v5760
    %v5762 = vpop.f32.mrf.mxu0
    %v5763 = vadd.f32 0.0, %v5762
    %5764 = vmatmul.bf16.gmra.mxu0 %v4881
    %v5765 = vpop.f32.mrf.mxu0
    %v5766 = vadd.f32 0.0, %v5765
    %v5767 = vpop.f32.mrf.mxu0
    %v5768 = vadd.f32 0.0, %v5767
    %5769 = vmatmul.bf16.gmra.mxu0 %v4884
    %v5770 = vpop.f32.mrf.mxu0
    %v5771 = vadd.f32 0.0, %v5770
    %v5772 = vpop.f32.mrf.mxu0
    %v5773 = vadd.f32 0.0, %v5772
    %5774 = vmatmul.bf16.gmra.mxu0 %v4887
    %v5775 = vpop.f32.mrf.mxu0
    %v5776 = vadd.f32 0.0, %v5775
    %v5777 = vpop.f32.mrf.mxu0
    %v5778 = vadd.f32 0.0, %v5777
    %5779 = vmatmul.bf16.gmra.mxu0 %v4890
    %v5780 = vpop.f32.mrf.mxu0
    %v5781 = vadd.f32 0.0, %v5780
    %v5782 = vpop.f32.mrf.mxu0
    %v5783 = vadd.f32 0.0, %v5782
    %5784 = vmatmul.bf16.gmra.mxu0 %v4893
    %v5785 = vpop.f32.mrf.mxu0
    %v5786 = vadd.f32 0.0, %v5785
    %v5787 = vpop.f32.mrf.mxu0
    %v5788 = vadd.f32 0.0, %v5787
    %5789 = vmatmul.bf16.gmra.mxu0 %v4896
    %v5790 = vpop.f32.mrf.mxu0
    %v5791 = vadd.f32 0.0, %v5790
    %v5792 = vpop.f32.mrf.mxu0
    %v5793 = vadd.f32 0.0, %v5792
    %5794 = vmatmul.bf16.gmra.mxu0 %v4899
    %v5795 = vpop.f32.mrf.mxu0
    %v5796 = vadd.f32 0.0, %v5795
    %v5797 = vpop.f32.mrf.mxu0
    %v5798 = vadd.f32 0.0, %v5797
    %5799 = vmatmul.bf16.gmra.mxu0 %v4902
    %v5800 = vpop.f32.mrf.mxu0
    %v5801 = vadd.f32 0.0, %v5800
    %v5802 = vpop.f32.mrf.mxu0
    %v5803 = vadd.f32 0.0, %v5802
    %5804 = vmatmul.bf16.gmra.mxu0 %v4905
    %v5805 = vpop.f32.mrf.mxu0
    %v5806 = vadd.f32 0.0, %v5805
    %v5807 = vpop.f32.mrf.mxu0
    %v5808 = vadd.f32 0.0, %v5807
    %5809 = vmatmul.bf16.gmra.mxu0 %v4908
    %v5810 = vpop.f32.mrf.mxu0
    %v5811 = vadd.f32 0.0, %v5810
    %v5812 = vpop.f32.mrf.mxu0
    %v5813 = vadd.f32 0.0, %v5812
    %5814 = vmatmul.bf16.gmra.mxu0 %v4911
    %v5815 = vpop.f32.mrf.mxu0
    %v5816 = vadd.f32 0.0, %v5815
    %v5817 = vpop.f32.mrf.mxu0
    %v5818 = vadd.f32 0.0, %v5817
    %5819 = vmatmul.bf16.gmra.mxu0 %v5728
    %v5820 = vpop.f32.mrf.mxu0
    %v5821 = vadd.f32 0.0, %v5820
    %v5822 = vpop.f32.mrf.mxu0
    %v5823 = vadd.f32 0.0, %v5822
    %5824 = vmatmul.bf16.gmra.mxu0 %v4917
    %v5825 = vpop.f32.mrf.mxu0
    %v5826 = vadd.f32 0.0, %v5825
    %v5827 = vpop.f32.mrf.mxu0
    %v5828 = vadd.f32 0.0, %v5827
    %5829 = vmatmul.bf16.gmra.mxu0 %v4920
    %v5830 = vpop.f32.mrf.mxu0
    %v5831 = vadd.f32 0.0, %v5830
    %v5832 = vpop.f32.mrf.mxu0
    %v5833 = vadd.f32 0.0, %v5832
    %5834 = vmatmul.bf16.gmra.mxu0 %v4923
    %v5835 = vpop.f32.mrf.mxu0
    %v5836 = vadd.f32 0.0, %v5835
    %v5837 = vpop.f32.mrf.mxu0
    %v5838 = vadd.f32 0.0, %v5837
    %5839 = vmatmul.bf16.gmra.mxu0 %v4926
    %v5840 = vpop.f32.mrf.mxu0
    %v5841 = vadd.f32 0.0, %v5840
    %v5842 = vpop.f32.mrf.mxu0
    %v5843 = vadd.f32 0.0, %v5842
    %5844 = vmatmul.bf16.gmra.mxu0 %v4929
    %v5845 = vpop.f32.mrf.mxu0
    %v5846 = vadd.f32 0.0, %v5845
    %v5847 = vpop.f32.mrf.mxu0
    %v5848 = vadd.f32 0.0, %v5847
    %5849 = vmatmul.bf16.gmra.mxu0 %v4932
    %v5850 = vpop.f32.mrf.mxu0
    %v5851 = vadd.f32 0.0, %v5850
    %v5852 = vpop.f32.mrf.mxu0
    %v5853 = vadd.f32 0.0, %v5852
    %5854 = vmatmul.bf16.gmra.mxu0 %v4935
    %v5855 = vpop.f32.mrf.mxu0
    %v5856 = vadd.f32 0.0, %v5855
    %v5857 = vpop.f32.mrf.mxu0
    %v5858 = vadd.f32 0.0, %v5857
    %5859 = vmatmul.bf16.gmra.mxu0 %v4938
    %v5860 = vpop.f32.mrf.mxu0
    %v5861 = vadd.f32 0.0, %v5860
    %v5862 = vpop.f32.mrf.mxu0
    %v5863 = vadd.f32 0.0, %v5862
    %5864 = vmatmul.bf16.gmra.mxu0 %v4941
    %v5865 = vpop.f32.mrf.mxu0
    %v5866 = vadd.f32 0.0, %v5865
    %v5867 = vpop.f32.mrf.mxu0
    %v5868 = vadd.f32 0.0, %v5867
    %5869 = vmatmul.bf16.gmra.mxu0 %v4944
    %v5870 = vpop.f32.mrf.mxu0
    %v5871 = vadd.f32 0.0, %v5870
    %v5872 = vpop.f32.mrf.mxu0
    %v5873 = vadd.f32 0.0, %v5872
    %5874 = vmatmul.bf16.gmra.mxu0 %v4947
    %v5875 = vpop.f32.mrf.mxu0
    %v5876 = vadd.f32 0.0, %v5875
    %v5877 = vpop.f32.mrf.mxu0
    %v5878 = vadd.f32 0.0, %v5877
    %5879 = vmatmul.bf16.gmra.mxu0 %v4950
    %v5880 = vpop.f32.mrf.mxu0
    %v5881 = vadd.f32 0.0, %v5880
    %v5882 = vpop.f32.mrf.mxu0
    %v5883 = vadd.f32 0.0, %v5882
    %5884 = vmatmul.bf16.gmra.mxu0 %v4953
    %v5885 = vpop.f32.mrf.mxu0
    %v5886 = vadd.f32 0.0, %v5885
    %v5887 = vpop.f32.mrf.mxu0
    %v5888 = vadd.f32 0.0, %v5887
    %5889 = vmatmul.bf16.gmra.mxu0 %v4956
    %v5890 = vpop.f32.mrf.mxu0
    %v5891 = vadd.f32 0.0, %v5890
    %v5892 = vpop.f32.mrf.mxu0
    %v5893 = vadd.f32 0.0, %v5892
    %5894 = vmatmul.bf16.gmra.mxu0 %v4959
    %v5895 = vpop.f32.mrf.mxu0
    %v5896 = vadd.f32 0.0, %v5895
    %v5897 = vpop.f32.mrf.mxu0
    %v5898 = vadd.f32 0.0, %v5897
    %5899 = vmatmul.bf16.gmra.mxu0 %v5731
    %v5900 = vpop.f32.mrf.mxu0
    %v5901 = vadd.f32 0.0, %v5900
    %v5902 = vpop.f32.mrf.mxu0
    %v5903 = vadd.f32 0.0, %v5902
    %5904 = vdwg.mxu0
    %v5905 = vadd.f32 %v5659, %v5746
    %v5906 = vadd.f32 %v5660, %v5748
    %v5907 = vadd.f32 %v5661, %v5751
    %v5908 = vadd.f32 %v5662, %v5753
    %v5909 = vadd.f32 %v5663, %v5756
    %v5910 = vadd.f32 %v5664, %v5758
    %v5911 = vadd.f32 %v5665, %v5761
    %v5912 = vadd.f32 %v5666, %v5763
    %v5913 = vadd.f32 %v5667, %v5766
    %v5914 = vadd.f32 %v5668, %v5768
    %v5915 = vadd.f32 %v5669, %v5771
    %v5916 = vadd.f32 %v5670, %v5773
    %v5917 = vadd.f32 %v5671, %v5776
    %v5918 = vadd.f32 %v5672, %v5778
    %v5919 = vadd.f32 %v5673, %v5781
    %v5920 = vadd.f32 %v5674, %v5783
    %v5921 = vadd.f32 %v5675, %v5786
    %v5922 = vadd.f32 %v5676, %v5788
    %v5923 = vadd.f32 %v5677, %v5791
    %v5924 = vadd.f32 %v5678, %v5793
    %v5925 = vadd.f32 %v5679, %v5796
    %v5926 = vadd.f32 %v5680, %v5798
    %v5927 = vadd.f32 %v5681, %v5801
    %v5928 = vadd.f32 %v5682, %v5803
    %v5929 = vadd.f32 %v5683, %v5806
    %v5930 = vadd.f32 %v5684, %v5808
    %v5931 = vadd.f32 %v5685, %v5811
    %v5932 = vadd.f32 %v5686, %v5813
    %v5933 = vadd.f32 %v5687, %v5816
    %v5934 = vadd.f32 %v5688, %v5818
    %v5935 = vadd.f32 %v5689, %v5821
    %v5936 = vadd.f32 %v5690, %v5823
    %v5937 = vadd.f32 %v5691, %v5826
    %v5938 = vadd.f32 %v5692, %v5828
    %v5939 = vadd.f32 %v5693, %v5831
    %v5940 = vadd.f32 %v5694, %v5833
    %v5941 = vadd.f32 %v5695, %v5836
    %v5942 = vadd.f32 %v5696, %v5838
    %v5943 = vadd.f32 %v5697, %v5841
    %v5944 = vadd.f32 %v5698, %v5843
    %v5945 = vadd.f32 %v5699, %v5846
    %v5946 = vadd.f32 %v5700, %v5848
    %v5947 = vadd.f32 %v5701, %v5851
    %v5948 = vadd.f32 %v5702, %v5853
    %v5949 = vadd.f32 %v5703, %v5856
    %v5950 = vadd.f32 %v5704, %v5858
    %v5951 = vadd.f32 %v5705, %v5861
    %v5952 = vadd.f32 %v5706, %v5863
    %v5953 = vadd.f32 %v5707, %v5866
    %v5954 = vadd.f32 %v5708, %v5868
    %v5955 = vadd.f32 %v5709, %v5871
    %v5956 = vadd.f32 %v5710, %v5873
    %v5957 = vadd.f32 %v5711, %v5876
    %v5958 = vadd.f32 %v5712, %v5878
    %v5959 = vadd.f32 %v5713, %v5881
    %v5960 = vadd.f32 %v5714, %v5883
    %v5961 = vadd.f32 %v5715, %v5886
    %v5962 = vadd.f32 %v5716, %v5888
    %v5963 = vadd.f32 %v5717, %v5891
    %v5964 = vadd.f32 %v5718, %v5893
    %v5965 = vadd.f32 %v5719, %v5896
    %v5966 = vadd.f32 %v5720, %v5898
    %v5967 = vadd.f32 %v5721, %v5901
    %v5968 = vadd.f32 %v5722, %v5903
    %v5975 = vrot.slane %v4150, 1
    %v5976 = vrot.slane %v4151, 1
    %v5977 = vsel %vm483, %v5975, %v5976
    %v5978 = vrot.slane %v4152, 1
    %v5979 = vsel %vm483, %v5976, %v5978
    %v5980 = vrot.slane %v4204, 1
    %v5981 = vrot.slane %v4205, 1
    %v5982 = vsel %vm483, %v5980, %v5981
    %v5983 = vrot.slane %v4206, 1
    %v5984 = vsel %vm483, %v5981, %v5983
    %s5989 = scalar_lea.vmem %s4, 16
    %v5990 = vld [vmem:[%s5989] sm:$0xf]
    %v5991 = vpack.c.bf16 %v5979, %v5977
    %v5992 = vpack.c.bf16 %v5984, %v5982
    %v5994 = vsel %vm101, %v5991, 0
    %v5997 = vsel %vm101, %v5992, 0
    %v6000 = vsel %vm838, %v5990, 0
    %6002 = vmatpush.bf16.msra.mxu0 0
    %6003 = vmatpush.bf16.msra.mxu0 0
    %6004 = vmatpush.bf16.msra.mxu0 0
    %6005 = vmatpush.bf16.msra.mxu0 0
    %6006 = vmatpush.bf16.msra.mxu0 0
    %6007 = vmatpush.bf16.msra.mxu0 0
    %6008 = vmatpush.bf16.msra.mxu0 0
    %6009 = vmatpush.bf16.msra.mxu0 %v6000
    %6010 = vmatmul.bf16.gmra.mxu0 %v4601
    %v6011 = vpop.f32.mrf.mxu0
    %v6012 = vadd.f32 0.0, %v6011
    %v6013 = vpop.f32.mrf.mxu0
    %v6014 = vadd.f32 0.0, %v6013
    %6015 = vmatmul.bf16.gmra.mxu0 %v4604
    %v6016 = vpop.f32.mrf.mxu0
    %v6017 = vadd.f32 0.0, %v6016
    %v6018 = vpop.f32.mrf.mxu0
    %v6019 = vadd.f32 0.0, %v6018
    %6020 = vmatmul.bf16.gmra.mxu0 %v4607
    %v6021 = vpop.f32.mrf.mxu0
    %v6022 = vadd.f32 0.0, %v6021
    %v6023 = vpop.f32.mrf.mxu0
    %v6024 = vadd.f32 0.0, %v6023
    %6025 = vmatmul.bf16.gmra.mxu0 %v4610
    %v6026 = vpop.f32.mrf.mxu0
    %v6027 = vadd.f32 0.0, %v6026
    %v6028 = vpop.f32.mrf.mxu0
    %v6029 = vadd.f32 0.0, %v6028
    %6030 = vmatmul.bf16.gmra.mxu0 %v4613
    %v6031 = vpop.f32.mrf.mxu0
    %v6032 = vadd.f32 0.0, %v6031
    %v6033 = vpop.f32.mrf.mxu0
    %v6034 = vadd.f32 0.0, %v6033
    %6035 = vmatmul.bf16.gmra.mxu0 %v4616
    %v6036 = vpop.f32.mrf.mxu0
    %v6037 = vadd.f32 0.0, %v6036
    %v6038 = vpop.f32.mrf.mxu0
    %v6039 = vadd.f32 0.0, %v6038
    %6040 = vmatmul.bf16.gmra.mxu0 %v4619
    %v6041 = vpop.f32.mrf.mxu0
    %v6042 = vadd.f32 0.0, %v6041
    %v6043 = vpop.f32.mrf.mxu0
    %v6044 = vadd.f32 0.0, %v6043
    %6045 = vmatmul.bf16.gmra.mxu0 %v4622
    %v6046 = vpop.f32.mrf.mxu0
    %v6047 = vadd.f32 0.0, %v6046
    %v6048 = vpop.f32.mrf.mxu0
    %v6049 = vadd.f32 0.0, %v6048
    %6050 = vmatmul.bf16.gmra.mxu0 %v4625
    %v6051 = vpop.f32.mrf.mxu0
    %v6052 = vadd.f32 0.0, %v6051
    %v6053 = vpop.f32.mrf.mxu0
    %v6054 = vadd.f32 0.0, %v6053
    %6055 = vmatmul.bf16.gmra.mxu0 %v4628
    %v6056 = vpop.f32.mrf.mxu0
    %v6057 = vadd.f32 0.0, %v6056
    %v6058 = vpop.f32.mrf.mxu0
    %v6059 = vadd.f32 0.0, %v6058
    %6060 = vmatmul.bf16.gmra.mxu0 %v4631
    %v6061 = vpop.f32.mrf.mxu0
    %v6062 = vadd.f32 0.0, %v6061
    %v6063 = vpop.f32.mrf.mxu0
    %v6064 = vadd.f32 0.0, %v6063
    %6065 = vmatmul.bf16.gmra.mxu0 %v4634
    %v6066 = vpop.f32.mrf.mxu0
    %v6067 = vadd.f32 0.0, %v6066
    %v6068 = vpop.f32.mrf.mxu0
    %v6069 = vadd.f32 0.0, %v6068
    %6070 = vmatmul.bf16.gmra.mxu0 %v4637
    %v6071 = vpop.f32.mrf.mxu0
    %v6072 = vadd.f32 0.0, %v6071
    %v6073 = vpop.f32.mrf.mxu0
    %v6074 = vadd.f32 0.0, %v6073
    %6075 = vmatmul.bf16.gmra.mxu0 %v4640
    %v6076 = vpop.f32.mrf.mxu0
    %v6077 = vadd.f32 0.0, %v6076
    %v6078 = vpop.f32.mrf.mxu0
    %v6079 = vadd.f32 0.0, %v6078
    %6080 = vmatmul.bf16.gmra.mxu0 %v4643
    %v6081 = vpop.f32.mrf.mxu0
    %v6082 = vadd.f32 0.0, %v6081
    %v6083 = vpop.f32.mrf.mxu0
    %v6084 = vadd.f32 0.0, %v6083
    %6085 = vmatmul.bf16.gmra.mxu0 %v5994
    %v6086 = vpop.f32.mrf.mxu0
    %v6087 = vadd.f32 0.0, %v6086
    %v6088 = vpop.f32.mrf.mxu0
    %v6089 = vadd.f32 0.0, %v6088
    %6090 = vmatmul.bf16.gmra.mxu0 %v4649
    %v6091 = vpop.f32.mrf.mxu0
    %v6092 = vadd.f32 0.0, %v6091
    %v6093 = vpop.f32.mrf.mxu0
    %v6094 = vadd.f32 0.0, %v6093
    %6095 = vmatmul.bf16.gmra.mxu0 %v4652
    %v6096 = vpop.f32.mrf.mxu0
    %v6097 = vadd.f32 0.0, %v6096
    %v6098 = vpop.f32.mrf.mxu0
    %v6099 = vadd.f32 0.0, %v6098
    %6100 = vmatmul.bf16.gmra.mxu0 %v4655
    %v6101 = vpop.f32.mrf.mxu0
    %v6102 = vadd.f32 0.0, %v6101
    %v6103 = vpop.f32.mrf.mxu0
    %v6104 = vadd.f32 0.0, %v6103
    %6105 = vmatmul.bf16.gmra.mxu0 %v4658
    %v6106 = vpop.f32.mrf.mxu0
    %v6107 = vadd.f32 0.0, %v6106
    %v6108 = vpop.f32.mrf.mxu0
    %v6109 = vadd.f32 0.0, %v6108
    %6110 = vmatmul.bf16.gmra.mxu0 %v4661
    %v6111 = vpop.f32.mrf.mxu0
    %v6112 = vadd.f32 0.0, %v6111
    %v6113 = vpop.f32.mrf.mxu0
    %v6114 = vadd.f32 0.0, %v6113
    %6115 = vmatmul.bf16.gmra.mxu0 %v4664
    %v6116 = vpop.f32.mrf.mxu0
    %v6117 = vadd.f32 0.0, %v6116
    %v6118 = vpop.f32.mrf.mxu0
    %v6119 = vadd.f32 0.0, %v6118
    %6120 = vmatmul.bf16.gmra.mxu0 %v4667
    %v6121 = vpop.f32.mrf.mxu0
    %v6122 = vadd.f32 0.0, %v6121
    %v6123 = vpop.f32.mrf.mxu0
    %v6124 = vadd.f32 0.0, %v6123
    %6125 = vmatmul.bf16.gmra.mxu0 %v4670
    %v6126 = vpop.f32.mrf.mxu0
    %v6127 = vadd.f32 0.0, %v6126
    %v6128 = vpop.f32.mrf.mxu0
    %v6129 = vadd.f32 0.0, %v6128
    %6130 = vmatmul.bf16.gmra.mxu0 %v4673
    %v6131 = vpop.f32.mrf.mxu0
    %v6132 = vadd.f32 0.0, %v6131
    %v6133 = vpop.f32.mrf.mxu0
    %v6134 = vadd.f32 0.0, %v6133
    %6135 = vmatmul.bf16.gmra.mxu0 %v4676
    %v6136 = vpop.f32.mrf.mxu0
    %v6137 = vadd.f32 0.0, %v6136
    %v6138 = vpop.f32.mrf.mxu0
    %v6139 = vadd.f32 0.0, %v6138
    %6140 = vmatmul.bf16.gmra.mxu0 %v4679
    %v6141 = vpop.f32.mrf.mxu0
    %v6142 = vadd.f32 0.0, %v6141
    %v6143 = vpop.f32.mrf.mxu0
    %v6144 = vadd.f32 0.0, %v6143
    %6145 = vmatmul.bf16.gmra.mxu0 %v4682
    %v6146 = vpop.f32.mrf.mxu0
    %v6147 = vadd.f32 0.0, %v6146
    %v6148 = vpop.f32.mrf.mxu0
    %v6149 = vadd.f32 0.0, %v6148
    %6150 = vmatmul.bf16.gmra.mxu0 %v4685
    %v6151 = vpop.f32.mrf.mxu0
    %v6152 = vadd.f32 0.0, %v6151
    %v6153 = vpop.f32.mrf.mxu0
    %v6154 = vadd.f32 0.0, %v6153
    %6155 = vmatmul.bf16.gmra.mxu0 %v4688
    %v6156 = vpop.f32.mrf.mxu0
    %v6157 = vadd.f32 0.0, %v6156
    %v6158 = vpop.f32.mrf.mxu0
    %v6159 = vadd.f32 0.0, %v6158
    %6160 = vmatmul.bf16.gmra.mxu0 %v4691
    %v6161 = vpop.f32.mrf.mxu0
    %v6162 = vadd.f32 0.0, %v6161
    %v6163 = vpop.f32.mrf.mxu0
    %v6164 = vadd.f32 0.0, %v6163
    %6165 = vmatmul.bf16.gmra.mxu0 %v5997
    %v6166 = vpop.f32.mrf.mxu0
    %v6167 = vadd.f32 0.0, %v6166
    %v6168 = vpop.f32.mrf.mxu0
    %v6169 = vadd.f32 0.0, %v6168
    %6170 = vdwg.mxu0
    %v6171 = vadd.f32 %v5905, %v6012
    %v6172 = vadd.f32 %v5906, %v6014
    %v6173 = vadd.f32 %v5907, %v6017
    %v6174 = vadd.f32 %v5908, %v6019
    %v6175 = vadd.f32 %v5909, %v6022
    %v6176 = vadd.f32 %v5910, %v6024
    %v6177 = vadd.f32 %v5911, %v6027
    %v6178 = vadd.f32 %v5912, %v6029
    %v6179 = vadd.f32 %v5913, %v6032
    %v6180 = vadd.f32 %v5914, %v6034
    %v6181 = vadd.f32 %v5915, %v6037
    %v6182 = vadd.f32 %v5916, %v6039
    %v6183 = vadd.f32 %v5917, %v6042
    %v6184 = vadd.f32 %v5918, %v6044
    %v6185 = vadd.f32 %v5919, %v6047
    %v6186 = vadd.f32 %v5920, %v6049
    %v6187 = vadd.f32 %v5921, %v6052
    %v6188 = vadd.f32 %v5922, %v6054
    %v6189 = vadd.f32 %v5923, %v6057
    %v6190 = vadd.f32 %v5924, %v6059
    %v6191 = vadd.f32 %v5925, %v6062
    %v6192 = vadd.f32 %v5926, %v6064
    %v6193 = vadd.f32 %v5927, %v6067
    %v6194 = vadd.f32 %v5928, %v6069
    %v6195 = vadd.f32 %v5929, %v6072
    %v6196 = vadd.f32 %v5930, %v6074
    %v6197 = vadd.f32 %v5931, %v6077
    %v6198 = vadd.f32 %v5932, %v6079
    %v6199 = vadd.f32 %v5933, %v6082
    %v6200 = vadd.f32 %v5934, %v6084
    %v6201 = vadd.f32 %v5935, %v6087
    %v6202 = vadd.f32 %v5936, %v6089
    %v6203 = vadd.f32 %v5937, %v6092
    %v6204 = vadd.f32 %v5938, %v6094
    %v6205 = vadd.f32 %v5939, %v6097
    %v6206 = vadd.f32 %v5940, %v6099
    %v6207 = vadd.f32 %v5941, %v6102
    %v6208 = vadd.f32 %v5942, %v6104
    %v6209 = vadd.f32 %v5943, %v6107
    %v6210 = vadd.f32 %v5944, %v6109
    %v6211 = vadd.f32 %v5945, %v6112
    %v6212 = vadd.f32 %v5946, %v6114
    %v6213 = vadd.f32 %v5947, %v6117
    %v6214 = vadd.f32 %v5948, %v6119
    %v6215 = vadd.f32 %v5949, %v6122
    %v6216 = vadd.f32 %v5950, %v6124
    %v6217 = vadd.f32 %v5951, %v6127
    %v6218 = vadd.f32 %v5952, %v6129
    %v6219 = vadd.f32 %v5953, %v6132
    %v6220 = vadd.f32 %v5954, %v6134
    %v6221 = vadd.f32 %v5955, %v6137
    %v6222 = vadd.f32 %v5956, %v6139
    %v6223 = vadd.f32 %v5957, %v6142
    %v6224 = vadd.f32 %v5958, %v6144
    %v6225 = vadd.f32 %v5959, %v6147
    %v6226 = vadd.f32 %v5960, %v6149
    %v6227 = vadd.f32 %v5961, %v6152
    %v6228 = vadd.f32 %v5962, %v6154
    %v6229 = vadd.f32 %v5963, %v6157
    %v6230 = vadd.f32 %v5964, %v6159
    %v6231 = vadd.f32 %v5965, %v6162
    %v6232 = vadd.f32 %v5966, %v6164
    %v6233 = vadd.f32 %v5967, %v6167
    %v6234 = vadd.f32 %v5968, %v6169
    %v6235 = vrot.slane %v4150, 2
    %v6236 = vrot.slane %v4151, 2
    %v6237 = vsel %vm1279, %v6235, %v6236
    %v6238 = vrot.slane %v4152, 2
    %v6239 = vsel %vm1279, %v6236, %v6238
    %v6240 = vrot.slane %v4204, 2
    %v6241 = vrot.slane %v4205, 2
    %v6242 = vsel %vm1279, %v6240, %v6241
    %v6243 = vrot.slane %v4206, 2
    %v6244 = vsel %vm1279, %v6241, %v6243
    %s6249 = scalar_lea.vmem %s4, 20
    %v6250 = vld [vmem:[%s6249] sm:$0xf]
    %v6251 = vpack.c.bf16 %v6239, %v6237
    %v6252 = vpack.c.bf16 %v6244, %v6242
    %v6254 = vsel %vm101, %v6251, 0
    %v6257 = vsel %vm101, %v6252, 0
    %v6260 = vsel %vm838, %v6250, 0
    %6262 = vmatpush.bf16.msra.mxu0 0
    %6263 = vmatpush.bf16.msra.mxu0 0
    %6264 = vmatpush.bf16.msra.mxu0 0
    %6265 = vmatpush.bf16.msra.mxu0 0
    %6266 = vmatpush.bf16.msra.mxu0 0
    %6267 = vmatpush.bf16.msra.mxu0 0
    %6268 = vmatpush.bf16.msra.mxu0 0
    %6269 = vmatpush.bf16.msra.mxu0 %v6260
    %6270 = vmatmul.bf16.gmra.mxu0 %v5395
    %v6271 = vpop.f32.mrf.mxu0
    %v6272 = vadd.f32 0.0, %v6271
    %v6273 = vpop.f32.mrf.mxu0
    %v6274 = vadd.f32 0.0, %v6273
    %6275 = vmatmul.bf16.gmra.mxu0 %v5398
    %v6276 = vpop.f32.mrf.mxu0
    %v6277 = vadd.f32 0.0, %v6276
    %v6278 = vpop.f32.mrf.mxu0
    %v6279 = vadd.f32 0.0, %v6278
    %6280 = vmatmul.bf16.gmra.mxu0 %v5401
    %v6281 = vpop.f32.mrf.mxu0
    %v6282 = vadd.f32 0.0, %v6281
    %v6283 = vpop.f32.mrf.mxu0
    %v6284 = vadd.f32 0.0, %v6283
    %6285 = vmatmul.bf16.gmra.mxu0 %v5404
    %v6286 = vpop.f32.mrf.mxu0
    %v6287 = vadd.f32 0.0, %v6286
    %v6288 = vpop.f32.mrf.mxu0
    %v6289 = vadd.f32 0.0, %v6288
    %6290 = vmatmul.bf16.gmra.mxu0 %v5407
    %v6291 = vpop.f32.mrf.mxu0
    %v6292 = vadd.f32 0.0, %v6291
    %v6293 = vpop.f32.mrf.mxu0
    %v6294 = vadd.f32 0.0, %v6293
    %6295 = vmatmul.bf16.gmra.mxu0 %v5410
    %v6296 = vpop.f32.mrf.mxu0
    %v6297 = vadd.f32 0.0, %v6296
    %v6298 = vpop.f32.mrf.mxu0
    %v6299 = vadd.f32 0.0, %v6298
    %6300 = vmatmul.bf16.gmra.mxu0 %v5413
    %v6301 = vpop.f32.mrf.mxu0
    %v6302 = vadd.f32 0.0, %v6301
    %v6303 = vpop.f32.mrf.mxu0
    %v6304 = vadd.f32 0.0, %v6303
    %6305 = vmatmul.bf16.gmra.mxu0 %v5416
    %v6306 = vpop.f32.mrf.mxu0
    %v6307 = vadd.f32 0.0, %v6306
    %v6308 = vpop.f32.mrf.mxu0
    %v6309 = vadd.f32 0.0, %v6308
    %6310 = vmatmul.bf16.gmra.mxu0 %v5419
    %v6311 = vpop.f32.mrf.mxu0
    %v6312 = vadd.f32 0.0, %v6311
    %v6313 = vpop.f32.mrf.mxu0
    %v6314 = vadd.f32 0.0, %v6313
    %6315 = vmatmul.bf16.gmra.mxu0 %v5422
    %v6316 = vpop.f32.mrf.mxu0
    %v6317 = vadd.f32 0.0, %v6316
    %v6318 = vpop.f32.mrf.mxu0
    %v6319 = vadd.f32 0.0, %v6318
    %6320 = vmatmul.bf16.gmra.mxu0 %v5425
    %v6321 = vpop.f32.mrf.mxu0
    %v6322 = vadd.f32 0.0, %v6321
    %v6323 = vpop.f32.mrf.mxu0
    %v6324 = vadd.f32 0.0, %v6323
    %6325 = vmatmul.bf16.gmra.mxu0 %v5428
    %v6326 = vpop.f32.mrf.mxu0
    %v6327 = vadd.f32 0.0, %v6326
    %v6328 = vpop.f32.mrf.mxu0
    %v6329 = vadd.f32 0.0, %v6328
    %6330 = vmatmul.bf16.gmra.mxu0 %v5431
    %v6331 = vpop.f32.mrf.mxu0
    %v6332 = vadd.f32 0.0, %v6331
    %v6333 = vpop.f32.mrf.mxu0
    %v6334 = vadd.f32 0.0, %v6333
    %6335 = vmatmul.bf16.gmra.mxu0 %v5434
    %v6336 = vpop.f32.mrf.mxu0
    %v6337 = vadd.f32 0.0, %v6336
    %v6338 = vpop.f32.mrf.mxu0
    %v6339 = vadd.f32 0.0, %v6338
    %6340 = vmatmul.bf16.gmra.mxu0 %v5437
    %v6341 = vpop.f32.mrf.mxu0
    %v6342 = vadd.f32 0.0, %v6341
    %v6343 = vpop.f32.mrf.mxu0
    %v6344 = vadd.f32 0.0, %v6343
    %6345 = vmatmul.bf16.gmra.mxu0 %v6254
    %v6346 = vpop.f32.mrf.mxu0
    %v6347 = vadd.f32 0.0, %v6346
    %v6348 = vpop.f32.mrf.mxu0
    %v6349 = vadd.f32 0.0, %v6348
    %6350 = vmatmul.bf16.gmra.mxu0 %v5443
    %v6351 = vpop.f32.mrf.mxu0
    %v6352 = vadd.f32 0.0, %v6351
    %v6353 = vpop.f32.mrf.mxu0
    %v6354 = vadd.f32 0.0, %v6353
    %6355 = vmatmul.bf16.gmra.mxu0 %v5446
    %v6356 = vpop.f32.mrf.mxu0
    %v6357 = vadd.f32 0.0, %v6356
    %v6358 = vpop.f32.mrf.mxu0
    %v6359 = vadd.f32 0.0, %v6358
    %6360 = vmatmul.bf16.gmra.mxu0 %v5449
    %v6361 = vpop.f32.mrf.mxu0
    %v6362 = vadd.f32 0.0, %v6361
    %v6363 = vpop.f32.mrf.mxu0
    %v6364 = vadd.f32 0.0, %v6363
    %6365 = vmatmul.bf16.gmra.mxu0 %v5452
    %v6366 = vpop.f32.mrf.mxu0
    %v6367 = vadd.f32 0.0, %v6366
    %v6368 = vpop.f32.mrf.mxu0
    %v6369 = vadd.f32 0.0, %v6368
    %6370 = vmatmul.bf16.gmra.mxu0 %v5455
    %v6371 = vpop.f32.mrf.mxu0
    %v6372 = vadd.f32 0.0, %v6371
    %v6373 = vpop.f32.mrf.mxu0
    %v6374 = vadd.f32 0.0, %v6373
    %6375 = vmatmul.bf16.gmra.mxu0 %v5458
    %v6376 = vpop.f32.mrf.mxu0
    %v6377 = vadd.f32 0.0, %v6376
    %v6378 = vpop.f32.mrf.mxu0
    %v6379 = vadd.f32 0.0, %v6378
    %6380 = vmatmul.bf16.gmra.mxu0 %v5461
    %v6381 = vpop.f32.mrf.mxu0
    %v6382 = vadd.f32 0.0, %v6381
    %v6383 = vpop.f32.mrf.mxu0
    %v6384 = vadd.f32 0.0, %v6383
    %6385 = vmatmul.bf16.gmra.mxu0 %v5464
    %v6386 = vpop.f32.mrf.mxu0
    %v6387 = vadd.f32 0.0, %v6386
    %v6388 = vpop.f32.mrf.mxu0
    %v6389 = vadd.f32 0.0, %v6388
    %6390 = vmatmul.bf16.gmra.mxu0 %v5467
    %v6391 = vpop.f32.mrf.mxu0
    %v6392 = vadd.f32 0.0, %v6391
    %v6393 = vpop.f32.mrf.mxu0
    %v6394 = vadd.f32 0.0, %v6393
    %6395 = vmatmul.bf16.gmra.mxu0 %v5470
    %v6396 = vpop.f32.mrf.mxu0
    %v6397 = vadd.f32 0.0, %v6396
    %v6398 = vpop.f32.mrf.mxu0
    %v6399 = vadd.f32 0.0, %v6398
    %6400 = vmatmul.bf16.gmra.mxu0 %v5473
    %v6401 = vpop.f32.mrf.mxu0
    %v6402 = vadd.f32 0.0, %v6401
    %v6403 = vpop.f32.mrf.mxu0
    %v6404 = vadd.f32 0.0, %v6403
    %6405 = vmatmul.bf16.gmra.mxu0 %v5476
    %v6406 = vpop.f32.mrf.mxu0
    %v6407 = vadd.f32 0.0, %v6406
    %v6408 = vpop.f32.mrf.mxu0
    %v6409 = vadd.f32 0.0, %v6408
    %6410 = vmatmul.bf16.gmra.mxu0 %v5479
    %v6411 = vpop.f32.mrf.mxu0
    %v6412 = vadd.f32 0.0, %v6411
    %v6413 = vpop.f32.mrf.mxu0
    %v6414 = vadd.f32 0.0, %v6413
    %6415 = vmatmul.bf16.gmra.mxu0 %v5482
    %v6416 = vpop.f32.mrf.mxu0
    %v6417 = vadd.f32 0.0, %v6416
    %v6418 = vpop.f32.mrf.mxu0
    %v6419 = vadd.f32 0.0, %v6418
    %6420 = vmatmul.bf16.gmra.mxu0 %v5485
    %v6421 = vpop.f32.mrf.mxu0
    %v6422 = vadd.f32 0.0, %v6421
    %v6423 = vpop.f32.mrf.mxu0
    %v6424 = vadd.f32 0.0, %v6423
    %6425 = vmatmul.bf16.gmra.mxu0 %v6257
    %v6426 = vpop.f32.mrf.mxu0
    %v6427 = vadd.f32 0.0, %v6426
    %v6428 = vpop.f32.mrf.mxu0
    %v6429 = vadd.f32 0.0, %v6428
    %6430 = vdwg.mxu0
    %v6431 = vadd.f32 %v6171, %v6272
    %v6432 = vadd.f32 %v6172, %v6274
    %v6433 = vadd.f32 %v6173, %v6277
    %v6434 = vadd.f32 %v6174, %v6279
    %v6435 = vadd.f32 %v6175, %v6282
    %v6436 = vadd.f32 %v6176, %v6284
    %v6437 = vadd.f32 %v6177, %v6287
    %v6438 = vadd.f32 %v6178, %v6289
    %v6439 = vadd.f32 %v6179, %v6292
    %v6440 = vadd.f32 %v6180, %v6294
    %v6441 = vadd.f32 %v6181, %v6297
    %v6442 = vadd.f32 %v6182, %v6299
    %v6443 = vadd.f32 %v6183, %v6302
    %v6444 = vadd.f32 %v6184, %v6304
    %v6445 = vadd.f32 %v6185, %v6307
    %v6446 = vadd.f32 %v6186, %v6309
    %v6447 = vadd.f32 %v6187, %v6312
    %v6448 = vadd.f32 %v6188, %v6314
    %v6449 = vadd.f32 %v6189, %v6317
    %v6450 = vadd.f32 %v6190, %v6319
    %v6451 = vadd.f32 %v6191, %v6322
    %v6452 = vadd.f32 %v6192, %v6324
    %v6453 = vadd.f32 %v6193, %v6327
    %v6454 = vadd.f32 %v6194, %v6329
    %v6455 = vadd.f32 %v6195, %v6332
    %v6456 = vadd.f32 %v6196, %v6334
    %v6457 = vadd.f32 %v6197, %v6337
    %v6458 = vadd.f32 %v6198, %v6339
    %v6459 = vadd.f32 %v6199, %v6342
    %v6460 = vadd.f32 %v6200, %v6344
    %v6461 = vadd.f32 %v6201, %v6347
    %v6462 = vadd.f32 %v6202, %v6349
    %v6463 = vadd.f32 %v6203, %v6352
    %v6464 = vadd.f32 %v6204, %v6354
    %v6465 = vadd.f32 %v6205, %v6357
    %v6466 = vadd.f32 %v6206, %v6359
    %v6467 = vadd.f32 %v6207, %v6362
    %v6468 = vadd.f32 %v6208, %v6364
    %v6469 = vadd.f32 %v6209, %v6367
    %v6470 = vadd.f32 %v6210, %v6369
    %v6471 = vadd.f32 %v6211, %v6372
    %v6472 = vadd.f32 %v6212, %v6374
    %v6473 = vadd.f32 %v6213, %v6377
    %v6474 = vadd.f32 %v6214, %v6379
    %v6475 = vadd.f32 %v6215, %v6382
    %v6476 = vadd.f32 %v6216, %v6384
    %v6477 = vadd.f32 %v6217, %v6387
    %v6478 = vadd.f32 %v6218, %v6389
    %v6479 = vadd.f32 %v6219, %v6392
    %v6480 = vadd.f32 %v6220, %v6394
    %v6481 = vadd.f32 %v6221, %v6397
    %v6482 = vadd.f32 %v6222, %v6399
    %v6483 = vadd.f32 %v6223, %v6402
    %v6484 = vadd.f32 %v6224, %v6404
    %v6485 = vadd.f32 %v6225, %v6407
    %v6486 = vadd.f32 %v6226, %v6409
    %v6487 = vadd.f32 %v6227, %v6412
    %v6488 = vadd.f32 %v6228, %v6414
    %v6489 = vadd.f32 %v6229, %v6417
    %v6490 = vadd.f32 %v6230, %v6419
    %v6491 = vadd.f32 %v6231, %v6422
    %v6492 = vadd.f32 %v6232, %v6424
    %v6493 = vadd.f32 %v6233, %v6427
    %v6494 = vadd.f32 %v6234, %v6429
    %s6495 = scalar_lea.vmem %s4, 24
    %v6496 = vld [vmem:[%s6495] sm:$0xf]
    %v6497 = vpack.c.bf16 %v4154, %v4153
    %v6498 = vpack.c.bf16 %v4208, %v4207
    %v6500 = vsel %vm101, %v6497, 0
    %v6503 = vsel %vm101, %v6498, 0
    %v6506 = vsel %vm838, %v6496, 0
    %6508 = vmatpush.bf16.msra.mxu0 0
    %6509 = vmatpush.bf16.msra.mxu0 0
    %6510 = vmatpush.bf16.msra.mxu0 0
    %6511 = vmatpush.bf16.msra.mxu0 0
    %6512 = vmatpush.bf16.msra.mxu0 0
    %6513 = vmatpush.bf16.msra.mxu0 0
    %6514 = vmatpush.bf16.msra.mxu0 0
    %6515 = vmatpush.bf16.msra.mxu0 %v6506
    %6516 = vmatmul.bf16.gmra.mxu0 %v4872
    %v6517 = vpop.f32.mrf.mxu0
    %v6518 = vadd.f32 0.0, %v6517
    %v6519 = vpop.f32.mrf.mxu0
    %v6520 = vadd.f32 0.0, %v6519
    %6521 = vmatmul.bf16.gmra.mxu0 %v4875
    %v6522 = vpop.f32.mrf.mxu0
    %v6523 = vadd.f32 0.0, %v6522
    %v6524 = vpop.f32.mrf.mxu0
    %v6525 = vadd.f32 0.0, %v6524
    %6526 = vmatmul.bf16.gmra.mxu0 %v4878
    %v6527 = vpop.f32.mrf.mxu0
    %v6528 = vadd.f32 0.0, %v6527
    %v6529 = vpop.f32.mrf.mxu0
    %v6530 = vadd.f32 0.0, %v6529
    %6531 = vmatmul.bf16.gmra.mxu0 %v4881
    %v6532 = vpop.f32.mrf.mxu0
    %v6533 = vadd.f32 0.0, %v6532
    %v6534 = vpop.f32.mrf.mxu0
    %v6535 = vadd.f32 0.0, %v6534
    %6536 = vmatmul.bf16.gmra.mxu0 %v4884
    %v6537 = vpop.f32.mrf.mxu0
    %v6538 = vadd.f32 0.0, %v6537
    %v6539 = vpop.f32.mrf.mxu0
    %v6540 = vadd.f32 0.0, %v6539
    %6541 = vmatmul.bf16.gmra.mxu0 %v4887
    %v6542 = vpop.f32.mrf.mxu0
    %v6543 = vadd.f32 0.0, %v6542
    %v6544 = vpop.f32.mrf.mxu0
    %v6545 = vadd.f32 0.0, %v6544
    %6546 = vmatmul.bf16.gmra.mxu0 %v4890
    %v6547 = vpop.f32.mrf.mxu0
    %v6548 = vadd.f32 0.0, %v6547
    %v6549 = vpop.f32.mrf.mxu0
    %v6550 = vadd.f32 0.0, %v6549
    %6551 = vmatmul.bf16.gmra.mxu0 %v4893
    %v6552 = vpop.f32.mrf.mxu0
    %v6553 = vadd.f32 0.0, %v6552
    %v6554 = vpop.f32.mrf.mxu0
    %v6555 = vadd.f32 0.0, %v6554
    %6556 = vmatmul.bf16.gmra.mxu0 %v4896
    %v6557 = vpop.f32.mrf.mxu0
    %v6558 = vadd.f32 0.0, %v6557
    %v6559 = vpop.f32.mrf.mxu0
    %v6560 = vadd.f32 0.0, %v6559
    %6561 = vmatmul.bf16.gmra.mxu0 %v4899
    %v6562 = vpop.f32.mrf.mxu0
    %v6563 = vadd.f32 0.0, %v6562
    %v6564 = vpop.f32.mrf.mxu0
    %v6565 = vadd.f32 0.0, %v6564
    %6566 = vmatmul.bf16.gmra.mxu0 %v4902
    %v6567 = vpop.f32.mrf.mxu0
    %v6568 = vadd.f32 0.0, %v6567
    %v6569 = vpop.f32.mrf.mxu0
    %v6570 = vadd.f32 0.0, %v6569
    %6571 = vmatmul.bf16.gmra.mxu0 %v4905
    %v6572 = vpop.f32.mrf.mxu0
    %v6573 = vadd.f32 0.0, %v6572
    %v6574 = vpop.f32.mrf.mxu0
    %v6575 = vadd.f32 0.0, %v6574
    %6576 = vmatmul.bf16.gmra.mxu0 %v4908
    %v6577 = vpop.f32.mrf.mxu0
    %v6578 = vadd.f32 0.0, %v6577
    %v6579 = vpop.f32.mrf.mxu0
    %v6580 = vadd.f32 0.0, %v6579
    %6581 = vmatmul.bf16.gmra.mxu0 %v4911
    %v6582 = vpop.f32.mrf.mxu0
    %v6583 = vadd.f32 0.0, %v6582
    %v6584 = vpop.f32.mrf.mxu0
    %v6585 = vadd.f32 0.0, %v6584
    %6586 = vmatmul.bf16.gmra.mxu0 %v5728
    %v6587 = vpop.f32.mrf.mxu0
    %v6588 = vadd.f32 0.0, %v6587
    %v6589 = vpop.f32.mrf.mxu0
    %v6590 = vadd.f32 0.0, %v6589
    %6591 = vmatmul.bf16.gmra.mxu0 %v6500
    %v6592 = vpop.f32.mrf.mxu0
    %v6593 = vadd.f32 0.0, %v6592
    %v6594 = vpop.f32.mrf.mxu0
    %v6595 = vadd.f32 0.0, %v6594
    %6596 = vmatmul.bf16.gmra.mxu0 %v4920
    %v6597 = vpop.f32.mrf.mxu0
    %v6598 = vadd.f32 0.0, %v6597
    %v6599 = vpop.f32.mrf.mxu0
    %v6600 = vadd.f32 0.0, %v6599
    %6601 = vmatmul.bf16.gmra.mxu0 %v4923
    %v6602 = vpop.f32.mrf.mxu0
    %v6603 = vadd.f32 0.0, %v6602
    %v6604 = vpop.f32.mrf.mxu0
    %v6605 = vadd.f32 0.0, %v6604
    %6606 = vmatmul.bf16.gmra.mxu0 %v4926
    %v6607 = vpop.f32.mrf.mxu0
    %v6608 = vadd.f32 0.0, %v6607
    %v6609 = vpop.f32.mrf.mxu0
    %v6610 = vadd.f32 0.0, %v6609
    %6611 = vmatmul.bf16.gmra.mxu0 %v4929
    %v6612 = vpop.f32.mrf.mxu0
    %v6613 = vadd.f32 0.0, %v6612
    %v6614 = vpop.f32.mrf.mxu0
    %v6615 = vadd.f32 0.0, %v6614
    %6616 = vmatmul.bf16.gmra.mxu0 %v4932
    %v6617 = vpop.f32.mrf.mxu0
    %v6618 = vadd.f32 0.0, %v6617
    %v6619 = vpop.f32.mrf.mxu0
    %v6620 = vadd.f32 0.0, %v6619
    %6621 = vmatmul.bf16.gmra.mxu0 %v4935
    %v6622 = vpop.f32.mrf.mxu0
    %v6623 = vadd.f32 0.0, %v6622
    %v6624 = vpop.f32.mrf.mxu0
    %v6625 = vadd.f32 0.0, %v6624
    %6626 = vmatmul.bf16.gmra.mxu0 %v4938
    %v6627 = vpop.f32.mrf.mxu0
    %v6628 = vadd.f32 0.0, %v6627
    %v6629 = vpop.f32.mrf.mxu0
    %v6630 = vadd.f32 0.0, %v6629
    %6631 = vmatmul.bf16.gmra.mxu0 %v4941
    %v6632 = vpop.f32.mrf.mxu0
    %v6633 = vadd.f32 0.0, %v6632
    %v6634 = vpop.f32.mrf.mxu0
    %v6635 = vadd.f32 0.0, %v6634
    %6636 = vmatmul.bf16.gmra.mxu0 %v4944
    %v6637 = vpop.f32.mrf.mxu0
    %v6638 = vadd.f32 0.0, %v6637
    %v6639 = vpop.f32.mrf.mxu0
    %v6640 = vadd.f32 0.0, %v6639
    %6641 = vmatmul.bf16.gmra.mxu0 %v4947
    %v6642 = vpop.f32.mrf.mxu0
    %v6643 = vadd.f32 0.0, %v6642
    %v6644 = vpop.f32.mrf.mxu0
    %v6645 = vadd.f32 0.0, %v6644
    %6646 = vmatmul.bf16.gmra.mxu0 %v4950
    %v6647 = vpop.f32.mrf.mxu0
    %v6648 = vadd.f32 0.0, %v6647
    %v6649 = vpop.f32.mrf.mxu0
    %v6650 = vadd.f32 0.0, %v6649
    %6651 = vmatmul.bf16.gmra.mxu0 %v4953
    %v6652 = vpop.f32.mrf.mxu0
    %v6653 = vadd.f32 0.0, %v6652
    %v6654 = vpop.f32.mrf.mxu0
    %v6655 = vadd.f32 0.0, %v6654
    %6656 = vmatmul.bf16.gmra.mxu0 %v4956
    %v6657 = vpop.f32.mrf.mxu0
    %v6658 = vadd.f32 0.0, %v6657
    %v6659 = vpop.f32.mrf.mxu0
    %v6660 = vadd.f32 0.0, %v6659
    %6661 = vmatmul.bf16.gmra.mxu0 %v4959
    %v6662 = vpop.f32.mrf.mxu0
    %v6663 = vadd.f32 0.0, %v6662
    %v6664 = vpop.f32.mrf.mxu0
    %v6665 = vadd.f32 0.0, %v6664
    %6666 = vmatmul.bf16.gmra.mxu0 %v5731
    %v6667 = vpop.f32.mrf.mxu0
    %v6668 = vadd.f32 0.0, %v6667
    %v6669 = vpop.f32.mrf.mxu0
    %v6670 = vadd.f32 0.0, %v6669
    %6671 = vmatmul.bf16.gmra.mxu0 %v6503
    %v6672 = vpop.f32.mrf.mxu0
    %v6673 = vadd.f32 0.0, %v6672
    %v6674 = vpop.f32.mrf.mxu0
    %v6675 = vadd.f32 0.0, %v6674
    %6676 = vdwg.mxu0
    %v6677 = vadd.f32 %v6431, %v6518
    %v6678 = vadd.f32 %v6432, %v6520
    %v6679 = vadd.f32 %v6433, %v6523
    %v6680 = vadd.f32 %v6434, %v6525
    %v6681 = vadd.f32 %v6435, %v6528
    %v6682 = vadd.f32 %v6436, %v6530
    %v6683 = vadd.f32 %v6437, %v6533
    %v6684 = vadd.f32 %v6438, %v6535
    %v6685 = vadd.f32 %v6439, %v6538
    %v6686 = vadd.f32 %v6440, %v6540
    %v6687 = vadd.f32 %v6441, %v6543
    %v6688 = vadd.f32 %v6442, %v6545
    %v6689 = vadd.f32 %v6443, %v6548
    %v6690 = vadd.f32 %v6444, %v6550
    %v6691 = vadd.f32 %v6445, %v6553
    %v6692 = vadd.f32 %v6446, %v6555
    %v6693 = vadd.f32 %v6447, %v6558
    %v6694 = vadd.f32 %v6448, %v6560
    %v6695 = vadd.f32 %v6449, %v6563
    %v6696 = vadd.f32 %v6450, %v6565
    %v6697 = vadd.f32 %v6451, %v6568
    %v6698 = vadd.f32 %v6452, %v6570
    %v6699 = vadd.f32 %v6453, %v6573
    %v6700 = vadd.f32 %v6454, %v6575
    %v6701 = vadd.f32 %v6455, %v6578
    %v6702 = vadd.f32 %v6456, %v6580
    %v6703 = vadd.f32 %v6457, %v6583
    %v6704 = vadd.f32 %v6458, %v6585
    %v6705 = vadd.f32 %v6459, %v6588
    %v6706 = vadd.f32 %v6460, %v6590
    %v6707 = vadd.f32 %v6461, %v6593
    %v6708 = vadd.f32 %v6462, %v6595
    %v6709 = vadd.f32 %v6463, %v6598
    %v6710 = vadd.f32 %v6464, %v6600
    %v6711 = vadd.f32 %v6465, %v6603
    %v6712 = vadd.f32 %v6466, %v6605
    %v6713 = vadd.f32 %v6467, %v6608
    %v6714 = vadd.f32 %v6468, %v6610
    %v6715 = vadd.f32 %v6469, %v6613
    %v6716 = vadd.f32 %v6470, %v6615
    %v6717 = vadd.f32 %v6471, %v6618
    %v6718 = vadd.f32 %v6472, %v6620
    %v6719 = vadd.f32 %v6473, %v6623
    %v6720 = vadd.f32 %v6474, %v6625
    %v6721 = vadd.f32 %v6475, %v6628
    %v6722 = vadd.f32 %v6476, %v6630
    %v6723 = vadd.f32 %v6477, %v6633
    %v6724 = vadd.f32 %v6478, %v6635
    %v6725 = vadd.f32 %v6479, %v6638
    %v6726 = vadd.f32 %v6480, %v6640
    %v6727 = vadd.f32 %v6481, %v6643
    %v6728 = vadd.f32 %v6482, %v6645
    %v6729 = vadd.f32 %v6483, %v6648
    %v6730 = vadd.f32 %v6484, %v6650
    %v6731 = vadd.f32 %v6485, %v6653
    %v6732 = vadd.f32 %v6486, %v6655
    %v6733 = vadd.f32 %v6487, %v6658
    %v6734 = vadd.f32 %v6488, %v6660
    %v6735 = vadd.f32 %v6489, %v6663
    %v6736 = vadd.f32 %v6490, %v6665
    %v6737 = vadd.f32 %v6491, %v6668
    %v6738 = vadd.f32 %v6492, %v6670
    %v6739 = vadd.f32 %v6493, %v6673
    %v6740 = vadd.f32 %v6494, %v6675
    %v6747 = vrot.slane %v4153, 1
    %v6748 = vrot.slane %v4154, 1
    %v6749 = vsel %vm483, %v6747, %v6748
    %v6750 = vrot.slane %v4155, 1
    %v6751 = vsel %vm483, %v6748, %v6750
    %v6752 = vrot.slane %v4207, 1
    %v6753 = vrot.slane %v4208, 1
    %v6754 = vsel %vm483, %v6752, %v6753
    %v6755 = vrot.slane %v4209, 1
    %v6756 = vsel %vm483, %v6753, %v6755
    %s6761 = scalar_lea.vmem %s4, 28
    %v6762 = vld [vmem:[%s6761] sm:$0xf]
    %v6763 = vpack.c.bf16 %v6751, %v6749
    %v6764 = vpack.c.bf16 %v6756, %v6754
    %v6766 = vsel %vm101, %v6763, 0
    %v6769 = vsel %vm101, %v6764, 0
    %v6772 = vsel %vm838, %v6762, 0
    %6774 = vmatpush.bf16.msra.mxu0 0
    %6775 = vmatpush.bf16.msra.mxu0 0
    %6776 = vmatpush.bf16.msra.mxu0 0
    %6777 = vmatpush.bf16.msra.mxu0 0
    %6778 = vmatpush.bf16.msra.mxu0 0
    %6779 = vmatpush.bf16.msra.mxu0 0
    %6780 = vmatpush.bf16.msra.mxu0 0
    %6781 = vmatpush.bf16.msra.mxu0 %v6772
    %6782 = vmatmul.bf16.gmra.mxu0 %v4604
    %v6783 = vpop.f32.mrf.mxu0
    %v6784 = vadd.f32 0.0, %v6783
    %v6785 = vpop.f32.mrf.mxu0
    %v6786 = vadd.f32 0.0, %v6785
    %6787 = vmatmul.bf16.gmra.mxu0 %v4607
    %v6788 = vpop.f32.mrf.mxu0
    %v6789 = vadd.f32 0.0, %v6788
    %v6790 = vpop.f32.mrf.mxu0
    %v6791 = vadd.f32 0.0, %v6790
    %6792 = vmatmul.bf16.gmra.mxu0 %v4610
    %v6793 = vpop.f32.mrf.mxu0
    %v6794 = vadd.f32 0.0, %v6793
    %v6795 = vpop.f32.mrf.mxu0
    %v6796 = vadd.f32 0.0, %v6795
    %6797 = vmatmul.bf16.gmra.mxu0 %v4613
    %v6798 = vpop.f32.mrf.mxu0
    %v6799 = vadd.f32 0.0, %v6798
    %v6800 = vpop.f32.mrf.mxu0
    %v6801 = vadd.f32 0.0, %v6800
    %6802 = vmatmul.bf16.gmra.mxu0 %v4616
    %v6803 = vpop.f32.mrf.mxu0
    %v6804 = vadd.f32 0.0, %v6803
    %v6805 = vpop.f32.mrf.mxu0
    %v6806 = vadd.f32 0.0, %v6805
    %6807 = vmatmul.bf16.gmra.mxu0 %v4619
    %v6808 = vpop.f32.mrf.mxu0
    %v6809 = vadd.f32 0.0, %v6808
    %v6810 = vpop.f32.mrf.mxu0
    %v6811 = vadd.f32 0.0, %v6810
    %6812 = vmatmul.bf16.gmra.mxu0 %v4622
    %v6813 = vpop.f32.mrf.mxu0
    %v6814 = vadd.f32 0.0, %v6813
    %v6815 = vpop.f32.mrf.mxu0
    %v6816 = vadd.f32 0.0, %v6815
    %6817 = vmatmul.bf16.gmra.mxu0 %v4625
    %v6818 = vpop.f32.mrf.mxu0
    %v6819 = vadd.f32 0.0, %v6818
    %v6820 = vpop.f32.mrf.mxu0
    %v6821 = vadd.f32 0.0, %v6820
    %6822 = vmatmul.bf16.gmra.mxu0 %v4628
    %v6823 = vpop.f32.mrf.mxu0
    %v6824 = vadd.f32 0.0, %v6823
    %v6825 = vpop.f32.mrf.mxu0
    %v6826 = vadd.f32 0.0, %v6825
    %6827 = vmatmul.bf16.gmra.mxu0 %v4631
    %v6828 = vpop.f32.mrf.mxu0
    %v6829 = vadd.f32 0.0, %v6828
    %v6830 = vpop.f32.mrf.mxu0
    %v6831 = vadd.f32 0.0, %v6830
    %6832 = vmatmul.bf16.gmra.mxu0 %v4634
    %v6833 = vpop.f32.mrf.mxu0
    %v6834 = vadd.f32 0.0, %v6833
    %v6835 = vpop.f32.mrf.mxu0
    %v6836 = vadd.f32 0.0, %v6835
    %6837 = vmatmul.bf16.gmra.mxu0 %v4637
    %v6838 = vpop.f32.mrf.mxu0
    %v6839 = vadd.f32 0.0, %v6838
    %v6840 = vpop.f32.mrf.mxu0
    %v6841 = vadd.f32 0.0, %v6840
    %6842 = vmatmul.bf16.gmra.mxu0 %v4640
    %v6843 = vpop.f32.mrf.mxu0
    %v6844 = vadd.f32 0.0, %v6843
    %v6845 = vpop.f32.mrf.mxu0
    %v6846 = vadd.f32 0.0, %v6845
    %6847 = vmatmul.bf16.gmra.mxu0 %v4643
    %v6848 = vpop.f32.mrf.mxu0
    %v6849 = vadd.f32 0.0, %v6848
    %v6850 = vpop.f32.mrf.mxu0
    %v6851 = vadd.f32 0.0, %v6850
    %6852 = vmatmul.bf16.gmra.mxu0 %v5994
    %v6853 = vpop.f32.mrf.mxu0
    %v6854 = vadd.f32 0.0, %v6853
    %v6855 = vpop.f32.mrf.mxu0
    %v6856 = vadd.f32 0.0, %v6855
    %6857 = vmatmul.bf16.gmra.mxu0 %v6766
    %v6858 = vpop.f32.mrf.mxu0
    %v6859 = vadd.f32 0.0, %v6858
    %v6860 = vpop.f32.mrf.mxu0
    %v6861 = vadd.f32 0.0, %v6860
    %6862 = vmatmul.bf16.gmra.mxu0 %v4652
    %v6863 = vpop.f32.mrf.mxu0
    %v6864 = vadd.f32 0.0, %v6863
    %v6865 = vpop.f32.mrf.mxu0
    %v6866 = vadd.f32 0.0, %v6865
    %6867 = vmatmul.bf16.gmra.mxu0 %v4655
    %v6868 = vpop.f32.mrf.mxu0
    %v6869 = vadd.f32 0.0, %v6868
    %v6870 = vpop.f32.mrf.mxu0
    %v6871 = vadd.f32 0.0, %v6870
    %6872 = vmatmul.bf16.gmra.mxu0 %v4658
    %v6873 = vpop.f32.mrf.mxu0
    %v6874 = vadd.f32 0.0, %v6873
    %v6875 = vpop.f32.mrf.mxu0
    %v6876 = vadd.f32 0.0, %v6875
    %6877 = vmatmul.bf16.gmra.mxu0 %v4661
    %v6878 = vpop.f32.mrf.mxu0
    %v6879 = vadd.f32 0.0, %v6878
    %v6880 = vpop.f32.mrf.mxu0
    %v6881 = vadd.f32 0.0, %v6880
    %6882 = vmatmul.bf16.gmra.mxu0 %v4664
    %v6883 = vpop.f32.mrf.mxu0
    %v6884 = vadd.f32 0.0, %v6883
    %v6885 = vpop.f32.mrf.mxu0
    %v6886 = vadd.f32 0.0, %v6885
    %6887 = vmatmul.bf16.gmra.mxu0 %v4667
    %v6888 = vpop.f32.mrf.mxu0
    %v6889 = vadd.f32 0.0, %v6888
    %v6890 = vpop.f32.mrf.mxu0
    %v6891 = vadd.f32 0.0, %v6890
    %6892 = vmatmul.bf16.gmra.mxu0 %v4670
    %v6893 = vpop.f32.mrf.mxu0
    %v6894 = vadd.f32 0.0, %v6893
    %v6895 = vpop.f32.mrf.mxu0
    %v6896 = vadd.f32 0.0, %v6895
    %6897 = vmatmul.bf16.gmra.mxu0 %v4673
    %v6898 = vpop.f32.mrf.mxu0
    %v6899 = vadd.f32 0.0, %v6898
    %v6900 = vpop.f32.mrf.mxu0
    %v6901 = vadd.f32 0.0, %v6900
    %6902 = vmatmul.bf16.gmra.mxu0 %v4676
    %v6903 = vpop.f32.mrf.mxu0
    %v6904 = vadd.f32 0.0, %v6903
    %v6905 = vpop.f32.mrf.mxu0
    %v6906 = vadd.f32 0.0, %v6905
    %6907 = vmatmul.bf16.gmra.mxu0 %v4679
    %v6908 = vpop.f32.mrf.mxu0
    %v6909 = vadd.f32 0.0, %v6908
    %v6910 = vpop.f32.mrf.mxu0
    %v6911 = vadd.f32 0.0, %v6910
    %6912 = vmatmul.bf16.gmra.mxu0 %v4682
    %v6913 = vpop.f32.mrf.mxu0
    %v6914 = vadd.f32 0.0, %v6913
    %v6915 = vpop.f32.mrf.mxu0
    %v6916 = vadd.f32 0.0, %v6915
    %6917 = vmatmul.bf16.gmra.mxu0 %v4685
    %v6918 = vpop.f32.mrf.mxu0
    %v6919 = vadd.f32 0.0, %v6918
    %v6920 = vpop.f32.mrf.mxu0
    %v6921 = vadd.f32 0.0, %v6920
    %6922 = vmatmul.bf16.gmra.mxu0 %v4688
    %v6923 = vpop.f32.mrf.mxu0
    %v6924 = vadd.f32 0.0, %v6923
    %v6925 = vpop.f32.mrf.mxu0
    %v6926 = vadd.f32 0.0, %v6925
    %6927 = vmatmul.bf16.gmra.mxu0 %v4691
    %v6928 = vpop.f32.mrf.mxu0
    %v6929 = vadd.f32 0.0, %v6928
    %v6930 = vpop.f32.mrf.mxu0
    %v6931 = vadd.f32 0.0, %v6930
    %6932 = vmatmul.bf16.gmra.mxu0 %v5997
    %v6933 = vpop.f32.mrf.mxu0
    %v6934 = vadd.f32 0.0, %v6933
    %v6935 = vpop.f32.mrf.mxu0
    %v6936 = vadd.f32 0.0, %v6935
    %6937 = vmatmul.bf16.gmra.mxu0 %v6769
    %v6938 = vpop.f32.mrf.mxu0
    %v6939 = vadd.f32 0.0, %v6938
    %v6940 = vpop.f32.mrf.mxu0
    %v6941 = vadd.f32 0.0, %v6940
    %6942 = vdwg.mxu0
    %v6943 = vadd.f32 %v6677, %v6784
    %v6944 = vadd.f32 %v6678, %v6786
    %v6945 = vadd.f32 %v6679, %v6789
    %v6946 = vadd.f32 %v6680, %v6791
    %v6947 = vadd.f32 %v6681, %v6794
    %v6948 = vadd.f32 %v6682, %v6796
    %v6949 = vadd.f32 %v6683, %v6799
    %v6950 = vadd.f32 %v6684, %v6801
    %v6951 = vadd.f32 %v6685, %v6804
    %v6952 = vadd.f32 %v6686, %v6806
    %v6953 = vadd.f32 %v6687, %v6809
    %v6954 = vadd.f32 %v6688, %v6811
    %v6955 = vadd.f32 %v6689, %v6814
    %v6956 = vadd.f32 %v6690, %v6816
    %v6957 = vadd.f32 %v6691, %v6819
    %v6958 = vadd.f32 %v6692, %v6821
    %v6959 = vadd.f32 %v6693, %v6824
    %v6960 = vadd.f32 %v6694, %v6826
    %v6961 = vadd.f32 %v6695, %v6829
    %v6962 = vadd.f32 %v6696, %v6831
    %v6963 = vadd.f32 %v6697, %v6834
    %v6964 = vadd.f32 %v6698, %v6836
    %v6965 = vadd.f32 %v6699, %v6839
    %v6966 = vadd.f32 %v6700, %v6841
    %v6967 = vadd.f32 %v6701, %v6844
    %v6968 = vadd.f32 %v6702, %v6846
    %v6969 = vadd.f32 %v6703, %v6849
    %v6970 = vadd.f32 %v6704, %v6851
    %v6971 = vadd.f32 %v6705, %v6854
    %v6972 = vadd.f32 %v6706, %v6856
    %v6973 = vadd.f32 %v6707, %v6859
    %v6974 = vadd.f32 %v6708, %v6861
    %v6975 = vadd.f32 %v6709, %v6864
    %v6976 = vadd.f32 %v6710, %v6866
    %v6977 = vadd.f32 %v6711, %v6869
    %v6978 = vadd.f32 %v6712, %v6871
    %v6979 = vadd.f32 %v6713, %v6874
    %v6980 = vadd.f32 %v6714, %v6876
    %v6981 = vadd.f32 %v6715, %v6879
    %v6982 = vadd.f32 %v6716, %v6881
    %v6983 = vadd.f32 %v6717, %v6884
    %v6984 = vadd.f32 %v6718, %v6886
    %v6985 = vadd.f32 %v6719, %v6889
    %v6986 = vadd.f32 %v6720, %v6891
    %v6987 = vadd.f32 %v6721, %v6894
    %v6988 = vadd.f32 %v6722, %v6896
    %v6989 = vadd.f32 %v6723, %v6899
    %v6990 = vadd.f32 %v6724, %v6901
    %v6991 = vadd.f32 %v6725, %v6904
    %v6992 = vadd.f32 %v6726, %v6906
    %v6993 = vadd.f32 %v6727, %v6909
    %v6994 = vadd.f32 %v6728, %v6911
    %v6995 = vadd.f32 %v6729, %v6914
    %v6996 = vadd.f32 %v6730, %v6916
    %v6997 = vadd.f32 %v6731, %v6919
    %v6998 = vadd.f32 %v6732, %v6921
    %v6999 = vadd.f32 %v6733, %v6924
    %v7000 = vadd.f32 %v6734, %v6926
    %v7001 = vadd.f32 %v6735, %v6929
    %v7002 = vadd.f32 %v6736, %v6931
    %v7003 = vadd.f32 %v6737, %v6934
    %v7004 = vadd.f32 %v6738, %v6936
    %v7005 = vadd.f32 %v6739, %v6939
    %v7006 = vadd.f32 %v6740, %v6941
    %v7007 = vrot.slane %v4153, 2
    %v7008 = vrot.slane %v4154, 2
    %v7009 = vsel %vm1279, %v7007, %v7008
    %v7010 = vrot.slane %v4155, 2
    %v7011 = vsel %vm1279, %v7008, %v7010
    %v7012 = vrot.slane %v4207, 2
    %v7013 = vrot.slane %v4208, 2
    %v7014 = vsel %vm1279, %v7012, %v7013
    %v7015 = vrot.slane %v4209, 2
    %v7016 = vsel %vm1279, %v7013, %v7015
    %s7021 = scalar_lea.vmem %s4, 32
    %v7022 = vld [vmem:[%s7021] sm:$0xf]
    %v7023 = vpack.c.bf16 %v7011, %v7009
    %v7024 = vpack.c.bf16 %v7016, %v7014
    %v7026 = vsel %vm101, %v7023, 0
    %v7029 = vsel %vm101, %v7024, 0
    %v7032 = vsel %vm838, %v7022, 0
    %7034 = vmatpush.bf16.msra.mxu0 0
    %7035 = vmatpush.bf16.msra.mxu0 0
    %7036 = vmatpush.bf16.msra.mxu0 0
    %7037 = vmatpush.bf16.msra.mxu0 0
    %7038 = vmatpush.bf16.msra.mxu0 0
    %7039 = vmatpush.bf16.msra.mxu0 0
    %7040 = vmatpush.bf16.msra.mxu0 0
    %7041 = vmatpush.bf16.msra.mxu0 %v7032
    %7042 = vmatmul.bf16.gmra.mxu0 %v5398
    %v7043 = vpop.f32.mrf.mxu0
    %v7044 = vadd.f32 0.0, %v7043
    %v7045 = vpop.f32.mrf.mxu0
    %v7046 = vadd.f32 0.0, %v7045
    %7047 = vmatmul.bf16.gmra.mxu0 %v5401
    %v7048 = vpop.f32.mrf.mxu0
    %v7049 = vadd.f32 0.0, %v7048
    %v7050 = vpop.f32.mrf.mxu0
    %v7051 = vadd.f32 0.0, %v7050
    %7052 = vmatmul.bf16.gmra.mxu0 %v5404
    %v7053 = vpop.f32.mrf.mxu0
    %v7054 = vadd.f32 0.0, %v7053
    %v7055 = vpop.f32.mrf.mxu0
    %v7056 = vadd.f32 0.0, %v7055
    %7057 = vmatmul.bf16.gmra.mxu0 %v5407
    %v7058 = vpop.f32.mrf.mxu0
    %v7059 = vadd.f32 0.0, %v7058
    %v7060 = vpop.f32.mrf.mxu0
    %v7061 = vadd.f32 0.0, %v7060
    %7062 = vmatmul.bf16.gmra.mxu0 %v5410
    %v7063 = vpop.f32.mrf.mxu0
    %v7064 = vadd.f32 0.0, %v7063
    %v7065 = vpop.f32.mrf.mxu0
    %v7066 = vadd.f32 0.0, %v7065
    %7067 = vmatmul.bf16.gmra.mxu0 %v5413
    %v7068 = vpop.f32.mrf.mxu0
    %v7069 = vadd.f32 0.0, %v7068
    %v7070 = vpop.f32.mrf.mxu0
    %v7071 = vadd.f32 0.0, %v7070
    %7072 = vmatmul.bf16.gmra.mxu0 %v5416
    %v7073 = vpop.f32.mrf.mxu0
    %v7074 = vadd.f32 0.0, %v7073
    %v7075 = vpop.f32.mrf.mxu0
    %v7076 = vadd.f32 0.0, %v7075
    %7077 = vmatmul.bf16.gmra.mxu0 %v5419
    %v7078 = vpop.f32.mrf.mxu0
    %v7079 = vadd.f32 0.0, %v7078
    %v7080 = vpop.f32.mrf.mxu0
    %v7081 = vadd.f32 0.0, %v7080
    %7082 = vmatmul.bf16.gmra.mxu0 %v5422
    %v7083 = vpop.f32.mrf.mxu0
    %v7084 = vadd.f32 0.0, %v7083
    %v7085 = vpop.f32.mrf.mxu0
    %v7086 = vadd.f32 0.0, %v7085
    %7087 = vmatmul.bf16.gmra.mxu0 %v5425
    %v7088 = vpop.f32.mrf.mxu0
    %v7089 = vadd.f32 0.0, %v7088
    %v7090 = vpop.f32.mrf.mxu0
    %v7091 = vadd.f32 0.0, %v7090
    %7092 = vmatmul.bf16.gmra.mxu0 %v5428
    %v7093 = vpop.f32.mrf.mxu0
    %v7094 = vadd.f32 0.0, %v7093
    %v7095 = vpop.f32.mrf.mxu0
    %v7096 = vadd.f32 0.0, %v7095
    %7097 = vmatmul.bf16.gmra.mxu0 %v5431
    %v7098 = vpop.f32.mrf.mxu0
    %v7099 = vadd.f32 0.0, %v7098
    %v7100 = vpop.f32.mrf.mxu0
    %v7101 = vadd.f32 0.0, %v7100
    %7102 = vmatmul.bf16.gmra.mxu0 %v5434
    %v7103 = vpop.f32.mrf.mxu0
    %v7104 = vadd.f32 0.0, %v7103
    %v7105 = vpop.f32.mrf.mxu0
    %v7106 = vadd.f32 0.0, %v7105
    %7107 = vmatmul.bf16.gmra.mxu0 %v5437
    %v7108 = vpop.f32.mrf.mxu0
    %v7109 = vadd.f32 0.0, %v7108
    %v7110 = vpop.f32.mrf.mxu0
    %v7111 = vadd.f32 0.0, %v7110
    %7112 = vmatmul.bf16.gmra.mxu0 %v6254
    %v7113 = vpop.f32.mrf.mxu0
    %v7114 = vadd.f32 0.0, %v7113
    %v7115 = vpop.f32.mrf.mxu0
    %v7116 = vadd.f32 0.0, %v7115
    %7117 = vmatmul.bf16.gmra.mxu0 %v7026
    %v7118 = vpop.f32.mrf.mxu0
    %v7119 = vadd.f32 0.0, %v7118
    %v7120 = vpop.f32.mrf.mxu0
    %v7121 = vadd.f32 0.0, %v7120
    %7122 = vmatmul.bf16.gmra.mxu0 %v5446
    %v7123 = vpop.f32.mrf.mxu0
    %v7124 = vadd.f32 0.0, %v7123
    %v7125 = vpop.f32.mrf.mxu0
    %v7126 = vadd.f32 0.0, %v7125
    %7127 = vmatmul.bf16.gmra.mxu0 %v5449
    %v7128 = vpop.f32.mrf.mxu0
    %v7129 = vadd.f32 0.0, %v7128
    %v7130 = vpop.f32.mrf.mxu0
    %v7131 = vadd.f32 0.0, %v7130
    %7132 = vmatmul.bf16.gmra.mxu0 %v5452
    %v7133 = vpop.f32.mrf.mxu0
    %v7134 = vadd.f32 0.0, %v7133
    %v7135 = vpop.f32.mrf.mxu0
    %v7136 = vadd.f32 0.0, %v7135
    %7137 = vmatmul.bf16.gmra.mxu0 %v5455
    %v7138 = vpop.f32.mrf.mxu0
    %v7139 = vadd.f32 0.0, %v7138
    %v7140 = vpop.f32.mrf.mxu0
    %v7141 = vadd.f32 0.0, %v7140
    %7142 = vmatmul.bf16.gmra.mxu0 %v5458
    %v7143 = vpop.f32.mrf.mxu0
    %v7144 = vadd.f32 0.0, %v7143
    %v7145 = vpop.f32.mrf.mxu0
    %v7146 = vadd.f32 0.0, %v7145
    %7147 = vmatmul.bf16.gmra.mxu0 %v5461
    %v7148 = vpop.f32.mrf.mxu0
    %v7149 = vadd.f32 0.0, %v7148
    %v7150 = vpop.f32.mrf.mxu0
    %v7151 = vadd.f32 0.0, %v7150
    %7152 = vmatmul.bf16.gmra.mxu0 %v5464
    %v7153 = vpop.f32.mrf.mxu0
    %v7154 = vadd.f32 0.0, %v7153
    %v7155 = vpop.f32.mrf.mxu0
    %v7156 = vadd.f32 0.0, %v7155
    %7157 = vmatmul.bf16.gmra.mxu0 %v5467
    %v7158 = vpop.f32.mrf.mxu0
    %v7159 = vadd.f32 0.0, %v7158
    %v7160 = vpop.f32.mrf.mxu0
    %v7161 = vadd.f32 0.0, %v7160
    %7162 = vmatmul.bf16.gmra.mxu0 %v5470
    %v7163 = vpop.f32.mrf.mxu0
    %v7164 = vadd.f32 0.0, %v7163
    %v7165 = vpop.f32.mrf.mxu0
    %v7166 = vadd.f32 0.0, %v7165
    %7167 = vmatmul.bf16.gmra.mxu0 %v5473
    %v7168 = vpop.f32.mrf.mxu0
    %v7169 = vadd.f32 0.0, %v7168
    %v7170 = vpop.f32.mrf.mxu0
    %v7171 = vadd.f32 0.0, %v7170
    %7172 = vmatmul.bf16.gmra.mxu0 %v5476
    %v7173 = vpop.f32.mrf.mxu0
    %v7174 = vadd.f32 0.0, %v7173
    %v7175 = vpop.f32.mrf.mxu0
    %v7176 = vadd.f32 0.0, %v7175
    %7177 = vmatmul.bf16.gmra.mxu0 %v5479
    %v7178 = vpop.f32.mrf.mxu0
    %v7179 = vadd.f32 0.0, %v7178
    %v7180 = vpop.f32.mrf.mxu0
    %v7181 = vadd.f32 0.0, %v7180
    %7182 = vmatmul.bf16.gmra.mxu0 %v5482
    %v7183 = vpop.f32.mrf.mxu0
    %v7184 = vadd.f32 0.0, %v7183
    %v7185 = vpop.f32.mrf.mxu0
    %v7186 = vadd.f32 0.0, %v7185
    %7187 = vmatmul.bf16.gmra.mxu0 %v5485
    %v7188 = vpop.f32.mrf.mxu0
    %v7189 = vadd.f32 0.0, %v7188
    %v7190 = vpop.f32.mrf.mxu0
    %v7191 = vadd.f32 0.0, %v7190
    %7192 = vmatmul.bf16.gmra.mxu0 %v6257
    %v7193 = vpop.f32.mrf.mxu0
    %v7194 = vadd.f32 0.0, %v7193
    %v7195 = vpop.f32.mrf.mxu0
    %v7196 = vadd.f32 0.0, %v7195
    %7197 = vmatmul.bf16.gmra.mxu0 %v7029
    %v7198 = vpop.f32.mrf.mxu0
    %v7199 = vadd.f32 0.0, %v7198
    %v7200 = vpop.f32.mrf.mxu0
    %v7201 = vadd.f32 0.0, %v7200
    %7202 = vdwg.mxu0
    %v7203 = vadd.f32 %v6943, %v7044
    %v7204 = vadd.f32 %v6944, %v7046
    %v7205 = vadd.f32 %v6945, %v7049
    %v7206 = vadd.f32 %v6946, %v7051
    %v7207 = vadd.f32 %v6947, %v7054
    %v7208 = vadd.f32 %v6948, %v7056
    %v7209 = vadd.f32 %v6949, %v7059
    %v7210 = vadd.f32 %v6950, %v7061
    %v7211 = vadd.f32 %v6951, %v7064
    %v7212 = vadd.f32 %v6952, %v7066
    %v7213 = vadd.f32 %v6953, %v7069
    %v7214 = vadd.f32 %v6954, %v7071
    %v7215 = vadd.f32 %v6955, %v7074
    %v7216 = vadd.f32 %v6956, %v7076
    %v7217 = vadd.f32 %v6957, %v7079
    %v7218 = vadd.f32 %v6958, %v7081
    %v7219 = vadd.f32 %v6959, %v7084
    %v7220 = vadd.f32 %v6960, %v7086
    %v7221 = vadd.f32 %v6961, %v7089
    %v7222 = vadd.f32 %v6962, %v7091
    %v7223 = vadd.f32 %v6963, %v7094
    %v7224 = vadd.f32 %v6964, %v7096
    %v7225 = vadd.f32 %v6965, %v7099
    %v7226 = vadd.f32 %v6966, %v7101
    %v7227 = vadd.f32 %v6967, %v7104
    %v7228 = vadd.f32 %v6968, %v7106
    %v7229 = vadd.f32 %v6969, %v7109
    %v7230 = vadd.f32 %v6970, %v7111
    %v7231 = vadd.f32 %v6971, %v7114
    %v7232 = vadd.f32 %v6972, %v7116
    %v7233 = vadd.f32 %v6973, %v7119
    %v7234 = vadd.f32 %v6974, %v7121
    %v7235 = vadd.f32 %v6975, %v7124
    %v7236 = vadd.f32 %v6976, %v7126
    %v7237 = vadd.f32 %v6977, %v7129
    %v7238 = vadd.f32 %v6978, %v7131
    %v7239 = vadd.f32 %v6979, %v7134
    %v7240 = vadd.f32 %v6980, %v7136
    %v7241 = vadd.f32 %v6981, %v7139
    %v7242 = vadd.f32 %v6982, %v7141
    %v7243 = vadd.f32 %v6983, %v7144
    %v7244 = vadd.f32 %v6984, %v7146
    %v7245 = vadd.f32 %v6985, %v7149
    %v7246 = vadd.f32 %v6986, %v7151
    %v7247 = vadd.f32 %v6987, %v7154
    %v7248 = vadd.f32 %v6988, %v7156
    %v7249 = vadd.f32 %v6989, %v7159
    %v7250 = vadd.f32 %v6990, %v7161
    %v7251 = vadd.f32 %v6991, %v7164
    %v7252 = vadd.f32 %v6992, %v7166
    %v7253 = vadd.f32 %v6993, %v7169
    %v7254 = vadd.f32 %v6994, %v7171
    %v7255 = vadd.f32 %v6995, %v7174
    %v7256 = vadd.f32 %v6996, %v7176
    %v7257 = vadd.f32 %v6997, %v7179
    %v7258 = vadd.f32 %v6998, %v7181
    %v7259 = vadd.f32 %v6999, %v7184
    %v7260 = vadd.f32 %v7000, %v7186
    %v7261 = vadd.f32 %v7001, %v7189
    %v7262 = vadd.f32 %v7002, %v7191
    %v7263 = vadd.f32 %v7003, %v7194
    %v7264 = vadd.f32 %v7004, %v7196
    %v7265 = vadd.f32 %v7005, %v7199
    %v7266 = vadd.f32 %v7006, %v7201
    %v7267 = vld [vmem:[%s5] sm:$0x1]
    %v7268 = vld [vmem:[%s6] sm:$0x1]
    %v7269 = vadd.f32 %v7203, %v7204
    %v7270 = vadd.f32 %v7269, %v7205
    %v7271 = vadd.f32 %v7270, %v7206
    %v7272 = vadd.f32 %v7271, %v7207
    %v7273 = vadd.f32 %v7272, %v7208
    %v7274 = vadd.f32 %v7273, %v7209
    %v7275 = vadd.f32 %v7274, %v7210
    %v7276 = vadd.f32 %v7275, %v7211
    %v7277 = vadd.f32 %v7276, %v7212
    %v7278 = vadd.f32 %v7277, %v7213
    %v7279 = vadd.f32 %v7278, %v7214
    %v7280 = vadd.f32 %v7279, %v7215
    %v7281 = vadd.f32 %v7280, %v7216
    %v7282 = vadd.f32 %v7281, %v7217
    %v7283 = vadd.f32 %v7282, %v7218
    %v7284 = vadd.f32 %v7283, %v7219
    %v7285 = vadd.f32 %v7284, %v7220
    %v7286 = vadd.f32 %v7285, %v7221
    %v7287 = vadd.f32 %v7286, %v7222
    %v7288 = vadd.f32 %v7287, %v7223
    %v7289 = vadd.f32 %v7288, %v7224
    %v7290 = vadd.f32 %v7289, %v7225
    %v7291 = vadd.f32 %v7290, %v7226
    %v7292 = vadd.f32 %v7291, %v7227
    %v7293 = vadd.f32 %v7292, %v7228
    %v7294 = vadd.f32 %v7293, %v7229
    %v7295 = vadd.f32 %v7294, %v7230
    %v7296 = vadd.f32 %v7295, %v7231
    %v7297 = vadd.f32 %v7296, %v7232
    %v7298 = vadd.f32 %v7297, %v7233
    %v7299 = vadd.f32 %v7298, %v7234
    %v7300 = vadd.f32 %v7299, %v7235
    %v7301 = vadd.f32 %v7300, %v7236
    %v7302 = vadd.f32 %v7301, %v7237
    %v7303 = vadd.f32 %v7302, %v7238
    %v7304 = vadd.f32 %v7303, %v7239
    %v7305 = vadd.f32 %v7304, %v7240
    %v7306 = vadd.f32 %v7305, %v7241
    %v7307 = vadd.f32 %v7306, %v7242
    %v7308 = vadd.f32 %v7307, %v7243
    %v7309 = vadd.f32 %v7308, %v7244
    %v7310 = vadd.f32 %v7309, %v7245
    %v7311 = vadd.f32 %v7310, %v7246
    %v7312 = vadd.f32 %v7311, %v7247
    %v7313 = vadd.f32 %v7312, %v7248
    %v7314 = vadd.f32 %v7313, %v7249
    %v7315 = vadd.f32 %v7314, %v7250
    %v7316 = vadd.f32 %v7315, %v7251
    %v7317 = vadd.f32 %v7316, %v7252
    %v7318 = vadd.f32 %v7317, %v7253
    %v7319 = vadd.f32 %v7318, %v7254
    %v7320 = vadd.f32 %v7319, %v7255
    %v7321 = vadd.f32 %v7320, %v7256
    %v7322 = vadd.f32 %v7321, %v7257
    %v7323 = vadd.f32 %v7322, %v7258
    %v7324 = vadd.f32 %v7323, %v7259
    %v7325 = vadd.f32 %v7324, %v7260
    %v7326 = vadd.f32 %v7325, %v7261
    %v7327 = vadd.f32 %v7326, %v7262
    %v7328 = vadd.f32 %v7327, %v7263
    %v7329 = vadd.f32 %v7328, %v7264
    %v7330 = vadd.f32 %v7329, %v7265
    %v7331 = vadd.f32 %v7330, %v7266
    %v7332 = vrot.slane %v7331, 4
    %v7333 = vadd.f32 %v7331, %v7332
    %v7334 = vrot.slane %v7333, 2
    %v7335 = vadd.f32 %v7333, %v7334
    %v7336 = vrot.slane %v7335, 1
    %v7337 = vadd.f32 %v7335, %v7336
    %v7338 = vmul.f32 %v7337, 0.001953125
    %v7339 = vmul.f32 %v7203, %v7203
    %v7340 = vmul.f32 %v7204, %v7204
    %v7341 = vmul.f32 %v7205, %v7205
    %v7342 = vmul.f32 %v7206, %v7206
    %v7343 = vmul.f32 %v7207, %v7207
    %v7344 = vmul.f32 %v7208, %v7208
    %v7345 = vmul.f32 %v7209, %v7209
    %v7346 = vmul.f32 %v7210, %v7210
    %v7347 = vmul.f32 %v7211, %v7211
    %v7348 = vmul.f32 %v7212, %v7212
    %v7349 = vmul.f32 %v7213, %v7213
    %v7350 = vmul.f32 %v7214, %v7214
    %v7351 = vmul.f32 %v7215, %v7215
    %v7352 = vmul.f32 %v7216, %v7216
    %v7353 = vmul.f32 %v7217, %v7217
    %v7354 = vmul.f32 %v7218, %v7218
    %v7355 = vmul.f32 %v7219, %v7219
    %v7356 = vmul.f32 %v7220, %v7220
    %v7357 = vmul.f32 %v7221, %v7221
    %v7358 = vmul.f32 %v7222, %v7222
    %v7359 = vmul.f32 %v7223, %v7223
    %v7360 = vmul.f32 %v7224, %v7224
    %v7361 = vmul.f32 %v7225, %v7225
    %v7362 = vmul.f32 %v7226, %v7226
    %v7363 = vmul.f32 %v7227, %v7227
    %v7364 = vmul.f32 %v7228, %v7228
    %v7365 = vmul.f32 %v7229, %v7229
    %v7366 = vmul.f32 %v7230, %v7230
    %v7367 = vmul.f32 %v7231, %v7231
    %v7368 = vmul.f32 %v7232, %v7232
    %v7369 = vmul.f32 %v7233, %v7233
    %v7370 = vmul.f32 %v7234, %v7234
    %v7371 = vmul.f32 %v7235, %v7235
    %v7372 = vmul.f32 %v7236, %v7236
    %v7373 = vmul.f32 %v7237, %v7237
    %v7374 = vmul.f32 %v7238, %v7238
    %v7375 = vmul.f32 %v7239, %v7239
    %v7376 = vmul.f32 %v7240, %v7240
    %v7377 = vmul.f32 %v7241, %v7241
    %v7378 = vmul.f32 %v7242, %v7242
    %v7379 = vmul.f32 %v7243, %v7243
    %v7380 = vmul.f32 %v7244, %v7244
    %v7381 = vmul.f32 %v7245, %v7245
    %v7382 = vmul.f32 %v7246, %v7246
    %v7383 = vmul.f32 %v7247, %v7247
    %v7384 = vmul.f32 %v7248, %v7248
    %v7385 = vmul.f32 %v7249, %v7249
    %v7386 = vmul.f32 %v7250, %v7250
    %v7387 = vmul.f32 %v7251, %v7251
    %v7388 = vmul.f32 %v7252, %v7252
    %v7389 = vmul.f32 %v7253, %v7253
    %v7390 = vmul.f32 %v7254, %v7254
    %v7391 = vmul.f32 %v7255, %v7255
    %v7392 = vmul.f32 %v7256, %v7256
    %v7393 = vmul.f32 %v7257, %v7257
    %v7394 = vmul.f32 %v7258, %v7258
    %v7395 = vmul.f32 %v7259, %v7259
    %v7396 = vmul.f32 %v7260, %v7260
    %v7397 = vmul.f32 %v7261, %v7261
    %v7398 = vmul.f32 %v7262, %v7262
    %v7399 = vmul.f32 %v7263, %v7263
    %v7400 = vmul.f32 %v7264, %v7264
    %v7401 = vmul.f32 %v7265, %v7265
    %v7402 = vmul.f32 %v7266, %v7266
    %v7403 = vadd.f32 %v7339, %v7340
    %v7404 = vadd.f32 %v7403, %v7341
    %v7405 = vadd.f32 %v7404, %v7342
    %v7406 = vadd.f32 %v7405, %v7343
    %v7407 = vadd.f32 %v7406, %v7344
    %v7408 = vadd.f32 %v7407, %v7345
    %v7409 = vadd.f32 %v7408, %v7346
    %v7410 = vadd.f32 %v7409, %v7347
    %v7411 = vadd.f32 %v7410, %v7348
    %v7412 = vadd.f32 %v7411, %v7349
    %v7413 = vadd.f32 %v7412, %v7350
    %v7414 = vadd.f32 %v7413, %v7351
    %v7415 = vadd.f32 %v7414, %v7352
    %v7416 = vadd.f32 %v7415, %v7353
    %v7417 = vadd.f32 %v7416, %v7354
    %v7418 = vadd.f32 %v7417, %v7355
    %v7419 = vadd.f32 %v7418, %v7356
    %v7420 = vadd.f32 %v7419, %v7357
    %v7421 = vadd.f32 %v7420, %v7358
    %v7422 = vadd.f32 %v7421, %v7359
    %v7423 = vadd.f32 %v7422, %v7360
    %v7424 = vadd.f32 %v7423, %v7361
    %v7425 = vadd.f32 %v7424, %v7362
    %v7426 = vadd.f32 %v7425, %v7363
    %v7427 = vadd.f32 %v7426, %v7364
    %v7428 = vadd.f32 %v7427, %v7365
    %v7429 = vadd.f32 %v7428, %v7366
    %v7430 = vadd.f32 %v7429, %v7367
    %v7431 = vadd.f32 %v7430, %v7368
    %v7432 = vadd.f32 %v7431, %v7369
    %v7433 = vadd.f32 %v7432, %v7370
    %v7434 = vadd.f32 %v7433, %v7371
    %v7435 = vadd.f32 %v7434, %v7372
    %v7436 = vadd.f32 %v7435, %v7373
    %v7437 = vadd.f32 %v7436, %v7374
    %v7438 = vadd.f32 %v7437, %v7375
    %v7439 = vadd.f32 %v7438, %v7376
    %v7440 = vadd.f32 %v7439, %v7377
    %v7441 = vadd.f32 %v7440, %v7378
    %v7442 = vadd.f32 %v7441, %v7379
    %v7443 = vadd.f32 %v7442, %v7380
    %v7444 = vadd.f32 %v7443, %v7381
    %v7445 = vadd.f32 %v7444, %v7382
    %v7446 = vadd.f32 %v7445, %v7383
    %v7447 = vadd.f32 %v7446, %v7384
    %v7448 = vadd.f32 %v7447, %v7385
    %v7449 = vadd.f32 %v7448, %v7386
    %v7450 = vadd.f32 %v7449, %v7387
    %v7451 = vadd.f32 %v7450, %v7388
    %v7452 = vadd.f32 %v7451, %v7389
    %v7453 = vadd.f32 %v7452, %v7390
    %v7454 = vadd.f32 %v7453, %v7391
    %v7455 = vadd.f32 %v7454, %v7392
    %v7456 = vadd.f32 %v7455, %v7393
    %v7457 = vadd.f32 %v7456, %v7394
    %v7458 = vadd.f32 %v7457, %v7395
    %v7459 = vadd.f32 %v7458, %v7396
    %v7460 = vadd.f32 %v7459, %v7397
    %v7461 = vadd.f32 %v7460, %v7398
    %v7462 = vadd.f32 %v7461, %v7399
    %v7463 = vadd.f32 %v7462, %v7400
    %v7464 = vadd.f32 %v7463, %v7401
    %v7465 = vadd.f32 %v7464, %v7402
    %v7466 = vrot.slane %v7465, 4
    %v7467 = vadd.f32 %v7465, %v7466
    %v7468 = vrot.slane %v7467, 2
    %v7469 = vadd.f32 %v7467, %v7468
    %v7470 = vrot.slane %v7469, 1
    %v7471 = vadd.f32 %v7469, %v7470
    %v7472 = vmul.f32 %v7471, 0.001953125
    %v7473 = vmul.f32 %v7338, %v7338
    %v7474 = vsub.f32 %v7472, %v7473
    %v7475 = vmax.f32 %v7474, 0.0
    %v7476 = vsub.f32 %v7203, %v7338
    %v7477 = vsub.f32 %v7204, %v7338
    %v7478 = vsub.f32 %v7205, %v7338
    %v7479 = vsub.f32 %v7206, %v7338
    %v7480 = vsub.f32 %v7207, %v7338
    %v7481 = vsub.f32 %v7208, %v7338
    %v7482 = vsub.f32 %v7209, %v7338
    %v7483 = vsub.f32 %v7210, %v7338
    %v7484 = vsub.f32 %v7211, %v7338
    %v7485 = vsub.f32 %v7212, %v7338
    %v7486 = vsub.f32 %v7213, %v7338
    %v7487 = vsub.f32 %v7214, %v7338
    %v7488 = vsub.f32 %v7215, %v7338
    %v7489 = vsub.f32 %v7216, %v7338
    %v7490 = vsub.f32 %v7217, %v7338
    %v7491 = vsub.f32 %v7218, %v7338
    %v7492 = vsub.f32 %v7219, %v7338
    %v7493 = vsub.f32 %v7220, %v7338
    %v7494 = vsub.f32 %v7221, %v7338
    %v7495 = vsub.f32 %v7222, %v7338
    %v7496 = vsub.f32 %v7223, %v7338
    %v7497 = vsub.f32 %v7224, %v7338
    %v7498 = vsub.f32 %v7225, %v7338
    %v7499 = vsub.f32 %v7226, %v7338
    %v7500 = vsub.f32 %v7227, %v7338
    %v7501 = vsub.f32 %v7228, %v7338
    %v7502 = vsub.f32 %v7229, %v7338
    %v7503 = vsub.f32 %v7230, %v7338
    %v7504 = vsub.f32 %v7231, %v7338
    %v7505 = vsub.f32 %v7232, %v7338
    %v7506 = vsub.f32 %v7233, %v7338
    %v7507 = vsub.f32 %v7234, %v7338
    %v7508 = vsub.f32 %v7235, %v7338
    %v7509 = vsub.f32 %v7236, %v7338
    %v7510 = vsub.f32 %v7237, %v7338
    %v7511 = vsub.f32 %v7238, %v7338
    %v7512 = vsub.f32 %v7239, %v7338
    %v7513 = vsub.f32 %v7240, %v7338
    %v7514 = vsub.f32 %v7241, %v7338
    %v7515 = vsub.f32 %v7242, %v7338
    %v7516 = vsub.f32 %v7243, %v7338
    %v7517 = vsub.f32 %v7244, %v7338
    %v7518 = vsub.f32 %v7245, %v7338
    %v7519 = vsub.f32 %v7246, %v7338
    %v7520 = vsub.f32 %v7247, %v7338
    %v7521 = vsub.f32 %v7248, %v7338
    %v7522 = vsub.f32 %v7249, %v7338
    %v7523 = vsub.f32 %v7250, %v7338
    %v7524 = vsub.f32 %v7251, %v7338
    %v7525 = vsub.f32 %v7252, %v7338
    %v7526 = vsub.f32 %v7253, %v7338
    %v7527 = vsub.f32 %v7254, %v7338
    %v7528 = vsub.f32 %v7255, %v7338
    %v7529 = vsub.f32 %v7256, %v7338
    %v7530 = vsub.f32 %v7257, %v7338
    %v7531 = vsub.f32 %v7258, %v7338
    %v7532 = vsub.f32 %v7259, %v7338
    %v7533 = vsub.f32 %v7260, %v7338
    %v7534 = vsub.f32 %v7261, %v7338
    %v7535 = vsub.f32 %v7262, %v7338
    %v7536 = vsub.f32 %v7263, %v7338
    %v7537 = vsub.f32 %v7264, %v7338
    %v7538 = vsub.f32 %v7265, %v7338
    %v7539 = vsub.f32 %v7266, %v7338
    %v7540 = vadd.f32 %v7475, 1e-05
    %v7541 = vrsqrt.pop %v7540
    %v7542 = vmul.f32 %v7541, %v7540
    %v7543 = vmul.f32 %v7542, %v7541
    %v7544 = vmul.f32 0.5, %v7543
    %v7545 = vsub.f32 1.5, %v7544
    %v7546 = vmul.f32 %v7541, %v7545
    %vm7547 = vweird.f32 %v7540
    %vm7548 = vweird.f32 %v7541
    %vm7549 = vmor %vm7547, %vm7548
    %v7550 = vsel %vm7549, %v7541, %v7546
    %v7551 = vmul.f32 %v7476, %v7550
    %v7552 = vmul.f32 %v7477, %v7550
    %v7553 = vmul.f32 %v7478, %v7550
    %v7554 = vmul.f32 %v7479, %v7550
    %v7555 = vmul.f32 %v7480, %v7550
    %v7556 = vmul.f32 %v7481, %v7550
    %v7557 = vmul.f32 %v7482, %v7550
    %v7558 = vmul.f32 %v7483, %v7550
    %v7559 = vmul.f32 %v7484, %v7550
    %v7560 = vmul.f32 %v7485, %v7550
    %v7561 = vmul.f32 %v7486, %v7550
    %v7562 = vmul.f32 %v7487, %v7550
    %v7563 = vmul.f32 %v7488, %v7550
    %v7564 = vmul.f32 %v7489, %v7550
    %v7565 = vmul.f32 %v7490, %v7550
    %v7566 = vmul.f32 %v7491, %v7550
    %v7567 = vmul.f32 %v7492, %v7550
    %v7568 = vmul.f32 %v7493, %v7550
    %v7569 = vmul.f32 %v7494, %v7550
    %v7570 = vmul.f32 %v7495, %v7550
    %v7571 = vmul.f32 %v7496, %v7550
    %v7572 = vmul.f32 %v7497, %v7550
    %v7573 = vmul.f32 %v7498, %v7550
    %v7574 = vmul.f32 %v7499, %v7550
    %v7575 = vmul.f32 %v7500, %v7550
    %v7576 = vmul.f32 %v7501, %v7550
    %v7577 = vmul.f32 %v7502, %v7550
    %v7578 = vmul.f32 %v7503, %v7550
    %v7579 = vmul.f32 %v7504, %v7550
    %v7580 = vmul.f32 %v7505, %v7550
    %v7581 = vmul.f32 %v7506, %v7550
    %v7582 = vmul.f32 %v7507, %v7550
    %v7583 = vmul.f32 %v7508, %v7550
    %v7584 = vmul.f32 %v7509, %v7550
    %v7585 = vmul.f32 %v7510, %v7550
    %v7586 = vmul.f32 %v7511, %v7550
    %v7587 = vmul.f32 %v7512, %v7550
    %v7588 = vmul.f32 %v7513, %v7550
    %v7589 = vmul.f32 %v7514, %v7550
    %v7590 = vmul.f32 %v7515, %v7550
    %v7591 = vmul.f32 %v7516, %v7550
    %v7592 = vmul.f32 %v7517, %v7550
    %v7593 = vmul.f32 %v7518, %v7550
    %v7594 = vmul.f32 %v7519, %v7550
    %v7595 = vmul.f32 %v7520, %v7550
    %v7596 = vmul.f32 %v7521, %v7550
    %v7597 = vmul.f32 %v7522, %v7550
    %v7598 = vmul.f32 %v7523, %v7550
    %v7599 = vmul.f32 %v7524, %v7550
    %v7600 = vmul.f32 %v7525, %v7550
    %v7601 = vmul.f32 %v7526, %v7550
    %v7602 = vmul.f32 %v7527, %v7550
    %v7603 = vmul.f32 %v7528, %v7550
    %v7604 = vmul.f32 %v7529, %v7550
    %v7605 = vmul.f32 %v7530, %v7550
    %v7606 = vmul.f32 %v7531, %v7550
    %v7607 = vmul.f32 %v7532, %v7550
    %v7608 = vmul.f32 %v7533, %v7550
    %v7609 = vmul.f32 %v7534, %v7550
    %v7610 = vmul.f32 %v7535, %v7550
    %v7611 = vmul.f32 %v7536, %v7550
    %v7612 = vmul.f32 %v7537, %v7550
    %v7613 = vmul.f32 %v7538, %v7550
    %v7614 = vmul.f32 %v7539, %v7550
    %v7616 = vperm.slane %v7267, 0
    %v7618 = vmul.f32 %v7551, %v7616
    %v7619 = vmul.f32 %v7552, %v7616
    %v7620 = vmul.f32 %v7553, %v7616
    %v7621 = vmul.f32 %v7554, %v7616
    %v7622 = vmul.f32 %v7555, %v7616
    %v7623 = vmul.f32 %v7556, %v7616
    %v7624 = vmul.f32 %v7557, %v7616
    %v7625 = vmul.f32 %v7558, %v7616
    %v7626 = vmul.f32 %v7559, %v7616
    %v7627 = vmul.f32 %v7560, %v7616
    %v7628 = vmul.f32 %v7561, %v7616
    %v7629 = vmul.f32 %v7562, %v7616
    %v7630 = vmul.f32 %v7563, %v7616
    %v7631 = vmul.f32 %v7564, %v7616
    %v7632 = vmul.f32 %v7565, %v7616
    %v7633 = vmul.f32 %v7566, %v7616
    %v7634 = vmul.f32 %v7567, %v7616
    %v7635 = vmul.f32 %v7568, %v7616
    %v7636 = vmul.f32 %v7569, %v7616
    %v7637 = vmul.f32 %v7570, %v7616
    %v7638 = vmul.f32 %v7571, %v7616
    %v7639 = vmul.f32 %v7572, %v7616
    %v7640 = vmul.f32 %v7573, %v7616
    %v7641 = vmul.f32 %v7574, %v7616
    %v7642 = vmul.f32 %v7575, %v7616
    %v7643 = vmul.f32 %v7576, %v7616
    %v7644 = vmul.f32 %v7577, %v7616
    %v7645 = vmul.f32 %v7578, %v7616
    %v7646 = vmul.f32 %v7579, %v7616
    %v7647 = vmul.f32 %v7580, %v7616
    %v7648 = vmul.f32 %v7581, %v7616
    %v7649 = vmul.f32 %v7582, %v7616
    %v7650 = vmul.f32 %v7583, %v7616
    %v7651 = vmul.f32 %v7584, %v7616
    %v7652 = vmul.f32 %v7585, %v7616
    %v7653 = vmul.f32 %v7586, %v7616
    %v7654 = vmul.f32 %v7587, %v7616
    %v7655 = vmul.f32 %v7588, %v7616
    %v7656 = vmul.f32 %v7589, %v7616
    %v7657 = vmul.f32 %v7590, %v7616
    %v7658 = vmul.f32 %v7591, %v7616
    %v7659 = vmul.f32 %v7592, %v7616
    %v7660 = vmul.f32 %v7593, %v7616
    %v7661 = vmul.f32 %v7594, %v7616
    %v7662 = vmul.f32 %v7595, %v7616
    %v7663 = vmul.f32 %v7596, %v7616
    %v7664 = vmul.f32 %v7597, %v7616
    %v7665 = vmul.f32 %v7598, %v7616
    %v7666 = vmul.f32 %v7599, %v7616
    %v7667 = vmul.f32 %v7600, %v7616
    %v7668 = vmul.f32 %v7601, %v7616
    %v7669 = vmul.f32 %v7602, %v7616
    %v7670 = vmul.f32 %v7603, %v7616
    %v7671 = vmul.f32 %v7604, %v7616
    %v7672 = vmul.f32 %v7605, %v7616
    %v7673 = vmul.f32 %v7606, %v7616
    %v7674 = vmul.f32 %v7607, %v7616
    %v7675 = vmul.f32 %v7608, %v7616
    %v7676 = vmul.f32 %v7609, %v7616
    %v7677 = vmul.f32 %v7610, %v7616
    %v7678 = vmul.f32 %v7611, %v7616
    %v7679 = vmul.f32 %v7612, %v7616
    %v7680 = vmul.f32 %v7613, %v7616
    %v7681 = vmul.f32 %v7614, %v7616
    %v7683 = vperm.slane %v7268, 0
    %v7685 = vadd.f32 %v7618, %v7683
    %v7686 = vadd.f32 %v7619, %v7683
    %v7687 = vadd.f32 %v7620, %v7683
    %v7688 = vadd.f32 %v7621, %v7683
    %v7689 = vadd.f32 %v7622, %v7683
    %v7690 = vadd.f32 %v7623, %v7683
    %v7691 = vadd.f32 %v7624, %v7683
    %v7692 = vadd.f32 %v7625, %v7683
    %v7693 = vadd.f32 %v7626, %v7683
    %v7694 = vadd.f32 %v7627, %v7683
    %v7695 = vadd.f32 %v7628, %v7683
    %v7696 = vadd.f32 %v7629, %v7683
    %v7697 = vadd.f32 %v7630, %v7683
    %v7698 = vadd.f32 %v7631, %v7683
    %v7699 = vadd.f32 %v7632, %v7683
    %v7700 = vadd.f32 %v7633, %v7683
    %v7701 = vadd.f32 %v7634, %v7683
    %v7702 = vadd.f32 %v7635, %v7683
    %v7703 = vadd.f32 %v7636, %v7683
    %v7704 = vadd.f32 %v7637, %v7683
    %v7705 = vadd.f32 %v7638, %v7683
    %v7706 = vadd.f32 %v7639, %v7683
    %v7707 = vadd.f32 %v7640, %v7683
    %v7708 = vadd.f32 %v7641, %v7683
    %v7709 = vadd.f32 %v7642, %v7683
    %v7710 = vadd.f32 %v7643, %v7683
    %v7711 = vadd.f32 %v7644, %v7683
    %v7712 = vadd.f32 %v7645, %v7683
    %v7713 = vadd.f32 %v7646, %v7683
    %v7714 = vadd.f32 %v7647, %v7683
    %v7715 = vadd.f32 %v7648, %v7683
    %v7716 = vadd.f32 %v7649, %v7683
    %v7717 = vadd.f32 %v7650, %v7683
    %v7718 = vadd.f32 %v7651, %v7683
    %v7719 = vadd.f32 %v7652, %v7683
    %v7720 = vadd.f32 %v7653, %v7683
    %v7721 = vadd.f32 %v7654, %v7683
    %v7722 = vadd.f32 %v7655, %v7683
    %v7723 = vadd.f32 %v7656, %v7683
    %v7724 = vadd.f32 %v7657, %v7683
    %v7725 = vadd.f32 %v7658, %v7683
    %v7726 = vadd.f32 %v7659, %v7683
    %v7727 = vadd.f32 %v7660, %v7683
    %v7728 = vadd.f32 %v7661, %v7683
    %v7729 = vadd.f32 %v7662, %v7683
    %v7730 = vadd.f32 %v7663, %v7683
    %v7731 = vadd.f32 %v7664, %v7683
    %v7732 = vadd.f32 %v7665, %v7683
    %v7733 = vadd.f32 %v7666, %v7683
    %v7734 = vadd.f32 %v7667, %v7683
    %v7735 = vadd.f32 %v7668, %v7683
    %v7736 = vadd.f32 %v7669, %v7683
    %v7737 = vadd.f32 %v7670, %v7683
    %v7738 = vadd.f32 %v7671, %v7683
    %v7739 = vadd.f32 %v7672, %v7683
    %v7740 = vadd.f32 %v7673, %v7683
    %v7741 = vadd.f32 %v7674, %v7683
    %v7742 = vadd.f32 %v7675, %v7683
    %v7743 = vadd.f32 %v7676, %v7683
    %v7744 = vadd.f32 %v7677, %v7683
    %v7745 = vadd.f32 %v7678, %v7683
    %v7746 = vadd.f32 %v7679, %v7683
    %v7747 = vadd.f32 %v7680, %v7683
    %v7748 = vadd.f32 %v7681, %v7683
    %v7749 = vld [vmem:[#allocation2 + $0x18] sm:$0xff]
    %v7750 = vld [vmem:[#allocation2 + $0x20] sm:$0xff]
    %v7751 = vld [vmem:[#allocation2 + $0x28] sm:$0x3]
    %v7752 = vld [vmem:[#allocation2 + $0x30] sm:$0xff]
    %v7753 = vld [vmem:[#allocation2 + $0x38] sm:$0xff]
    %v7754 = vld [vmem:[#allocation2 + $0x40] sm:$0x3]
    %v7755 = vld [vmem:[#allocation2 + $0x48] sm:$0xff]
    %v7756 = vld [vmem:[#allocation2 + $0x50] sm:$0xff]
    %v7757 = vld [vmem:[#allocation2 + $0x58] sm:$0x3]
    %v7758 = vld [vmem:[#allocation2 + $0x60] sm:$0xff]
    %v7759 = vld [vmem:[#allocation2 + $0x68] sm:$0xff]
    %v7760 = vld [vmem:[#allocation2 + $0x70] sm:$0x3]
    %v7761 = vld [vmem:[#allocation2 + $0x78] sm:$0xff]
    %v7762 = vld [vmem:[#allocation2 + $0x80] sm:$0xff]
    %v7763 = vld [vmem:[#allocation2 + $0x88] sm:$0x3]
    %v7764 = vld [vmem:[#allocation2 + $0x90] sm:$0xff]
    %v7765 = vld [vmem:[#allocation2 + $0x98] sm:$0xff]
    %v7766 = vld [vmem:[#allocation2 + $0xa0] sm:$0x3]
    %v7767 = vld [vmem:[#allocation2 + $0xa8] sm:$0xff]
    %v7768 = vld [vmem:[#allocation2 + $0xb0] sm:$0xff]
    %v7769 = vld [vmem:[#allocation2 + $0xb8] sm:$0x3]
    %v7770 = vld [vmem:[#allocation2 + $0xc0] sm:$0xff]
    %v7771 = vld [vmem:[#allocation2 + $0xc8] sm:$0xff]
    %v7772 = vld [vmem:[#allocation2 + $0xd0] sm:$0x3]
    %v7773 = vld [vmem:[#allocation2 + $0xd8] sm:$0xff]
    %v7774 = vld [vmem:[#allocation2 + $0xe0] sm:$0xff]
    %v7775 = vld [vmem:[#allocation2 + $0xe8] sm:$0x3]
    %v7776 = vld [vmem:[#allocation2 + $0xf0] sm:$0xff]
    %v7777 = vld [vmem:[#allocation2 + $0xf8] sm:$0xff]
    %v7778 = vld [vmem:[#allocation2 + $0x100] sm:$0x3]
    %v7779 = vld [vmem:[#allocation2 + $0x108] sm:$0xff]
    %v7780 = vld [vmem:[#allocation2 + $0x110] sm:$0xff]
    %v7781 = vld [vmem:[#allocation2 + $0x118] sm:$0x3]
    %v7782 = vld [vmem:[#allocation2 + $0x120] sm:$0xff]
    %v7783 = vld [vmem:[#allocation2 + $0x128] sm:$0xff]
    %v7784 = vld [vmem:[#allocation2 + $0x130] sm:$0x3]
    %v7785 = vld [vmem:[#allocation2 + $0x138] sm:$0xff]
    %v7786 = vld [vmem:[#allocation2 + $0x140] sm:$0xff]
    %v7787 = vld [vmem:[#allocation2 + $0x148] sm:$0x3]
    %v7788 = vld [vmem:[#allocation2 + $0x150] sm:$0xff]
    %v7789 = vld [vmem:[#allocation2 + $0x158] sm:$0xff]
    %v7790 = vld [vmem:[#allocation2 + $0x160] sm:$0x3]
    %v7791 = vld [vmem:[#allocation2 + $0x168] sm:$0xff]
    %v7792 = vld [vmem:[#allocation2 + $0x170] sm:$0xff]
    %v7793 = vld [vmem:[#allocation2 + $0x178] sm:$0x3]
    %v7794 = vld [vmem:[#allocation2 + $0x180] sm:$0xff]
    %v7795 = vld [vmem:[#allocation2 + $0x188] sm:$0xff]
    %v7796 = vld [vmem:[#allocation2 + $0x190] sm:$0x3]
    %v7797 = vld [vmem:[#allocation2 + $0x1c8] sm:$0xff]
    %v7798 = vld [vmem:[#allocation2 + $0x1d0] sm:$0xff]
    %v7799 = vld [vmem:[#allocation2 + $0x1d8] sm:$0x3]
    %v7800 = vld [vmem:[#allocation2 + $0x1e0] sm:$0xff]
    %v7801 = vld [vmem:[#allocation2 + $0x1e8] sm:$0xff]
    %v7802 = vld [vmem:[#allocation2 + $0x1f0] sm:$0x3]
    %v7803 = vld [vmem:[#allocation2 + $0x1f8] sm:$0xff]
    %v7804 = vld [vmem:[#allocation2 + $0x200] sm:$0xff]
    %v7805 = vld [vmem:[#allocation2 + $0x208] sm:$0x3]
    %v7806 = vld [vmem:[#allocation2 + $0x210] sm:$0xff]
    %v7807 = vld [vmem:[#allocation2 + $0x218] sm:$0xff]
    %v7808 = vld [vmem:[#allocation2 + $0x220] sm:$0x3]
    %v7809 = vld [vmem:[#allocation2 + $0x228] sm:$0xff]
    %v7810 = vld [vmem:[#allocation2 + $0x230] sm:$0xff]
    %v7811 = vld [vmem:[#allocation2 + $0x238] sm:$0x3]
    %v7812 = vld [vmem:[#allocation2 + $0x240] sm:$0xff]
    %v7813 = vld [vmem:[#allocation2 + $0x248] sm:$0xff]
    %v7814 = vld [vmem:[#allocation2 + $0x250] sm:$0x3]
    %v7815 = vld [vmem:[#allocation2 + $0x258] sm:$0xff]
    %v7816 = vld [vmem:[#allocation2 + $0x260] sm:$0xff]
    %v7817 = vld [vmem:[#allocation2 + $0x268] sm:$0x3]
    %v7818 = vld [vmem:[#allocation2 + $0x270] sm:$0xff]
    %v7819 = vld [vmem:[#allocation2 + $0x278] sm:$0xff]
    %v7820 = vld [vmem:[#allocation2 + $0x280] sm:$0x3]
    %v7821 = vld [vmem:[#allocation2 + $0x288] sm:$0xff]
    %v7822 = vld [vmem:[#allocation2 + $0x290] sm:$0xff]
    %v7823 = vld [vmem:[#allocation2 + $0x298] sm:$0x3]
    %v7824 = vld [vmem:[#allocation2 + $0x2a0] sm:$0xff]
    %v7825 = vld [vmem:[#allocation2 + $0x2a8] sm:$0xff]
    %v7826 = vld [vmem:[#allocation2 + $0x2b0] sm:$0x3]
    %v7827 = vld [vmem:[#allocation2 + $0x2b8] sm:$0xff]
    %v7828 = vld [vmem:[#allocation2 + $0x2c0] sm:$0xff]
    %v7829 = vld [vmem:[#allocation2 + $0x2c8] sm:$0x3]
    %v7830 = vld [vmem:[#allocation2 + $0x2d0] sm:$0xff]
    %v7831 = vld [vmem:[#allocation2 + $0x2d8] sm:$0xff]
    %v7832 = vld [vmem:[#allocation2 + $0x2e0] sm:$0x3]
    %v7833 = vld [vmem:[#allocation2 + $0x2e8] sm:$0xff]
    %v7834 = vld [vmem:[#allocation2 + $0x2f0] sm:$0xff]
    %v7835 = vld [vmem:[#allocation2 + $0x2f8] sm:$0x3]
    %v7836 = vld [vmem:[#allocation2 + $0x300] sm:$0xff]
    %v7837 = vld [vmem:[#allocation2 + $0x308] sm:$0xff]
    %v7838 = vld [vmem:[#allocation2 + $0x310] sm:$0x3]
    %v7839 = vld [vmem:[#allocation2 + $0x318] sm:$0xff]
    %v7840 = vld [vmem:[#allocation2 + $0x320] sm:$0xff]
    %v7841 = vld [vmem:[#allocation2 + $0x328] sm:$0x3]
    %v7842 = vld [vmem:[#allocation2 + $0x330] sm:$0xff]
    %v7843 = vld [vmem:[#allocation2 + $0x338] sm:$0xff]
    %v7844 = vld [vmem:[#allocation2 + $0x340] sm:$0x3]
    %v7941 = vrot.slane %v7749, 1
    %v7942 = vrot.slane %v7750, 1
    %v7943 = vsel %vm483, %v7941, %v7942
    %v7944 = vrot.slane %v7751, 1
    %v7945 = vsel %vm483, %v7942, %v7944
    %v7946 = vrot.slane %v7752, 1
    %v7947 = vrot.slane %v7753, 1
    %v7948 = vsel %vm483, %v7946, %v7947
    %v7949 = vrot.slane %v7754, 1
    %v7950 = vsel %vm483, %v7947, %v7949
    %v7951 = vrot.slane %v7755, 1
    %v7952 = vrot.slane %v7756, 1
    %v7953 = vsel %vm483, %v7951, %v7952
    %v7954 = vrot.slane %v7757, 1
    %v7955 = vsel %vm483, %v7952, %v7954
    %v7956 = vrot.slane %v7758, 1
    %v7957 = vrot.slane %v7759, 1
    %v7958 = vsel %vm483, %v7956, %v7957
    %v7959 = vrot.slane %v7760, 1
    %v7960 = vsel %vm483, %v7957, %v7959
    %v7961 = vrot.slane %v7761, 1
    %v7962 = vrot.slane %v7762, 1
    %v7963 = vsel %vm483, %v7961, %v7962
    %v7964 = vrot.slane %v7763, 1
    %v7965 = vsel %vm483, %v7962, %v7964
    %v7966 = vrot.slane %v7764, 1
    %v7967 = vrot.slane %v7765, 1
    %v7968 = vsel %vm483, %v7966, %v7967
    %v7969 = vrot.slane %v7766, 1
    %v7970 = vsel %vm483, %v7967, %v7969
    %v7971 = vrot.slane %v7767, 1
    %v7972 = vrot.slane %v7768, 1
    %v7973 = vsel %vm483, %v7971, %v7972
    %v7974 = vrot.slane %v7769, 1
    %v7975 = vsel %vm483, %v7972, %v7974
    %v7976 = vrot.slane %v7770, 1
    %v7977 = vrot.slane %v7771, 1
    %v7978 = vsel %vm483, %v7976, %v7977
    %v7979 = vrot.slane %v7772, 1
    %v7980 = vsel %vm483, %v7977, %v7979
    %v7981 = vrot.slane %v7773, 1
    %v7982 = vrot.slane %v7774, 1
    %v7983 = vsel %vm483, %v7981, %v7982
    %v7984 = vrot.slane %v7775, 1
    %v7985 = vsel %vm483, %v7982, %v7984
    %v7986 = vrot.slane %v7776, 1
    %v7987 = vrot.slane %v7777, 1
    %v7988 = vsel %vm483, %v7986, %v7987
    %v7989 = vrot.slane %v7778, 1
    %v7990 = vsel %vm483, %v7987, %v7989
    %v7991 = vrot.slane %v7779, 1
    %v7992 = vrot.slane %v7780, 1
    %v7993 = vsel %vm483, %v7991, %v7992
    %v7994 = vrot.slane %v7781, 1
    %v7995 = vsel %vm483, %v7992, %v7994
    %v7996 = vrot.slane %v7782, 1
    %v7997 = vrot.slane %v7783, 1
    %v7998 = vsel %vm483, %v7996, %v7997
    %v7999 = vrot.slane %v7784, 1
    %v8000 = vsel %vm483, %v7997, %v7999
    %v8001 = vrot.slane %v7785, 1
    %v8002 = vrot.slane %v7786, 1
    %v8003 = vsel %vm483, %v8001, %v8002
    %v8004 = vrot.slane %v7787, 1
    %v8005 = vsel %vm483, %v8002, %v8004
    %v8006 = vrot.slane %v7788, 1
    %v8007 = vrot.slane %v7789, 1
    %v8008 = vsel %vm483, %v8006, %v8007
    %v8009 = vrot.slane %v7790, 1
    %v8010 = vsel %vm483, %v8007, %v8009
    %v8011 = vrot.slane %v7791, 1
    %v8012 = vrot.slane %v7792, 1
    %v8013 = vsel %vm483, %v8011, %v8012
    %v8014 = vrot.slane %v7793, 1
    %v8015 = vsel %vm483, %v8012, %v8014
    %v8016 = vrot.slane %v7794, 1
    %v8017 = vrot.slane %v7795, 1
    %v8018 = vsel %vm483, %v8016, %v8017
    %v8019 = vrot.slane %v7796, 1
    %v8020 = vsel %vm483, %v8017, %v8019
    %v8021 = vrot.slane %v7797, 1
    %v8022 = vrot.slane %v7798, 1
    %v8023 = vsel %vm483, %v8021, %v8022
    %v8024 = vrot.slane %v7799, 1
    %v8025 = vsel %vm483, %v8022, %v8024
    %v8026 = vrot.slane %v7800, 1
    %v8027 = vrot.slane %v7801, 1
    %v8028 = vsel %vm483, %v8026, %v8027
    %v8029 = vrot.slane %v7802, 1
    %v8030 = vsel %vm483, %v8027, %v8029
    %v8031 = vrot.slane %v7803, 1
    %v8032 = vrot.slane %v7804, 1
    %v8033 = vsel %vm483, %v8031, %v8032
    %v8034 = vrot.slane %v7805, 1
    %v8035 = vsel %vm483, %v8032, %v8034
    %v8036 = vrot.slane %v7806, 1
    %v8037 = vrot.slane %v7807, 1
    %v8038 = vsel %vm483, %v8036, %v8037
    %v8039 = vrot.slane %v7808, 1
    %v8040 = vsel %vm483, %v8037, %v8039
    %v8041 = vrot.slane %v7809, 1
    %v8042 = vrot.slane %v7810, 1
    %v8043 = vsel %vm483, %v8041, %v8042
    %v8044 = vrot.slane %v7811, 1
    %v8045 = vsel %vm483, %v8042, %v8044
    %v8046 = vrot.slane %v7812, 1
    %v8047 = vrot.slane %v7813, 1
    %v8048 = vsel %vm483, %v8046, %v8047
    %v8049 = vrot.slane %v7814, 1
    %v8050 = vsel %vm483, %v8047, %v8049
    %v8051 = vrot.slane %v7815, 1
    %v8052 = vrot.slane %v7816, 1
    %v8053 = vsel %vm483, %v8051, %v8052
    %v8054 = vrot.slane %v7817, 1
    %v8055 = vsel %vm483, %v8052, %v8054
    %v8056 = vrot.slane %v7818, 1
    %v8057 = vrot.slane %v7819, 1
    %v8058 = vsel %vm483, %v8056, %v8057
    %v8059 = vrot.slane %v7820, 1
    %v8060 = vsel %vm483, %v8057, %v8059
    %v8061 = vrot.slane %v7821, 1
    %v8062 = vrot.slane %v7822, 1
    %v8063 = vsel %vm483, %v8061, %v8062
    %v8064 = vrot.slane %v7823, 1
    %v8065 = vsel %vm483, %v8062, %v8064
    %v8066 = vrot.slane %v7824, 1
    %v8067 = vrot.slane %v7825, 1
    %v8068 = vsel %vm483, %v8066, %v8067
    %v8069 = vrot.slane %v7826, 1
    %v8070 = vsel %vm483, %v8067, %v8069
    %v8071 = vrot.slane %v7827, 1
    %v8072 = vrot.slane %v7828, 1
    %v8073 = vsel %vm483, %v8071, %v8072
    %v8074 = vrot.slane %v7829, 1
    %v8075 = vsel %vm483, %v8072, %v8074
    %v8076 = vrot.slane %v7830, 1
    %v8077 = vrot.slane %v7831, 1
    %v8078 = vsel %vm483, %v8076, %v8077
    %v8079 = vrot.slane %v7832, 1
    %v8080 = vsel %vm483, %v8077, %v8079
    %v8081 = vrot.slane %v7833, 1
    %v8082 = vrot.slane %v7834, 1
    %v8083 = vsel %vm483, %v8081, %v8082
    %v8084 = vrot.slane %v7835, 1
    %v8085 = vsel %vm483, %v8082, %v8084
    %v8086 = vrot.slane %v7836, 1
    %v8087 = vrot.slane %v7837, 1
    %v8088 = vsel %vm483, %v8086, %v8087
    %v8089 = vrot.slane %v7838, 1
    %v8090 = vsel %vm483, %v8087, %v8089
    %v8091 = vrot.slane %v7839, 1
    %v8092 = vrot.slane %v7840, 1
    %v8093 = vsel %vm483, %v8091, %v8092
    %v8094 = vrot.slane %v7841, 1
    %v8095 = vsel %vm483, %v8092, %v8094
    %v8096 = vrot.slane %v7842, 1
    %v8097 = vrot.slane %v7843, 1
    %v8098 = vsel %vm483, %v8096, %v8097
    %v8099 = vrot.slane %v7844, 1
    %v8100 = vsel %vm483, %v8097, %v8099
    %v8165 = vld [vmem:[%s7] sm:$0xf]
    %v8166 = vpack.c.bf16 %v7945, %v7943
    %v8167 = vpack.c.bf16 %v7950, %v7948
    %v8168 = vpack.c.bf16 %v7955, %v7953
    %v8169 = vpack.c.bf16 %v7960, %v7958
    %v8170 = vpack.c.bf16 %v7965, %v7963
    %v8171 = vpack.c.bf16 %v7970, %v7968
    %v8172 = vpack.c.bf16 %v7975, %v7973
    %v8173 = vpack.c.bf16 %v7980, %v7978
    %v8174 = vpack.c.bf16 %v7985, %v7983
    %v8175 = vpack.c.bf16 %v7990, %v7988
    %v8176 = vpack.c.bf16 %v7995, %v7993
    %v8177 = vpack.c.bf16 %v8000, %v7998
    %v8178 = vpack.c.bf16 %v8005, %v8003
    %v8179 = vpack.c.bf16 %v8010, %v8008
    %v8180 = vpack.c.bf16 %v8015, %v8013
    %v8181 = vpack.c.bf16 %v8020, %v8018
    %v8182 = vpack.c.bf16 %v8025, %v8023
    %v8183 = vpack.c.bf16 %v8030, %v8028
    %v8184 = vpack.c.bf16 %v8035, %v8033
    %v8185 = vpack.c.bf16 %v8040, %v8038
    %v8186 = vpack.c.bf16 %v8045, %v8043
    %v8187 = vpack.c.bf16 %v8050, %v8048
    %v8188 = vpack.c.bf16 %v8055, %v8053
    %v8189 = vpack.c.bf16 %v8060, %v8058
    %v8190 = vpack.c.bf16 %v8065, %v8063
    %v8191 = vpack.c.bf16 %v8070, %v8068
    %v8192 = vpack.c.bf16 %v8075, %v8073
    %v8193 = vpack.c.bf16 %v8080, %v8078
    %v8194 = vpack.c.bf16 %v8085, %v8083
    %v8195 = vpack.c.bf16 %v8090, %v8088
    %v8196 = vpack.c.bf16 %v8095, %v8093
    %v8197 = vpack.c.bf16 %v8100, %v8098
    %v8199 = vsel %vm101, %v8166, 0
    %v8202 = vsel %vm101, %v8167, 0
    %v8205 = vsel %vm101, %v8168, 0
    %v8208 = vsel %vm101, %v8169, 0
    %v8211 = vsel %vm101, %v8170, 0
    %v8214 = vsel %vm101, %v8171, 0
    %v8217 = vsel %vm101, %v8172, 0
    %v8220 = vsel %vm101, %v8173, 0
    %v8223 = vsel %vm101, %v8174, 0
    %v8226 = vsel %vm101, %v8175, 0
    %v8229 = vsel %vm101, %v8176, 0
    %v8232 = vsel %vm101, %v8177, 0
    %v8235 = vsel %vm101, %v8178, 0
    %v8238 = vsel %vm101, %v8179, 0
    %v8241 = vsel %vm101, %v8180, 0
    %v8244 = vsel %vm101, %v8181, 0
    %v8247 = vsel %vm101, %v8182, 0
    %v8250 = vsel %vm101, %v8183, 0
    %v8253 = vsel %vm101, %v8184, 0
    %v8256 = vsel %vm101, %v8185, 0
    %v8259 = vsel %vm101, %v8186, 0
    %v8262 = vsel %vm101, %v8187, 0
    %v8265 = vsel %vm101, %v8188, 0
    %v8268 = vsel %vm101, %v8189, 0
    %v8271 = vsel %vm101, %v8190, 0
    %v8274 = vsel %vm101, %v8191, 0
    %v8277 = vsel %vm101, %v8192, 0
    %v8280 = vsel %vm101, %v8193, 0
    %v8283 = vsel %vm101, %v8194, 0
    %v8286 = vsel %vm101, %v8195, 0
    %v8289 = vsel %vm101, %v8196, 0
    %v8292 = vsel %vm101, %v8197, 0
    %v8295 = vsel %vm838, %v8165, 0
    %8297 = vmatpush.bf16.msra.mxu0 0
    %8298 = vmatpush.bf16.msra.mxu0 0
    %8299 = vmatpush.bf16.msra.mxu0 0
    %8300 = vmatpush.bf16.msra.mxu0 0
    %8301 = vmatpush.bf16.msra.mxu0 0
    %8302 = vmatpush.bf16.msra.mxu0 0
    %8303 = vmatpush.bf16.msra.mxu0 0
    %8304 = vmatpush.bf16.msra.mxu0 %v8295
    %8305 = vmatmul.bf16.gmra.mxu0 %v8199
    %v8306 = vpop.f32.mrf.mxu0
    %v8307 = vadd.f32 0.0, %v8306
    %v8308 = vpop.f32.mrf.mxu0
    %v8309 = vadd.f32 0.0, %v8308
    %8310 = vmatmul.bf16.gmra.mxu0 %v8202
    %v8311 = vpop.f32.mrf.mxu0
    %v8312 = vadd.f32 0.0, %v8311
    %v8313 = vpop.f32.mrf.mxu0
    %v8314 = vadd.f32 0.0, %v8313
    %8315 = vmatmul.bf16.gmra.mxu0 %v8205
    %v8316 = vpop.f32.mrf.mxu0
    %v8317 = vadd.f32 0.0, %v8316
    %v8318 = vpop.f32.mrf.mxu0
    %v8319 = vadd.f32 0.0, %v8318
    %8320 = vmatmul.bf16.gmra.mxu0 %v8208
    %v8321 = vpop.f32.mrf.mxu0
    %v8322 = vadd.f32 0.0, %v8321
    %v8323 = vpop.f32.mrf.mxu0
    %v8324 = vadd.f32 0.0, %v8323
    %8325 = vmatmul.bf16.gmra.mxu0 %v8211
    %v8326 = vpop.f32.mrf.mxu0
    %v8327 = vadd.f32 0.0, %v8326
    %v8328 = vpop.f32.mrf.mxu0
    %v8329 = vadd.f32 0.0, %v8328
    %8330 = vmatmul.bf16.gmra.mxu0 %v8214
    %v8331 = vpop.f32.mrf.mxu0
    %v8332 = vadd.f32 0.0, %v8331
    %v8333 = vpop.f32.mrf.mxu0
    %v8334 = vadd.f32 0.0, %v8333
    %8335 = vmatmul.bf16.gmra.mxu0 %v8217
    %v8336 = vpop.f32.mrf.mxu0
    %v8337 = vadd.f32 0.0, %v8336
    %v8338 = vpop.f32.mrf.mxu0
    %v8339 = vadd.f32 0.0, %v8338
    %8340 = vmatmul.bf16.gmra.mxu0 %v8220
    %v8341 = vpop.f32.mrf.mxu0
    %v8342 = vadd.f32 0.0, %v8341
    %v8343 = vpop.f32.mrf.mxu0
    %v8344 = vadd.f32 0.0, %v8343
    %8345 = vmatmul.bf16.gmra.mxu0 %v8223
    %v8346 = vpop.f32.mrf.mxu0
    %v8347 = vadd.f32 0.0, %v8346
    %v8348 = vpop.f32.mrf.mxu0
    %v8349 = vadd.f32 0.0, %v8348
    %8350 = vmatmul.bf16.gmra.mxu0 %v8226
    %v8351 = vpop.f32.mrf.mxu0
    %v8352 = vadd.f32 0.0, %v8351
    %v8353 = vpop.f32.mrf.mxu0
    %v8354 = vadd.f32 0.0, %v8353
    %8355 = vmatmul.bf16.gmra.mxu0 %v8229
    %v8356 = vpop.f32.mrf.mxu0
    %v8357 = vadd.f32 0.0, %v8356
    %v8358 = vpop.f32.mrf.mxu0
    %v8359 = vadd.f32 0.0, %v8358
    %8360 = vmatmul.bf16.gmra.mxu0 %v8232
    %v8361 = vpop.f32.mrf.mxu0
    %v8362 = vadd.f32 0.0, %v8361
    %v8363 = vpop.f32.mrf.mxu0
    %v8364 = vadd.f32 0.0, %v8363
    %8365 = vmatmul.bf16.gmra.mxu0 %v8235
    %v8366 = vpop.f32.mrf.mxu0
    %v8367 = vadd.f32 0.0, %v8366
    %v8368 = vpop.f32.mrf.mxu0
    %v8369 = vadd.f32 0.0, %v8368
    %8370 = vmatmul.bf16.gmra.mxu0 %v8238
    %v8371 = vpop.f32.mrf.mxu0
    %v8372 = vadd.f32 0.0, %v8371
    %v8373 = vpop.f32.mrf.mxu0
    %v8374 = vadd.f32 0.0, %v8373
    %8375 = vmatmul.bf16.gmra.mxu0 %v8241
    %v8376 = vpop.f32.mrf.mxu0
    %v8377 = vadd.f32 0.0, %v8376
    %v8378 = vpop.f32.mrf.mxu0
    %v8379 = vadd.f32 0.0, %v8378
    %8380 = vmatmul.bf16.gmra.mxu0 %v8244
    %v8381 = vpop.f32.mrf.mxu0
    %v8382 = vadd.f32 0.0, %v8381
    %v8383 = vpop.f32.mrf.mxu0
    %v8384 = vadd.f32 0.0, %v8383
    %8385 = vmatmul.bf16.gmra.mxu0 %v8247
    %v8386 = vpop.f32.mrf.mxu0
    %v8387 = vadd.f32 0.0, %v8386
    %v8388 = vpop.f32.mrf.mxu0
    %v8389 = vadd.f32 0.0, %v8388
    %8390 = vmatmul.bf16.gmra.mxu0 %v8250
    %v8391 = vpop.f32.mrf.mxu0
    %v8392 = vadd.f32 0.0, %v8391
    %v8393 = vpop.f32.mrf.mxu0
    %v8394 = vadd.f32 0.0, %v8393
    %8395 = vmatmul.bf16.gmra.mxu0 %v8253
    %v8396 = vpop.f32.mrf.mxu0
    %v8397 = vadd.f32 0.0, %v8396
    %v8398 = vpop.f32.mrf.mxu0
    %v8399 = vadd.f32 0.0, %v8398
    %8400 = vmatmul.bf16.gmra.mxu0 %v8256
    %v8401 = vpop.f32.mrf.mxu0
    %v8402 = vadd.f32 0.0, %v8401
    %v8403 = vpop.f32.mrf.mxu0
    %v8404 = vadd.f32 0.0, %v8403
    %8405 = vmatmul.bf16.gmra.mxu0 %v8259
    %v8406 = vpop.f32.mrf.mxu0
    %v8407 = vadd.f32 0.0, %v8406
    %v8408 = vpop.f32.mrf.mxu0
    %v8409 = vadd.f32 0.0, %v8408
    %8410 = vmatmul.bf16.gmra.mxu0 %v8262
    %v8411 = vpop.f32.mrf.mxu0
    %v8412 = vadd.f32 0.0, %v8411
    %v8413 = vpop.f32.mrf.mxu0
    %v8414 = vadd.f32 0.0, %v8413
    %8415 = vmatmul.bf16.gmra.mxu0 %v8265
    %v8416 = vpop.f32.mrf.mxu0
    %v8417 = vadd.f32 0.0, %v8416
    %v8418 = vpop.f32.mrf.mxu0
    %v8419 = vadd.f32 0.0, %v8418
    %8420 = vmatmul.bf16.gmra.mxu0 %v8268
    %v8421 = vpop.f32.mrf.mxu0
    %v8422 = vadd.f32 0.0, %v8421
    %v8423 = vpop.f32.mrf.mxu0
    %v8424 = vadd.f32 0.0, %v8423
    %8425 = vmatmul.bf16.gmra.mxu0 %v8271
    %v8426 = vpop.f32.mrf.mxu0
    %v8427 = vadd.f32 0.0, %v8426
    %v8428 = vpop.f32.mrf.mxu0
    %v8429 = vadd.f32 0.0, %v8428
    %8430 = vmatmul.bf16.gmra.mxu0 %v8274
    %v8431 = vpop.f32.mrf.mxu0
    %v8432 = vadd.f32 0.0, %v8431
    %v8433 = vpop.f32.mrf.mxu0
    %v8434 = vadd.f32 0.0, %v8433
    %8435 = vmatmul.bf16.gmra.mxu0 %v8277
    %v8436 = vpop.f32.mrf.mxu0
    %v8437 = vadd.f32 0.0, %v8436
    %v8438 = vpop.f32.mrf.mxu0
    %v8439 = vadd.f32 0.0, %v8438
    %8440 = vmatmul.bf16.gmra.mxu0 %v8280
    %v8441 = vpop.f32.mrf.mxu0
    %v8442 = vadd.f32 0.0, %v8441
    %v8443 = vpop.f32.mrf.mxu0
    %v8444 = vadd.f32 0.0, %v8443
    %8445 = vmatmul.bf16.gmra.mxu0 %v8283
    %v8446 = vpop.f32.mrf.mxu0
    %v8447 = vadd.f32 0.0, %v8446
    %v8448 = vpop.f32.mrf.mxu0
    %v8449 = vadd.f32 0.0, %v8448
    %8450 = vmatmul.bf16.gmra.mxu0 %v8286
    %v8451 = vpop.f32.mrf.mxu0
    %v8452 = vadd.f32 0.0, %v8451
    %v8453 = vpop.f32.mrf.mxu0
    %v8454 = vadd.f32 0.0, %v8453
    %8455 = vmatmul.bf16.gmra.mxu0 %v8289
    %v8456 = vpop.f32.mrf.mxu0
    %v8457 = vadd.f32 0.0, %v8456
    %v8458 = vpop.f32.mrf.mxu0
    %v8459 = vadd.f32 0.0, %v8458
    %8460 = vmatmul.bf16.gmra.mxu0 %v8292
    %v8461 = vpop.f32.mrf.mxu0
    %v8462 = vadd.f32 0.0, %v8461
    %v8463 = vpop.f32.mrf.mxu0
    %v8464 = vadd.f32 0.0, %v8463
    %8465 = vdwg.mxu0
    %v8466 = vld [vmem:[%s8] sm:$0x1]
    %v8467 = vld [vmem:[%s9] sm:$0x1]
    %v8468 = vadd.f32 %v8307, %v8309
    %v8469 = vadd.f32 %v8468, %v8312
    %v8470 = vadd.f32 %v8469, %v8314
    %v8471 = vadd.f32 %v8470, %v8317
    %v8472 = vadd.f32 %v8471, %v8319
    %v8473 = vadd.f32 %v8472, %v8322
    %v8474 = vadd.f32 %v8473, %v8324
    %v8475 = vadd.f32 %v8474, %v8327
    %v8476 = vadd.f32 %v8475, %v8329
    %v8477 = vadd.f32 %v8476, %v8332
    %v8478 = vadd.f32 %v8477, %v8334
    %v8479 = vadd.f32 %v8478, %v8337
    %v8480 = vadd.f32 %v8479, %v8339
    %v8481 = vadd.f32 %v8480, %v8342
    %v8482 = vadd.f32 %v8481, %v8344
    %v8483 = vadd.f32 %v8482, %v8347
    %v8484 = vadd.f32 %v8483, %v8349
    %v8485 = vadd.f32 %v8484, %v8352
    %v8486 = vadd.f32 %v8485, %v8354
    %v8487 = vadd.f32 %v8486, %v8357
    %v8488 = vadd.f32 %v8487, %v8359
    %v8489 = vadd.f32 %v8488, %v8362
    %v8490 = vadd.f32 %v8489, %v8364
    %v8491 = vadd.f32 %v8490, %v8367
    %v8492 = vadd.f32 %v8491, %v8369
    %v8493 = vadd.f32 %v8492, %v8372
    %v8494 = vadd.f32 %v8493, %v8374
    %v8495 = vadd.f32 %v8494, %v8377
    %v8496 = vadd.f32 %v8495, %v8379
    %v8497 = vadd.f32 %v8496, %v8382
    %v8498 = vadd.f32 %v8497, %v8384
    %v8499 = vadd.f32 %v8498, %v8387
    %v8500 = vadd.f32 %v8499, %v8389
    %v8501 = vadd.f32 %v8500, %v8392
    %v8502 = vadd.f32 %v8501, %v8394
    %v8503 = vadd.f32 %v8502, %v8397
    %v8504 = vadd.f32 %v8503, %v8399
    %v8505 = vadd.f32 %v8504, %v8402
    %v8506 = vadd.f32 %v8505, %v8404
    %v8507 = vadd.f32 %v8506, %v8407
    %v8508 = vadd.f32 %v8507, %v8409
    %v8509 = vadd.f32 %v8508, %v8412
    %v8510 = vadd.f32 %v8509, %v8414
    %v8511 = vadd.f32 %v8510, %v8417
    %v8512 = vadd.f32 %v8511, %v8419
    %v8513 = vadd.f32 %v8512, %v8422
    %v8514 = vadd.f32 %v8513, %v8424
    %v8515 = vadd.f32 %v8514, %v8427
    %v8516 = vadd.f32 %v8515, %v8429
    %v8517 = vadd.f32 %v8516, %v8432
    %v8518 = vadd.f32 %v8517, %v8434
    %v8519 = vadd.f32 %v8518, %v8437
    %v8520 = vadd.f32 %v8519, %v8439
    %v8521 = vadd.f32 %v8520, %v8442
    %v8522 = vadd.f32 %v8521, %v8444
    %v8523 = vadd.f32 %v8522, %v8447
    %v8524 = vadd.f32 %v8523, %v8449
    %v8525 = vadd.f32 %v8524, %v8452
    %v8526 = vadd.f32 %v8525, %v8454
    %v8527 = vadd.f32 %v8526, %v8457
    %v8528 = vadd.f32 %v8527, %v8459
    %v8529 = vadd.f32 %v8528, %v8462
    %v8530 = vadd.f32 %v8529, %v8464
    %v8531 = vrot.slane %v8530, 4
    %v8532 = vadd.f32 %v8530, %v8531
    %v8533 = vrot.slane %v8532, 2
    %v8534 = vadd.f32 %v8532, %v8533
    %v8535 = vrot.slane %v8534, 1
    %v8536 = vadd.f32 %v8534, %v8535
    %v8537 = vmul.f32 %v8536, 0.001953125
    %v8538 = vmul.f32 %v8307, %v8307
    %v8539 = vmul.f32 %v8309, %v8309
    %v8540 = vmul.f32 %v8312, %v8312
    %v8541 = vmul.f32 %v8314, %v8314
    %v8542 = vmul.f32 %v8317, %v8317
    %v8543 = vmul.f32 %v8319, %v8319
    %v8544 = vmul.f32 %v8322, %v8322
    %v8545 = vmul.f32 %v8324, %v8324
    %v8546 = vmul.f32 %v8327, %v8327
    %v8547 = vmul.f32 %v8329, %v8329
    %v8548 = vmul.f32 %v8332, %v8332
    %v8549 = vmul.f32 %v8334, %v8334
    %v8550 = vmul.f32 %v8337, %v8337
    %v8551 = vmul.f32 %v8339, %v8339
    %v8552 = vmul.f32 %v8342, %v8342
    %v8553 = vmul.f32 %v8344, %v8344
    %v8554 = vmul.f32 %v8347, %v8347
    %v8555 = vmul.f32 %v8349, %v8349
    %v8556 = vmul.f32 %v8352, %v8352
    %v8557 = vmul.f32 %v8354, %v8354
    %v8558 = vmul.f32 %v8357, %v8357
    %v8559 = vmul.f32 %v8359, %v8359
    %v8560 = vmul.f32 %v8362, %v8362
    %v8561 = vmul.f32 %v8364, %v8364
    %v8562 = vmul.f32 %v8367, %v8367
    %v8563 = vmul.f32 %v8369, %v8369
    %v8564 = vmul.f32 %v8372, %v8372
    %v8565 = vmul.f32 %v8374, %v8374
    %v8566 = vmul.f32 %v8377, %v8377
    %v8567 = vmul.f32 %v8379, %v8379
    %v8568 = vmul.f32 %v8382, %v8382
    %v8569 = vmul.f32 %v8384, %v8384
    %v8570 = vmul.f32 %v8387, %v8387
    %v8571 = vmul.f32 %v8389, %v8389
    %v8572 = vmul.f32 %v8392, %v8392
    %v8573 = vmul.f32 %v8394, %v8394
    %v8574 = vmul.f32 %v8397, %v8397
    %v8575 = vmul.f32 %v8399, %v8399
    %v8576 = vmul.f32 %v8402, %v8402
    %v8577 = vmul.f32 %v8404, %v8404
    %v8578 = vmul.f32 %v8407, %v8407
    %v8579 = vmul.f32 %v8409, %v8409
    %v8580 = vmul.f32 %v8412, %v8412
    %v8581 = vmul.f32 %v8414, %v8414
    %v8582 = vmul.f32 %v8417, %v8417
    %v8583 = vmul.f32 %v8419, %v8419
    %v8584 = vmul.f32 %v8422, %v8422
    %v8585 = vmul.f32 %v8424, %v8424
    %v8586 = vmul.f32 %v8427, %v8427
    %v8587 = vmul.f32 %v8429, %v8429
    %v8588 = vmul.f32 %v8432, %v8432
    %v8589 = vmul.f32 %v8434, %v8434
    %v8590 = vmul.f32 %v8437, %v8437
    %v8591 = vmul.f32 %v8439, %v8439
    %v8592 = vmul.f32 %v8442, %v8442
    %v8593 = vmul.f32 %v8444, %v8444
    %v8594 = vmul.f32 %v8447, %v8447
    %v8595 = vmul.f32 %v8449, %v8449
    %v8596 = vmul.f32 %v8452, %v8452
    %v8597 = vmul.f32 %v8454, %v8454
    %v8598 = vmul.f32 %v8457, %v8457
    %v8599 = vmul.f32 %v8459, %v8459
    %v8600 = vmul.f32 %v8462, %v8462
    %v8601 = vmul.f32 %v8464, %v8464
    %v8602 = vadd.f32 %v8538, %v8539
    %v8603 = vadd.f32 %v8602, %v8540
    %v8604 = vadd.f32 %v8603, %v8541
    %v8605 = vadd.f32 %v8604, %v8542
    %v8606 = vadd.f32 %v8605, %v8543
    %v8607 = vadd.f32 %v8606, %v8544
    %v8608 = vadd.f32 %v8607, %v8545
    %v8609 = vadd.f32 %v8608, %v8546
    %v8610 = vadd.f32 %v8609, %v8547
    %v8611 = vadd.f32 %v8610, %v8548
    %v8612 = vadd.f32 %v8611, %v8549
    %v8613 = vadd.f32 %v8612, %v8550
    %v8614 = vadd.f32 %v8613, %v8551
    %v8615 = vadd.f32 %v8614, %v8552
    %v8616 = vadd.f32 %v8615, %v8553
    %v8617 = vadd.f32 %v8616, %v8554
    %v8618 = vadd.f32 %v8617, %v8555
    %v8619 = vadd.f32 %v8618, %v8556
    %v8620 = vadd.f32 %v8619, %v8557
    %v8621 = vadd.f32 %v8620, %v8558
    %v8622 = vadd.f32 %v8621, %v8559
    %v8623 = vadd.f32 %v8622, %v8560
    %v8624 = vadd.f32 %v8623, %v8561
    %v8625 = vadd.f32 %v8624, %v8562
    %v8626 = vadd.f32 %v8625, %v8563
    %v8627 = vadd.f32 %v8626, %v8564
    %v8628 = vadd.f32 %v8627, %v8565
    %v8629 = vadd.f32 %v8628, %v8566
    %v8630 = vadd.f32 %v8629, %v8567
    %v8631 = vadd.f32 %v8630, %v8568
    %v8632 = vadd.f32 %v8631, %v8569
    %v8633 = vadd.f32 %v8632, %v8570
    %v8634 = vadd.f32 %v8633, %v8571
    %v8635 = vadd.f32 %v8634, %v8572
    %v8636 = vadd.f32 %v8635, %v8573
    %v8637 = vadd.f32 %v8636, %v8574
    %v8638 = vadd.f32 %v8637, %v8575
    %v8639 = vadd.f32 %v8638, %v8576
    %v8640 = vadd.f32 %v8639, %v8577
    %v8641 = vadd.f32 %v8640, %v8578
    %v8642 = vadd.f32 %v8641, %v8579
    %v8643 = vadd.f32 %v8642, %v8580
    %v8644 = vadd.f32 %v8643, %v8581
    %v8645 = vadd.f32 %v8644, %v8582
    %v8646 = vadd.f32 %v8645, %v8583
    %v8647 = vadd.f32 %v8646, %v8584
    %v8648 = vadd.f32 %v8647, %v8585
    %v8649 = vadd.f32 %v8648, %v8586
    %v8650 = vadd.f32 %v8649, %v8587
    %v8651 = vadd.f32 %v8650, %v8588
    %v8652 = vadd.f32 %v8651, %v8589
    %v8653 = vadd.f32 %v8652, %v8590
    %v8654 = vadd.f32 %v8653, %v8591
    %v8655 = vadd.f32 %v8654, %v8592
    %v8656 = vadd.f32 %v8655, %v8593
    %v8657 = vadd.f32 %v8656, %v8594
    %v8658 = vadd.f32 %v8657, %v8595
    %v8659 = vadd.f32 %v8658, %v8596
    %v8660 = vadd.f32 %v8659, %v8597
    %v8661 = vadd.f32 %v8660, %v8598
    %v8662 = vadd.f32 %v8661, %v8599
    %v8663 = vadd.f32 %v8662, %v8600
    %v8664 = vadd.f32 %v8663, %v8601
    %v8665 = vrot.slane %v8664, 4
    %v8666 = vadd.f32 %v8664, %v8665
    %v8667 = vrot.slane %v8666, 2
    %v8668 = vadd.f32 %v8666, %v8667
    %v8669 = vrot.slane %v8668, 1
    %v8670 = vadd.f32 %v8668, %v8669
    %v8671 = vmul.f32 %v8670, 0.001953125
    %v8672 = vmul.f32 %v8537, %v8537
    %v8673 = vsub.f32 %v8671, %v8672
    %v8674 = vmax.f32 %v8673, 0.0
    %v8675 = vsub.f32 %v8307, %v8537
    %v8676 = vsub.f32 %v8309, %v8537
    %v8677 = vsub.f32 %v8312, %v8537
    %v8678 = vsub.f32 %v8314, %v8537
    %v8679 = vsub.f32 %v8317, %v8537
    %v8680 = vsub.f32 %v8319, %v8537
    %v8681 = vsub.f32 %v8322, %v8537
    %v8682 = vsub.f32 %v8324, %v8537
    %v8683 = vsub.f32 %v8327, %v8537
    %v8684 = vsub.f32 %v8329, %v8537
    %v8685 = vsub.f32 %v8332, %v8537
    %v8686 = vsub.f32 %v8334, %v8537
    %v8687 = vsub.f32 %v8337, %v8537
    %v8688 = vsub.f32 %v8339, %v8537
    %v8689 = vsub.f32 %v8342, %v8537
    %v8690 = vsub.f32 %v8344, %v8537
    %v8691 = vsub.f32 %v8347, %v8537
    %v8692 = vsub.f32 %v8349, %v8537
    %v8693 = vsub.f32 %v8352, %v8537
    %v8694 = vsub.f32 %v8354, %v8537
    %v8695 = vsub.f32 %v8357, %v8537
    %v8696 = vsub.f32 %v8359, %v8537
    %v8697 = vsub.f32 %v8362, %v8537
    %v8698 = vsub.f32 %v8364, %v8537
    %v8699 = vsub.f32 %v8367, %v8537
    %v8700 = vsub.f32 %v8369, %v8537
    %v8701 = vsub.f32 %v8372, %v8537
    %v8702 = vsub.f32 %v8374, %v8537
    %v8703 = vsub.f32 %v8377, %v8537
    %v8704 = vsub.f32 %v8379, %v8537
    %v8705 = vsub.f32 %v8382, %v8537
    %v8706 = vsub.f32 %v8384, %v8537
    %v8707 = vsub.f32 %v8387, %v8537
    %v8708 = vsub.f32 %v8389, %v8537
    %v8709 = vsub.f32 %v8392, %v8537
    %v8710 = vsub.f32 %v8394, %v8537
    %v8711 = vsub.f32 %v8397, %v8537
    %v8712 = vsub.f32 %v8399, %v8537
    %v8713 = vsub.f32 %v8402, %v8537
    %v8714 = vsub.f32 %v8404, %v8537
    %v8715 = vsub.f32 %v8407, %v8537
    %v8716 = vsub.f32 %v8409, %v8537
    %v8717 = vsub.f32 %v8412, %v8537
    %v8718 = vsub.f32 %v8414, %v8537
    %v8719 = vsub.f32 %v8417, %v8537
    %v8720 = vsub.f32 %v8419, %v8537
    %v8721 = vsub.f32 %v8422, %v8537
    %v8722 = vsub.f32 %v8424, %v8537
    %v8723 = vsub.f32 %v8427, %v8537
    %v8724 = vsub.f32 %v8429, %v8537
    %v8725 = vsub.f32 %v8432, %v8537
    %v8726 = vsub.f32 %v8434, %v8537
    %v8727 = vsub.f32 %v8437, %v8537
    %v8728 = vsub.f32 %v8439, %v8537
    %v8729 = vsub.f32 %v8442, %v8537
    %v8730 = vsub.f32 %v8444, %v8537
    %v8731 = vsub.f32 %v8447, %v8537
    %v8732 = vsub.f32 %v8449, %v8537
    %v8733 = vsub.f32 %v8452, %v8537
    %v8734 = vsub.f32 %v8454, %v8537
    %v8735 = vsub.f32 %v8457, %v8537
    %v8736 = vsub.f32 %v8459, %v8537
    %v8737 = vsub.f32 %v8462, %v8537
    %v8738 = vsub.f32 %v8464, %v8537
    %v8739 = vadd.f32 %v8674, 1e-05
    %v8740 = vrsqrt.pop %v8739
    %v8741 = vmul.f32 %v8740, %v8739
    %v8742 = vmul.f32 %v8741, %v8740
    %v8743 = vmul.f32 0.5, %v8742
    %v8744 = vsub.f32 1.5, %v8743
    %v8745 = vmul.f32 %v8740, %v8744
    %vm8746 = vweird.f32 %v8739
    %vm8747 = vweird.f32 %v8740
    %vm8748 = vmor %vm8746, %vm8747
    %v8749 = vsel %vm8748, %v8740, %v8745
    %v8750 = vmul.f32 %v8675, %v8749
    %v8751 = vmul.f32 %v8676, %v8749
    %v8752 = vmul.f32 %v8677, %v8749
    %v8753 = vmul.f32 %v8678, %v8749
    %v8754 = vmul.f32 %v8679, %v8749
    %v8755 = vmul.f32 %v8680, %v8749
    %v8756 = vmul.f32 %v8681, %v8749
    %v8757 = vmul.f32 %v8682, %v8749
    %v8758 = vmul.f32 %v8683, %v8749
    %v8759 = vmul.f32 %v8684, %v8749
    %v8760 = vmul.f32 %v8685, %v8749
    %v8761 = vmul.f32 %v8686, %v8749
    %v8762 = vmul.f32 %v8687, %v8749
    %v8763 = vmul.f32 %v8688, %v8749
    %v8764 = vmul.f32 %v8689, %v8749
    %v8765 = vmul.f32 %v8690, %v8749
    %v8766 = vmul.f32 %v8691, %v8749
    %v8767 = vmul.f32 %v8692, %v8749
    %v8768 = vmul.f32 %v8693, %v8749
    %v8769 = vmul.f32 %v8694, %v8749
    %v8770 = vmul.f32 %v8695, %v8749
    %v8771 = vmul.f32 %v8696, %v8749
    %v8772 = vmul.f32 %v8697, %v8749
    %v8773 = vmul.f32 %v8698, %v8749
    %v8774 = vmul.f32 %v8699, %v8749
    %v8775 = vmul.f32 %v8700, %v8749
    %v8776 = vmul.f32 %v8701, %v8749
    %v8777 = vmul.f32 %v8702, %v8749
    %v8778 = vmul.f32 %v8703, %v8749
    %v8779 = vmul.f32 %v8704, %v8749
    %v8780 = vmul.f32 %v8705, %v8749
    %v8781 = vmul.f32 %v8706, %v8749
    %v8782 = vmul.f32 %v8707, %v8749
    %v8783 = vmul.f32 %v8708, %v8749
    %v8784 = vmul.f32 %v8709, %v8749
    %v8785 = vmul.f32 %v8710, %v8749
    %v8786 = vmul.f32 %v8711, %v8749
    %v8787 = vmul.f32 %v8712, %v8749
    %v8788 = vmul.f32 %v8713, %v8749
    %v8789 = vmul.f32 %v8714, %v8749
    %v8790 = vmul.f32 %v8715, %v8749
    %v8791 = vmul.f32 %v8716, %v8749
    %v8792 = vmul.f32 %v8717, %v8749
    %v8793 = vmul.f32 %v8718, %v8749
    %v8794 = vmul.f32 %v8719, %v8749
    %v8795 = vmul.f32 %v8720, %v8749
    %v8796 = vmul.f32 %v8721, %v8749
    %v8797 = vmul.f32 %v8722, %v8749
    %v8798 = vmul.f32 %v8723, %v8749
    %v8799 = vmul.f32 %v8724, %v8749
    %v8800 = vmul.f32 %v8725, %v8749
    %v8801 = vmul.f32 %v8726, %v8749
    %v8802 = vmul.f32 %v8727, %v8749
    %v8803 = vmul.f32 %v8728, %v8749
    %v8804 = vmul.f32 %v8729, %v8749
    %v8805 = vmul.f32 %v8730, %v8749
    %v8806 = vmul.f32 %v8731, %v8749
    %v8807 = vmul.f32 %v8732, %v8749
    %v8808 = vmul.f32 %v8733, %v8749
    %v8809 = vmul.f32 %v8734, %v8749
    %v8810 = vmul.f32 %v8735, %v8749
    %v8811 = vmul.f32 %v8736, %v8749
    %v8812 = vmul.f32 %v8737, %v8749
    %v8813 = vmul.f32 %v8738, %v8749
    %v8815 = vperm.slane %v8466, 0
    %v8817 = vmul.f32 %v8750, %v8815
    %v8818 = vmul.f32 %v8751, %v8815
    %v8819 = vmul.f32 %v8752, %v8815
    %v8820 = vmul.f32 %v8753, %v8815
    %v8821 = vmul.f32 %v8754, %v8815
    %v8822 = vmul.f32 %v8755, %v8815
    %v8823 = vmul.f32 %v8756, %v8815
    %v8824 = vmul.f32 %v8757, %v8815
    %v8825 = vmul.f32 %v8758, %v8815
    %v8826 = vmul.f32 %v8759, %v8815
    %v8827 = vmul.f32 %v8760, %v8815
    %v8828 = vmul.f32 %v8761, %v8815
    %v8829 = vmul.f32 %v8762, %v8815
    %v8830 = vmul.f32 %v8763, %v8815
    %v8831 = vmul.f32 %v8764, %v8815
    %v8832 = vmul.f32 %v8765, %v8815
    %v8833 = vmul.f32 %v8766, %v8815
    %v8834 = vmul.f32 %v8767, %v8815
    %v8835 = vmul.f32 %v8768, %v8815
    %v8836 = vmul.f32 %v8769, %v8815
    %v8837 = vmul.f32 %v8770, %v8815
    %v8838 = vmul.f32 %v8771, %v8815
    %v8839 = vmul.f32 %v8772, %v8815
    %v8840 = vmul.f32 %v8773, %v8815
    %v8841 = vmul.f32 %v8774, %v8815
    %v8842 = vmul.f32 %v8775, %v8815
    %v8843 = vmul.f32 %v8776, %v8815
    %v8844 = vmul.f32 %v8777, %v8815
    %v8845 = vmul.f32 %v8778, %v8815
    %v8846 = vmul.f32 %v8779, %v8815
    %v8847 = vmul.f32 %v8780, %v8815
    %v8848 = vmul.f32 %v8781, %v8815
    %v8849 = vmul.f32 %v8782, %v8815
    %v8850 = vmul.f32 %v8783, %v8815
    %v8851 = vmul.f32 %v8784, %v8815
    %v8852 = vmul.f32 %v8785, %v8815
    %v8853 = vmul.f32 %v8786, %v8815
    %v8854 = vmul.f32 %v8787, %v8815
    %v8855 = vmul.f32 %v8788, %v8815
    %v8856 = vmul.f32 %v8789, %v8815
    %v8857 = vmul.f32 %v8790, %v8815
    %v8858 = vmul.f32 %v8791, %v8815
    %v8859 = vmul.f32 %v8792, %v8815
    %v8860 = vmul.f32 %v8793, %v8815
    %v8861 = vmul.f32 %v8794, %v8815
    %v8862 = vmul.f32 %v8795, %v8815
    %v8863 = vmul.f32 %v8796, %v8815
    %v8864 = vmul.f32 %v8797, %v8815
    %v8865 = vmul.f32 %v8798, %v8815
    %v8866 = vmul.f32 %v8799, %v8815
    %v8867 = vmul.f32 %v8800, %v8815
    %v8868 = vmul.f32 %v8801, %v8815
    %v8869 = vmul.f32 %v8802, %v8815
    %v8870 = vmul.f32 %v8803, %v8815
    %v8871 = vmul.f32 %v8804, %v8815
    %v8872 = vmul.f32 %v8805, %v8815
    %v8873 = vmul.f32 %v8806, %v8815
    %v8874 = vmul.f32 %v8807, %v8815
    %v8875 = vmul.f32 %v8808, %v8815
    %v8876 = vmul.f32 %v8809, %v8815
    %v8877 = vmul.f32 %v8810, %v8815
    %v8878 = vmul.f32 %v8811, %v8815
    %v8879 = vmul.f32 %v8812, %v8815
    %v8880 = vmul.f32 %v8813, %v8815
    %v8882 = vperm.slane %v8467, 0
    %v8884 = vadd.f32 %v8817, %v8882
    %v8885 = vadd.f32 %v8818, %v8882
    %v8886 = vadd.f32 %v8819, %v8882
    %v8887 = vadd.f32 %v8820, %v8882
    %v8888 = vadd.f32 %v8821, %v8882
    %v8889 = vadd.f32 %v8822, %v8882
    %v8890 = vadd.f32 %v8823, %v8882
    %v8891 = vadd.f32 %v8824, %v8882
    %v8892 = vadd.f32 %v8825, %v8882
    %v8893 = vadd.f32 %v8826, %v8882
    %v8894 = vadd.f32 %v8827, %v8882
    %v8895 = vadd.f32 %v8828, %v8882
    %v8896 = vadd.f32 %v8829, %v8882
    %v8897 = vadd.f32 %v8830, %v8882
    %v8898 = vadd.f32 %v8831, %v8882
    %v8899 = vadd.f32 %v8832, %v8882
    %v8900 = vadd.f32 %v8833, %v8882
    %v8901 = vadd.f32 %v8834, %v8882
    %v8902 = vadd.f32 %v8835, %v8882
    %v8903 = vadd.f32 %v8836, %v8882
    %v8904 = vadd.f32 %v8837, %v8882
    %v8905 = vadd.f32 %v8838, %v8882
    %v8906 = vadd.f32 %v8839, %v8882
    %v8907 = vadd.f32 %v8840, %v8882
    %v8908 = vadd.f32 %v8841, %v8882
    %v8909 = vadd.f32 %v8842, %v8882
    %v8910 = vadd.f32 %v8843, %v8882
    %v8911 = vadd.f32 %v8844, %v8882
    %v8912 = vadd.f32 %v8845, %v8882
    %v8913 = vadd.f32 %v8846, %v8882
    %v8914 = vadd.f32 %v8847, %v8882
    %v8915 = vadd.f32 %v8848, %v8882
    %v8916 = vadd.f32 %v8849, %v8882
    %v8917 = vadd.f32 %v8850, %v8882
    %v8918 = vadd.f32 %v8851, %v8882
    %v8919 = vadd.f32 %v8852, %v8882
    %v8920 = vadd.f32 %v8853, %v8882
    %v8921 = vadd.f32 %v8854, %v8882
    %v8922 = vadd.f32 %v8855, %v8882
    %v8923 = vadd.f32 %v8856, %v8882
    %v8924 = vadd.f32 %v8857, %v8882
    %v8925 = vadd.f32 %v8858, %v8882
    %v8926 = vadd.f32 %v8859, %v8882
    %v8927 = vadd.f32 %v8860, %v8882
    %v8928 = vadd.f32 %v8861, %v8882
    %v8929 = vadd.f32 %v8862, %v8882
    %v8930 = vadd.f32 %v8863, %v8882
    %v8931 = vadd.f32 %v8864, %v8882
    %v8932 = vadd.f32 %v8865, %v8882
    %v8933 = vadd.f32 %v8866, %v8882
    %v8934 = vadd.f32 %v8867, %v8882
    %v8935 = vadd.f32 %v8868, %v8882
    %v8936 = vadd.f32 %v8869, %v8882
    %v8937 = vadd.f32 %v8870, %v8882
    %v8938 = vadd.f32 %v8871, %v8882
    %v8939 = vadd.f32 %v8872, %v8882
    %v8940 = vadd.f32 %v8873, %v8882
    %v8941 = vadd.f32 %v8874, %v8882
    %v8942 = vadd.f32 %v8875, %v8882
    %v8943 = vadd.f32 %v8876, %v8882
    %v8944 = vadd.f32 %v8877, %v8882
    %v8945 = vadd.f32 %v8878, %v8882
    %v8946 = vadd.f32 %v8879, %v8882
    %v8947 = vadd.f32 %v8880, %v8882
    %v8948 = vadd.f32 %v7685, %v8884
    %v8949 = vadd.f32 %v7686, %v8885
    %v8950 = vadd.f32 %v7687, %v8886
    %v8951 = vadd.f32 %v7688, %v8887
    %v8952 = vadd.f32 %v7689, %v8888
    %v8953 = vadd.f32 %v7690, %v8889
    %v8954 = vadd.f32 %v7691, %v8890
    %v8955 = vadd.f32 %v7692, %v8891
    %v8956 = vadd.f32 %v7693, %v8892
    %v8957 = vadd.f32 %v7694, %v8893
    %v8958 = vadd.f32 %v7695, %v8894
    %v8959 = vadd.f32 %v7696, %v8895
    %v8960 = vadd.f32 %v7697, %v8896
    %v8961 = vadd.f32 %v7698, %v8897
    %v8962 = vadd.f32 %v7699, %v8898
    %v8963 = vadd.f32 %v7700, %v8899
    %v8964 = vadd.f32 %v7701, %v8900
    %v8965 = vadd.f32 %v7702, %v8901
    %v8966 = vadd.f32 %v7703, %v8902
    %v8967 = vadd.f32 %v7704, %v8903
    %v8968 = vadd.f32 %v7705, %v8904
    %v8969 = vadd.f32 %v7706, %v8905
    %v8970 = vadd.f32 %v7707, %v8906
    %v8971 = vadd.f32 %v7708, %v8907
    %v8972 = vadd.f32 %v7709, %v8908
    %v8973 = vadd.f32 %v7710, %v8909
    %v8974 = vadd.f32 %v7711, %v8910
    %v8975 = vadd.f32 %v7712, %v8911
    %v8976 = vadd.f32 %v7713, %v8912
    %v8977 = vadd.f32 %v7714, %v8913
    %v8978 = vadd.f32 %v7715, %v8914
    %v8979 = vadd.f32 %v7716, %v8915
    %v8980 = vadd.f32 %v7717, %v8916
    %v8981 = vadd.f32 %v7718, %v8917
    %v8982 = vadd.f32 %v7719, %v8918
    %v8983 = vadd.f32 %v7720, %v8919
    %v8984 = vadd.f32 %v7721, %v8920
    %v8985 = vadd.f32 %v7722, %v8921
    %v8986 = vadd.f32 %v7723, %v8922
    %v8987 = vadd.f32 %v7724, %v8923
    %v8988 = vadd.f32 %v7725, %v8924
    %v8989 = vadd.f32 %v7726, %v8925
    %v8990 = vadd.f32 %v7727, %v8926
    %v8991 = vadd.f32 %v7728, %v8927
    %v8992 = vadd.f32 %v7729, %v8928
    %v8993 = vadd.f32 %v7730, %v8929
    %v8994 = vadd.f32 %v7731, %v8930
    %v8995 = vadd.f32 %v7732, %v8931
    %v8996 = vadd.f32 %v7733, %v8932
    %v8997 = vadd.f32 %v7734, %v8933
    %v8998 = vadd.f32 %v7735, %v8934
    %v8999 = vadd.f32 %v7736, %v8935
    %v9000 = vadd.f32 %v7737, %v8936
    %v9001 = vadd.f32 %v7738, %v8937
    %v9002 = vadd.f32 %v7739, %v8938
    %v9003 = vadd.f32 %v7740, %v8939
    %v9004 = vadd.f32 %v7741, %v8940
    %v9005 = vadd.f32 %v7742, %v8941
    %v9006 = vadd.f32 %v7743, %v8942
    %v9007 = vadd.f32 %v7744, %v8943
    %v9008 = vadd.f32 %v7745, %v8944
    %v9009 = vadd.f32 %v7746, %v8945
    %v9010 = vadd.f32 %v7747, %v8946
    %v9011 = vadd.f32 %v7748, %v8947
    %v9012 = vmax.f32 %v8948, 0.0
    %v9013 = vmax.f32 %v8949, 0.0
    %v9014 = vmax.f32 %v8950, 0.0
    %v9015 = vmax.f32 %v8951, 0.0
    %v9016 = vmax.f32 %v8952, 0.0
    %v9017 = vmax.f32 %v8953, 0.0
    %v9018 = vmax.f32 %v8954, 0.0
    %v9019 = vmax.f32 %v8955, 0.0
    %v9020 = vmax.f32 %v8956, 0.0
    %v9021 = vmax.f32 %v8957, 0.0
    %v9022 = vmax.f32 %v8958, 0.0
    %v9023 = vmax.f32 %v8959, 0.0
    %v9024 = vmax.f32 %v8960, 0.0
    %v9025 = vmax.f32 %v8961, 0.0
    %v9026 = vmax.f32 %v8962, 0.0
    %v9027 = vmax.f32 %v8963, 0.0
    %v9028 = vmax.f32 %v8964, 0.0
    %v9029 = vmax.f32 %v8965, 0.0
    %v9030 = vmax.f32 %v8966, 0.0
    %v9031 = vmax.f32 %v8967, 0.0
    %v9032 = vmax.f32 %v8968, 0.0
    %v9033 = vmax.f32 %v8969, 0.0
    %v9034 = vmax.f32 %v8970, 0.0
    %v9035 = vmax.f32 %v8971, 0.0
    %v9036 = vmax.f32 %v8972, 0.0
    %v9037 = vmax.f32 %v8973, 0.0
    %v9038 = vmax.f32 %v8974, 0.0
    %v9039 = vmax.f32 %v8975, 0.0
    %v9040 = vmax.f32 %v8976, 0.0
    %v9041 = vmax.f32 %v8977, 0.0
    %v9042 = vmax.f32 %v8978, 0.0
    %v9043 = vmax.f32 %v8979, 0.0
    %v9044 = vmax.f32 %v8980, 0.0
    %v9045 = vmax.f32 %v8981, 0.0
    %v9046 = vmax.f32 %v8982, 0.0
    %v9047 = vmax.f32 %v8983, 0.0
    %v9048 = vmax.f32 %v8984, 0.0
    %v9049 = vmax.f32 %v8985, 0.0
    %v9050 = vmax.f32 %v8986, 0.0
    %v9051 = vmax.f32 %v8987, 0.0
    %v9052 = vmax.f32 %v8988, 0.0
    %v9053 = vmax.f32 %v8989, 0.0
    %v9054 = vmax.f32 %v8990, 0.0
    %v9055 = vmax.f32 %v8991, 0.0
    %v9056 = vmax.f32 %v8992, 0.0
    %v9057 = vmax.f32 %v8993, 0.0
    %v9058 = vmax.f32 %v8994, 0.0
    %v9059 = vmax.f32 %v8995, 0.0
    %v9060 = vmax.f32 %v8996, 0.0
    %v9061 = vmax.f32 %v8997, 0.0
    %v9062 = vmax.f32 %v8998, 0.0
    %v9063 = vmax.f32 %v8999, 0.0
    %v9064 = vmax.f32 %v9000, 0.0
    %v9065 = vmax.f32 %v9001, 0.0
    %v9066 = vmax.f32 %v9002, 0.0
    %v9067 = vmax.f32 %v9003, 0.0
    %v9068 = vmax.f32 %v9004, 0.0
    %v9069 = vmax.f32 %v9005, 0.0
    %v9070 = vmax.f32 %v9006, 0.0
    %v9071 = vmax.f32 %v9007, 0.0
    %v9072 = vmax.f32 %v9008, 0.0
    %v9073 = vmax.f32 %v9009, 0.0
    %v9074 = vmax.f32 %v9010, 0.0
    %v9075 = vmax.f32 %v9011, 0.0
    %9076 = vst [vmem:[#allocation4] sm:$0xff] %v9012
    %9077 = vst [vmem:[#allocation4 + $0x8] sm:$0xff] %v9013
    %9078 = vst [vmem:[#allocation4 + $0x10] sm:$0xff] %v9014
    %9079 = vst [vmem:[#allocation4 + $0x18] sm:$0xff] %v9015
    %9080 = vst [vmem:[#allocation4 + $0x20] sm:$0xff] %v9016
    %9081 = vst [vmem:[#allocation4 + $0x28] sm:$0xff] %v9017
    %9082 = vst [vmem:[#allocation4 + $0x30] sm:$0xff] %v9018
    %9083 = vst [vmem:[#allocation4 + $0x38] sm:$0xff] %v9019
    %9084 = vst [vmem:[#allocation4 + $0x40] sm:$0xff] %v9020
    %9085 = vst [vmem:[#allocation4 + $0x48] sm:$0xff] %v9021
    %9086 = vst [vmem:[#allocation4 + $0x50] sm:$0xff] %v9022
    %9087 = vst [vmem:[#allocation4 + $0x58] sm:$0xff] %v9023
    %9088 = vst [vmem:[#allocation4 + $0x60] sm:$0xff] %v9024
    %9089 = vst [vmem:[#allocation4 + $0x68] sm:$0xff] %v9025
    %9090 = vst [vmem:[#allocation4 + $0x70] sm:$0xff] %v9026
    %9091 = vst [vmem:[#allocation4 + $0x78] sm:$0xff] %v9027
    %9092 = vst [vmem:[#allocation4 + $0x80] sm:$0xff] %v9028
    %9093 = vst [vmem:[#allocation4 + $0x88] sm:$0xff] %v9029
    %9094 = vst [vmem:[#allocation4 + $0x90] sm:$0xff] %v9030
    %9095 = vst [vmem:[#allocation4 + $0x98] sm:$0xff] %v9031
    %9096 = vst [vmem:[#allocation4 + $0xa0] sm:$0xff] %v9032
    %9097 = vst [vmem:[#allocation4 + $0xa8] sm:$0xff] %v9033
    %9098 = vst [vmem:[#allocation4 + $0xb0] sm:$0xff] %v9034
    %9099 = vst [vmem:[#allocation4 + $0xb8] sm:$0xff] %v9035
    %9100 = vst [vmem:[#allocation4 + $0xc0] sm:$0xff] %v9036
    %9101 = vst [vmem:[#allocation4 + $0xc8] sm:$0xff] %v9037
    %9102 = vst [vmem:[#allocation4 + $0xd0] sm:$0xff] %v9038
    %9103 = vst [vmem:[#allocation4 + $0xd8] sm:$0xff] %v9039
    %9104 = vst [vmem:[#allocation4 + $0xe0] sm:$0xff] %v9040
    %9105 = vst [vmem:[#allocation4 + $0xe8] sm:$0xff] %v9041
    %9106 = vst [vmem:[#allocation4 + $0xf0] sm:$0xff] %v9042
    %9107 = vst [vmem:[#allocation4 + $0xf8] sm:$0xff] %v9043
    %9108 = vst [vmem:[#allocation4 + $0x100] sm:$0xff] %v9044
    %9109 = vst [vmem:[#allocation4 + $0x108] sm:$0xff] %v9045
    %9110 = vst [vmem:[#allocation4 + $0x110] sm:$0xff] %v9046
    %9111 = vst [vmem:[#allocation4 + $0x118] sm:$0xff] %v9047
    %9112 = vst [vmem:[#allocation4 + $0x120] sm:$0xff] %v9048
    %9113 = vst [vmem:[#allocation4 + $0x128] sm:$0xff] %v9049
    %9114 = vst [vmem:[#allocation4 + $0x130] sm:$0xff] %v9050
    %9115 = vst [vmem:[#allocation4 + $0x138] sm:$0xff] %v9051
    %9116 = vst [vmem:[#allocation4 + $0x140] sm:$0xff] %v9052
    %9117 = vst [vmem:[#allocation4 + $0x148] sm:$0xff] %v9053
    %9118 = vst [vmem:[#allocation4 + $0x150] sm:$0xff] %v9054
    %9119 = vst [vmem:[#allocation4 + $0x158] sm:$0xff] %v9055
    %9120 = vst [vmem:[#allocation4 + $0x160] sm:$0xff] %v9056
    %9121 = vst [vmem:[#allocation4 + $0x168] sm:$0xff] %v9057
    %9122 = vst [vmem:[#allocation4 + $0x170] sm:$0xff] %v9058
    %9123 = vst [vmem:[#allocation4 + $0x178] sm:$0xff] %v9059
    %9124 = vst [vmem:[#allocation4 + $0x180] sm:$0xff] %v9060
    %9125 = vst [vmem:[#allocation4 + $0x188] sm:$0xff] %v9061
    %9126 = vst [vmem:[#allocation4 + $0x190] sm:$0xff] %v9062
    %9127 = vst [vmem:[#allocation4 + $0x198] sm:$0xff] %v9063
    %9128 = vst [vmem:[#allocation4 + $0x1a0] sm:$0xff] %v9064
    %9129 = vst [vmem:[#allocation4 + $0x1a8] sm:$0xff] %v9065
    %9130 = vst [vmem:[#allocation4 + $0x1b0] sm:$0xff] %v9066
    %9131 = vst [vmem:[#allocation4 + $0x1b8] sm:$0xff] %v9067
    %9132 = vst [vmem:[#allocation4 + $0x1c0] sm:$0xff] %v9068
    %9133 = vst [vmem:[#allocation4 + $0x1c8] sm:$0xff] %v9069
    %9134 = vst [vmem:[#allocation4 + $0x1d0] sm:$0xff] %v9070
    %9135 = vst [vmem:[#allocation4 + $0x1d8] sm:$0xff] %v9071
    %9136 = vst [vmem:[#allocation4 + $0x1e0] sm:$0xff] %v9072
    %9137 = vst [vmem:[#allocation4 + $0x1e8] sm:$0xff] %v9073
    %9138 = vst [vmem:[#allocation4 + $0x1f0] sm:$0xff] %v9074
    %9139 = vst [vmem:[#allocation4 + $0x1f8] sm:$0xff] %v9075
    // Predicated region
    $region42: #{tpu_custom_call.1} parent=1 // pred_check
      _
    $region43: #{tpu_custom_call.1} parent=1 // pred_check_branch
      %9141 = sbr.rel (0) target = $region45
    $region44: #{tpu_custom_call.1} parent=1 // pred_region
      %9143 = vsyncadd [#allocation5], 0
      %s9144 = sshll.u32 [#allocation4], 4
      %s9145 = int_to_ptr.vmem [resolvable:$true] %s9144
      %s9146 = sshll.u32 %s10, 4
      %s9147 = int_to_ptr.hbm [resolvable:$true] %s9146
      %9152 = dma.vmem_to_hbm [thread:$0]  %s9145, 8192, %s9147, [#allocation5], 128, 128, 8
    $region45: #{tpu_custom_call.1} parent=1 // pred_fallthru
      _
    // Predicated region
    $region46: #{tpu_custom_call.1} parent=1 // pred_check
      _
    $region47: #{tpu_custom_call.1} parent=1 // pred_check_branch
      %9154 = sbr.rel (0) target = $region49
    $region48: #{tpu_custom_call.1} parent=1 // pred_region
      %9156 = dma.done [#allocation5], 8192
    $region49: #{tpu_custom_call.1} parent=1 // pred_fallthru
      _
    %9157 = vsyncpa [#allocation5], 1

</llo_original>
